<compile_context>
chip_gen: v7x
topology: tpu7x:2x2x1
jax: 0.10.0
libtpu: 0.0.40
codegen_flags: <defaults>
</compile_context>

<pallas_src>
import math
import functools

import jax
import jax.numpy as jnp
from jax.experimental import pallas as pl
from jax.experimental.pallas import tpu as pltpu


# --------------------------------------------------------------------------
# Kernel
# --------------------------------------------------------------------------

def _mhatt_kernel(q_ref, k_ref, v_ref,
                  wq_ref, wk_ref, wv_ref, wm_ref, b_ref,
                  o_ref, *, n_batch, seq, head, head_size, fused_merge):
    """One grid step processes `n_batch` batch elements (R = n_batch*seq rows).

    Shapes seen by the kernel (H = head * head_size):
      q/k/v_ref        : (R, H)   compute dtype (f32 or bf16)
      wq/wk/wv/wm_ref  : (H, H)   compute dtype (1/sqrt(hs) folded into Wq)
      b_ref            : (4, H)   f32 rows = [bq*scale, bk, bv, bm]
      o_ref            : (R, H)   caller dtype
    """
    cdt = q_ref.dtype
    rows = n_batch * seq

    def project(x_ref, w_ref, bias_row):
        # Full-width (R,H)@(H,H) matmul on the MXU, f32 accumulation, f32 bias.
        y = jnp.dot(x_ref[...], w_ref[...], preferred_element_type=jnp.float32)
        return (y + bias_row).astype(cdt)

    yq = project(q_ref, wq_ref, b_ref[0, :])   # 1/sqrt(hs) pre-folded into Wq/bq
    yk = project(k_ref, wk_ref, b_ref[1, :])
    yv = project(v_ref, wv_ref, b_ref[2, :])

    ctx_parts = []
    for h in range(head):                      # static unroll over heads
        lo = h * head_size
        hi = lo + head_size
        # Static lane slice per head + sublane relabel (tb*N, hs) -> (tb, N, hs)
        # (free when N is a multiple of 8; trivial unit-dim add when tb == 1).
        qh = yq[:, lo:hi].reshape(n_batch, seq, head_size)
        kh = yk[:, lo:hi].reshape(n_batch, seq, head_size)
        vh = yv[:, lo:hi].reshape(n_batch, seq, head_size)

        # Scores: batched last-dim contraction (no explicit K transpose), f32.
        s = jnp.einsum("bnd,bmd->bnm", qh, kh,
                       preferred_element_type=jnp.float32)        # (tb, N, N)

        # Numerically-stable softmax in f32; EUP reciprocal for the denominator.
        s = s - jnp.max(s, axis=-1, keepdims=True)
        p = jnp.exp(s)
        p = p * pl.reciprocal(jnp.sum(p, axis=-1, keepdims=True), approx=True)
        # TODO(synk): optional mask (-65504 fill) / train-mode dropout go here.

        ctx = jnp.einsum("bnm,bmd->bnd", p.astype(cdt), vh,
                         preferred_element_type=jnp.float32)      # (tb, N, hs)
        ctx_parts.append(ctx.reshape(rows, head_size).astype(cdt))

    if fused_merge:
        # Lane-dense (R, H) context slab -> one full-depth merge matmul (K = H).
        ctx_all = ctx_parts[0] if head == 1 else jnp.concatenate(ctx_parts, axis=-1)
        out = jnp.dot(ctx_all, wm_ref[...], preferred_element_type=jnp.float32)
    else:
        # Conservative fallback: per-head merge accumulation (K = hs depth).
        out = None
        for h in range(head):
            wm_h = wm_ref[h * head_size:(h + 1) * head_size, :]   # (hs, H) row slice
            part = jnp.dot(ctx_parts[h], wm_h,
                           preferred_element_type=jnp.float32)
            out = part if out is None else out + part

    out = out + b_ref[3, :]
    o_ref[...] = out.astype(o_ref.dtype)


# --------------------------------------------------------------------------
# Generation-aware sizing helpers
# --------------------------------------------------------------------------

def _vmem_capacity_bytes():
    try:
        info = pltpu.get_tpu_info()
        cap = getattr(info, "vmem_capacity_bytes", None)
        if cap:
            return int(cap)
    except Exception:
        pass
    return 64 * 1024 * 1024          # conservative default: v7x per-TC VMEM


def _vmem_estimate(tb, seq, hidden, itemsize):
    """Rough per-grid-step VMEM bytes (pipelined I/O + kernel temporaries)."""
    rows = tb * seq
    act_io = 2 * 4 * rows * hidden * itemsize        # q, k, v, out blocks, double-buffered
    weights = 4 * hidden * hidden * itemsize + 4 * hidden * 4
    proj = 3 * rows * hidden * 4                     # yq / yk / yv (f32 upper bound)
    scores = 2 * rows * seq * 4                      # one head's s + exp(s), f32
    ctx = 2 * rows * hidden * 4                      # ctx slab + merge accumulator
    return act_io + weights + proj + scores + ctx


def _pick_block_batch(batch, seq, hidden, itemsize, row_target, budget):
    """Pick tb (batch elements per grid step): row-aligned divisor of `batch`,
    <= row_target rows, keeping >= min(4, batch) grid steps, within VMEM budget."""
    row_align = 8 if itemsize >= 4 else (16 if itemsize == 2 else 32)
    divisors = [d for d in range(1, batch + 1) if batch % d == 0]
    # full-batch block is always layout-legal (block == full array dims)
    cands = sorted({d for d in divisors if (d * seq) % row_align == 0} | {batch})
    min_steps = min(4, batch)
    good = [d for d in cands
            if d * seq <= max(row_target, seq) and batch // d >= min_steps]
    tb = max(good) if good else min(cands)
    while _vmem_estimate(tb, seq, hidden, itemsize) > budget:
        smaller = [d for d in cands if d < tb]
        if not smaller:
            break
        tb = max(smaller)
    return tb


# --------------------------------------------------------------------------
# Wrapper
# --------------------------------------------------------------------------

def mhatt_pallas(q, k, v, params, *, head=8, block_batch=None,
                 compute_dtype=jnp.bfloat16):
    """q, k, v: (B, N, H). params: PyTorch-layout (out,in) weights, (H,) biases.

    compute_dtype is the MXU input dtype (bf16 by default — the native MXU path
    on v5e/v6e/v7x). Accumulation and softmax are always f32; the result is
    returned in the caller's dtype.
    """
    B, N, H = q.shape
    assert H % head == 0, "hidden_dim must be divisible by head"
    hs = H // head                   # matches the module's int(hidden_dim / 8) for head=8
    out_dtype = q.dtype
    cdt = jnp.dtype(compute_dtype)
    itemsize = cdt.itemsize

    # Generation-aware VMEM budget / block sizing (64 MiB v7x vs 128 MiB v5e/v6e).
    vmem_cap = _vmem_capacity_bytes()
    vmem_limit = min(int(vmem_cap * 0.75), 100 * 1024 * 1024)   # ~96 MiB v5e/v6e, 48 MiB v7x
    row_target = 512 if vmem_cap >= 96 * 1024 * 1024 else 256

    if block_batch is None:
        tb = _pick_block_batch(B, N, H, itemsize, row_target,
                               budget=int(0.6 * vmem_limit))
    else:
        tb = block_batch
        assert B % tb == 0, "block_batch must divide B"

    # Weight preprocessing (wrapper-side XLA, one-time): PyTorch Linear is
    # y = x @ W.T + b, so transpose to (H_in, H_out); fold 1/sqrt(hs) into Q.
    scale = 1.0 / math.sqrt(hs)

    def w_t(name):
        return jnp.asarray(params[name], jnp.float32).T

    wq_t = (w_t("wq") * scale).astype(cdt)
    wk_t = w_t("wk").astype(cdt)
    wv_t = w_t("wv").astype(cdt)
    wm_t = w_t("wm").astype(cdt)
    biases = jnp.stack([jnp.asarray(params["bq"], jnp.float32) * scale,
                        jnp.asarray(params["bk"], jnp.float32),
                        jnp.asarray(params["bv"], jnp.float32),
                        jnp.asarray(params["bm"], jnp.float32)], axis=0)   # (4, H) f32

    # Lane-dense (B*N, H) row slabs in the MXU compute dtype.
    q2 = q.reshape(B * N, H).astype(cdt)
    k2 = k.reshape(B * N, H).astype(cdt)
    v2 = v.reshape(B * N, H).astype(cdt)

    def call(single_buffer_weights, fused_merge):
        kernel = functools.partial(_mhatt_kernel, n_batch=tb, seq=N,
                                   head=head, head_size=hs,
                                   fused_merge=fused_merge)
        spec_kw = {}
        if single_buffer_weights:
            # Constant-index blocks do not need double buffering.
            spec_kw = dict(pipeline_mode=pl.Buffered(1))
        x_spec = pl.BlockSpec((tb * N, H), lambda i: (i, 0))
        w_spec = pl.BlockSpec((H, H), lambda i: (0, 0), **spec_kw)
        b_spec = pl.BlockSpec((4, H), lambda i: (0, 0), **spec_kw)
        return pl.pallas_call(
            kernel,
            out_shape=jax.ShapeDtypeStruct((B * N, H), out_dtype),
            grid_spec=pltpu.PrefetchScalarGridSpec(
                num_scalar_prefetch=0,
                grid=(B // tb,),
                in_specs=[x_spec, x_spec, x_spec,
                          w_spec, w_spec, w_spec, w_spec, b_spec],
                out_specs=x_spec,
            ),
            compiler_params=pltpu.CompilerParams(
                dimension_semantics=("parallel",),     # megacore batch sharding on v7x
                vmem_limit_bytes=vmem_limit,
            ),
        )(q2, k2, v2, wq_t, wk_t, wv_t, wm_t, biases)

    try:
        out2 = jax.block_until_ready(call(single_buffer_weights=True,
                                          fused_merge=True))
    except Exception:
        # Fallback for JAX/Mosaic versions lacking pipeline_mode on pallas_call
        # specs or unaligned lane concatenation: default buffering + per-head
        # merge accumulation (same math, slightly lower MXU occupancy).
        out2 = call(single_buffer_weights=False, fused_merge=False)

    return out2.reshape(B, N, H)


# --------------------------------------------------------------------------
# Pure-JAX reference mirroring the PyTorch forward (eval mode, mask=None).
# --------------------------------------------------------------------------

def mhatt_reference(q, k, v, params, *, head=8):
    B, N, H = q.shape
    hs = H // head

    def lin(x, w, b):                      # PyTorch layout: y = x @ W.T + b
        return x @ w.T + b

    def split(x):                          # (B, N, H) -> (B, head, N, hs)
        return x.reshape(B, N, head, hs).transpose(0, 2, 1, 3)

    vv = split(lin(v, params["wv"], params["bv"]))
    kk = split(lin(k, params["wk"], params["bk"]))
    qq = split(lin(q, params["wq"], params["bq"]))

    scores = jnp.einsum("bhnd,bhmd->bhnm", qq, kk) / math.sqrt(hs)
    att = jax.nn.softmax(scores, axis=-1)
    out = jnp.einsum("bhnm,bhmd->bhnd", att, vv).transpose(0, 2, 1, 3).reshape(B, N, H)
    return lin(out, params["wm"], params["bm"])


def init_params(key, hidden_dim):
    """Deterministic nn.Linear-style init, PyTorch (out, in) weight layout."""
    ks = jax.random.split(key, 8)
    bound = 1.0 / math.sqrt(hidden_dim)

    def w(kk):
        return jax.random.uniform(kk, (hidden_dim, hidden_dim), jnp.float32, -bound, bound)

    def b(kk):
        return jax.random.uniform(kk, (hidden_dim,), jnp.float32, -bound, bound)

    return {"wv": w(ks[0]), "bv": b(ks[1]),
            "wk": w(ks[2]), "bk": b(ks[3]),
            "wq": w(ks[4]), "bq": b(ks[5]),
            "wm": w(ks[6]), "bm": b(ks[7])}


if __name__ == "__main__":
    B, N, H, HEAD = 2, 16, 32, 8           # head_size = 4

    key = jax.random.PRNGKey(0)
    kq, kk, kv, kp = jax.random.split(key, 4)
    q = jax.random.normal(kq, (B, N, H), jnp.float32)
    k = jax.random.normal(kk, (B, N, H), jnp.float32)
    v = jax.random.normal(kv, (B, N, H), jnp.float32)
    params = init_params(kp, H)

    ref = mhatt_reference(q, k, v, params, head=HEAD)

    # f32-compute path (tight tolerance vs the JAX reference).
    out_f32 = jax.block_until_ready(
        mhatt_pallas(q, k, v, params, head=HEAD, compute_dtype=jnp.float32))
    assert out_f32.shape == (B, N, H)
    assert jnp.allclose(out_f32, ref, atol=5e-3, rtol=5e-3), "f32 mismatch vs JAX reference"

    # Default bf16-MXU / f32-accumulate path (perf feedback #10); looser tolerance.
    out_bf16 = jax.block_until_ready(
        mhatt_pallas(q, k, v, params, head=HEAD))          # compute_dtype=bf16 default
    assert out_bf16.shape == (B, N, H)
    assert jnp.allclose(out_bf16.astype(jnp.float32), ref, atol=1e-1, rtol=1e-1), \
        "bf16 mismatch vs JAX reference"

    print("KERNEL_OK")
</pallas_src>

<mosaic_0001>
module attributes {stable_mosaic.version = 11 : i64} {
  func.func @_mhatt_kernel(%arg0: i32, %arg1: memref<16x32xf32, #tpu.memory_space<vmem>>, %arg2: memref<16x32xf32, #tpu.memory_space<vmem>>, %arg3: memref<16x32xf32, #tpu.memory_space<vmem>>, %arg4: memref<32x32xf32, #tpu.memory_space<vmem>>, %arg5: memref<32x32xf32, #tpu.memory_space<vmem>>, %arg6: memref<32x32xf32, #tpu.memory_space<vmem>>, %arg7: memref<32x32xf32, #tpu.memory_space<vmem>>, %arg8: memref<4x32xf32, #tpu.memory_space<vmem>>, %arg9: memref<16x32xf32, #tpu.memory_space<vmem>>) attributes {dimension_semantics = [#tpu.dimension_semantics<parallel>], iteration_bounds = array<i64: 2>, scalar_prefetch = 0 : i64, scratch_operands = 0 : i64, tpu.core_type = #tpu.core_type<tc>, window_params = [{transform_indices = @transform_0, window_bounds = array<i64: 16, 32>}, {transform_indices = @transform_1, window_bounds = array<i64: 16, 32>}, {transform_indices = @transform_2, window_bounds = array<i64: 16, 32>}, {pipeline_mode = #tpu.pipeline_mode<synchronous>, transform_indices = @transform_3, window_bounds = array<i64: 32, 32>}, {pipeline_mode = #tpu.pipeline_mode<synchronous>, transform_indices = @transform_4, window_bounds = array<i64: 32, 32>}, {pipeline_mode = #tpu.pipeline_mode<synchronous>, transform_indices = @transform_5, window_bounds = array<i64: 32, 32>}, {pipeline_mode = #tpu.pipeline_mode<synchronous>, transform_indices = @transform_6, window_bounds = array<i64: 32, 32>}, {pipeline_mode = #tpu.pipeline_mode<synchronous>, transform_indices = @transform_7, window_bounds = array<i64: 4, 32>}, {transform_indices = @transform_8, window_bounds = array<i64: 16, 32>}]} {
    %c0 = arith.constant 0 : index
    %c0_0 = arith.constant 0 : index
    %0 = vector.load %arg8[%c0, %c0_0] : memref<4x32xf32, #tpu.memory_space<vmem>>, vector<1x32xf32>
    %1 = vector.shape_cast %0 : vector<1x32xf32> to vector<32xf32>
    %c0_1 = arith.constant 0 : index
    %c0_2 = arith.constant 0 : index
    %2 = vector.load %arg1[%c0_1, %c0_2] : memref<16x32xf32, #tpu.memory_space<vmem>>, vector<16x32xf32>
    %c0_3 = arith.constant 0 : index
    %c0_4 = arith.constant 0 : index
    %3 = vector.load %arg4[%c0_3, %c0_4] : memref<32x32xf32, #tpu.memory_space<vmem>>, vector<32x32xf32>
    %cst = arith.constant dense<0.000000e+00> : vector<16x32xf32>
    %4 = tpu.matmul %2, %3, %cst {dimension_numbers = #tpu.dot_dimension_numbers<[1], [0], [0], [1], [0, 0, 1, 1], [], []>} : vector<16x32xf32>, vector<32x32xf32>, vector<16x32xf32> -> vector<16x32xf32>
    %5 = vector.shape_cast %1 : vector<32xf32> to vector<1x32xf32>
    %6 = vector.broadcast %5 : vector<1x32xf32> to vector<16x32xf32>
    %7 = arith.addf %4, %6 : vector<16x32xf32>
    %c1 = arith.constant 1 : index
    %c0_5 = arith.constant 0 : index
    %8 = vector.load %arg8[%c1, %c0_5] : memref<4x32xf32, #tpu.memory_space<vmem>>, vector<1x32xf32>
    %9 = vector.shape_cast %8 : vector<1x32xf32> to vector<32xf32>
    %c0_6 = arith.constant 0 : index
    %c0_7 = arith.constant 0 : index
    %10 = vector.load %arg2[%c0_6, %c0_7] : memref<16x32xf32, #tpu.memory_space<vmem>>, vector<16x32xf32>
    %c0_8 = arith.constant 0 : index
    %c0_9 = arith.constant 0 : index
    %11 = vector.load %arg5[%c0_8, %c0_9] : memref<32x32xf32, #tpu.memory_space<vmem>>, vector<32x32xf32>
    %cst_10 = arith.constant dense<0.000000e+00> : vector<16x32xf32>
    %12 = tpu.matmul %10, %11, %cst_10 {dimension_numbers = #tpu.dot_dimension_numbers<[1], [0], [0], [1], [0, 0, 1, 1], [], []>} : vector<16x32xf32>, vector<32x32xf32>, vector<16x32xf32> -> vector<16x32xf32>
    %13 = vector.shape_cast %9 : vector<32xf32> to vector<1x32xf32>
    %14 = vector.broadcast %13 : vector<1x32xf32> to vector<16x32xf32>
    %15 = arith.addf %12, %14 : vector<16x32xf32>
    %c2 = arith.constant 2 : index
    %c0_11 = arith.constant 0 : index
    %16 = vector.load %arg8[%c2, %c0_11] : memref<4x32xf32, #tpu.memory_space<vmem>>, vector<1x32xf32>
    %17 = vector.shape_cast %16 : vector<1x32xf32> to vector<32xf32>
    %c0_12 = arith.constant 0 : index
    %c0_13 = arith.constant 0 : index
    %18 = vector.load %arg3[%c0_12, %c0_13] : memref<16x32xf32, #tpu.memory_space<vmem>>, vector<16x32xf32>
    %c0_14 = arith.constant 0 : index
    %c0_15 = arith.constant 0 : index
    %19 = vector.load %arg6[%c0_14, %c0_15] : memref<32x32xf32, #tpu.memory_space<vmem>>, vector<32x32xf32>
    %cst_16 = arith.constant dense<0.000000e+00> : vector<16x32xf32>
    %20 = tpu.matmul %18, %19, %cst_16 {dimension_numbers = #tpu.dot_dimension_numbers<[1], [0], [0], [1], [0, 0, 1, 1], [], []>} : vector<16x32xf32>, vector<32x32xf32>, vector<16x32xf32> -> vector<16x32xf32>
    %21 = vector.shape_cast %17 : vector<32xf32> to vector<1x32xf32>
    %22 = vector.broadcast %21 : vector<1x32xf32> to vector<16x32xf32>
    %23 = arith.addf %20, %22 : vector<16x32xf32>
    %24 = vector.extract_strided_slice %7 {offsets = [0, 0], sizes = [16, 4], strides = [1, 1]} : vector<16x32xf32> to vector<16x4xf32>
    %25 = vector.shape_cast %24 : vector<16x4xf32> to vector<1x16x4xf32>
    %26 = vector.extract_strided_slice %15 {offsets = [0, 0], sizes = [16, 4], strides = [1, 1]} : vector<16x32xf32> to vector<16x4xf32>
    %27 = vector.shape_cast %26 : vector<16x4xf32> to vector<1x16x4xf32>
    %28 = vector.extract_strided_slice %23 {offsets = [0, 0], sizes = [16, 4], strides = [1, 1]} : vector<16x32xf32> to vector<16x4xf32>
    %29 = vector.shape_cast %28 : vector<16x4xf32> to vector<1x16x4xf32>
    "tpu.trace_start"() <{level = 10 : i32, message = "bnd,bmd->bnm"}> : () -> ()
    %cst_17 = arith.constant dense<0.000000e+00> : vector<1x16x16xf32>
    %30 = tpu.matmul %25, %27, %cst_17 {dimension_numbers = #tpu.dot_dimension_numbers<[2], [2], [1], [1], [0, 0, 0, 1, 1, 1], [0], [0]>} : vector<1x16x4xf32>, vector<1x16x4xf32>, vector<1x16x16xf32> -> vector<1x16x16xf32>
    "tpu.trace_stop"() : () -> ()
    %cst_18 = arith.constant dense<0xFF800000> : vector<1x16xf32>
    %31 = vector.multi_reduction <maximumf>, %30, %cst_18 [2] : vector<1x16x16xf32> to vector<1x16xf32>
    %32 = vector.shape_cast %31 : vector<1x16xf32> to vector<1x16x1xf32>
    %33 = vector.broadcast %32 : vector<1x16x1xf32> to vector<1x16x16xf32>
    %34 = arith.subf %30, %33 : vector<1x16x16xf32>
    %35 = math.exp %34 : vector<1x16x16xf32>
    %cst_19 = arith.constant dense<0.000000e+00> : vector<1x16xf32>
    %36 = vector.multi_reduction <add>, %35, %cst_19 [2] : vector<1x16x16xf32> to vector<1x16xf32>
    %37 = vector.shape_cast %36 : vector<1x16xf32> to vector<1x16x1xf32>
    %38 = tpu.reciprocal %37 {approx = true} : vector<1x16x1xf32> -> vector<1x16x1xf32>
    %39 = vector.broadcast %38 : vector<1x16x1xf32> to vector<1x16x16xf32>
    %40 = arith.mulf %35, %39 : vector<1x16x16xf32>
    "tpu.trace_start"() <{level = 10 : i32, message = "bnm,bmd->bnd"}> : () -> ()
    %cst_20 = arith.constant dense<0.000000e+00> : vector<1x16x4xf32>
    %41 = tpu.matmul %40, %29, %cst_20 {dimension_numbers = #tpu.dot_dimension_numbers<[2], [1], [1], [2], [0, 0, 0, 1, 1, 2], [0], [0]>} : vector<1x16x16xf32>, vector<1x16x4xf32>, vector<1x16x4xf32> -> vector<1x16x4xf32>
    "tpu.trace_stop"() : () -> ()
    %42 = vector.shape_cast %41 : vector<1x16x4xf32> to vector<16x4xf32>
    %43 = vector.extract_strided_slice %7 {offsets = [0, 4], sizes = [16, 4], strides = [1, 1]} : vector<16x32xf32> to vector<16x4xf32>
    %44 = vector.shape_cast %43 : vector<16x4xf32> to vector<1x16x4xf32>
    %45 = vector.extract_strided_slice %15 {offsets = [0, 4], sizes = [16, 4], strides = [1, 1]} : vector<16x32xf32> to vector<16x4xf32>
    %46 = vector.shape_cast %45 : vector<16x4xf32> to vector<1x16x4xf32>
    %47 = vector.extract_strided_slice %23 {offsets = [0, 4], sizes = [16, 4], strides = [1, 1]} : vector<16x32xf32> to vector<16x4xf32>
    %48 = vector.shape_cast %47 : vector<16x4xf32> to vector<1x16x4xf32>
    "tpu.trace_start"() <{level = 10 : i32, message = "bnd,bmd->bnm"}> : () -> ()
    %cst_21 = arith.constant dense<0.000000e+00> : vector<1x16x16xf32>
    %49 = tpu.matmul %44, %46, %cst_21 {dimension_numbers = #tpu.dot_dimension_numbers<[2], [2], [1], [1], [0, 0, 0, 1, 1, 1], [0], [0]>} : vector<1x16x4xf32>, vector<1x16x4xf32>, vector<1x16x16xf32> -> vector<1x16x16xf32>
    "tpu.trace_stop"() : () -> ()
    %cst_22 = arith.constant dense<0xFF800000> : vector<1x16xf32>
    %50 = vector.multi_reduction <maximumf>, %49, %cst_22 [2] : vector<1x16x16xf32> to vector<1x16xf32>
    %51 = vector.shape_cast %50 : vector<1x16xf32> to vector<1x16x1xf32>
    %52 = vector.broadcast %51 : vector<1x16x1xf32> to vector<1x16x16xf32>
    %53 = arith.subf %49, %52 : vector<1x16x16xf32>
    %54 = math.exp %53 : vector<1x16x16xf32>
    %cst_23 = arith.constant dense<0.000000e+00> : vector<1x16xf32>
    %55 = vector.multi_reduction <add>, %54, %cst_23 [2] : vector<1x16x16xf32> to vector<1x16xf32>
    %56 = vector.shape_cast %55 : vector<1x16xf32> to vector<1x16x1xf32>
    %57 = tpu.reciprocal %56 {approx = true} : vector<1x16x1xf32> -> vector<1x16x1xf32>
    %58 = vector.broadcast %57 : vector<1x16x1xf32> to vector<1x16x16xf32>
    %59 = arith.mulf %54, %58 : vector<1x16x16xf32>
    "tpu.trace_start"() <{level = 10 : i32, message = "bnm,bmd->bnd"}> : () -> ()
    %cst_24 = arith.constant dense<0.000000e+00> : vector<1x16x4xf32>
    %60 = tpu.matmul %59, %48, %cst_24 {dimension_numbers = #tpu.dot_dimension_numbers<[2], [1], [1], [2], [0, 0, 0, 1, 1, 2], [0], [0]>} : vector<1x16x16xf32>, vector<1x16x4xf32>, vector<1x16x4xf32> -> vector<1x16x4xf32>
    "tpu.trace_stop"() : () -> ()
    %61 = vector.shape_cast %60 : vector<1x16x4xf32> to vector<16x4xf32>
    %62 = vector.extract_strided_slice %7 {offsets = [0, 8], sizes = [16, 4], strides = [1, 1]} : vector<16x32xf32> to vector<16x4xf32>
    %63 = vector.shape_cast %62 : vector<16x4xf32> to vector<1x16x4xf32>
    %64 = vector.extract_strided_slice %15 {offsets = [0, 8], sizes = [16, 4], strides = [1, 1]} : vector<16x32xf32> to vector<16x4xf32>
    %65 = vector.shape_cast %64 : vector<16x4xf32> to vector<1x16x4xf32>
    %66 = vector.extract_strided_slice %23 {offsets = [0, 8], sizes = [16, 4], strides = [1, 1]} : vector<16x32xf32> to vector<16x4xf32>
    %67 = vector.shape_cast %66 : vector<16x4xf32> to vector<1x16x4xf32>
    "tpu.trace_start"() <{level = 10 : i32, message = "bnd,bmd->bnm"}> : () -> ()
    %cst_25 = arith.constant dense<0.000000e+00> : vector<1x16x16xf32>
    %68 = tpu.matmul %63, %65, %cst_25 {dimension_numbers = #tpu.dot_dimension_numbers<[2], [2], [1], [1], [0, 0, 0, 1, 1, 1], [0], [0]>} : vector<1x16x4xf32>, vector<1x16x4xf32>, vector<1x16x16xf32> -> vector<1x16x16xf32>
    "tpu.trace_stop"() : () -> ()
    %cst_26 = arith.constant dense<0xFF800000> : vector<1x16xf32>
    %69 = vector.multi_reduction <maximumf>, %68, %cst_26 [2] : vector<1x16x16xf32> to vector<1x16xf32>
    %70 = vector.shape_cast %69 : vector<1x16xf32> to vector<1x16x1xf32>
    %71 = vector.broadcast %70 : vector<1x16x1xf32> to vector<1x16x16xf32>
    %72 = arith.subf %68, %71 : vector<1x16x16xf32>
    %73 = math.exp %72 : vector<1x16x16xf32>
    %cst_27 = arith.constant dense<0.000000e+00> : vector<1x16xf32>
    %74 = vector.multi_reduction <add>, %73, %cst_27 [2] : vector<1x16x16xf32> to vector<1x16xf32>
    %75 = vector.shape_cast %74 : vector<1x16xf32> to vector<1x16x1xf32>
    %76 = tpu.reciprocal %75 {approx = true} : vector<1x16x1xf32> -> vector<1x16x1xf32>
    %77 = vector.broadcast %76 : vector<1x16x1xf32> to vector<1x16x16xf32>
    %78 = arith.mulf %73, %77 : vector<1x16x16xf32>
    "tpu.trace_start"() <{level = 10 : i32, message = "bnm,bmd->bnd"}> : () -> ()
    %cst_28 = arith.constant dense<0.000000e+00> : vector<1x16x4xf32>
    %79 = tpu.matmul %78, %67, %cst_28 {dimension_numbers = #tpu.dot_dimension_numbers<[2], [1], [1], [2], [0, 0, 0, 1, 1, 2], [0], [0]>} : vector<1x16x16xf32>, vector<1x16x4xf32>, vector<1x16x4xf32> -> vector<1x16x4xf32>
    "tpu.trace_stop"() : () -> ()
    %80 = vector.shape_cast %79 : vector<1x16x4xf32> to vector<16x4xf32>
    %81 = vector.extract_strided_slice %7 {offsets = [0, 12], sizes = [16, 4], strides = [1, 1]} : vector<16x32xf32> to vector<16x4xf32>
    %82 = vector.shape_cast %81 : vector<16x4xf32> to vector<1x16x4xf32>
    %83 = vector.extract_strided_slice %15 {offsets = [0, 12], sizes = [16, 4], strides = [1, 1]} : vector<16x32xf32> to vector<16x4xf32>
    %84 = vector.shape_cast %83 : vector<16x4xf32> to vector<1x16x4xf32>
    %85 = vector.extract_strided_slice %23 {offsets = [0, 12], sizes = [16, 4], strides = [1, 1]} : vector<16x32xf32> to vector<16x4xf32>
    %86 = vector.shape_cast %85 : vector<16x4xf32> to vector<1x16x4xf32>
    "tpu.trace_start"() <{level = 10 : i32, message = "bnd,bmd->bnm"}> : () -> ()
    %cst_29 = arith.constant dense<0.000000e+00> : vector<1x16x16xf32>
    %87 = tpu.matmul %82, %84, %cst_29 {dimension_numbers = #tpu.dot_dimension_numbers<[2], [2], [1], [1], [0, 0, 0, 1, 1, 1], [0], [0]>} : vector<1x16x4xf32>, vector<1x16x4xf32>, vector<1x16x16xf32> -> vector<1x16x16xf32>
    "tpu.trace_stop"() : () -> ()
    %cst_30 = arith.constant dense<0xFF800000> : vector<1x16xf32>
    %88 = vector.multi_reduction <maximumf>, %87, %cst_30 [2] : vector<1x16x16xf32> to vector<1x16xf32>
    %89 = vector.shape_cast %88 : vector<1x16xf32> to vector<1x16x1xf32>
    %90 = vector.broadcast %89 : vector<1x16x1xf32> to vector<1x16x16xf32>
    %91 = arith.subf %87, %90 : vector<1x16x16xf32>
    %92 = math.exp %91 : vector<1x16x16xf32>
    %cst_31 = arith.constant dense<0.000000e+00> : vector<1x16xf32>
    %93 = vector.multi_reduction <add>, %92, %cst_31 [2] : vector<1x16x16xf32> to vector<1x16xf32>
    %94 = vector.shape_cast %93 : vector<1x16xf32> to vector<1x16x1xf32>
    %95 = tpu.reciprocal %94 {approx = true} : vector<1x16x1xf32> -> vector<1x16x1xf32>
    %96 = vector.broadcast %95 : vector<1x16x1xf32> to vector<1x16x16xf32>
    %97 = arith.mulf %92, %96 : vector<1x16x16xf32>
    "tpu.trace_start"() <{level = 10 : i32, message = "bnm,bmd->bnd"}> : () -> ()
    %cst_32 = arith.constant dense<0.000000e+00> : vector<1x16x4xf32>
    %98 = tpu.matmul %97, %86, %cst_32 {dimension_numbers = #tpu.dot_dimension_numbers<[2], [1], [1], [2], [0, 0, 0, 1, 1, 2], [0], [0]>} : vector<1x16x16xf32>, vector<1x16x4xf32>, vector<1x16x4xf32> -> vector<1x16x4xf32>
    "tpu.trace_stop"() : () -> ()
    %99 = vector.shape_cast %98 : vector<1x16x4xf32> to vector<16x4xf32>
    %100 = vector.extract_strided_slice %7 {offsets = [0, 16], sizes = [16, 4], strides = [1, 1]} : vector<16x32xf32> to vector<16x4xf32>
    %101 = vector.shape_cast %100 : vector<16x4xf32> to vector<1x16x4xf32>
    %102 = vector.extract_strided_slice %15 {offsets = [0, 16], sizes = [16, 4], strides = [1, 1]} : vector<16x32xf32> to vector<16x4xf32>
    %103 = vector.shape_cast %102 : vector<16x4xf32> to vector<1x16x4xf32>
    %104 = vector.extract_strided_slice %23 {offsets = [0, 16], sizes = [16, 4], strides = [1, 1]} : vector<16x32xf32> to vector<16x4xf32>
    %105 = vector.shape_cast %104 : vector<16x4xf32> to vector<1x16x4xf32>
    "tpu.trace_start"() <{level = 10 : i32, message = "bnd,bmd->bnm"}> : () -> ()
    %cst_33 = arith.constant dense<0.000000e+00> : vector<1x16x16xf32>
    %106 = tpu.matmul %101, %103, %cst_33 {dimension_numbers = #tpu.dot_dimension_numbers<[2], [2], [1], [1], [0, 0, 0, 1, 1, 1], [0], [0]>} : vector<1x16x4xf32>, vector<1x16x4xf32>, vector<1x16x16xf32> -> vector<1x16x16xf32>
    "tpu.trace_stop"() : () -> ()
    %cst_34 = arith.constant dense<0xFF800000> : vector<1x16xf32>
    %107 = vector.multi_reduction <maximumf>, %106, %cst_34 [2] : vector<1x16x16xf32> to vector<1x16xf32>
    %108 = vector.shape_cast %107 : vector<1x16xf32> to vector<1x16x1xf32>
    %109 = vector.broadcast %108 : vector<1x16x1xf32> to vector<1x16x16xf32>
    %110 = arith.subf %106, %109 : vector<1x16x16xf32>
    %111 = math.exp %110 : vector<1x16x16xf32>
    %cst_35 = arith.constant dense<0.000000e+00> : vector<1x16xf32>
    %112 = vector.multi_reduction <add>, %111, %cst_35 [2] : vector<1x16x16xf32> to vector<1x16xf32>
    %113 = vector.shape_cast %112 : vector<1x16xf32> to vector<1x16x1xf32>
    %114 = tpu.reciprocal %113 {approx = true} : vector<1x16x1xf32> -> vector<1x16x1xf32>
    %115 = vector.broadcast %114 : vector<1x16x1xf32> to vector<1x16x16xf32>
    %116 = arith.mulf %111, %115 : vector<1x16x16xf32>
    "tpu.trace_start"() <{level = 10 : i32, message = "bnm,bmd->bnd"}> : () -> ()
    %cst_36 = arith.constant dense<0.000000e+00> : vector<1x16x4xf32>
    %117 = tpu.matmul %116, %105, %cst_36 {dimension_numbers = #tpu.dot_dimension_numbers<[2], [1], [1], [2], [0, 0, 0, 1, 1, 2], [0], [0]>} : vector<1x16x16xf32>, vector<1x16x4xf32>, vector<1x16x4xf32> -> vector<1x16x4xf32>
    "tpu.trace_stop"() : () -> ()
    %118 = vector.shape_cast %117 : vector<1x16x4xf32> to vector<16x4xf32>
    %119 = vector.extract_strided_slice %7 {offsets = [0, 20], sizes = [16, 4], strides = [1, 1]} : vector<16x32xf32> to vector<16x4xf32>
    %120 = vector.shape_cast %119 : vector<16x4xf32> to vector<1x16x4xf32>
    %121 = vector.extract_strided_slice %15 {offsets = [0, 20], sizes = [16, 4], strides = [1, 1]} : vector<16x32xf32> to vector<16x4xf32>
    %122 = vector.shape_cast %121 : vector<16x4xf32> to vector<1x16x4xf32>
    %123 = vector.extract_strided_slice %23 {offsets = [0, 20], sizes = [16, 4], strides = [1, 1]} : vector<16x32xf32> to vector<16x4xf32>
    %124 = vector.shape_cast %123 : vector<16x4xf32> to vector<1x16x4xf32>
    "tpu.trace_start"() <{level = 10 : i32, message = "bnd,bmd->bnm"}> : () -> ()
    %cst_37 = arith.constant dense<0.000000e+00> : vector<1x16x16xf32>
    %125 = tpu.matmul %120, %122, %cst_37 {dimension_numbers = #tpu.dot_dimension_numbers<[2], [2], [1], [1], [0, 0, 0, 1, 1, 1], [0], [0]>} : vector<1x16x4xf32>, vector<1x16x4xf32>, vector<1x16x16xf32> -> vector<1x16x16xf32>
    "tpu.trace_stop"() : () -> ()
    %cst_38 = arith.constant dense<0xFF800000> : vector<1x16xf32>
    %126 = vector.multi_reduction <maximumf>, %125, %cst_38 [2] : vector<1x16x16xf32> to vector<1x16xf32>
    %127 = vector.shape_cast %126 : vector<1x16xf32> to vector<1x16x1xf32>
    %128 = vector.broadcast %127 : vector<1x16x1xf32> to vector<1x16x16xf32>
    %129 = arith.subf %125, %128 : vector<1x16x16xf32>
    %130 = math.exp %129 : vector<1x16x16xf32>
    %cst_39 = arith.constant dense<0.000000e+00> : vector<1x16xf32>
    %131 = vector.multi_reduction <add>, %130, %cst_39 [2] : vector<1x16x16xf32> to vector<1x16xf32>
    %132 = vector.shape_cast %131 : vector<1x16xf32> to vector<1x16x1xf32>
    %133 = tpu.reciprocal %132 {approx = true} : vector<1x16x1xf32> -> vector<1x16x1xf32>
    %134 = vector.broadcast %133 : vector<1x16x1xf32> to vector<1x16x16xf32>
    %135 = arith.mulf %130, %134 : vector<1x16x16xf32>
    "tpu.trace_start"() <{level = 10 : i32, message = "bnm,bmd->bnd"}> : () -> ()
    %cst_40 = arith.constant dense<0.000000e+00> : vector<1x16x4xf32>
    %136 = tpu.matmul %135, %124, %cst_40 {dimension_numbers = #tpu.dot_dimension_numbers<[2], [1], [1], [2], [0, 0, 0, 1, 1, 2], [0], [0]>} : vector<1x16x16xf32>, vector<1x16x4xf32>, vector<1x16x4xf32> -> vector<1x16x4xf32>
    "tpu.trace_stop"() : () -> ()
    %137 = vector.shape_cast %136 : vector<1x16x4xf32> to vector<16x4xf32>
    %138 = vector.extract_strided_slice %7 {offsets = [0, 24], sizes = [16, 4], strides = [1, 1]} : vector<16x32xf32> to vector<16x4xf32>
    %139 = vector.shape_cast %138 : vector<16x4xf32> to vector<1x16x4xf32>
    %140 = vector.extract_strided_slice %15 {offsets = [0, 24], sizes = [16, 4], strides = [1, 1]} : vector<16x32xf32> to vector<16x4xf32>
    %141 = vector.shape_cast %140 : vector<16x4xf32> to vector<1x16x4xf32>
    %142 = vector.extract_strided_slice %23 {offsets = [0, 24], sizes = [16, 4], strides = [1, 1]} : vector<16x32xf32> to vector<16x4xf32>
    %143 = vector.shape_cast %142 : vector<16x4xf32> to vector<1x16x4xf32>
    "tpu.trace_start"() <{level = 10 : i32, message = "bnd,bmd->bnm"}> : () -> ()
    %cst_41 = arith.constant dense<0.000000e+00> : vector<1x16x16xf32>
    %144 = tpu.matmul %139, %141, %cst_41 {dimension_numbers = #tpu.dot_dimension_numbers<[2], [2], [1], [1], [0, 0, 0, 1, 1, 1], [0], [0]>} : vector<1x16x4xf32>, vector<1x16x4xf32>, vector<1x16x16xf32> -> vector<1x16x16xf32>
    "tpu.trace_stop"() : () -> ()
    %cst_42 = arith.constant dense<0xFF800000> : vector<1x16xf32>
    %145 = vector.multi_reduction <maximumf>, %144, %cst_42 [2] : vector<1x16x16xf32> to vector<1x16xf32>
    %146 = vector.shape_cast %145 : vector<1x16xf32> to vector<1x16x1xf32>
    %147 = vector.broadcast %146 : vector<1x16x1xf32> to vector<1x16x16xf32>
    %148 = arith.subf %144, %147 : vector<1x16x16xf32>
    %149 = math.exp %148 : vector<1x16x16xf32>
    %cst_43 = arith.constant dense<0.000000e+00> : vector<1x16xf32>
    %150 = vector.multi_reduction <add>, %149, %cst_43 [2] : vector<1x16x16xf32> to vector<1x16xf32>
    %151 = vector.shape_cast %150 : vector<1x16xf32> to vector<1x16x1xf32>
    %152 = tpu.reciprocal %151 {approx = true} : vector<1x16x1xf32> -> vector<1x16x1xf32>
    %153 = vector.broadcast %152 : vector<1x16x1xf32> to vector<1x16x16xf32>
    %154 = arith.mulf %149, %153 : vector<1x16x16xf32>
    "tpu.trace_start"() <{level = 10 : i32, message = "bnm,bmd->bnd"}> : () -> ()
    %cst_44 = arith.constant dense<0.000000e+00> : vector<1x16x4xf32>
    %155 = tpu.matmul %154, %143, %cst_44 {dimension_numbers = #tpu.dot_dimension_numbers<[2], [1], [1], [2], [0, 0, 0, 1, 1, 2], [0], [0]>} : vector<1x16x16xf32>, vector<1x16x4xf32>, vector<1x16x4xf32> -> vector<1x16x4xf32>
    "tpu.trace_stop"() : () -> ()
    %156 = vector.shape_cast %155 : vector<1x16x4xf32> to vector<16x4xf32>
    %157 = vector.extract_strided_slice %7 {offsets = [0, 28], sizes = [16, 4], strides = [1, 1]} : vector<16x32xf32> to vector<16x4xf32>
    %158 = vector.shape_cast %157 : vector<16x4xf32> to vector<1x16x4xf32>
    %159 = vector.extract_strided_slice %15 {offsets = [0, 28], sizes = [16, 4], strides = [1, 1]} : vector<16x32xf32> to vector<16x4xf32>
    %160 = vector.shape_cast %159 : vector<16x4xf32> to vector<1x16x4xf32>
    %161 = vector.extract_strided_slice %23 {offsets = [0, 28], sizes = [16, 4], strides = [1, 1]} : vector<16x32xf32> to vector<16x4xf32>
    %162 = vector.shape_cast %161 : vector<16x4xf32> to vector<1x16x4xf32>
    "tpu.trace_start"() <{level = 10 : i32, message = "bnd,bmd->bnm"}> : () -> ()
    %cst_45 = arith.constant dense<0.000000e+00> : vector<1x16x16xf32>
    %163 = tpu.matmul %158, %160, %cst_45 {dimension_numbers = #tpu.dot_dimension_numbers<[2], [2], [1], [1], [0, 0, 0, 1, 1, 1], [0], [0]>} : vector<1x16x4xf32>, vector<1x16x4xf32>, vector<1x16x16xf32> -> vector<1x16x16xf32>
    "tpu.trace_stop"() : () -> ()
    %cst_46 = arith.constant dense<0xFF800000> : vector<1x16xf32>
    %164 = vector.multi_reduction <maximumf>, %163, %cst_46 [2] : vector<1x16x16xf32> to vector<1x16xf32>
    %165 = vector.shape_cast %164 : vector<1x16xf32> to vector<1x16x1xf32>
    %166 = vector.broadcast %165 : vector<1x16x1xf32> to vector<1x16x16xf32>
    %167 = arith.subf %163, %166 : vector<1x16x16xf32>
    %168 = math.exp %167 : vector<1x16x16xf32>
    %cst_47 = arith.constant dense<0.000000e+00> : vector<1x16xf32>
    %169 = vector.multi_reduction <add>, %168, %cst_47 [2] : vector<1x16x16xf32> to vector<1x16xf32>
    %170 = vector.shape_cast %169 : vector<1x16xf32> to vector<1x16x1xf32>
    %171 = tpu.reciprocal %170 {approx = true} : vector<1x16x1xf32> -> vector<1x16x1xf32>
    %172 = vector.broadcast %171 : vector<1x16x1xf32> to vector<1x16x16xf32>
    %173 = arith.mulf %168, %172 : vector<1x16x16xf32>
    "tpu.trace_start"() <{level = 10 : i32, message = "bnm,bmd->bnd"}> : () -> ()
    %cst_48 = arith.constant dense<0.000000e+00> : vector<1x16x4xf32>
    %174 = tpu.matmul %173, %162, %cst_48 {dimension_numbers = #tpu.dot_dimension_numbers<[2], [1], [1], [2], [0, 0, 0, 1, 1, 2], [0], [0]>} : vector<1x16x16xf32>, vector<1x16x4xf32>, vector<1x16x4xf32> -> vector<1x16x4xf32>
    "tpu.trace_stop"() : () -> ()
    %175 = vector.shape_cast %174 : vector<1x16x4xf32> to vector<16x4xf32>
    %176 = tpu.concatenate %42, %61, %80, %99, %118, %137, %156, %175 in 1 : vector<16x4xf32>, vector<16x4xf32>, vector<16x4xf32>, vector<16x4xf32>, vector<16x4xf32>, vector<16x4xf32>, vector<16x4xf32>, vector<16x4xf32> -> vector<16x32xf32>
    %c0_49 = arith.constant 0 : index
    %c0_50 = arith.constant 0 : index
    %177 = vector.load %arg7[%c0_49, %c0_50] : memref<32x32xf32, #tpu.memory_space<vmem>>, vector<32x32xf32>
    %cst_51 = arith.constant dense<0.000000e+00> : vector<16x32xf32>
    %178 = tpu.matmul %176, %177, %cst_51 {dimension_numbers = #tpu.dot_dimension_numbers<[1], [0], [0], [1], [0, 0, 1, 1], [], []>} : vector<16x32xf32>, vector<32x32xf32>, vector<16x32xf32> -> vector<16x32xf32>
    %c3 = arith.constant 3 : index
    %c0_52 = arith.constant 0 : index
    %179 = vector.load %arg8[%c3, %c0_52] : memref<4x32xf32, #tpu.memory_space<vmem>>, vector<1x32xf32>
    %180 = vector.shape_cast %179 : vector<1x32xf32> to vector<32xf32>
    %181 = vector.shape_cast %180 : vector<32xf32> to vector<1x32xf32>
    %182 = vector.broadcast %181 : vector<1x32xf32> to vector<16x32xf32>
    %183 = arith.addf %178, %182 : vector<16x32xf32>
    %c0_53 = arith.constant 0 : index
    %c0_54 = arith.constant 0 : index
    %184 = vector.load %arg9[%c0_53, %c0_54] : memref<16x32xf32, #tpu.memory_space<vmem>>, vector<16x32xf32>
    tpu.vector_store %arg9[%c0_53, %c0_54], %183 {strides = array<i32>} : memref<16x32xf32, #tpu.memory_space<vmem>>, vector<16x32xf32>,
    return
  }
  func.func @transform_0(%arg0: i32) -> (i32, i32) {
    %c0_i32 = arith.constant 0 : i32
    %c0_i32_0 = arith.constant 0 : i32
    return %arg0, %c0_i32 : i32, i32
  }
  func.func @transform_1(%arg0: i32) -> (i32, i32) {
    %c0_i32 = arith.constant 0 : i32
    %c0_i32_0 = arith.constant 0 : i32
    return %arg0, %c0_i32 : i32, i32
  }
  func.func @transform_2(%arg0: i32) -> (i32, i32) {
    %c0_i32 = arith.constant 0 : i32
    %c0_i32_0 = arith.constant 0 : i32
    return %arg0, %c0_i32 : i32, i32
  }
  func.func @transform_3(%arg0: i32) -> (i32, i32) {
    %c0_i32 = arith.constant 0 : i32
    %c0_i32_0 = arith.constant 0 : i32
    %c0_i32_1 = arith.constant 0 : i32
    return %c0_i32, %c0_i32_0 : i32, i32
  }
  func.func @transform_4(%arg0: i32) -> (i32, i32) {
    %c0_i32 = arith.constant 0 : i32
    %c0_i32_0 = arith.constant 0 : i32
    %c0_i32_1 = arith.constant 0 : i32
    return %c0_i32, %c0_i32_0 : i32, i32
  }
  func.func @transform_5(%arg0: i32) -> (i32, i32) {
    %c0_i32 = arith.constant 0 : i32
    %c0_i32_0 = arith.constant 0 : i32
    %c0_i32_1 = arith.constant 0 : i32
    return %c0_i32, %c0_i32_0 : i32, i32
  }
  func.func @transform_6(%arg0: i32) -> (i32, i32) {
    %c0_i32 = arith.constant 0 : i32
    %c0_i32_0 = arith.constant 0 : i32
    %c0_i32_1 = arith.constant 0 : i32
    return %c0_i32, %c0_i32_0 : i32, i32
  }
  func.func @transform_7(%arg0: i32) -> (i32, i32) {
    %c0_i32 = arith.constant 0 : i32
    %c0_i32_0 = arith.constant 0 : i32
    %c0_i32_1 = arith.constant 0 : i32
    return %c0_i32, %c0_i32_0 : i32, i32
  }
  func.func @transform_8(%arg0: i32) -> (i32, i32) {
    %c0_i32 = arith.constant 0 : i32
    %c0_i32_0 = arith.constant 0 : i32
    return %arg0, %c0_i32 : i32, i32
  }
}

module attributes {stable_mosaic.version = 11 : i64} {
  func.func @_mhatt_kernel(%arg0: i32, %arg1: memref<16x32xf32, #tpu.memory_space<vmem>>, %arg2: memref<16x32xf32, #tpu.memory_space<vmem>>, %arg3: memref<16x32xf32, #tpu.memory_space<vmem>>, %arg4: memref<32x32xf32, #tpu.memory_space<vmem>>, %arg5: memref<32x32xf32, #tpu.memory_space<vmem>>, %arg6: memref<32x32xf32, #tpu.memory_space<vmem>>, %arg7: memref<32x32xf32, #tpu.memory_space<vmem>>, %arg8: memref<4x32xf32, #tpu.memory_space<vmem>>, %arg9: memref<16x32xf32, #tpu.memory_space<vmem>>) attributes {dimension_semantics = [#tpu.dimension_semantics<parallel>], iteration_bounds = array<i64: 2>, scalar_prefetch = 0 : i64, scratch_operands = 0 : i64, tpu.core_type = #tpu.core_type<tc>, window_params = [{transform_indices = @transform_0, window_bounds = array<i64: 16, 32>}, {transform_indices = @transform_1, window_bounds = array<i64: 16, 32>}, {transform_indices = @transform_2, window_bounds = array<i64: 16, 32>}, {pipeline_mode = #tpu.pipeline_mode<synchronous>, transform_indices = @transform_3, window_bounds = array<i64: 32, 32>}, {pipeline_mode = #tpu.pipeline_mode<synchronous>, transform_indices = @transform_4, window_bounds = array<i64: 32, 32>}, {pipeline_mode = #tpu.pipeline_mode<synchronous>, transform_indices = @transform_5, window_bounds = array<i64: 32, 32>}, {pipeline_mode = #tpu.pipeline_mode<synchronous>, transform_indices = @transform_6, window_bounds = array<i64: 32, 32>}, {pipeline_mode = #tpu.pipeline_mode<synchronous>, transform_indices = @transform_7, window_bounds = array<i64: 4, 32>}, {transform_indices = @transform_8, window_bounds = array<i64: 16, 32>}]} {
    %c0 = arith.constant 0 : index
    %c0_0 = arith.constant 0 : index
    %0 = vector.load %arg8[%c0, %c0_0] : memref<4x32xf32, #tpu.memory_space<vmem>>, vector<1x32xf32>
    %1 = vector.shape_cast %0 : vector<1x32xf32> to vector<32xf32>
    %c0_1 = arith.constant 0 : index
    %c0_2 = arith.constant 0 : index
    %2 = vector.load %arg1[%c0_1, %c0_2] : memref<16x32xf32, #tpu.memory_space<vmem>>, vector<16x32xf32>
    %c0_3 = arith.constant 0 : index
    %c0_4 = arith.constant 0 : index
    %3 = vector.load %arg4[%c0_3, %c0_4] : memref<32x32xf32, #tpu.memory_space<vmem>>, vector<32x32xf32>
    %cst = arith.constant dense<0.000000e+00> : vector<16x32xf32>
    %4 = tpu.matmul %2, %3, %cst {dimension_numbers = #tpu.dot_dimension_numbers<[1], [0], [0], [1], [0, 0, 1, 1], [], []>} : vector<16x32xf32>, vector<32x32xf32>, vector<16x32xf32> -> vector<16x32xf32>
    %5 = vector.shape_cast %1 : vector<32xf32> to vector<1x32xf32>
    %6 = vector.broadcast %5 : vector<1x32xf32> to vector<16x32xf32>
    %7 = arith.addf %4, %6 : vector<16x32xf32>
    %c1 = arith.constant 1 : index
    %c0_5 = arith.constant 0 : index
    %8 = vector.load %arg8[%c1, %c0_5] : memref<4x32xf32, #tpu.memory_space<vmem>>, vector<1x32xf32>
    %9 = vector.shape_cast %8 : vector<1x32xf32> to vector<32xf32>
    %c0_6 = arith.constant 0 : index
    %c0_7 = arith.constant 0 : index
    %10 = vector.load %arg2[%c0_6, %c0_7] : memref<16x32xf32, #tpu.memory_space<vmem>>, vector<16x32xf32>
    %c0_8 = arith.constant 0 : index
    %c0_9 = arith.constant 0 : index
    %11 = vector.load %arg5[%c0_8, %c0_9] : memref<32x32xf32, #tpu.memory_space<vmem>>, vector<32x32xf32>
    %cst_10 = arith.constant dense<0.000000e+00> : vector<16x32xf32>
    %12 = tpu.matmul %10, %11, %cst_10 {dimension_numbers = #tpu.dot_dimension_numbers<[1], [0], [0], [1], [0, 0, 1, 1], [], []>} : vector<16x32xf32>, vector<32x32xf32>, vector<16x32xf32> -> vector<16x32xf32>
    %13 = vector.shape_cast %9 : vector<32xf32> to vector<1x32xf32>
    %14 = vector.broadcast %13 : vector<1x32xf32> to vector<16x32xf32>
    %15 = arith.addf %12, %14 : vector<16x32xf32>
    %c2 = arith.constant 2 : index
    %c0_11 = arith.constant 0 : index
    %16 = vector.load %arg8[%c2, %c0_11] : memref<4x32xf32, #tpu.memory_space<vmem>>, vector<1x32xf32>
    %17 = vector.shape_cast %16 : vector<1x32xf32> to vector<32xf32>
    %c0_12 = arith.constant 0 : index
    %c0_13 = arith.constant 0 : index
    %18 = vector.load %arg3[%c0_12, %c0_13] : memref<16x32xf32, #tpu.memory_space<vmem>>, vector<16x32xf32>
    %c0_14 = arith.constant 0 : index
    %c0_15 = arith.constant 0 : index
    %19 = vector.load %arg6[%c0_14, %c0_15] : memref<32x32xf32, #tpu.memory_space<vmem>>, vector<32x32xf32>
    %cst_16 = arith.constant dense<0.000000e+00> : vector<16x32xf32>
    %20 = tpu.matmul %18, %19, %cst_16 {dimension_numbers = #tpu.dot_dimension_numbers<[1], [0], [0], [1], [0, 0, 1, 1], [], []>} : vector<16x32xf32>, vector<32x32xf32>, vector<16x32xf32> -> vector<16x32xf32>
    %21 = vector.shape_cast %17 : vector<32xf32> to vector<1x32xf32>
    %22 = vector.broadcast %21 : vector<1x32xf32> to vector<16x32xf32>
    %23 = arith.addf %20, %22 : vector<16x32xf32>
    %24 = vector.extract_strided_slice %7 {offsets = [0, 0], sizes = [16, 4], strides = [1, 1]} : vector<16x32xf32> to vector<16x4xf32>
    %25 = vector.shape_cast %24 : vector<16x4xf32> to vector<1x16x4xf32>
    %26 = vector.extract_strided_slice %15 {offsets = [0, 0], sizes = [16, 4], strides = [1, 1]} : vector<16x32xf32> to vector<16x4xf32>
    %27 = vector.shape_cast %26 : vector<16x4xf32> to vector<1x16x4xf32>
    %28 = vector.extract_strided_slice %23 {offsets = [0, 0], sizes = [16, 4], strides = [1, 1]} : vector<16x32xf32> to vector<16x4xf32>
    %29 = vector.shape_cast %28 : vector<16x4xf32> to vector<1x16x4xf32>
    "tpu.trace_start"() <{level = 10 : i32, message = "bnd,bmd->bnm"}> : () -> ()
    %cst_17 = arith.constant dense<0.000000e+00> : vector<1x16x16xf32>
    %30 = tpu.matmul %25, %27, %cst_17 {dimension_numbers = #tpu.dot_dimension_numbers<[2], [2], [1], [1], [0, 0, 0, 1, 1, 1], [0], [0]>} : vector<1x16x4xf32>, vector<1x16x4xf32>, vector<1x16x16xf32> -> vector<1x16x16xf32>
    "tpu.trace_stop"() : () -> ()
    %cst_18 = arith.constant dense<0xFF800000> : vector<1x16xf32>
    %31 = vector.multi_reduction <maximumf>, %30, %cst_18 [2] : vector<1x16x16xf32> to vector<1x16xf32>
    %32 = vector.shape_cast %31 : vector<1x16xf32> to vector<1x16x1xf32>
    %33 = vector.broadcast %32 : vector<1x16x1xf32> to vector<1x16x16xf32>
    %34 = arith.subf %30, %33 : vector<1x16x16xf32>
    %35 = math.exp %34 : vector<1x16x16xf32>
    %cst_19 = arith.constant dense<0.000000e+00> : vector<1x16xf32>
    %36 = vector.multi_reduction <add>, %35, %cst_19 [2] : vector<1x16x16xf32> to vector<1x16xf32>
    %37 = vector.shape_cast %36 : vector<1x16xf32> to vector<1x16x1xf32>
    %38 = tpu.reciprocal %37 {approx = true} : vector<1x16x1xf32> -> vector<1x16x1xf32>
    %39 = vector.broadcast %38 : vector<1x16x1xf32> to vector<1x16x16xf32>
    %40 = arith.mulf %35, %39 : vector<1x16x16xf32>
    "tpu.trace_start"() <{level = 10 : i32, message = "bnm,bmd->bnd"}> : () -> ()
    %cst_20 = arith.constant dense<0.000000e+00> : vector<1x16x4xf32>
    %41 = tpu.matmul %40, %29, %cst_20 {dimension_numbers = #tpu.dot_dimension_numbers<[2], [1], [1], [2], [0, 0, 0, 1, 1, 2], [0], [0]>} : vector<1x16x16xf32>, vector<1x16x4xf32>, vector<1x16x4xf32> -> vector<1x16x4xf32>
    "tpu.trace_stop"() : () -> ()
    %42 = vector.shape_cast %41 : vector<1x16x4xf32> to vector<16x4xf32>
    %43 = vector.extract_strided_slice %7 {offsets = [0, 4], sizes = [16, 4], strides = [1, 1]} : vector<16x32xf32> to vector<16x4xf32>
    %44 = vector.shape_cast %43 : vector<16x4xf32> to vector<1x16x4xf32>
    %45 = vector.extract_strided_slice %15 {offsets = [0, 4], sizes = [16, 4], strides = [1, 1]} : vector<16x32xf32> to vector<16x4xf32>
    %46 = vector.shape_cast %45 : vector<16x4xf32> to vector<1x16x4xf32>
    %47 = vector.extract_strided_slice %23 {offsets = [0, 4], sizes = [16, 4], strides = [1, 1]} : vector<16x32xf32> to vector<16x4xf32>
    %48 = vector.shape_cast %47 : vector<16x4xf32> to vector<1x16x4xf32>
    "tpu.trace_start"() <{level = 10 : i32, message = "bnd,bmd->bnm"}> : () -> ()
    %cst_21 = arith.constant dense<0.000000e+00> : vector<1x16x16xf32>
    %49 = tpu.matmul %44, %46, %cst_21 {dimension_numbers = #tpu.dot_dimension_numbers<[2], [2], [1], [1], [0, 0, 0, 1, 1, 1], [0], [0]>} : vector<1x16x4xf32>, vector<1x16x4xf32>, vector<1x16x16xf32> -> vector<1x16x16xf32>
    "tpu.trace_stop"() : () -> ()
    %cst_22 = arith.constant dense<0xFF800000> : vector<1x16xf32>
    %50 = vector.multi_reduction <maximumf>, %49, %cst_22 [2] : vector<1x16x16xf32> to vector<1x16xf32>
    %51 = vector.shape_cast %50 : vector<1x16xf32> to vector<1x16x1xf32>
    %52 = vector.broadcast %51 : vector<1x16x1xf32> to vector<1x16x16xf32>
    %53 = arith.subf %49, %52 : vector<1x16x16xf32>
    %54 = math.exp %53 : vector<1x16x16xf32>
    %cst_23 = arith.constant dense<0.000000e+00> : vector<1x16xf32>
    %55 = vector.multi_reduction <add>, %54, %cst_23 [2] : vector<1x16x16xf32> to vector<1x16xf32>
    %56 = vector.shape_cast %55 : vector<1x16xf32> to vector<1x16x1xf32>
    %57 = tpu.reciprocal %56 {approx = true} : vector<1x16x1xf32> -> vector<1x16x1xf32>
    %58 = vector.broadcast %57 : vector<1x16x1xf32> to vector<1x16x16xf32>
    %59 = arith.mulf %54, %58 : vector<1x16x16xf32>
    "tpu.trace_start"() <{level = 10 : i32, message = "bnm,bmd->bnd"}> : () -> ()
    %cst_24 = arith.constant dense<0.000000e+00> : vector<1x16x4xf32>
    %60 = tpu.matmul %59, %48, %cst_24 {dimension_numbers = #tpu.dot_dimension_numbers<[2], [1], [1], [2], [0, 0, 0, 1, 1, 2], [0], [0]>} : vector<1x16x16xf32>, vector<1x16x4xf32>, vector<1x16x4xf32> -> vector<1x16x4xf32>
    "tpu.trace_stop"() : () -> ()
    %61 = vector.shape_cast %60 : vector<1x16x4xf32> to vector<16x4xf32>
    %62 = vector.extract_strided_slice %7 {offsets = [0, 8], sizes = [16, 4], strides = [1, 1]} : vector<16x32xf32> to vector<16x4xf32>
    %63 = vector.shape_cast %62 : vector<16x4xf32> to vector<1x16x4xf32>
    %64 = vector.extract_strided_slice %15 {offsets = [0, 8], sizes = [16, 4], strides = [1, 1]} : vector<16x32xf32> to vector<16x4xf32>
    %65 = vector.shape_cast %64 : vector<16x4xf32> to vector<1x16x4xf32>
    %66 = vector.extract_strided_slice %23 {offsets = [0, 8], sizes = [16, 4], strides = [1, 1]} : vector<16x32xf32> to vector<16x4xf32>
    %67 = vector.shape_cast %66 : vector<16x4xf32> to vector<1x16x4xf32>
    "tpu.trace_start"() <{level = 10 : i32, message = "bnd,bmd->bnm"}> : () -> ()
    %cst_25 = arith.constant dense<0.000000e+00> : vector<1x16x16xf32>
    %68 = tpu.matmul %63, %65, %cst_25 {dimension_numbers = #tpu.dot_dimension_numbers<[2], [2], [1], [1], [0, 0, 0, 1, 1, 1], [0], [0]>} : vector<1x16x4xf32>, vector<1x16x4xf32>, vector<1x16x16xf32> -> vector<1x16x16xf32>
    "tpu.trace_stop"() : () -> ()
    %cst_26 = arith.constant dense<0xFF800000> : vector<1x16xf32>
    %69 = vector.multi_reduction <maximumf>, %68, %cst_26 [2] : vector<1x16x16xf32> to vector<1x16xf32>
    %70 = vector.shape_cast %69 : vector<1x16xf32> to vector<1x16x1xf32>
    %71 = vector.broadcast %70 : vector<1x16x1xf32> to vector<1x16x16xf32>
    %72 = arith.subf %68, %71 : vector<1x16x16xf32>
    %73 = math.exp %72 : vector<1x16x16xf32>
    %cst_27 = arith.constant dense<0.000000e+00> : vector<1x16xf32>
    %74 = vector.multi_reduction <add>, %73, %cst_27 [2] : vector<1x16x16xf32> to vector<1x16xf32>
    %75 = vector.shape_cast %74 : vector<1x16xf32> to vector<1x16x1xf32>
    %76 = tpu.reciprocal %75 {approx = true} : vector<1x16x1xf32> -> vector<1x16x1xf32>
    %77 = vector.broadcast %76 : vector<1x16x1xf32> to vector<1x16x16xf32>
    %78 = arith.mulf %73, %77 : vector<1x16x16xf32>
    "tpu.trace_start"() <{level = 10 : i32, message = "bnm,bmd->bnd"}> : () -> ()
    %cst_28 = arith.constant dense<0.000000e+00> : vector<1x16x4xf32>
    %79 = tpu.matmul %78, %67, %cst_28 {dimension_numbers = #tpu.dot_dimension_numbers<[2], [1], [1], [2], [0, 0, 0, 1, 1, 2], [0], [0]>} : vector<1x16x16xf32>, vector<1x16x4xf32>, vector<1x16x4xf32> -> vector<1x16x4xf32>
    "tpu.trace_stop"() : () -> ()
    %80 = vector.shape_cast %79 : vector<1x16x4xf32> to vector<16x4xf32>
    %81 = vector.extract_strided_slice %7 {offsets = [0, 12], sizes = [16, 4], strides = [1, 1]} : vector<16x32xf32> to vector<16x4xf32>
    %82 = vector.shape_cast %81 : vector<16x4xf32> to vector<1x16x4xf32>
    %83 = vector.extract_strided_slice %15 {offsets = [0, 12], sizes = [16, 4], strides = [1, 1]} : vector<16x32xf32> to vector<16x4xf32>
    %84 = vector.shape_cast %83 : vector<16x4xf32> to vector<1x16x4xf32>
    %85 = vector.extract_strided_slice %23 {offsets = [0, 12], sizes = [16, 4], strides = [1, 1]} : vector<16x32xf32> to vector<16x4xf32>
    %86 = vector.shape_cast %85 : vector<16x4xf32> to vector<1x16x4xf32>
    "tpu.trace_start"() <{level = 10 : i32, message = "bnd,bmd->bnm"}> : () -> ()
    %cst_29 = arith.constant dense<0.000000e+00> : vector<1x16x16xf32>
    %87 = tpu.matmul %82, %84, %cst_29 {dimension_numbers = #tpu.dot_dimension_numbers<[2], [2], [1], [1], [0, 0, 0, 1, 1, 1], [0], [0]>} : vector<1x16x4xf32>, vector<1x16x4xf32>, vector<1x16x16xf32> -> vector<1x16x16xf32>
    "tpu.trace_stop"() : () -> ()
    %cst_30 = arith.constant dense<0xFF800000> : vector<1x16xf32>
    %88 = vector.multi_reduction <maximumf>, %87, %cst_30 [2] : vector<1x16x16xf32> to vector<1x16xf32>
    %89 = vector.shape_cast %88 : vector<1x16xf32> to vector<1x16x1xf32>
    %90 = vector.broadcast %89 : vector<1x16x1xf32> to vector<1x16x16xf32>
    %91 = arith.subf %87, %90 : vector<1x16x16xf32>
    %92 = math.exp %91 : vector<1x16x16xf32>
    %cst_31 = arith.constant dense<0.000000e+00> : vector<1x16xf32>
    %93 = vector.multi_reduction <add>, %92, %cst_31 [2] : vector<1x16x16xf32> to vector<1x16xf32>
    %94 = vector.shape_cast %93 : vector<1x16xf32> to vector<1x16x1xf32>
    %95 = tpu.reciprocal %94 {approx = true} : vector<1x16x1xf32> -> vector<1x16x1xf32>
    %96 = vector.broadcast %95 : vector<1x16x1xf32> to vector<1x16x16xf32>
    %97 = arith.mulf %92, %96 : vector<1x16x16xf32>
    "tpu.trace_start"() <{level = 10 : i32, message = "bnm,bmd->bnd"}> : () -> ()
    %cst_32 = arith.constant dense<0.000000e+00> : vector<1x16x4xf32>
    %98 = tpu.matmul %97, %86, %cst_32 {dimension_numbers = #tpu.dot_dimension_numbers<[2], [1], [1], [2], [0, 0, 0, 1, 1, 2], [0], [0]>} : vector<1x16x16xf32>, vector<1x16x4xf32>, vector<1x16x4xf32> -> vector<1x16x4xf32>
    "tpu.trace_stop"() : () -> ()
    %99 = vector.shape_cast %98 : vector<1x16x4xf32> to vector<16x4xf32>
    %100 = vector.extract_strided_slice %7 {offsets = [0, 16], sizes = [16, 4], strides = [1, 1]} : vector<16x32xf32> to vector<16x4xf32>
    %101 = vector.shape_cast %100 : vector<16x4xf32> to vector<1x16x4xf32>
    %102 = vector.extract_strided_slice %15 {offsets = [0, 16], sizes = [16, 4], strides = [1, 1]} : vector<16x32xf32> to vector<16x4xf32>
    %103 = vector.shape_cast %102 : vector<16x4xf32> to vector<1x16x4xf32>
    %104 = vector.extract_strided_slice %23 {offsets = [0, 16], sizes = [16, 4], strides = [1, 1]} : vector<16x32xf32> to vector<16x4xf32>
    %105 = vector.shape_cast %104 : vector<16x4xf32> to vector<1x16x4xf32>
    "tpu.trace_start"() <{level = 10 : i32, message = "bnd,bmd->bnm"}> : () -> ()
    %cst_33 = arith.constant dense<0.000000e+00> : vector<1x16x16xf32>
    %106 = tpu.matmul %101, %103, %cst_33 {dimension_numbers = #tpu.dot_dimension_numbers<[2], [2], [1], [1], [0, 0, 0, 1, 1, 1], [0], [0]>} : vector<1x16x4xf32>, vector<1x16x4xf32>, vector<1x16x16xf32> -> vector<1x16x16xf32>
    "tpu.trace_stop"() : () -> ()
    %cst_34 = arith.constant dense<0xFF800000> : vector<1x16xf32>
    %107 = vector.multi_reduction <maximumf>, %106, %cst_34 [2] : vector<1x16x16xf32> to vector<1x16xf32>
    %108 = vector.shape_cast %107 : vector<1x16xf32> to vector<1x16x1xf32>
    %109 = vector.broadcast %108 : vector<1x16x1xf32> to vector<1x16x16xf32>
    %110 = arith.subf %106, %109 : vector<1x16x16xf32>
    %111 = math.exp %110 : vector<1x16x16xf32>
    %cst_35 = arith.constant dense<0.000000e+00> : vector<1x16xf32>
    %112 = vector.multi_reduction <add>, %111, %cst_35 [2] : vector<1x16x16xf32> to vector<1x16xf32>
    %113 = vector.shape_cast %112 : vector<1x16xf32> to vector<1x16x1xf32>
    %114 = tpu.reciprocal %113 {approx = true} : vector<1x16x1xf32> -> vector<1x16x1xf32>
    %115 = vector.broadcast %114 : vector<1x16x1xf32> to vector<1x16x16xf32>
    %116 = arith.mulf %111, %115 : vector<1x16x16xf32>
    "tpu.trace_start"() <{level = 10 : i32, message = "bnm,bmd->bnd"}> : () -> ()
    %cst_36 = arith.constant dense<0.000000e+00> : vector<1x16x4xf32>
    %117 = tpu.matmul %116, %105, %cst_36 {dimension_numbers = #tpu.dot_dimension_numbers<[2], [1], [1], [2], [0, 0, 0, 1, 1, 2], [0], [0]>} : vector<1x16x16xf32>, vector<1x16x4xf32>, vector<1x16x4xf32> -> vector<1x16x4xf32>
    "tpu.trace_stop"() : () -> ()
    %118 = vector.shape_cast %117 : vector<1x16x4xf32> to vector<16x4xf32>
    %119 = vector.extract_strided_slice %7 {offsets = [0, 20], sizes = [16, 4], strides = [1, 1]} : vector<16x32xf32> to vector<16x4xf32>
    %120 = vector.shape_cast %119 : vector<16x4xf32> to vector<1x16x4xf32>
    %121 = vector.extract_strided_slice %15 {offsets = [0, 20], sizes = [16, 4], strides = [1, 1]} : vector<16x32xf32> to vector<16x4xf32>
    %122 = vector.shape_cast %121 : vector<16x4xf32> to vector<1x16x4xf32>
    %123 = vector.extract_strided_slice %23 {offsets = [0, 20], sizes = [16, 4], strides = [1, 1]} : vector<16x32xf32> to vector<16x4xf32>
    %124 = vector.shape_cast %123 : vector<16x4xf32> to vector<1x16x4xf32>
    "tpu.trace_start"() <{level = 10 : i32, message = "bnd,bmd->bnm"}> : () -> ()
    %cst_37 = arith.constant dense<0.000000e+00> : vector<1x16x16xf32>
    %125 = tpu.matmul %120, %122, %cst_37 {dimension_numbers = #tpu.dot_dimension_numbers<[2], [2], [1], [1], [0, 0, 0, 1, 1, 1], [0], [0]>} : vector<1x16x4xf32>, vector<1x16x4xf32>, vector<1x16x16xf32> -> vector<1x16x16xf32>
    "tpu.trace_stop"() : () -> ()
    %cst_38 = arith.constant dense<0xFF800000> : vector<1x16xf32>
    %126 = vector.multi_reduction <maximumf>, %125, %cst_38 [2] : vector<1x16x16xf32> to vector<1x16xf32>
    %127 = vector.shape_cast %126 : vector<1x16xf32> to vector<1x16x1xf32>
    %128 = vector.broadcast %127 : vector<1x16x1xf32> to vector<1x16x16xf32>
    %129 = arith.subf %125, %128 : vector<1x16x16xf32>
    %130 = math.exp %129 : vector<1x16x16xf32>
    %cst_39 = arith.constant dense<0.000000e+00> : vector<1x16xf32>
    %131 = vector.multi_reduction <add>, %130, %cst_39 [2] : vector<1x16x16xf32> to vector<1x16xf32>
    %132 = vector.shape_cast %131 : vector<1x16xf32> to vector<1x16x1xf32>
    %133 = tpu.reciprocal %132 {approx = true} : vector<1x16x1xf32> -> vector<1x16x1xf32>
    %134 = vector.broadcast %133 : vector<1x16x1xf32> to vector<1x16x16xf32>
    %135 = arith.mulf %130, %134 : vector<1x16x16xf32>
    "tpu.trace_start"() <{level = 10 : i32, message = "bnm,bmd->bnd"}> : () -> ()
    %cst_40 = arith.constant dense<0.000000e+00> : vector<1x16x4xf32>
    %136 = tpu.matmul %135, %124, %cst_40 {dimension_numbers = #tpu.dot_dimension_numbers<[2], [1], [1], [2], [0, 0, 0, 1, 1, 2], [0], [0]>} : vector<1x16x16xf32>, vector<1x16x4xf32>, vector<1x16x4xf32> -> vector<1x16x4xf32>
    "tpu.trace_stop"() : () -> ()
    %137 = vector.shape_cast %136 : vector<1x16x4xf32> to vector<16x4xf32>
    %138 = vector.extract_strided_slice %7 {offsets = [0, 24], sizes = [16, 4], strides = [1, 1]} : vector<16x32xf32> to vector<16x4xf32>
    %139 = vector.shape_cast %138 : vector<16x4xf32> to vector<1x16x4xf32>
    %140 = vector.extract_strided_slice %15 {offsets = [0, 24], sizes = [16, 4], strides = [1, 1]} : vector<16x32xf32> to vector<16x4xf32>
    %141 = vector.shape_cast %140 : vector<16x4xf32> to vector<1x16x4xf32>
    %142 = vector.extract_strided_slice %23 {offsets = [0, 24], sizes = [16, 4], strides = [1, 1]} : vector<16x32xf32> to vector<16x4xf32>
    %143 = vector.shape_cast %142 : vector<16x4xf32> to vector<1x16x4xf32>
    "tpu.trace_start"() <{level = 10 : i32, message = "bnd,bmd->bnm"}> : () -> ()
    %cst_41 = arith.constant dense<0.000000e+00> : vector<1x16x16xf32>
    %144 = tpu.matmul %139, %141, %cst_41 {dimension_numbers = #tpu.dot_dimension_numbers<[2], [2], [1], [1], [0, 0, 0, 1, 1, 1], [0], [0]>} : vector<1x16x4xf32>, vector<1x16x4xf32>, vector<1x16x16xf32> -> vector<1x16x16xf32>
    "tpu.trace_stop"() : () -> ()
    %cst_42 = arith.constant dense<0xFF800000> : vector<1x16xf32>
    %145 = vector.multi_reduction <maximumf>, %144, %cst_42 [2] : vector<1x16x16xf32> to vector<1x16xf32>
    %146 = vector.shape_cast %145 : vector<1x16xf32> to vector<1x16x1xf32>
    %147 = vector.broadcast %146 : vector<1x16x1xf32> to vector<1x16x16xf32>
    %148 = arith.subf %144, %147 : vector<1x16x16xf32>
    %149 = math.exp %148 : vector<1x16x16xf32>
    %cst_43 = arith.constant dense<0.000000e+00> : vector<1x16xf32>
    %150 = vector.multi_reduction <add>, %149, %cst_43 [2] : vector<1x16x16xf32> to vector<1x16xf32>
    %151 = vector.shape_cast %150 : vector<1x16xf32> to vector<1x16x1xf32>
    %152 = tpu.reciprocal %151 {approx = true} : vector<1x16x1xf32> -> vector<1x16x1xf32>
    %153 = vector.broadcast %152 : vector<1x16x1xf32> to vector<1x16x16xf32>
    %154 = arith.mulf %149, %153 : vector<1x16x16xf32>
    "tpu.trace_start"() <{level = 10 : i32, message = "bnm,bmd->bnd"}> : () -> ()
    %cst_44 = arith.constant dense<0.000000e+00> : vector<1x16x4xf32>
    %155 = tpu.matmul %154, %143, %cst_44 {dimension_numbers = #tpu.dot_dimension_numbers<[2], [1], [1], [2], [0, 0, 0, 1, 1, 2], [0], [0]>} : vector<1x16x16xf32>, vector<1x16x4xf32>, vector<1x16x4xf32> -> vector<1x16x4xf32>
    "tpu.trace_stop"() : () -> ()
    %156 = vector.shape_cast %155 : vector<1x16x4xf32> to vector<16x4xf32>
    %157 = vector.extract_strided_slice %7 {offsets = [0, 28], sizes = [16, 4], strides = [1, 1]} : vector<16x32xf32> to vector<16x4xf32>
    %158 = vector.shape_cast %157 : vector<16x4xf32> to vector<1x16x4xf32>
    %159 = vector.extract_strided_slice %15 {offsets = [0, 28], sizes = [16, 4], strides = [1, 1]} : vector<16x32xf32> to vector<16x4xf32>
    %160 = vector.shape_cast %159 : vector<16x4xf32> to vector<1x16x4xf32>
    %161 = vector.extract_strided_slice %23 {offsets = [0, 28], sizes = [16, 4], strides = [1, 1]} : vector<16x32xf32> to vector<16x4xf32>
    %162 = vector.shape_cast %161 : vector<16x4xf32> to vector<1x16x4xf32>
    "tpu.trace_start"() <{level = 10 : i32, message = "bnd,bmd->bnm"}> : () -> ()
    %cst_45 = arith.constant dense<0.000000e+00> : vector<1x16x16xf32>
    %163 = tpu.matmul %158, %160, %cst_45 {dimension_numbers = #tpu.dot_dimension_numbers<[2], [2], [1], [1], [0, 0, 0, 1, 1, 1], [0], [0]>} : vector<1x16x4xf32>, vector<1x16x4xf32>, vector<1x16x16xf32> -> vector<1x16x16xf32>
    "tpu.trace_stop"() : () -> ()
    %cst_46 = arith.constant dense<0xFF800000> : vector<1x16xf32>
    %164 = vector.multi_reduction <maximumf>, %163, %cst_46 [2] : vector<1x16x16xf32> to vector<1x16xf32>
    %165 = vector.shape_cast %164 : vector<1x16xf32> to vector<1x16x1xf32>
    %166 = vector.broadcast %165 : vector<1x16x1xf32> to vector<1x16x16xf32>
    %167 = arith.subf %163, %166 : vector<1x16x16xf32>
    %168 = math.exp %167 : vector<1x16x16xf32>
    %cst_47 = arith.constant dense<0.000000e+00> : vector<1x16xf32>
    %169 = vector.multi_reduction <add>, %168, %cst_47 [2] : vector<1x16x16xf32> to vector<1x16xf32>
    %170 = vector.shape_cast %169 : vector<1x16xf32> to vector<1x16x1xf32>
    %171 = tpu.reciprocal %170 {approx = true} : vector<1x16x1xf32> -> vector<1x16x1xf32>
    %172 = vector.broadcast %171 : vector<1x16x1xf32> to vector<1x16x16xf32>
    %173 = arith.mulf %168, %172 : vector<1x16x16xf32>
    "tpu.trace_start"() <{level = 10 : i32, message = "bnm,bmd->bnd"}> : () -> ()
    %cst_48 = arith.constant dense<0.000000e+00> : vector<1x16x4xf32>
    %174 = tpu.matmul %173, %162, %cst_48 {dimension_numbers = #tpu.dot_dimension_numbers<[2], [1], [1], [2], [0, 0, 0, 1, 1, 2], [0], [0]>} : vector<1x16x16xf32>, vector<1x16x4xf32>, vector<1x16x4xf32> -> vector<1x16x4xf32>
    "tpu.trace_stop"() : () -> ()
    %175 = vector.shape_cast %174 : vector<1x16x4xf32> to vector<16x4xf32>
    %c0_49 = arith.constant 0 : index
    %c0_50 = arith.constant 0 : index
    %176 = vector.load %arg7[%c0_49, %c0_50] : memref<32x32xf32, #tpu.memory_space<vmem>>, vector<4x32xf32>
    %cst_51 = arith.constant dense<0.000000e+00> : vector<16x32xf32>
    %177 = tpu.matmul %42, %176, %cst_51 {dimension_numbers = #tpu.dot_dimension_numbers<[1], [0], [0], [1], [0, 0, 1, 1], [], []>} : vector<16x4xf32>, vector<4x32xf32>, vector<16x32xf32> -> vector<16x32xf32>
    %c4 = arith.constant 4 : index
    %c0_52 = arith.constant 0 : index
    %178 = vector.load %arg7[%c4, %c0_52] : memref<32x32xf32, #tpu.memory_space<vmem>>, vector<4x32xf32>
    %cst_53 = arith.constant dense<0.000000e+00> : vector<16x32xf32>
    %179 = tpu.matmul %61, %178, %cst_53 {dimension_numbers = #tpu.dot_dimension_numbers<[1], [0], [0], [1], [0, 0, 1, 1], [], []>} : vector<16x4xf32>, vector<4x32xf32>, vector<16x32xf32> -> vector<16x32xf32>
    %180 = arith.addf %177, %179 : vector<16x32xf32>
    %c8 = arith.constant 8 : index
    %c0_54 = arith.constant 0 : index
    %181 = vector.load %arg7[%c8, %c0_54] : memref<32x32xf32, #tpu.memory_space<vmem>>, vector<4x32xf32>
    %cst_55 = arith.constant dense<0.000000e+00> : vector<16x32xf32>
    %182 = tpu.matmul %80, %181, %cst_55 {dimension_numbers = #tpu.dot_dimension_numbers<[1], [0], [0], [1], [0, 0, 1, 1], [], []>} : vector<16x4xf32>, vector<4x32xf32>, vector<16x32xf32> -> vector<16x32xf32>
    %183 = arith.addf %180, %182 : vector<16x32xf32>
    %c12 = arith.constant 12 : index
    %c0_56 = arith.constant 0 : index
    %184 = vector.load %arg7[%c12, %c0_56] : memref<32x32xf32, #tpu.memory_space<vmem>>, vector<4x32xf32>
    %cst_57 = arith.constant dense<0.000000e+00> : vector<16x32xf32>
    %185 = tpu.matmul %99, %184, %cst_57 {dimension_numbers = #tpu.dot_dimension_numbers<[1], [0], [0], [1], [0, 0, 1, 1], [], []>} : vector<16x4xf32>, vector<4x32xf32>, vector<16x32xf32> -> vector<16x32xf32>
    %186 = arith.addf %183, %185 : vector<16x32xf32>
    %c16 = arith.constant 16 : index
    %c0_58 = arith.constant 0 : index
    %187 = vector.load %arg7[%c16, %c0_58] : memref<32x32xf32, #tpu.memory_space<vmem>>, vector<4x32xf32>
    %cst_59 = arith.constant dense<0.000000e+00> : vector<16x32xf32>
    %188 = tpu.matmul %118, %187, %cst_59 {dimension_numbers = #tpu.dot_dimension_numbers<[1], [0], [0], [1], [0, 0, 1, 1], [], []>} : vector<16x4xf32>, vector<4x32xf32>, vector<16x32xf32> -> vector<16x32xf32>
    %189 = arith.addf %186, %188 : vector<16x32xf32>
    %c20 = arith.constant 20 : index
    %c0_60 = arith.constant 0 : index
    %190 = vector.load %arg7[%c20, %c0_60] : memref<32x32xf32, #tpu.memory_space<vmem>>, vector<4x32xf32>
    %cst_61 = arith.constant dense<0.000000e+00> : vector<16x32xf32>
    %191 = tpu.matmul %137, %190, %cst_61 {dimension_numbers = #tpu.dot_dimension_numbers<[1], [0], [0], [1], [0, 0, 1, 1], [], []>} : vector<16x4xf32>, vector<4x32xf32>, vector<16x32xf32> -> vector<16x32xf32>
    %192 = arith.addf %189, %191 : vector<16x32xf32>
    %c24 = arith.constant 24 : index
    %c0_62 = arith.constant 0 : index
    %193 = vector.load %arg7[%c24, %c0_62] : memref<32x32xf32, #tpu.memory_space<vmem>>, vector<4x32xf32>
    %cst_63 = arith.constant dense<0.000000e+00> : vector<16x32xf32>
    %194 = tpu.matmul %156, %193, %cst_63 {dimension_numbers = #tpu.dot_dimension_numbers<[1], [0], [0], [1], [0, 0, 1, 1], [], []>} : vector<16x4xf32>, vector<4x32xf32>, vector<16x32xf32> -> vector<16x32xf32>
    %195 = arith.addf %192, %194 : vector<16x32xf32>
    %c28 = arith.constant 28 : index
    %c0_64 = arith.constant 0 : index
    %196 = vector.load %arg7[%c28, %c0_64] : memref<32x32xf32, #tpu.memory_space<vmem>>, vector<4x32xf32>
    %cst_65 = arith.constant dense<0.000000e+00> : vector<16x32xf32>
    %197 = tpu.matmul %175, %196, %cst_65 {dimension_numbers = #tpu.dot_dimension_numbers<[1], [0], [0], [1], [0, 0, 1, 1], [], []>} : vector<16x4xf32>, vector<4x32xf32>, vector<16x32xf32> -> vector<16x32xf32>
    %198 = arith.addf %195, %197 : vector<16x32xf32>
    %c3 = arith.constant 3 : index
    %c0_66 = arith.constant 0 : index
    %199 = vector.load %arg8[%c3, %c0_66] : memref<4x32xf32, #tpu.memory_space<vmem>>, vector<1x32xf32>
    %200 = vector.shape_cast %199 : vector<1x32xf32> to vector<32xf32>
    %201 = vector.shape_cast %200 : vector<32xf32> to vector<1x32xf32>
    %202 = vector.broadcast %201 : vector<1x32xf32> to vector<16x32xf32>
    %203 = arith.addf %198, %202 : vector<16x32xf32>
    %c0_67 = arith.constant 0 : index
    %c0_68 = arith.constant 0 : index
    %204 = vector.load %arg9[%c0_67, %c0_68] : memref<16x32xf32, #tpu.memory_space<vmem>>, vector<16x32xf32>
    tpu.vector_store %arg9[%c0_67, %c0_68], %203 {strides = array<i32>} : memref<16x32xf32, #tpu.memory_space<vmem>>, vector<16x32xf32>,
    return
  }
  func.func @transform_0(%arg0: i32) -> (i32, i32) {
    %c0_i32 = arith.constant 0 : i32
    %c0_i32_0 = arith.constant 0 : i32
    return %arg0, %c0_i32 : i32, i32
  }
  func.func @transform_1(%arg0: i32) -> (i32, i32) {
    %c0_i32 = arith.constant 0 : i32
    %c0_i32_0 = arith.constant 0 : i32
    return %arg0, %c0_i32 : i32, i32
  }
  func.func @transform_2(%arg0: i32) -> (i32, i32) {
    %c0_i32 = arith.constant 0 : i32
    %c0_i32_0 = arith.constant 0 : i32
    return %arg0, %c0_i32 : i32, i32
  }
  func.func @transform_3(%arg0: i32) -> (i32, i32) {
    %c0_i32 = arith.constant 0 : i32
    %c0_i32_0 = arith.constant 0 : i32
    %c0_i32_1 = arith.constant 0 : i32
    return %c0_i32, %c0_i32_0 : i32, i32
  }
  func.func @transform_4(%arg0: i32) -> (i32, i32) {
    %c0_i32 = arith.constant 0 : i32
    %c0_i32_0 = arith.constant 0 : i32
    %c0_i32_1 = arith.constant 0 : i32
    return %c0_i32, %c0_i32_0 : i32, i32
  }
  func.func @transform_5(%arg0: i32) -> (i32, i32) {
    %c0_i32 = arith.constant 0 : i32
    %c0_i32_0 = arith.constant 0 : i32
    %c0_i32_1 = arith.constant 0 : i32
    return %c0_i32, %c0_i32_0 : i32, i32
  }
  func.func @transform_6(%arg0: i32) -> (i32, i32) {
    %c0_i32 = arith.constant 0 : i32
    %c0_i32_0 = arith.constant 0 : i32
    %c0_i32_1 = arith.constant 0 : i32
    return %c0_i32, %c0_i32_0 : i32, i32
  }
  func.func @transform_7(%arg0: i32) -> (i32, i32) {
    %c0_i32 = arith.constant 0 : i32
    %c0_i32_0 = arith.constant 0 : i32
    %c0_i32_1 = arith.constant 0 : i32
    return %c0_i32, %c0_i32_0 : i32, i32
  }
  func.func @transform_8(%arg0: i32) -> (i32, i32) {
    %c0_i32 = arith.constant 0 : i32
    %c0_i32_0 = arith.constant 0 : i32
    return %arg0, %c0_i32 : i32, i32
  }
}

</mosaic_0001>

<llo_original>
// kernel: tpu_custom_call.1
$region0: #{tpu_custom_call.1}
  #allocation0 [shape = 'u32[]', space=smem, size = 0x4, offset = 0x4, fixed_abs, tag = 'smem constant byte address 0x4 - core index']
  #allocation1 [shape = 'u32[144,128]{1,0:T(1,128)}', space=vmem, size = 0x12000, scoped, tag = 'internal scratch']
  %s0 = inlined_call_operand.hbm [shape: f32[32,32], index: 0, kind: input, shape index: {}]
  %s1 = inlined_call_operand.hbm [shape: f32[32,32], index: 1, kind: input, shape index: {}]
  %s2 = inlined_call_operand.hbm [shape: f32[32,32], index: 2, kind: input, shape index: {}]
  %s3 = inlined_call_operand.hbm [shape: f32[32,32], index: 3, kind: input, shape index: {}]
  %s4 = inlined_call_operand.hbm [shape: f32[32,32], index: 4, kind: input, shape index: {}]
  %s5 = inlined_call_operand.hbm [shape: f32[32,32], index: 5, kind: input, shape index: {}]
  %s6 = inlined_call_operand.hbm [shape: f32[32,32], index: 6, kind: input, shape index: {}]
  %s7 = inlined_call_operand.vmem [shape: f32[4,32], index: 7, kind: input, shape index: {}]
  %s8 = inlined_call_operand.hbm [shape: f32[32,32], index: 8, kind: output, shape index: {}]
  %s9 = sld [smem:[#allocation0]]
  $region93: #{tpu_custom_call.1} parent=0
    _
  %s11 = ssub.s32 1, %s9
  %s12 = scalar_select 0, %s11, %s9
  $region1: #{tpu_custom_call.1} parent=0
    #allocation2 [shape = 'u8[16384]{0}', space=vmem, size = 0x4000, scoped, tag = 'input window, operand 0']
    #allocation3 [shape = 's32[2]{0}', space=sflag, size = 0x8, scoped, tag = 'scoped memory for tpu_custom_call.1']
    #allocation4 [shape = 's32[2]{0}', space=sflag, size = 0x8, scoped, tag = 'scoped memory for tpu_custom_call.1']
    #allocation5 [shape = 'u8[16384]{0}', space=vmem, size = 0x4000, scoped, tag = 'input window, operand 1']
    #allocation6 [shape = 's32[2]{0}', space=sflag, size = 0x8, scoped, tag = 'scoped memory for tpu_custom_call.1']
    #allocation7 [shape = 'u8[16384]{0}', space=vmem, size = 0x4000, scoped, tag = 'input window, operand 2']
    #allocation8 [shape = 'u8[16384]{0}', space=vmem, size = 0x4000, scoped, tag = 'input window, operand 3, single buffered']
    #allocation9 [shape = 's32[1]{0}', space=sflag, size = 0x4, scoped, tag = 'scoped memory for tpu_custom_call.1']
    #allocation10 [shape = 'u8[16384]{0}', space=vmem, size = 0x4000, scoped, tag = 'input window, operand 4, single buffered']
    #allocation11 [shape = 'u8[16384]{0}', space=vmem, size = 0x4000, scoped, tag = 'input window, operand 5, single buffered']
    #allocation12 [shape = 's32[1]{0}', space=sflag, size = 0x4, scoped, tag = 'scoped memory for tpu_custom_call.1']
    #allocation13 [shape = 'u8[16384]{0}', space=vmem, size = 0x4000, scoped, tag = 'input window, operand 6, single buffered']
    #allocation14 [shape = 'u8[16384]{0}', space=vmem, size = 0x4000, scoped, tag = 'output window, operand 0']
    %13 = vsyncpa [#allocation3], 0
    %s14 = scalar_lea.sflag [#allocation3], 1
    %15 = vsyncpa %s14, 0
    %16 = vsyncpa [#allocation6], 0
    %s17 = scalar_lea.sflag [#allocation6], 1
    %18 = vsyncpa %s17, 0
    %19 = vsyncpa [#allocation9], 0
    %20 = vsyncpa [#allocation12], 0
    %21 = vsyncpa [#allocation4], 0
    %s22 = scalar_lea.sflag [#allocation4], 1
    %23 = vsyncpa %s22, 0
    loop: start=0, step=1, limit=4
    $region2: #{tpu_custom_call.1} parent=1 // loop_pre_header
      _
    $region3: #{tpu_custom_call.1} parent=1 // loop_header
      %s25 = sphi 0, %s29
      %p26 = scmp.ge.s32.totalorder %s25, 4
      %s35 = sphi 0, %s37
      %s38 = sphi 0, %s35
      %s39 = sphi 0, %s38
      %s55 = sphi 0, %s39
      %s61 = sphi 0, %s63
      %s64 = sphi 0, %s61
      %s65 = sphi 0, %s64
      %s81 = sphi 0, %s65
      %s87 = sphi 0, %s89
      %s90 = sphi 0, %s87
      %s91 = sphi 0, %s90
      %s107 = sphi 0, %s91
      %s111 = sphi 0, %s111
      %s113 = sphi 0, %s111
      %s114 = sphi 0, %s113
      %s128 = sphi 0, %s114
      %s132 = sphi 0, %s132
      %s134 = sphi 0, %s132
      %s135 = sphi 0, %s134
      %s149 = sphi 0, %s135
      %s153 = sphi 0, %s153
      %s155 = sphi 0, %s153
      %s156 = sphi 0, %s155
      %s170 = sphi 0, %s156
      %s174 = sphi 0, %s174
      %s176 = sphi 0, %s174
      %s177 = sphi 0, %s176
      %s191 = sphi 0, %s177
      %s195 = sphi 0, %s195
      %s197 = sphi 0, %s195
      %s198 = sphi 0, %s197
      %s212 = sphi 0, %s198
      %s218 = sphi 0, %s220
      %s221 = sphi 0, %s218
      %s222 = sphi 0, %s221
      %s238 = sphi 0, %s222
    $region4: #{tpu_custom_call.1} parent=1 // loop_header_branch
      %28 = sbr.rel (%p26) target = $region8
    $region5: #{tpu_custom_call.1} parent=1 // loop_body
      %s30 = ssub.s32 %s25, 1
      %s31 = ssub.s32 %s25, 2
      %s32 = sadd.s32 %s25, 1
      %s33 = ssub.s32 %s25, %s32
      %p34 = scmp.eq.s32.totalorder %s33, 0
      %s36 = sadd.s32 %s35, 1
      %s37 = scalar_select %p34, %s35, %s36
      %p40 = pneg %p34
      %p41 = scmp.eq.s32.totalorder %s25, 1
      %p42 = por %p40, %p41
      %p43 = scmp.ne.s32.totalorder %s35, %s38
      %p44 = scmp.eq.s32.totalorder %s25, 0
      %p45 = por %p43, %p44
      %p46 = scmp.ne.s32.totalorder %s35, %s38
      %p47 = scmp.eq.s32.totalorder %s30, 1
      %p48 = por %p46, %p47
      %p49 = scmp.ne.s32.totalorder %s38, %s39
      %p50 = scmp.eq.s32.totalorder %s30, 0
      %p51 = por %p49, %p50
      %p52 = scmp.ne.s32.totalorder %s38, %s39
      %p53 = scmp.eq.s32.totalorder %s31, 1
      %p54 = por %p52, %p53
      %p56 = scmp.ne.s32.totalorder %s39, %s55
      %p57 = scmp.eq.s32.totalorder %s31, 0
      %p58 = por %p56, %p57
      %s59 = ssub.s32 %s25, %s32
      %p60 = scmp.eq.s32.totalorder %s59, 0
      %s62 = sadd.s32 %s61, 1
      %s63 = scalar_select %p60, %s61, %s62
      %p66 = pneg %p60
      %p67 = scmp.eq.s32.totalorder %s25, 1
      %p68 = por %p66, %p67
      %p69 = scmp.ne.s32.totalorder %s61, %s64
      %p70 = scmp.eq.s32.totalorder %s25, 0
      %p71 = por %p69, %p70
      %p72 = scmp.ne.s32.totalorder %s61, %s64
      %p73 = scmp.eq.s32.totalorder %s30, 1
      %p74 = por %p72, %p73
      %p75 = scmp.ne.s32.totalorder %s64, %s65
      %p76 = scmp.eq.s32.totalorder %s30, 0
      %p77 = por %p75, %p76
      %p78 = scmp.ne.s32.totalorder %s64, %s65
      %p79 = scmp.eq.s32.totalorder %s31, 1
      %p80 = por %p78, %p79
      %p82 = scmp.ne.s32.totalorder %s65, %s81
      %p83 = scmp.eq.s32.totalorder %s31, 0
      %p84 = por %p82, %p83
      %s85 = ssub.s32 %s25, %s32
      %p86 = scmp.eq.s32.totalorder %s85, 0
      %s88 = sadd.s32 %s87, 1
      %s89 = scalar_select %p86, %s87, %s88
      %p92 = pneg %p86
      %p93 = scmp.eq.s32.totalorder %s25, 1
      %p94 = por %p92, %p93
      %p95 = scmp.ne.s32.totalorder %s87, %s90
      %p96 = scmp.eq.s32.totalorder %s25, 0
      %p97 = por %p95, %p96
      %p98 = scmp.ne.s32.totalorder %s87, %s90
      %p99 = scmp.eq.s32.totalorder %s30, 1
      %p100 = por %p98, %p99
      %p101 = scmp.ne.s32.totalorder %s90, %s91
      %p102 = scmp.eq.s32.totalorder %s30, 0
      %p103 = por %p101, %p102
      %p104 = scmp.ne.s32.totalorder %s90, %s91
      %p105 = scmp.eq.s32.totalorder %s31, 1
      %p106 = por %p104, %p105
      %p108 = scmp.ne.s32.totalorder %s91, %s107
      %p109 = scmp.eq.s32.totalorder %s31, 0
      %p110 = por %p108, %p109
      %s112 = sadd.s32 %s111, 1
      %p115 = scmp.eq.s32.totalorder %s25, 1
      %p116 = scmp.ne.s32.totalorder %s111, %s113
      %p117 = scmp.eq.s32.totalorder %s25, 0
      %p118 = por %p116, %p117
      %p119 = scmp.ne.s32.totalorder %s111, %s113
      %p120 = scmp.eq.s32.totalorder %s30, 1
      %p121 = por %p119, %p120
      %p122 = scmp.ne.s32.totalorder %s113, %s114
      %p123 = scmp.eq.s32.totalorder %s30, 0
      %p124 = por %p122, %p123
      %p125 = scmp.ne.s32.totalorder %s113, %s114
      %p126 = scmp.eq.s32.totalorder %s31, 1
      %p127 = por %p125, %p126
      %p129 = scmp.ne.s32.totalorder %s114, %s128
      %p130 = scmp.eq.s32.totalorder %s31, 0
      %p131 = por %p129, %p130
      %s133 = sadd.s32 %s132, 1
      %p136 = scmp.eq.s32.totalorder %s25, 1
      %p137 = scmp.ne.s32.totalorder %s132, %s134
      %p138 = scmp.eq.s32.totalorder %s25, 0
      %p139 = por %p137, %p138
      %p140 = scmp.ne.s32.totalorder %s132, %s134
      %p141 = scmp.eq.s32.totalorder %s30, 1
      %p142 = por %p140, %p141
      %p143 = scmp.ne.s32.totalorder %s134, %s135
      %p144 = scmp.eq.s32.totalorder %s30, 0
      %p145 = por %p143, %p144
      %p146 = scmp.ne.s32.totalorder %s134, %s135
      %p147 = scmp.eq.s32.totalorder %s31, 1
      %p148 = por %p146, %p147
      %p150 = scmp.ne.s32.totalorder %s135, %s149
      %p151 = scmp.eq.s32.totalorder %s31, 0
      %p152 = por %p150, %p151
      %s154 = sadd.s32 %s153, 1
      %p157 = scmp.eq.s32.totalorder %s25, 1
      %p158 = scmp.ne.s32.totalorder %s153, %s155
      %p159 = scmp.eq.s32.totalorder %s25, 0
      %p160 = por %p158, %p159
      %p161 = scmp.ne.s32.totalorder %s153, %s155
      %p162 = scmp.eq.s32.totalorder %s30, 1
      %p163 = por %p161, %p162
      %p164 = scmp.ne.s32.totalorder %s155, %s156
      %p165 = scmp.eq.s32.totalorder %s30, 0
      %p166 = por %p164, %p165
      %p167 = scmp.ne.s32.totalorder %s155, %s156
      %p168 = scmp.eq.s32.totalorder %s31, 1
      %p169 = por %p167, %p168
      %p171 = scmp.ne.s32.totalorder %s156, %s170
      %p172 = scmp.eq.s32.totalorder %s31, 0
      %p173 = por %p171, %p172
      %s175 = sadd.s32 %s174, 1
      %p178 = scmp.eq.s32.totalorder %s25, 1
      %p179 = scmp.ne.s32.totalorder %s174, %s176
      %p180 = scmp.eq.s32.totalorder %s25, 0
      %p181 = por %p179, %p180
      %p182 = scmp.ne.s32.totalorder %s174, %s176
      %p183 = scmp.eq.s32.totalorder %s30, 1
      %p184 = por %p182, %p183
      %p185 = scmp.ne.s32.totalorder %s176, %s177
      %p186 = scmp.eq.s32.totalorder %s30, 0
      %p187 = por %p185, %p186
      %p188 = scmp.ne.s32.totalorder %s176, %s177
      %p189 = scmp.eq.s32.totalorder %s31, 1
      %p190 = por %p188, %p189
      %p192 = scmp.ne.s32.totalorder %s177, %s191
      %p193 = scmp.eq.s32.totalorder %s31, 0
      %p194 = por %p192, %p193
      %s196 = sadd.s32 %s195, 1
      %p199 = scmp.eq.s32.totalorder %s25, 1
      %p200 = scmp.ne.s32.totalorder %s195, %s197
      %p201 = scmp.eq.s32.totalorder %s25, 0
      %p202 = por %p200, %p201
      %p203 = scmp.ne.s32.totalorder %s195, %s197
      %p204 = scmp.eq.s32.totalorder %s30, 1
      %p205 = por %p203, %p204
      %p206 = scmp.ne.s32.totalorder %s197, %s198
      %p207 = scmp.eq.s32.totalorder %s30, 0
      %p208 = por %p206, %p207
      %p209 = scmp.ne.s32.totalorder %s197, %s198
      %p210 = scmp.eq.s32.totalorder %s31, 1
      %p211 = por %p209, %p210
      %p213 = scmp.ne.s32.totalorder %s198, %s212
      %p214 = scmp.eq.s32.totalorder %s31, 0
      %p215 = por %p213, %p214
      %s216 = ssub.s32 %s25, %s32
      %p217 = scmp.eq.s32.totalorder %s216, 0
      %s219 = sadd.s32 %s218, 1
      %s220 = scalar_select %p217, %s218, %s219
      %p223 = pneg %p217
      %p224 = scmp.eq.s32.totalorder %s25, 1
      %p225 = por %p223, %p224
      %p226 = scmp.ne.s32.totalorder %s218, %s221
      %p227 = scmp.eq.s32.totalorder %s25, 0
      %p228 = por %p226, %p227
      %p229 = scmp.ne.s32.totalorder %s218, %s221
      %p230 = scmp.eq.s32.totalorder %s30, 1
      %p231 = por %p229, %p230
      %p232 = scmp.ne.s32.totalorder %s221, %s222
      %p233 = scmp.eq.s32.totalorder %s30, 0
      %p234 = por %p232, %p233
      %p235 = scmp.ne.s32.totalorder %s221, %s222
      %p236 = scmp.eq.s32.totalorder %s31, 1
      %p237 = por %p235, %p236
      %p239 = scmp.ne.s32.totalorder %s222, %s238
      %p240 = scmp.eq.s32.totalorder %s31, 0
      %p241 = por %p239, %p240
      %p242 = scmp.le.s32.totalorder 1, %s25
      %p243 = scmp.lt.s32.totalorder %s25, 3
      %p244 = pnand %p242, %p243
      %p245 = pneg %p244
      // Predicated region
      $region9: #{tpu_custom_call.1} parent=5 // pred_check
        _
      $region10: #{tpu_custom_call.1} parent=5 // pred_check_branch
        %247 = sbr.rel (%p244) target = $region12
      $region11: #{tpu_custom_call.1} parent=5 // pred_region
        %s248 = ssub.s32 %s25, 1
        // Predicated region
        $region13: #{tpu_custom_call.1} parent=11 // pred_check
          %p249 = pneg %p124
        $region14: #{tpu_custom_call.1} parent=11 // pred_check_branch
          %251 = sbr.rel (%p249) target = $region16
        $region15: #{tpu_custom_call.1} parent=11 // pred_region
          %s253 = ssub.s32 512, 512
          %254 = vsyncadd [#allocation9], %s253
          %s255 = sshll.u32 [#allocation8], 4
          %s256 = int_to_ptr.vmem [resolvable:$true] %s255
          %261 = dma.hbm_to_vmem [thread:$0]  %s3, 512, %s256, [#allocation9], 128, 128, 8
        $region16: #{tpu_custom_call.1} parent=11 // pred_fallthru
          _
        // Predicated region
        $region17: #{tpu_custom_call.1} parent=11 // pred_check
          %p262 = pneg %p145
        $region18: #{tpu_custom_call.1} parent=11 // pred_check_branch
          %264 = sbr.rel (%p262) target = $region20
        $region19: #{tpu_custom_call.1} parent=11 // pred_region
          %s266 = ssub.s32 512, 512
          %267 = vsyncadd [#allocation9], %s266
          %s268 = sshll.u32 [#allocation10], 4
          %s269 = int_to_ptr.vmem [resolvable:$true] %s268
          %274 = dma.hbm_to_vmem [thread:$0]  %s4, 512, %s269, [#allocation9], 128, 128, 8
        $region20: #{tpu_custom_call.1} parent=11 // pred_fallthru
          _
        // Predicated region
        $region21: #{tpu_custom_call.1} parent=11 // pred_check
          %p275 = pneg %p166
        $region22: #{tpu_custom_call.1} parent=11 // pred_check_branch
          %277 = sbr.rel (%p275) target = $region24
        $region23: #{tpu_custom_call.1} parent=11 // pred_region
          %s279 = ssub.s32 512, 512
          %280 = vsyncadd [#allocation12], %s279
          %s281 = sshll.u32 [#allocation11], 4
          %s282 = int_to_ptr.vmem [resolvable:$true] %s281
          %287 = dma.hbm_to_vmem [thread:$0]  %s5, 512, %s282, [#allocation12], 128, 128, 8
        $region24: #{tpu_custom_call.1} parent=11 // pred_fallthru
          _
        // Predicated region
        $region25: #{tpu_custom_call.1} parent=11 // pred_check
          %p288 = pneg %p187
        $region26: #{tpu_custom_call.1} parent=11 // pred_check_branch
          %290 = sbr.rel (%p288) target = $region28
        $region27: #{tpu_custom_call.1} parent=11 // pred_region
          %s292 = ssub.s32 512, 512
          %293 = vsyncadd [#allocation12], %s292
          %s294 = sshll.u32 [#allocation13], 4
          %s295 = int_to_ptr.vmem [resolvable:$true] %s294
          %300 = dma.hbm_to_vmem [thread:$0]  %s6, 512, %s295, [#allocation12], 128, 128, 8
        $region28: #{tpu_custom_call.1} parent=11 // pred_fallthru
          _
        // Predicated region
        $region29: #{tpu_custom_call.1} parent=11 // pred_check
          %p301 = pneg %p208
        $region30: #{tpu_custom_call.1} parent=11 // pred_check_branch
          %303 = sbr.rel (%p301) target = $region32
        $region31: #{tpu_custom_call.1} parent=11 // pred_region
          _
        $region32: #{tpu_custom_call.1} parent=11 // pred_fallthru
          _
      $region12: #{tpu_custom_call.1} parent=5 // pred_fallthru
        _
      %p304 = scmp.lt.s32.totalorder %s25, 2
      // Predicated region
      $region33: #{tpu_custom_call.1} parent=5 // pred_check
        %p305 = pneg %p304
      $region34: #{tpu_custom_call.1} parent=5 // pred_check_branch
        %307 = sbr.rel (%p305) target = $region36
      $region35: #{tpu_custom_call.1} parent=5 // pred_region
        // Predicated region
        $region37: #{tpu_custom_call.1} parent=35 // pred_check
          %p308 = pneg %p45
        $region38: #{tpu_custom_call.1} parent=35 // pred_check_branch
          %310 = sbr.rel (%p308) target = $region40
        $region39: #{tpu_custom_call.1} parent=35 // pred_region
          %s311 = sand.u32 %s35, 1
          %s312 = scalar_lea.sflag [#allocation3], %s311
          %s313 = sand.u32 %s35, 1
          %s314 = smul.addr %s313, 16
          %s315 = scalar_lea.vmem [#allocation2], %s314
          %s316 = smul.u32 2, %s25
          %s318 = ssub.s32 256, 256
          %319 = vsyncadd %s312, %s318
          %s320 = smul.addr %s316, 128
          %s321 = scalar_lea.hbm %s0, %s320
          %s322 = sshll.u32 %s315, 4
          %s323 = int_to_ptr.vmem [resolvable:$true] %s322
          %328 = dma.hbm_to_vmem [thread:$0]  %s321, 256, %s323, %s312, 128, 128, 8
        $region40: #{tpu_custom_call.1} parent=35 // pred_fallthru
          _
        // Predicated region
        $region41: #{tpu_custom_call.1} parent=35 // pred_check
          %p329 = pneg %p71
        $region42: #{tpu_custom_call.1} parent=35 // pred_check_branch
          %331 = sbr.rel (%p329) target = $region44
        $region43: #{tpu_custom_call.1} parent=35 // pred_region
          %s332 = sand.u32 %s25, 1
          %s333 = scalar_lea.sflag [#allocation6], %s332
          %s334 = sand.u32 %s61, 1
          %s335 = smul.addr %s334, 16
          %s336 = scalar_lea.vmem [#allocation5], %s335
          %s337 = smul.u32 2, %s25
          %s339 = ssub.s32 256, 256
          %340 = vsyncadd %s333, %s339
          %s341 = smul.addr %s337, 128
          %s342 = scalar_lea.hbm %s1, %s341
          %s343 = sshll.u32 %s336, 4
          %s344 = int_to_ptr.vmem [resolvable:$true] %s343
          %349 = dma.hbm_to_vmem [thread:$0]  %s342, 256, %s344, %s333, 128, 128, 8
        $region44: #{tpu_custom_call.1} parent=35 // pred_fallthru
          _
        // Predicated region
        $region45: #{tpu_custom_call.1} parent=35 // pred_check
          %p350 = pneg %p97
        $region46: #{tpu_custom_call.1} parent=35 // pred_check_branch
          %352 = sbr.rel (%p350) target = $region48
        $region47: #{tpu_custom_call.1} parent=35 // pred_region
          %s353 = sand.u32 %s25, 1
          %s354 = scalar_lea.sflag [#allocation6], %s353
          %s355 = sand.u32 %s87, 1
          %s356 = smul.addr %s355, 16
          %s357 = scalar_lea.vmem [#allocation7], %s356
          %s358 = smul.u32 2, %s25
          %s360 = ssub.s32 256, 256
          %361 = vsyncadd %s354, %s360
          %s362 = smul.addr %s358, 128
          %s363 = scalar_lea.hbm %s2, %s362
          %s364 = sshll.u32 %s357, 4
          %s365 = int_to_ptr.vmem [resolvable:$true] %s364
          %370 = dma.hbm_to_vmem [thread:$0]  %s363, 256, %s365, %s354, 128, 128, 8
        $region48: #{tpu_custom_call.1} parent=35 // pred_fallthru
          _
      $region36: #{tpu_custom_call.1} parent=5 // pred_fallthru
        _
      %p371 = scmp.le.s32.totalorder 1, %s25
      %p372 = scmp.lt.s32.totalorder %s25, 3
      %p373 = pnand %p371, %p372
      %p374 = pneg %p373
      // Predicated region
      $region49: #{tpu_custom_call.1} parent=5 // pred_check
        _
      $region50: #{tpu_custom_call.1} parent=5 // pred_check_branch
        %376 = sbr.rel (%p373) target = $region52
      $region51: #{tpu_custom_call.1} parent=5 // pred_region
        %s377 = ssub.s32 %s25, 1
        %s378 = sand.u32 %s38, 1
        %s379 = scalar_lea.sflag [#allocation3], %s378
        %s380 = sand.u32 %s38, 1
        %s381 = smul.addr %s380, 16
        %s382 = scalar_lea.vmem [#allocation2], %s381
        // Predicated region
        $region53: #{tpu_custom_call.1} parent=51 // pred_check
          %p383 = pneg %p51
        $region54: #{tpu_custom_call.1} parent=51 // pred_check_branch
          %385 = sbr.rel (%p383) target = $region56
        $region55: #{tpu_custom_call.1} parent=51 // pred_region
          %386 = dma.done %s379, 256
        $region56: #{tpu_custom_call.1} parent=51 // pred_fallthru
          _
        %s387 = sand.u32 %s30, 1
        %s388 = scalar_lea.sflag [#allocation6], %s387
        %s389 = sand.u32 %s64, 1
        %s390 = smul.addr %s389, 16
        %s391 = scalar_lea.vmem [#allocation5], %s390
        // Predicated region
        $region57: #{tpu_custom_call.1} parent=51 // pred_check
          %p392 = pneg %p77
        $region58: #{tpu_custom_call.1} parent=51 // pred_check_branch
          %394 = sbr.rel (%p392) target = $region60
        $region59: #{tpu_custom_call.1} parent=51 // pred_region
          %395 = dma.done %s388, 256
        $region60: #{tpu_custom_call.1} parent=51 // pred_fallthru
          _
        %s396 = sand.u32 %s30, 1
        %s397 = scalar_lea.sflag [#allocation6], %s396
        %s398 = sand.u32 %s90, 1
        %s399 = smul.addr %s398, 16
        %s400 = scalar_lea.vmem [#allocation7], %s399
        // Predicated region
        $region61: #{tpu_custom_call.1} parent=51 // pred_check
          %p401 = pneg %p103
        $region62: #{tpu_custom_call.1} parent=51 // pred_check_branch
          %403 = sbr.rel (%p401) target = $region64
        $region63: #{tpu_custom_call.1} parent=51 // pred_region
          %404 = dma.done %s397, 256
        $region64: #{tpu_custom_call.1} parent=51 // pred_fallthru
          _
        // Predicated region
        $region65: #{tpu_custom_call.1} parent=51 // pred_check
          %p405 = pneg %p124
        $region66: #{tpu_custom_call.1} parent=51 // pred_check_branch
          %407 = sbr.rel (%p405) target = $region68
        $region67: #{tpu_custom_call.1} parent=51 // pred_region
          %408 = dma.done [#allocation9], 512
        $region68: #{tpu_custom_call.1} parent=51 // pred_fallthru
          _
        // Predicated region
        $region69: #{tpu_custom_call.1} parent=51 // pred_check
          %p409 = pneg %p145
        $region70: #{tpu_custom_call.1} parent=51 // pred_check_branch
          %411 = sbr.rel (%p409) target = $region72
        $region71: #{tpu_custom_call.1} parent=51 // pred_region
          %412 = dma.done [#allocation9], 512
        $region72: #{tpu_custom_call.1} parent=51 // pred_fallthru
          _
        // Predicated region
        $region73: #{tpu_custom_call.1} parent=51 // pred_check
          %p413 = pneg %p166
        $region74: #{tpu_custom_call.1} parent=51 // pred_check_branch
          %415 = sbr.rel (%p413) target = $region76
        $region75: #{tpu_custom_call.1} parent=51 // pred_region
          %416 = dma.done [#allocation12], 512
        $region76: #{tpu_custom_call.1} parent=51 // pred_fallthru
          _
        // Predicated region
        $region77: #{tpu_custom_call.1} parent=51 // pred_check
          %p417 = pneg %p187
        $region78: #{tpu_custom_call.1} parent=51 // pred_check_branch
          %419 = sbr.rel (%p417) target = $region80
        $region79: #{tpu_custom_call.1} parent=51 // pred_region
          %420 = dma.done [#allocation12], 512
        $region80: #{tpu_custom_call.1} parent=51 // pred_fallthru
          _
        %s421 = sand.u32 %s38, 1
        %s422 = scalar_lea.sflag [#allocation3], %s421
        %s423 = sand.u32 %s38, 1
        %s424 = smul.addr %s423, 16
        %s425 = scalar_lea.vmem [#allocation2], %s424
        %p426 = pneg %p51
        %p427 = pneg %p48
        %s428 = sand.u32 %s30, 1
        %s429 = scalar_lea.sflag [#allocation6], %s428
        %s430 = sand.u32 %s64, 1
        %s431 = smul.addr %s430, 16
        %s432 = scalar_lea.vmem [#allocation5], %s431
        %p433 = pneg %p77
        %p434 = pneg %p74
        %s435 = sand.u32 %s30, 1
        %s436 = scalar_lea.sflag [#allocation6], %s435
        %s437 = sand.u32 %s90, 1
        %s438 = smul.addr %s437, 16
        %s439 = scalar_lea.vmem [#allocation7], %s438
        %p440 = pneg %p103
        %p441 = pneg %p100
        %p442 = pneg %p124
        %p443 = pneg %p121
        %p444 = pneg %p145
        %p445 = pneg %p142
        %p446 = pneg %p166
        %p447 = pneg %p163
        %p448 = pneg %p187
        %p449 = pneg %p184
        %p450 = pneg %p208
        %p451 = pneg %p205
        %p452 = pneg %p234
        %p453 = pneg %p231
        %s454 = sand.u32 %s221, 1
        %s455 = scalar_lea.sflag [#allocation4], %s454
        %s456 = sand.u32 %s221, 1
        %s457 = smul.addr %s456, 16
        %s458 = scalar_lea.vmem [#allocation14], %s457
        %s459 = smul.u32 2, %s30
        %s460 = smul.u32 2, %s30
        %s461 = smul.u32 2, %s30
        %s462 = smul.u32 2, %s30
        %v463 = vld [vmem:[%s7] sm:$0x1]
        %v464 = vld [vmem:[%s382] sm:$0xff]
        %v465 = vld [vmem:[%s382 + $0x8] sm:$0xff]
        %v466 = vld [vmem:[#allocation8] sm:$0xff]
        %v467 = vld [vmem:[#allocation8 + $0x8] sm:$0xff]
        %v468 = vld [vmem:[#allocation8 + $0x10] sm:$0xff]
        %v469 = vld [vmem:[#allocation8 + $0x18] sm:$0xff]
        %v470 = vlaneseq
        %v471 = vshrl.u32 %v470, 7
        %v472 = vsub.s32 0, %v471
        %v473 = vrot.slane %v463, %v472
        %vm474 = vcmask 261120
        %v476 = vsel %vm474, %v464, 0
        %v479 = vsel %vm474, %v465, 0
        %481 = vmatprep.subr.mxu0 0.0
        %482 = vmatpush1.msra.mxu0 %v466
        %483 = vmatprep.subr.mxu0 0.0
        %484 = vmatpush1.msra.mxu0 %v467
        %485 = vmatprep.subr.mxu0 0.0
        %486 = vmatpush1.msra.mxu0 %v468
        %487 = vmatprep.subr.mxu0 0.0
        %488 = vmatpush1.msra.mxu0 %v469
        %489 = vmatprep.subr.mxu0 0.0
        %490 = vmatpush1.msra.mxu0 0.0
        %491 = vmatprep.subr.mxu0 0.0
        %492 = vmatpush1.msra.mxu0 0.0
        %493 = vmatprep.subr.mxu0 0.0
        %494 = vmatpush1.msra.mxu0 0.0
        %495 = vmatprep.subr.mxu0 0.0
        %496 = vmatpush1.msra.mxu0 0.0
        %497 = vmatprep.subr.mxu0 0.0
        %498 = vmatpush1.msra.mxu0 0.0
        %499 = vmatprep.subr.mxu0 0.0
        %500 = vmatpush1.msra.mxu0 0.0
        %501 = vmatprep.subr.mxu0 0.0
        %502 = vmatpush1.msra.mxu0 0.0
        %503 = vmatprep.subr.mxu0 0.0
        %504 = vmatpush1.msra.mxu0 0.0
        %505 = vmatprep.subr.mxu0 0.0
        %506 = vmatpush1.msra.mxu0 0.0
        %507 = vmatprep.subr.mxu0 0.0
        %508 = vmatpush1.msra.mxu0 0.0
        %509 = vmatprep.subr.mxu0 0.0
        %510 = vmatpush1.msra.mxu0 0.0
        %511 = vmatprep.subr.mxu0 0.0
        %512 = vmatpush1.msra.mxu0 0.0
        %513 = vmatprep.subr.mxu0 0.0
        %514 = vmatpush1.msra.mxu0 0.0
        %515 = vmatprep.subr.mxu0 0.0
        %516 = vmatpush1.msra.mxu0 0.0
        %517 = vmatprep.subr.mxu0 0.0
        %518 = vmatpush1.msra.mxu0 0.0
        %519 = vmatprep.subr.mxu0 0.0
        %520 = vmatpush1.msra.mxu0 0.0
        %521 = vmatprep.subr.mxu0 0.0
        %522 = vmatpush1.msra.mxu0 0.0
        %523 = vmatprep.subr.mxu0 0.0
        %524 = vmatpush1.msra.mxu0 0.0
        %525 = vmatprep.subr.mxu0 0.0
        %526 = vmatpush1.msra.mxu0 0.0
        %527 = vmatprep.subr.mxu0 0.0
        %528 = vmatpush1.msra.mxu0 0.0
        %529 = vmatprep.subr.mxu0 0.0
        %530 = vmatpush1.msra.mxu0 0.0
        %531 = vmatprep.subr.mxu0 0.0
        %532 = vmatpush1.msra.mxu0 0.0
        %533 = vmatprep.subr.mxu0 0.0
        %534 = vmatpush1.msra.mxu0 0.0
        %535 = vmatprep.subr.mxu0 0.0
        %536 = vmatpush1.msra.mxu0 0.0
        %537 = vmatprep.subr.mxu0 0.0
        %538 = vmatpush1.msra.mxu0 0.0
        %539 = vmatprep.subr.mxu0 0.0
        %540 = vmatpush1.msra.mxu0 0.0
        %541 = vmatprep.subr.mxu0 0.0
        %542 = vmatpush1.msra.mxu0 0.0
        %543 = vmatprep.subr.mxu0 0.0
        %544 = vmatpush1.msra.mxu0 0.0
        %545 = vmatprep.mubr.f32.mxu0 0.0
        %546 = vmatmul.mubr.f32.gmra.mrb[0].mxu0 %v476
        %v547 = vpop.f32.mrb[0].mxu0
        %v548 = vadd.f32 %v473, %v547
        %v549 = vpop.f32.mrb[0].mxu0
        %550 = vmatprep.mubr.f32.mxu0 0.0
        %551 = vmatmul.mubr.f32.gmra.mrb[0].mxu0 %v479
        %v552 = vpop.f32.mrb[0].mxu0
        %v553 = vadd.f32 %v473, %v552
        %v554 = vpop.f32.mrb[0].mxu0
        %555 = vdwg.mxu0
        %v556 = vld [vmem:[%s7 + $0x1] sm:$0x1]
        %v557 = vld [vmem:[%s391] sm:$0xff]
        %v558 = vld [vmem:[%s391 + $0x8] sm:$0xff]
        %v559 = vld [vmem:[#allocation10] sm:$0xff]
        %v560 = vld [vmem:[#allocation10 + $0x8] sm:$0xff]
        %v561 = vld [vmem:[#allocation10 + $0x10] sm:$0xff]
        %v562 = vld [vmem:[#allocation10 + $0x18] sm:$0xff]
        %v563 = vlaneseq
        %v564 = vshrl.u32 %v563, 7
        %v565 = vsub.s32 0, %v564
        %v566 = vrot.slane %v556, %v565
        %v568 = vsel %vm474, %v557, 0
        %v571 = vsel %vm474, %v558, 0
        %573 = vmatprep.subr.mxu0 0.0
        %574 = vmatpush1.msra.mxu0 %v559
        %575 = vmatprep.subr.mxu0 0.0
        %576 = vmatpush1.msra.mxu0 %v560
        %577 = vmatprep.subr.mxu0 0.0
        %578 = vmatpush1.msra.mxu0 %v561
        %579 = vmatprep.subr.mxu0 0.0
        %580 = vmatpush1.msra.mxu0 %v562
        %581 = vmatprep.subr.mxu0 0.0
        %582 = vmatpush1.msra.mxu0 0.0
        %583 = vmatprep.subr.mxu0 0.0
        %584 = vmatpush1.msra.mxu0 0.0
        %585 = vmatprep.subr.mxu0 0.0
        %586 = vmatpush1.msra.mxu0 0.0
        %587 = vmatprep.subr.mxu0 0.0
        %588 = vmatpush1.msra.mxu0 0.0
        %589 = vmatprep.subr.mxu0 0.0
        %590 = vmatpush1.msra.mxu0 0.0
        %591 = vmatprep.subr.mxu0 0.0
        %592 = vmatpush1.msra.mxu0 0.0
        %593 = vmatprep.subr.mxu0 0.0
        %594 = vmatpush1.msra.mxu0 0.0
        %595 = vmatprep.subr.mxu0 0.0
        %596 = vmatpush1.msra.mxu0 0.0
        %597 = vmatprep.subr.mxu0 0.0
        %598 = vmatpush1.msra.mxu0 0.0
        %599 = vmatprep.subr.mxu0 0.0
        %600 = vmatpush1.msra.mxu0 0.0
        %601 = vmatprep.subr.mxu0 0.0
        %602 = vmatpush1.msra.mxu0 0.0
        %603 = vmatprep.subr.mxu0 0.0
        %604 = vmatpush1.msra.mxu0 0.0
        %605 = vmatprep.subr.mxu0 0.0
        %606 = vmatpush1.msra.mxu0 0.0
        %607 = vmatprep.subr.mxu0 0.0
        %608 = vmatpush1.msra.mxu0 0.0
        %609 = vmatprep.subr.mxu0 0.0
        %610 = vmatpush1.msra.mxu0 0.0
        %611 = vmatprep.subr.mxu0 0.0
        %612 = vmatpush1.msra.mxu0 0.0
        %613 = vmatprep.subr.mxu0 0.0
        %614 = vmatpush1.msra.mxu0 0.0
        %615 = vmatprep.subr.mxu0 0.0
        %616 = vmatpush1.msra.mxu0 0.0
        %617 = vmatprep.subr.mxu0 0.0
        %618 = vmatpush1.msra.mxu0 0.0
        %619 = vmatprep.subr.mxu0 0.0
        %620 = vmatpush1.msra.mxu0 0.0
        %621 = vmatprep.subr.mxu0 0.0
        %622 = vmatpush1.msra.mxu0 0.0
        %623 = vmatprep.subr.mxu0 0.0
        %624 = vmatpush1.msra.mxu0 0.0
        %625 = vmatprep.subr.mxu0 0.0
        %626 = vmatpush1.msra.mxu0 0.0
        %627 = vmatprep.subr.mxu0 0.0
        %628 = vmatpush1.msra.mxu0 0.0
        %629 = vmatprep.subr.mxu0 0.0
        %630 = vmatpush1.msra.mxu0 0.0
        %631 = vmatprep.subr.mxu0 0.0
        %632 = vmatpush1.msra.mxu0 0.0
        %633 = vmatprep.subr.mxu0 0.0
        %634 = vmatpush1.msra.mxu0 0.0
        %635 = vmatprep.subr.mxu0 0.0
        %636 = vmatpush1.msra.mxu0 0.0
        %637 = vmatprep.mubr.f32.mxu0 0.0
        %638 = vmatmul.mubr.f32.gmra.mrb[0].mxu0 %v568
        %v639 = vpop.f32.mrb[0].mxu0
        %v640 = vadd.f32 %v566, %v639
        %v641 = vpop.f32.mrb[0].mxu0
        %642 = vmatprep.mubr.f32.mxu0 0.0
        %643 = vmatmul.mubr.f32.gmra.mrb[0].mxu0 %v571
        %v644 = vpop.f32.mrb[0].mxu0
        %v645 = vadd.f32 %v566, %v644
        %v646 = vpop.f32.mrb[0].mxu0
        %647 = vdwg.mxu0
        %v648 = vld [vmem:[%s7 + $0x2] sm:$0x1]
        %v649 = vld [vmem:[%s400] sm:$0xff]
        %v650 = vld [vmem:[%s400 + $0x8] sm:$0xff]
        %v651 = vld [vmem:[#allocation11] sm:$0xff]
        %v652 = vld [vmem:[#allocation11 + $0x8] sm:$0xff]
        %v653 = vld [vmem:[#allocation11 + $0x10] sm:$0xff]
        %v654 = vld [vmem:[#allocation11 + $0x18] sm:$0xff]
        %v655 = vlaneseq
        %v656 = vshrl.u32 %v655, 7
        %v657 = vsub.s32 0, %v656
        %v658 = vrot.slane %v648, %v657
        %v660 = vsel %vm474, %v649, 0
        %v663 = vsel %vm474, %v650, 0
        %665 = vmatprep.subr.mxu0 0.0
        %666 = vmatpush1.msra.mxu0 %v651
        %667 = vmatprep.subr.mxu0 0.0
        %668 = vmatpush1.msra.mxu0 %v652
        %669 = vmatprep.subr.mxu0 0.0
        %670 = vmatpush1.msra.mxu0 %v653
        %671 = vmatprep.subr.mxu0 0.0
        %672 = vmatpush1.msra.mxu0 %v654
        %673 = vmatprep.subr.mxu0 0.0
        %674 = vmatpush1.msra.mxu0 0.0
        %675 = vmatprep.subr.mxu0 0.0
        %676 = vmatpush1.msra.mxu0 0.0
        %677 = vmatprep.subr.mxu0 0.0
        %678 = vmatpush1.msra.mxu0 0.0
        %679 = vmatprep.subr.mxu0 0.0
        %680 = vmatpush1.msra.mxu0 0.0
        %681 = vmatprep.subr.mxu0 0.0
        %682 = vmatpush1.msra.mxu0 0.0
        %683 = vmatprep.subr.mxu0 0.0
        %684 = vmatpush1.msra.mxu0 0.0
        %685 = vmatprep.subr.mxu0 0.0
        %686 = vmatpush1.msra.mxu0 0.0
        %687 = vmatprep.subr.mxu0 0.0
        %688 = vmatpush1.msra.mxu0 0.0
        %689 = vmatprep.subr.mxu0 0.0
        %690 = vmatpush1.msra.mxu0 0.0
        %691 = vmatprep.subr.mxu0 0.0
        %692 = vmatpush1.msra.mxu0 0.0
        %693 = vmatprep.subr.mxu0 0.0
        %694 = vmatpush1.msra.mxu0 0.0
        %695 = vmatprep.subr.mxu0 0.0
        %696 = vmatpush1.msra.mxu0 0.0
        %697 = vmatprep.subr.mxu0 0.0
        %698 = vmatpush1.msra.mxu0 0.0
        %699 = vmatprep.subr.mxu0 0.0
        %700 = vmatpush1.msra.mxu0 0.0
        %701 = vmatprep.subr.mxu0 0.0
        %702 = vmatpush1.msra.mxu0 0.0
        %703 = vmatprep.subr.mxu0 0.0
        %704 = vmatpush1.msra.mxu0 0.0
        %705 = vmatprep.subr.mxu0 0.0
        %706 = vmatpush1.msra.mxu0 0.0
        %707 = vmatprep.subr.mxu0 0.0
        %708 = vmatpush1.msra.mxu0 0.0
        %709 = vmatprep.subr.mxu0 0.0
        %710 = vmatpush1.msra.mxu0 0.0
        %711 = vmatprep.subr.mxu0 0.0
        %712 = vmatpush1.msra.mxu0 0.0
        %713 = vmatprep.subr.mxu0 0.0
        %714 = vmatpush1.msra.mxu0 0.0
        %715 = vmatprep.subr.mxu0 0.0
        %716 = vmatpush1.msra.mxu0 0.0
        %717 = vmatprep.subr.mxu0 0.0
        %718 = vmatpush1.msra.mxu0 0.0
        %719 = vmatprep.subr.mxu0 0.0
        %720 = vmatpush1.msra.mxu0 0.0
        %721 = vmatprep.subr.mxu0 0.0
        %722 = vmatpush1.msra.mxu0 0.0
        %723 = vmatprep.subr.mxu0 0.0
        %724 = vmatpush1.msra.mxu0 0.0
        %725 = vmatprep.subr.mxu0 0.0
        %726 = vmatpush1.msra.mxu0 0.0
        %727 = vmatprep.subr.mxu0 0.0
        %728 = vmatpush1.msra.mxu0 0.0
        %729 = vmatprep.mubr.f32.mxu0 0.0
        %730 = vmatmul.mubr.f32.gmra.mrb[0].mxu0 %v660
        %v731 = vpop.f32.mrb[0].mxu0
        %v732 = vadd.f32 %v658, %v731
        %v733 = vpop.f32.mrb[0].mxu0
        %734 = vmatprep.mubr.f32.mxu0 0.0
        %735 = vmatmul.mubr.f32.gmra.mrb[0].mxu0 %v663
        %v736 = vpop.f32.mrb[0].mxu0
        %v737 = vadd.f32 %v658, %v736
        %v738 = vpop.f32.mrb[0].mxu0
        %739 = vdwg.mxu0
        %vm740 = vcmask 31744
        %v742 = vsel %vm740, %v548, 0
        %v745 = vsel %vm740, %v553, 0
        %v748 = vsel %vm740, %v640, 0
        %v751 = vsel %vm740, %v645, 0
        %753 = vmatprep.subr.mxu0 0.0
        %754 = vmatpush1.xpose.msra.mxu0 %v748
        %755 = vmatprep.subr.mxu0 0.0
        %756 = vmatpush1.xpose.msra.mxu0 %v751
        %757 = vmatprep.subr.mxu0 0.0
        %758 = vmatpush1.xpose.msra.mxu0 0.0
        %759 = vmatprep.subr.mxu0 0.0
        %760 = vmatpush1.xpose.msra.mxu0 0.0
        %761 = vmatprep.subr.mxu0 0.0
        %762 = vmatpush1.xpose.msra.mxu0 0.0
        %763 = vmatprep.subr.mxu0 0.0
        %764 = vmatpush1.xpose.msra.mxu0 0.0
        %765 = vmatprep.subr.mxu0 0.0
        %766 = vmatpush1.xpose.msra.mxu0 0.0
        %767 = vmatprep.subr.mxu0 0.0
        %768 = vmatpush1.xpose.msra.mxu0 0.0
        %769 = vmatprep.subr.mxu0 0.0
        %770 = vmatpush1.xpose.msra.mxu0 0.0
        %771 = vmatprep.subr.mxu0 0.0
        %772 = vmatpush1.xpose.msra.mxu0 0.0
        %773 = vmatprep.subr.mxu0 0.0
        %774 = vmatpush1.xpose.msra.mxu0 0.0
        %775 = vmatprep.subr.mxu0 0.0
        %776 = vmatpush1.xpose.msra.mxu0 0.0
        %777 = vmatprep.subr.mxu0 0.0
        %778 = vmatpush1.xpose.msra.mxu0 0.0
        %779 = vmatprep.subr.mxu0 0.0
        %780 = vmatpush1.xpose.msra.mxu0 0.0
        %781 = vmatprep.subr.mxu0 0.0
        %782 = vmatpush1.xpose.msra.mxu0 0.0
        %783 = vmatprep.subr.mxu0 0.0
        %784 = vmatpush1.xpose.msra.mxu0 0.0
        %785 = vmatprep.subr.mxu0 0.0
        %786 = vmatpush1.xpose.msra.mxu0 0.0
        %787 = vmatprep.subr.mxu0 0.0
        %788 = vmatpush1.xpose.msra.mxu0 0.0
        %789 = vmatprep.subr.mxu0 0.0
        %790 = vmatpush1.xpose.msra.mxu0 0.0
        %791 = vmatprep.subr.mxu0 0.0
        %792 = vmatpush1.xpose.msra.mxu0 0.0
        %793 = vmatprep.subr.mxu0 0.0
        %794 = vmatpush1.xpose.msra.mxu0 0.0
        %795 = vmatprep.subr.mxu0 0.0
        %796 = vmatpush1.xpose.msra.mxu0 0.0
        %797 = vmatprep.subr.mxu0 0.0
        %798 = vmatpush1.xpose.msra.mxu0 0.0
        %799 = vmatprep.subr.mxu0 0.0
        %800 = vmatpush1.xpose.msra.mxu0 0.0
        %801 = vmatprep.subr.mxu0 0.0
        %802 = vmatpush1.xpose.msra.mxu0 0.0
        %803 = vmatprep.subr.mxu0 0.0
        %804 = vmatpush1.xpose.msra.mxu0 0.0
        %805 = vmatprep.subr.mxu0 0.0
        %806 = vmatpush1.xpose.msra.mxu0 0.0
        %807 = vmatprep.subr.mxu0 0.0
        %808 = vmatpush1.xpose.msra.mxu0 0.0
        %809 = vmatprep.subr.mxu0 0.0
        %810 = vmatpush1.xpose.msra.mxu0 0.0
        %811 = vmatprep.subr.mxu0 0.0
        %812 = vmatpush1.xpose.msra.mxu0 0.0
        %813 = vmatprep.subr.mxu0 0.0
        %814 = vmatpush1.xpose.msra.mxu0 0.0
        %815 = vmatprep.subr.mxu0 0.0
        %816 = vmatpush1.xpose.msra.mxu0 0.0
        %817 = vmatprep.mubr.f32.mxu0 0.0
        %818 = vmatmul.mubr.f32.gmra.mrb[0].mxu0 %v742
        %v819 = vpop.f32.mrb[0].mxu0
        %v820 = vadd.f32 0.0, %v819
        %v821 = vpop.f32.mrb[0].mxu0
        %822 = vmatprep.mubr.f32.mxu0 0.0
        %823 = vmatmul.mubr.f32.gmra.mrb[0].mxu0 %v745
        %v824 = vpop.f32.mrb[0].mxu0
        %v825 = vadd.f32 0.0, %v824
        %v826 = vpop.f32.mrb[0].mxu0
        %827 = vdwg.mxu0
        %vm828 = vcmask 130048
        %v829 = vsel %vm828, %v820, -inf
        %830 = vmax.xlane.f32.xlu0 %v829
        %v831 = vpop.xlane.xlu0 %830
        %v832 = vsel %vm828, %v825, -inf
        %833 = vmax.xlane.f32.xlu0 %v832
        %v834 = vpop.xlane.xlu0 %833
        %v835 = vsub.f32 %v820, %v831
        %v836 = vsub.f32 %v825, %v834
        %v837 = vmul.f32 %v835, 1.442695
        %v838 = vpow.pop %v837
        %v839 = vmul.f32 %v836, 1.442695
        %v840 = vpow.pop %v839
        %v841 = vsel %vm828, %v838, 0.0
        %842 = vadd.xlane.f32.xlu0 %v841
        %v843 = vpop.xlane.xlu0 %842
        %v844 = vsel %vm828, %v840, 0.0
        %845 = vadd.xlane.f32.xlu0 %v844
        %v846 = vpop.xlane.xlu0 %845
        %v847 = vrcp.pop %v843
        %v848 = vrcp.pop %v846
        %v849 = vmul.f32 %v838, %v847
        %v850 = vmul.f32 %v840, %v848
        %v852 = vsel %vm828, %v849, 0
        %v855 = vsel %vm828, %v850, 0
        %857 = vmatprep.subr.mxu0 0.0
        %858 = vmatpush1.msra.mxu0 %v732
        %859 = vmatprep.subr.mxu0 0.0
        %860 = vmatpush1.msra.mxu0 %v737
        %861 = vmatprep.subr.mxu0 0.0
        %862 = vmatpush1.msra.mxu0 0.0
        %863 = vmatprep.subr.mxu0 0.0
        %864 = vmatpush1.msra.mxu0 0.0
        %865 = vmatprep.subr.mxu0 0.0
        %866 = vmatpush1.msra.mxu0 0.0
        %867 = vmatprep.subr.mxu0 0.0
        %868 = vmatpush1.msra.mxu0 0.0
        %869 = vmatprep.subr.mxu0 0.0
        %870 = vmatpush1.msra.mxu0 0.0
        %871 = vmatprep.subr.mxu0 0.0
        %872 = vmatpush1.msra.mxu0 0.0
        %873 = vmatprep.subr.mxu0 0.0
        %874 = vmatpush1.msra.mxu0 0.0
        %875 = vmatprep.subr.mxu0 0.0
        %876 = vmatpush1.msra.mxu0 0.0
        %877 = vmatprep.subr.mxu0 0.0
        %878 = vmatpush1.msra.mxu0 0.0
        %879 = vmatprep.subr.mxu0 0.0
        %880 = vmatpush1.msra.mxu0 0.0
        %881 = vmatprep.subr.mxu0 0.0
        %882 = vmatpush1.msra.mxu0 0.0
        %883 = vmatprep.subr.mxu0 0.0
        %884 = vmatpush1.msra.mxu0 0.0
        %885 = vmatprep.subr.mxu0 0.0
        %886 = vmatpush1.msra.mxu0 0.0
        %887 = vmatprep.subr.mxu0 0.0
        %888 = vmatpush1.msra.mxu0 0.0
        %889 = vmatprep.subr.mxu0 0.0
        %890 = vmatpush1.msra.mxu0 0.0
        %891 = vmatprep.subr.mxu0 0.0
        %892 = vmatpush1.msra.mxu0 0.0
        %893 = vmatprep.subr.mxu0 0.0
        %894 = vmatpush1.msra.mxu0 0.0
        %895 = vmatprep.subr.mxu0 0.0
        %896 = vmatpush1.msra.mxu0 0.0
        %897 = vmatprep.subr.mxu0 0.0
        %898 = vmatpush1.msra.mxu0 0.0
        %899 = vmatprep.subr.mxu0 0.0
        %900 = vmatpush1.msra.mxu0 0.0
        %901 = vmatprep.subr.mxu0 0.0
        %902 = vmatpush1.msra.mxu0 0.0
        %903 = vmatprep.subr.mxu0 0.0
        %904 = vmatpush1.msra.mxu0 0.0
        %905 = vmatprep.subr.mxu0 0.0
        %906 = vmatpush1.msra.mxu0 0.0
        %907 = vmatprep.subr.mxu0 0.0
        %908 = vmatpush1.msra.mxu0 0.0
        %909 = vmatprep.subr.mxu0 0.0
        %910 = vmatpush1.msra.mxu0 0.0
        %911 = vmatprep.subr.mxu0 0.0
        %912 = vmatpush1.msra.mxu0 0.0
        %913 = vmatprep.subr.mxu0 0.0
        %914 = vmatpush1.msra.mxu0 0.0
        %915 = vmatprep.subr.mxu0 0.0
        %916 = vmatpush1.msra.mxu0 0.0
        %917 = vmatprep.subr.mxu0 0.0
        %918 = vmatpush1.msra.mxu0 0.0
        %919 = vmatprep.subr.mxu0 0.0
        %920 = vmatpush1.msra.mxu0 0.0
        %921 = vmatprep.mubr.f32.mxu0 0.0
        %922 = vmatmul.mubr.f32.gmra.mrb[0].mxu0 %v852
        %v923 = vpop.f32.mrb[0].mxu0
        %v924 = vadd.f32 0.0, %v923
        %v925 = vpop.f32.mrb[0].mxu0
        %926 = vmatprep.mubr.f32.mxu0 0.0
        %927 = vmatmul.mubr.f32.gmra.mrb[0].mxu0 %v855
        %v928 = vpop.f32.mrb[0].mxu0
        %v929 = vadd.f32 0.0, %v928
        %v930 = vpop.f32.mrb[0].mxu0
        %931 = vdwg.mxu0
        %932 = vrot.lane.b32.xlu0 %v548, 124
        %v933 = vpop.permute.xlu0 %932
        %934 = vrot.lane.b32.xlu0 %v553, 124
        %v935 = vpop.permute.xlu0 %934
        %936 = vrot.lane.b32.xlu0 %v640, 124
        %v937 = vpop.permute.xlu0 %936
        %938 = vrot.lane.b32.xlu0 %v645, 124
        %v939 = vpop.permute.xlu0 %938
        %v940 = vsel %vm740, %v933, 0
        %v942 = vsel %vm740, %v935, 0
        %v944 = vsel %vm740, %v937, 0
        %v946 = vsel %vm740, %v939, 0
        %948 = vmatprep.subr.mxu0 0.0
        %949 = vmatpush1.xpose.msra.mxu0 %v944
        %950 = vmatprep.subr.mxu0 0.0
        %951 = vmatpush1.xpose.msra.mxu0 %v946
        %952 = vmatprep.subr.mxu0 0.0
        %953 = vmatpush1.xpose.msra.mxu0 0.0
        %954 = vmatprep.subr.mxu0 0.0
        %955 = vmatpush1.xpose.msra.mxu0 0.0
        %956 = vmatprep.subr.mxu0 0.0
        %957 = vmatpush1.xpose.msra.mxu0 0.0
        %958 = vmatprep.subr.mxu0 0.0
        %959 = vmatpush1.xpose.msra.mxu0 0.0
        %960 = vmatprep.subr.mxu0 0.0
        %961 = vmatpush1.xpose.msra.mxu0 0.0
        %962 = vmatprep.subr.mxu0 0.0
        %963 = vmatpush1.xpose.msra.mxu0 0.0
        %964 = vmatprep.subr.mxu0 0.0
        %965 = vmatpush1.xpose.msra.mxu0 0.0
        %966 = vmatprep.subr.mxu0 0.0
        %967 = vmatpush1.xpose.msra.mxu0 0.0
        %968 = vmatprep.subr.mxu0 0.0
        %969 = vmatpush1.xpose.msra.mxu0 0.0
        %970 = vmatprep.subr.mxu0 0.0
        %971 = vmatpush1.xpose.msra.mxu0 0.0
        %972 = vmatprep.subr.mxu0 0.0
        %973 = vmatpush1.xpose.msra.mxu0 0.0
        %974 = vmatprep.subr.mxu0 0.0
        %975 = vmatpush1.xpose.msra.mxu0 0.0
        %976 = vmatprep.subr.mxu0 0.0
        %977 = vmatpush1.xpose.msra.mxu0 0.0
        %978 = vmatprep.subr.mxu0 0.0
        %979 = vmatpush1.xpose.msra.mxu0 0.0
        %980 = vmatprep.subr.mxu0 0.0
        %981 = vmatpush1.xpose.msra.mxu0 0.0
        %982 = vmatprep.subr.mxu0 0.0
        %983 = vmatpush1.xpose.msra.mxu0 0.0
        %984 = vmatprep.subr.mxu0 0.0
        %985 = vmatpush1.xpose.msra.mxu0 0.0
        %986 = vmatprep.subr.mxu0 0.0
        %987 = vmatpush1.xpose.msra.mxu0 0.0
        %988 = vmatprep.subr.mxu0 0.0
        %989 = vmatpush1.xpose.msra.mxu0 0.0
        %990 = vmatprep.subr.mxu0 0.0
        %991 = vmatpush1.xpose.msra.mxu0 0.0
        %992 = vmatprep.subr.mxu0 0.0
        %993 = vmatpush1.xpose.msra.mxu0 0.0
        %994 = vmatprep.subr.mxu0 0.0
        %995 = vmatpush1.xpose.msra.mxu0 0.0
        %996 = vmatprep.subr.mxu0 0.0
        %997 = vmatpush1.xpose.msra.mxu0 0.0
        %998 = vmatprep.subr.mxu0 0.0
        %999 = vmatpush1.xpose.msra.mxu0 0.0
        %1000 = vmatprep.subr.mxu0 0.0
        %1001 = vmatpush1.xpose.msra.mxu0 0.0
        %1002 = vmatprep.subr.mxu0 0.0
        %1003 = vmatpush1.xpose.msra.mxu0 0.0
        %1004 = vmatprep.subr.mxu0 0.0
        %1005 = vmatpush1.xpose.msra.mxu0 0.0
        %1006 = vmatprep.subr.mxu0 0.0
        %1007 = vmatpush1.xpose.msra.mxu0 0.0
        %1008 = vmatprep.subr.mxu0 0.0
        %1009 = vmatpush1.xpose.msra.mxu0 0.0
        %1010 = vmatprep.subr.mxu0 0.0
        %1011 = vmatpush1.xpose.msra.mxu0 0.0
        %1012 = vmatprep.mubr.f32.mxu0 0.0
        %1013 = vmatmul.mubr.f32.gmra.mrb[0].mxu0 %v940
        %v1014 = vpop.f32.mrb[0].mxu0
        %v1015 = vadd.f32 0.0, %v1014
        %v1016 = vpop.f32.mrb[0].mxu0
        %1017 = vmatprep.mubr.f32.mxu0 0.0
        %1018 = vmatmul.mubr.f32.gmra.mrb[0].mxu0 %v942
        %v1019 = vpop.f32.mrb[0].mxu0
        %v1020 = vadd.f32 0.0, %v1019
        %v1021 = vpop.f32.mrb[0].mxu0
        %1022 = vdwg.mxu0
        %v1023 = vsel %vm828, %v1015, -inf
        %1024 = vmax.xlane.f32.xlu0 %v1023
        %v1025 = vpop.xlane.xlu0 %1024
        %v1026 = vsel %vm828, %v1020, -inf
        %1027 = vmax.xlane.f32.xlu0 %v1026
        %v1028 = vpop.xlane.xlu0 %1027
        %v1029 = vsub.f32 %v1015, %v1025
        %v1030 = vsub.f32 %v1020, %v1028
        %v1031 = vmul.f32 %v1029, 1.442695
        %v1032 = vpow.pop %v1031
        %v1033 = vmul.f32 %v1030, 1.442695
        %v1034 = vpow.pop %v1033
        %v1035 = vsel %vm828, %v1032, 0.0
        %1036 = vadd.xlane.f32.xlu0 %v1035
        %v1037 = vpop.xlane.xlu0 %1036
        %v1038 = vsel %vm828, %v1034, 0.0
        %1039 = vadd.xlane.f32.xlu0 %v1038
        %v1040 = vpop.xlane.xlu0 %1039
        %v1041 = vrcp.pop %v1037
        %v1042 = vrcp.pop %v1040
        %v1043 = vmul.f32 %v1032, %v1041
        %v1044 = vmul.f32 %v1034, %v1042
        %1047 = vrot.lane.b32.xlu0 %v732, 124
        %v1048 = vpop.permute.xlu0 %1047
        %1049 = vrot.lane.b32.xlu0 %v737, 124
        %v1050 = vpop.permute.xlu0 %1049
        %v1054 = vsel %vm828, %v1043, 0
        %v1057 = vsel %vm828, %v1044, 0
        %1059 = vmatprep.subr.mxu0 0.0
        %1060 = vmatpush1.msra.mxu0 %v1048
        %1061 = vmatprep.subr.mxu0 0.0
        %1062 = vmatpush1.msra.mxu0 %v1050
        %1063 = vmatprep.subr.mxu0 0.0
        %1064 = vmatpush1.msra.mxu0 0.0
        %1065 = vmatprep.subr.mxu0 0.0
        %1066 = vmatpush1.msra.mxu0 0.0
        %1067 = vmatprep.subr.mxu0 0.0
        %1068 = vmatpush1.msra.mxu0 0.0
        %1069 = vmatprep.subr.mxu0 0.0
        %1070 = vmatpush1.msra.mxu0 0.0
        %1071 = vmatprep.subr.mxu0 0.0
        %1072 = vmatpush1.msra.mxu0 0.0
        %1073 = vmatprep.subr.mxu0 0.0
        %1074 = vmatpush1.msra.mxu0 0.0
        %1075 = vmatprep.subr.mxu0 0.0
        %1076 = vmatpush1.msra.mxu0 0.0
        %1077 = vmatprep.subr.mxu0 0.0
        %1078 = vmatpush1.msra.mxu0 0.0
        %1079 = vmatprep.subr.mxu0 0.0
        %1080 = vmatpush1.msra.mxu0 0.0
        %1081 = vmatprep.subr.mxu0 0.0
        %1082 = vmatpush1.msra.mxu0 0.0
        %1083 = vmatprep.subr.mxu0 0.0
        %1084 = vmatpush1.msra.mxu0 0.0
        %1085 = vmatprep.subr.mxu0 0.0
        %1086 = vmatpush1.msra.mxu0 0.0
        %1087 = vmatprep.subr.mxu0 0.0
        %1088 = vmatpush1.msra.mxu0 0.0
        %1089 = vmatprep.subr.mxu0 0.0
        %1090 = vmatpush1.msra.mxu0 0.0
        %1091 = vmatprep.subr.mxu0 0.0
        %1092 = vmatpush1.msra.mxu0 0.0
        %1093 = vmatprep.subr.mxu0 0.0
        %1094 = vmatpush1.msra.mxu0 0.0
        %1095 = vmatprep.subr.mxu0 0.0
        %1096 = vmatpush1.msra.mxu0 0.0
        %1097 = vmatprep.subr.mxu0 0.0
        %1098 = vmatpush1.msra.mxu0 0.0
        %1099 = vmatprep.subr.mxu0 0.0
        %1100 = vmatpush1.msra.mxu0 0.0
        %1101 = vmatprep.subr.mxu0 0.0
        %1102 = vmatpush1.msra.mxu0 0.0
        %1103 = vmatprep.subr.mxu0 0.0
        %1104 = vmatpush1.msra.mxu0 0.0
        %1105 = vmatprep.subr.mxu0 0.0
        %1106 = vmatpush1.msra.mxu0 0.0
        %1107 = vmatprep.subr.mxu0 0.0
        %1108 = vmatpush1.msra.mxu0 0.0
        %1109 = vmatprep.subr.mxu0 0.0
        %1110 = vmatpush1.msra.mxu0 0.0
        %1111 = vmatprep.subr.mxu0 0.0
        %1112 = vmatpush1.msra.mxu0 0.0
        %1113 = vmatprep.subr.mxu0 0.0
        %1114 = vmatpush1.msra.mxu0 0.0
        %1115 = vmatprep.subr.mxu0 0.0
        %1116 = vmatpush1.msra.mxu0 0.0
        %1117 = vmatprep.subr.mxu0 0.0
        %1118 = vmatpush1.msra.mxu0 0.0
        %1119 = vmatprep.subr.mxu0 0.0
        %1120 = vmatpush1.msra.mxu0 0.0
        %1121 = vmatprep.subr.mxu0 0.0
        %1122 = vmatpush1.msra.mxu0 0.0
        %1123 = vmatprep.mubr.f32.mxu0 0.0
        %1124 = vmatmul.mubr.f32.gmra.mrb[0].mxu0 %v1054
        %v1125 = vpop.f32.mrb[0].mxu0
        %v1126 = vadd.f32 0.0, %v1125
        %v1127 = vpop.f32.mrb[0].mxu0
        %1128 = vmatprep.mubr.f32.mxu0 0.0
        %1129 = vmatmul.mubr.f32.gmra.mrb[0].mxu0 %v1057
        %v1130 = vpop.f32.mrb[0].mxu0
        %v1131 = vadd.f32 0.0, %v1130
        %v1132 = vpop.f32.mrb[0].mxu0
        %1133 = vdwg.mxu0
        %1134 = vrot.lane.b32.xlu0 %v548, 120
        %v1135 = vpop.permute.xlu0 %1134
        %1136 = vrot.lane.b32.xlu0 %v553, 120
        %v1137 = vpop.permute.xlu0 %1136
        %1138 = vrot.lane.b32.xlu0 %v640, 120
        %v1139 = vpop.permute.xlu0 %1138
        %1140 = vrot.lane.b32.xlu0 %v645, 120
        %v1141 = vpop.permute.xlu0 %1140
        %v1142 = vsel %vm740, %v1135, 0
        %v1144 = vsel %vm740, %v1137, 0
        %v1146 = vsel %vm740, %v1139, 0
        %v1148 = vsel %vm740, %v1141, 0
        %1150 = vmatprep.subr.mxu0 0.0
        %1151 = vmatpush1.xpose.msra.mxu0 %v1146
        %1152 = vmatprep.subr.mxu0 0.0
        %1153 = vmatpush1.xpose.msra.mxu0 %v1148
        %1154 = vmatprep.subr.mxu0 0.0
        %1155 = vmatpush1.xpose.msra.mxu0 0.0
        %1156 = vmatprep.subr.mxu0 0.0
        %1157 = vmatpush1.xpose.msra.mxu0 0.0
        %1158 = vmatprep.subr.mxu0 0.0
        %1159 = vmatpush1.xpose.msra.mxu0 0.0
        %1160 = vmatprep.subr.mxu0 0.0
        %1161 = vmatpush1.xpose.msra.mxu0 0.0
        %1162 = vmatprep.subr.mxu0 0.0
        %1163 = vmatpush1.xpose.msra.mxu0 0.0
        %1164 = vmatprep.subr.mxu0 0.0
        %1165 = vmatpush1.xpose.msra.mxu0 0.0
        %1166 = vmatprep.subr.mxu0 0.0
        %1167 = vmatpush1.xpose.msra.mxu0 0.0
        %1168 = vmatprep.subr.mxu0 0.0
        %1169 = vmatpush1.xpose.msra.mxu0 0.0
        %1170 = vmatprep.subr.mxu0 0.0
        %1171 = vmatpush1.xpose.msra.mxu0 0.0
        %1172 = vmatprep.subr.mxu0 0.0
        %1173 = vmatpush1.xpose.msra.mxu0 0.0
        %1174 = vmatprep.subr.mxu0 0.0
        %1175 = vmatpush1.xpose.msra.mxu0 0.0
        %1176 = vmatprep.subr.mxu0 0.0
        %1177 = vmatpush1.xpose.msra.mxu0 0.0
        %1178 = vmatprep.subr.mxu0 0.0
        %1179 = vmatpush1.xpose.msra.mxu0 0.0
        %1180 = vmatprep.subr.mxu0 0.0
        %1181 = vmatpush1.xpose.msra.mxu0 0.0
        %1182 = vmatprep.subr.mxu0 0.0
        %1183 = vmatpush1.xpose.msra.mxu0 0.0
        %1184 = vmatprep.subr.mxu0 0.0
        %1185 = vmatpush1.xpose.msra.mxu0 0.0
        %1186 = vmatprep.subr.mxu0 0.0
        %1187 = vmatpush1.xpose.msra.mxu0 0.0
        %1188 = vmatprep.subr.mxu0 0.0
        %1189 = vmatpush1.xpose.msra.mxu0 0.0
        %1190 = vmatprep.subr.mxu0 0.0
        %1191 = vmatpush1.xpose.msra.mxu0 0.0
        %1192 = vmatprep.subr.mxu0 0.0
        %1193 = vmatpush1.xpose.msra.mxu0 0.0
        %1194 = vmatprep.subr.mxu0 0.0
        %1195 = vmatpush1.xpose.msra.mxu0 0.0
        %1196 = vmatprep.subr.mxu0 0.0
        %1197 = vmatpush1.xpose.msra.mxu0 0.0
        %1198 = vmatprep.subr.mxu0 0.0
        %1199 = vmatpush1.xpose.msra.mxu0 0.0
        %1200 = vmatprep.subr.mxu0 0.0
        %1201 = vmatpush1.xpose.msra.mxu0 0.0
        %1202 = vmatprep.subr.mxu0 0.0
        %1203 = vmatpush1.xpose.msra.mxu0 0.0
        %1204 = vmatprep.subr.mxu0 0.0
        %1205 = vmatpush1.xpose.msra.mxu0 0.0
        %1206 = vmatprep.subr.mxu0 0.0
        %1207 = vmatpush1.xpose.msra.mxu0 0.0
        %1208 = vmatprep.subr.mxu0 0.0
        %1209 = vmatpush1.xpose.msra.mxu0 0.0
        %1210 = vmatprep.subr.mxu0 0.0
        %1211 = vmatpush1.xpose.msra.mxu0 0.0
        %1212 = vmatprep.subr.mxu0 0.0
        %1213 = vmatpush1.xpose.msra.mxu0 0.0
        %1214 = vmatprep.mubr.f32.mxu0 0.0
        %1215 = vmatmul.mubr.f32.gmra.mrb[0].mxu0 %v1142
        %v1216 = vpop.f32.mrb[0].mxu0
        %v1217 = vadd.f32 0.0, %v1216
        %v1218 = vpop.f32.mrb[0].mxu0
        %1219 = vmatprep.mubr.f32.mxu0 0.0
        %1220 = vmatmul.mubr.f32.gmra.mrb[0].mxu0 %v1144
        %v1221 = vpop.f32.mrb[0].mxu0
        %v1222 = vadd.f32 0.0, %v1221
        %v1223 = vpop.f32.mrb[0].mxu0
        %1224 = vdwg.mxu0
        %v1225 = vsel %vm828, %v1217, -inf
        %1226 = vmax.xlane.f32.xlu0 %v1225
        %v1227 = vpop.xlane.xlu0 %1226
        %v1228 = vsel %vm828, %v1222, -inf
        %1229 = vmax.xlane.f32.xlu0 %v1228
        %v1230 = vpop.xlane.xlu0 %1229
        %v1231 = vsub.f32 %v1217, %v1227
        %v1232 = vsub.f32 %v1222, %v1230
        %v1233 = vmul.f32 %v1231, 1.442695
        %v1234 = vpow.pop %v1233
        %v1235 = vmul.f32 %v1232, 1.442695
        %v1236 = vpow.pop %v1235
        %v1237 = vsel %vm828, %v1234, 0.0
        %1238 = vadd.xlane.f32.xlu0 %v1237
        %v1239 = vpop.xlane.xlu0 %1238
        %v1240 = vsel %vm828, %v1236, 0.0
        %1241 = vadd.xlane.f32.xlu0 %v1240
        %v1242 = vpop.xlane.xlu0 %1241
        %v1243 = vrcp.pop %v1239
        %v1244 = vrcp.pop %v1242
        %v1245 = vmul.f32 %v1234, %v1243
        %v1246 = vmul.f32 %v1236, %v1244
        %1247 = vrot.lane.b32.xlu0 %v732, 120
        %v1248 = vpop.permute.xlu0 %1247
        %1249 = vrot.lane.b32.xlu0 %v737, 120
        %v1250 = vpop.permute.xlu0 %1249
        %v1254 = vsel %vm828, %v1245, 0
        %v1257 = vsel %vm828, %v1246, 0
        %1259 = vmatprep.subr.mxu0 0.0
        %1260 = vmatpush1.msra.mxu0 %v1248
        %1261 = vmatprep.subr.mxu0 0.0
        %1262 = vmatpush1.msra.mxu0 %v1250
        %1263 = vmatprep.subr.mxu0 0.0
        %1264 = vmatpush1.msra.mxu0 0.0
        %1265 = vmatprep.subr.mxu0 0.0
        %1266 = vmatpush1.msra.mxu0 0.0
        %1267 = vmatprep.subr.mxu0 0.0
        %1268 = vmatpush1.msra.mxu0 0.0
        %1269 = vmatprep.subr.mxu0 0.0
        %1270 = vmatpush1.msra.mxu0 0.0
        %1271 = vmatprep.subr.mxu0 0.0
        %1272 = vmatpush1.msra.mxu0 0.0
        %1273 = vmatprep.subr.mxu0 0.0
        %1274 = vmatpush1.msra.mxu0 0.0
        %1275 = vmatprep.subr.mxu0 0.0
        %1276 = vmatpush1.msra.mxu0 0.0
        %1277 = vmatprep.subr.mxu0 0.0
        %1278 = vmatpush1.msra.mxu0 0.0
        %1279 = vmatprep.subr.mxu0 0.0
        %1280 = vmatpush1.msra.mxu0 0.0
        %1281 = vmatprep.subr.mxu0 0.0
        %1282 = vmatpush1.msra.mxu0 0.0
        %1283 = vmatprep.subr.mxu0 0.0
        %1284 = vmatpush1.msra.mxu0 0.0
        %1285 = vmatprep.subr.mxu0 0.0
        %1286 = vmatpush1.msra.mxu0 0.0
        %1287 = vmatprep.subr.mxu0 0.0
        %1288 = vmatpush1.msra.mxu0 0.0
        %1289 = vmatprep.subr.mxu0 0.0
        %1290 = vmatpush1.msra.mxu0 0.0
        %1291 = vmatprep.subr.mxu0 0.0
        %1292 = vmatpush1.msra.mxu0 0.0
        %1293 = vmatprep.subr.mxu0 0.0
        %1294 = vmatpush1.msra.mxu0 0.0
        %1295 = vmatprep.subr.mxu0 0.0
        %1296 = vmatpush1.msra.mxu0 0.0
        %1297 = vmatprep.subr.mxu0 0.0
        %1298 = vmatpush1.msra.mxu0 0.0
        %1299 = vmatprep.subr.mxu0 0.0
        %1300 = vmatpush1.msra.mxu0 0.0
        %1301 = vmatprep.subr.mxu0 0.0
        %1302 = vmatpush1.msra.mxu0 0.0
        %1303 = vmatprep.subr.mxu0 0.0
        %1304 = vmatpush1.msra.mxu0 0.0
        %1305 = vmatprep.subr.mxu0 0.0
        %1306 = vmatpush1.msra.mxu0 0.0
        %1307 = vmatprep.subr.mxu0 0.0
        %1308 = vmatpush1.msra.mxu0 0.0
        %1309 = vmatprep.subr.mxu0 0.0
        %1310 = vmatpush1.msra.mxu0 0.0
        %1311 = vmatprep.subr.mxu0 0.0
        %1312 = vmatpush1.msra.mxu0 0.0
        %1313 = vmatprep.subr.mxu0 0.0
        %1314 = vmatpush1.msra.mxu0 0.0
        %1315 = vmatprep.subr.mxu0 0.0
        %1316 = vmatpush1.msra.mxu0 0.0
        %1317 = vmatprep.subr.mxu0 0.0
        %1318 = vmatpush1.msra.mxu0 0.0
        %1319 = vmatprep.subr.mxu0 0.0
        %1320 = vmatpush1.msra.mxu0 0.0
        %1321 = vmatprep.subr.mxu0 0.0
        %1322 = vmatpush1.msra.mxu0 0.0
        %1323 = vmatprep.mubr.f32.mxu0 0.0
        %1324 = vmatmul.mubr.f32.gmra.mrb[0].mxu0 %v1254
        %v1325 = vpop.f32.mrb[0].mxu0
        %v1326 = vadd.f32 0.0, %v1325
        %v1327 = vpop.f32.mrb[0].mxu0
        %1328 = vmatprep.mubr.f32.mxu0 0.0
        %1329 = vmatmul.mubr.f32.gmra.mrb[0].mxu0 %v1257
        %v1330 = vpop.f32.mrb[0].mxu0
        %v1331 = vadd.f32 0.0, %v1330
        %v1332 = vpop.f32.mrb[0].mxu0
        %1333 = vdwg.mxu0
        %1334 = vrot.lane.b32.xlu0 %v548, 116
        %v1335 = vpop.permute.xlu0 %1334
        %1336 = vrot.lane.b32.xlu0 %v553, 116
        %v1337 = vpop.permute.xlu0 %1336
        %1338 = vrot.lane.b32.xlu0 %v640, 116
        %v1339 = vpop.permute.xlu0 %1338
        %1340 = vrot.lane.b32.xlu0 %v645, 116
        %v1341 = vpop.permute.xlu0 %1340
        %v1342 = vsel %vm740, %v1335, 0
        %v1344 = vsel %vm740, %v1337, 0
        %v1346 = vsel %vm740, %v1339, 0
        %v1348 = vsel %vm740, %v1341, 0
        %1350 = vmatprep.subr.mxu0 0.0
        %1351 = vmatpush1.xpose.msra.mxu0 %v1346
        %1352 = vmatprep.subr.mxu0 0.0
        %1353 = vmatpush1.xpose.msra.mxu0 %v1348
        %1354 = vmatprep.subr.mxu0 0.0
        %1355 = vmatpush1.xpose.msra.mxu0 0.0
        %1356 = vmatprep.subr.mxu0 0.0
        %1357 = vmatpush1.xpose.msra.mxu0 0.0
        %1358 = vmatprep.subr.mxu0 0.0
        %1359 = vmatpush1.xpose.msra.mxu0 0.0
        %1360 = vmatprep.subr.mxu0 0.0
        %1361 = vmatpush1.xpose.msra.mxu0 0.0
        %1362 = vmatprep.subr.mxu0 0.0
        %1363 = vmatpush1.xpose.msra.mxu0 0.0
        %1364 = vmatprep.subr.mxu0 0.0
        %1365 = vmatpush1.xpose.msra.mxu0 0.0
        %1366 = vmatprep.subr.mxu0 0.0
        %1367 = vmatpush1.xpose.msra.mxu0 0.0
        %1368 = vmatprep.subr.mxu0 0.0
        %1369 = vmatpush1.xpose.msra.mxu0 0.0
        %1370 = vmatprep.subr.mxu0 0.0
        %1371 = vmatpush1.xpose.msra.mxu0 0.0
        %1372 = vmatprep.subr.mxu0 0.0
        %1373 = vmatpush1.xpose.msra.mxu0 0.0
        %1374 = vmatprep.subr.mxu0 0.0
        %1375 = vmatpush1.xpose.msra.mxu0 0.0
        %1376 = vmatprep.subr.mxu0 0.0
        %1377 = vmatpush1.xpose.msra.mxu0 0.0
        %1378 = vmatprep.subr.mxu0 0.0
        %1379 = vmatpush1.xpose.msra.mxu0 0.0
        %1380 = vmatprep.subr.mxu0 0.0
        %1381 = vmatpush1.xpose.msra.mxu0 0.0
        %1382 = vmatprep.subr.mxu0 0.0
        %1383 = vmatpush1.xpose.msra.mxu0 0.0
        %1384 = vmatprep.subr.mxu0 0.0
        %1385 = vmatpush1.xpose.msra.mxu0 0.0
        %1386 = vmatprep.subr.mxu0 0.0
        %1387 = vmatpush1.xpose.msra.mxu0 0.0
        %1388 = vmatprep.subr.mxu0 0.0
        %1389 = vmatpush1.xpose.msra.mxu0 0.0
        %1390 = vmatprep.subr.mxu0 0.0
        %1391 = vmatpush1.xpose.msra.mxu0 0.0
        %1392 = vmatprep.subr.mxu0 0.0
        %1393 = vmatpush1.xpose.msra.mxu0 0.0
        %1394 = vmatprep.subr.mxu0 0.0
        %1395 = vmatpush1.xpose.msra.mxu0 0.0
        %1396 = vmatprep.subr.mxu0 0.0
        %1397 = vmatpush1.xpose.msra.mxu0 0.0
        %1398 = vmatprep.subr.mxu0 0.0
        %1399 = vmatpush1.xpose.msra.mxu0 0.0
        %1400 = vmatprep.subr.mxu0 0.0
        %1401 = vmatpush1.xpose.msra.mxu0 0.0
        %1402 = vmatprep.subr.mxu0 0.0
        %1403 = vmatpush1.xpose.msra.mxu0 0.0
        %1404 = vmatprep.subr.mxu0 0.0
        %1405 = vmatpush1.xpose.msra.mxu0 0.0
        %1406 = vmatprep.subr.mxu0 0.0
        %1407 = vmatpush1.xpose.msra.mxu0 0.0
        %1408 = vmatprep.subr.mxu0 0.0
        %1409 = vmatpush1.xpose.msra.mxu0 0.0
        %1410 = vmatprep.subr.mxu0 0.0
        %1411 = vmatpush1.xpose.msra.mxu0 0.0
        %1412 = vmatprep.subr.mxu0 0.0
        %1413 = vmatpush1.xpose.msra.mxu0 0.0
        %1414 = vmatprep.mubr.f32.mxu0 0.0
        %1415 = vmatmul.mubr.f32.gmra.mrb[0].mxu0 %v1342
        %v1416 = vpop.f32.mrb[0].mxu0
        %v1417 = vadd.f32 0.0, %v1416
        %v1418 = vpop.f32.mrb[0].mxu0
        %1419 = vmatprep.mubr.f32.mxu0 0.0
        %1420 = vmatmul.mubr.f32.gmra.mrb[0].mxu0 %v1344
        %v1421 = vpop.f32.mrb[0].mxu0
        %v1422 = vadd.f32 0.0, %v1421
        %v1423 = vpop.f32.mrb[0].mxu0
        %1424 = vdwg.mxu0
        %v1425 = vsel %vm828, %v1417, -inf
        %1426 = vmax.xlane.f32.xlu0 %v1425
        %v1427 = vpop.xlane.xlu0 %1426
        %v1428 = vsel %vm828, %v1422, -inf
        %1429 = vmax.xlane.f32.xlu0 %v1428
        %v1430 = vpop.xlane.xlu0 %1429
        %v1431 = vsub.f32 %v1417, %v1427
        %v1432 = vsub.f32 %v1422, %v1430
        %v1433 = vmul.f32 %v1431, 1.442695
        %v1434 = vpow.pop %v1433
        %v1435 = vmul.f32 %v1432, 1.442695
        %v1436 = vpow.pop %v1435
        %v1437 = vsel %vm828, %v1434, 0.0
        %1438 = vadd.xlane.f32.xlu0 %v1437
        %v1439 = vpop.xlane.xlu0 %1438
        %v1440 = vsel %vm828, %v1436, 0.0
        %1441 = vadd.xlane.f32.xlu0 %v1440
        %v1442 = vpop.xlane.xlu0 %1441
        %v1443 = vrcp.pop %v1439
        %v1444 = vrcp.pop %v1442
        %v1445 = vmul.f32 %v1434, %v1443
        %v1446 = vmul.f32 %v1436, %v1444
        %1447 = vrot.lane.b32.xlu0 %v732, 116
        %v1448 = vpop.permute.xlu0 %1447
        %1449 = vrot.lane.b32.xlu0 %v737, 116
        %v1450 = vpop.permute.xlu0 %1449
        %v1454 = vsel %vm828, %v1445, 0
        %v1457 = vsel %vm828, %v1446, 0
        %1459 = vmatprep.subr.mxu0 0.0
        %1460 = vmatpush1.msra.mxu0 %v1448
        %1461 = vmatprep.subr.mxu0 0.0
        %1462 = vmatpush1.msra.mxu0 %v1450
        %1463 = vmatprep.subr.mxu0 0.0
        %1464 = vmatpush1.msra.mxu0 0.0
        %1465 = vmatprep.subr.mxu0 0.0
        %1466 = vmatpush1.msra.mxu0 0.0
        %1467 = vmatprep.subr.mxu0 0.0
        %1468 = vmatpush1.msra.mxu0 0.0
        %1469 = vmatprep.subr.mxu0 0.0
        %1470 = vmatpush1.msra.mxu0 0.0
        %1471 = vmatprep.subr.mxu0 0.0
        %1472 = vmatpush1.msra.mxu0 0.0
        %1473 = vmatprep.subr.mxu0 0.0
        %1474 = vmatpush1.msra.mxu0 0.0
        %1475 = vmatprep.subr.mxu0 0.0
        %1476 = vmatpush1.msra.mxu0 0.0
        %1477 = vmatprep.subr.mxu0 0.0
        %1478 = vmatpush1.msra.mxu0 0.0
        %1479 = vmatprep.subr.mxu0 0.0
        %1480 = vmatpush1.msra.mxu0 0.0
        %1481 = vmatprep.subr.mxu0 0.0
        %1482 = vmatpush1.msra.mxu0 0.0
        %1483 = vmatprep.subr.mxu0 0.0
        %1484 = vmatpush1.msra.mxu0 0.0
        %1485 = vmatprep.subr.mxu0 0.0
        %1486 = vmatpush1.msra.mxu0 0.0
        %1487 = vmatprep.subr.mxu0 0.0
        %1488 = vmatpush1.msra.mxu0 0.0
        %1489 = vmatprep.subr.mxu0 0.0
        %1490 = vmatpush1.msra.mxu0 0.0
        %1491 = vmatprep.subr.mxu0 0.0
        %1492 = vmatpush1.msra.mxu0 0.0
        %1493 = vmatprep.subr.mxu0 0.0
        %1494 = vmatpush1.msra.mxu0 0.0
        %1495 = vmatprep.subr.mxu0 0.0
        %1496 = vmatpush1.msra.mxu0 0.0
        %1497 = vmatprep.subr.mxu0 0.0
        %1498 = vmatpush1.msra.mxu0 0.0
        %1499 = vmatprep.subr.mxu0 0.0
        %1500 = vmatpush1.msra.mxu0 0.0
        %1501 = vmatprep.subr.mxu0 0.0
        %1502 = vmatpush1.msra.mxu0 0.0
        %1503 = vmatprep.subr.mxu0 0.0
        %1504 = vmatpush1.msra.mxu0 0.0
        %1505 = vmatprep.subr.mxu0 0.0
        %1506 = vmatpush1.msra.mxu0 0.0
        %1507 = vmatprep.subr.mxu0 0.0
        %1508 = vmatpush1.msra.mxu0 0.0
        %1509 = vmatprep.subr.mxu0 0.0
        %1510 = vmatpush1.msra.mxu0 0.0
        %1511 = vmatprep.subr.mxu0 0.0
        %1512 = vmatpush1.msra.mxu0 0.0
        %1513 = vmatprep.subr.mxu0 0.0
        %1514 = vmatpush1.msra.mxu0 0.0
        %1515 = vmatprep.subr.mxu0 0.0
        %1516 = vmatpush1.msra.mxu0 0.0
        %1517 = vmatprep.subr.mxu0 0.0
        %1518 = vmatpush1.msra.mxu0 0.0
        %1519 = vmatprep.subr.mxu0 0.0
        %1520 = vmatpush1.msra.mxu0 0.0
        %1521 = vmatprep.subr.mxu0 0.0
        %1522 = vmatpush1.msra.mxu0 0.0
        %1523 = vmatprep.mubr.f32.mxu0 0.0
        %1524 = vmatmul.mubr.f32.gmra.mrb[0].mxu0 %v1454
        %v1525 = vpop.f32.mrb[0].mxu0
        %v1526 = vadd.f32 0.0, %v1525
        %v1527 = vpop.f32.mrb[0].mxu0
        %1528 = vmatprep.mubr.f32.mxu0 0.0
        %1529 = vmatmul.mubr.f32.gmra.mrb[0].mxu0 %v1457
        %v1530 = vpop.f32.mrb[0].mxu0
        %v1531 = vadd.f32 0.0, %v1530
        %v1532 = vpop.f32.mrb[0].mxu0
        %1533 = vdwg.mxu0
        %1534 = vrot.lane.b32.xlu0 %v548, 112
        %v1535 = vpop.permute.xlu0 %1534
        %1536 = vrot.lane.b32.xlu0 %v553, 112
        %v1537 = vpop.permute.xlu0 %1536
        %1538 = vrot.lane.b32.xlu0 %v640, 112
        %v1539 = vpop.permute.xlu0 %1538
        %1540 = vrot.lane.b32.xlu0 %v645, 112
        %v1541 = vpop.permute.xlu0 %1540
        %v1542 = vsel %vm740, %v1535, 0
        %v1544 = vsel %vm740, %v1537, 0
        %v1546 = vsel %vm740, %v1539, 0
        %v1548 = vsel %vm740, %v1541, 0
        %1550 = vmatprep.subr.mxu0 0.0
        %1551 = vmatpush1.xpose.msra.mxu0 %v1546
        %1552 = vmatprep.subr.mxu0 0.0
        %1553 = vmatpush1.xpose.msra.mxu0 %v1548
        %1554 = vmatprep.subr.mxu0 0.0
        %1555 = vmatpush1.xpose.msra.mxu0 0.0
        %1556 = vmatprep.subr.mxu0 0.0
        %1557 = vmatpush1.xpose.msra.mxu0 0.0
        %1558 = vmatprep.subr.mxu0 0.0
        %1559 = vmatpush1.xpose.msra.mxu0 0.0
        %1560 = vmatprep.subr.mxu0 0.0
        %1561 = vmatpush1.xpose.msra.mxu0 0.0
        %1562 = vmatprep.subr.mxu0 0.0
        %1563 = vmatpush1.xpose.msra.mxu0 0.0
        %1564 = vmatprep.subr.mxu0 0.0
        %1565 = vmatpush1.xpose.msra.mxu0 0.0
        %1566 = vmatprep.subr.mxu0 0.0
        %1567 = vmatpush1.xpose.msra.mxu0 0.0
        %1568 = vmatprep.subr.mxu0 0.0
        %1569 = vmatpush1.xpose.msra.mxu0 0.0
        %1570 = vmatprep.subr.mxu0 0.0
        %1571 = vmatpush1.xpose.msra.mxu0 0.0
        %1572 = vmatprep.subr.mxu0 0.0
        %1573 = vmatpush1.xpose.msra.mxu0 0.0
        %1574 = vmatprep.subr.mxu0 0.0
        %1575 = vmatpush1.xpose.msra.mxu0 0.0
        %1576 = vmatprep.subr.mxu0 0.0
        %1577 = vmatpush1.xpose.msra.mxu0 0.0
        %1578 = vmatprep.subr.mxu0 0.0
        %1579 = vmatpush1.xpose.msra.mxu0 0.0
        %1580 = vmatprep.subr.mxu0 0.0
        %1581 = vmatpush1.xpose.msra.mxu0 0.0
        %1582 = vmatprep.subr.mxu0 0.0
        %1583 = vmatpush1.xpose.msra.mxu0 0.0
        %1584 = vmatprep.subr.mxu0 0.0
        %1585 = vmatpush1.xpose.msra.mxu0 0.0
        %1586 = vmatprep.subr.mxu0 0.0
        %1587 = vmatpush1.xpose.msra.mxu0 0.0
        %1588 = vmatprep.subr.mxu0 0.0
        %1589 = vmatpush1.xpose.msra.mxu0 0.0
        %1590 = vmatprep.subr.mxu0 0.0
        %1591 = vmatpush1.xpose.msra.mxu0 0.0
        %1592 = vmatprep.subr.mxu0 0.0
        %1593 = vmatpush1.xpose.msra.mxu0 0.0
        %1594 = vmatprep.subr.mxu0 0.0
        %1595 = vmatpush1.xpose.msra.mxu0 0.0
        %1596 = vmatprep.subr.mxu0 0.0
        %1597 = vmatpush1.xpose.msra.mxu0 0.0
        %1598 = vmatprep.subr.mxu0 0.0
        %1599 = vmatpush1.xpose.msra.mxu0 0.0
        %1600 = vmatprep.subr.mxu0 0.0
        %1601 = vmatpush1.xpose.msra.mxu0 0.0
        %1602 = vmatprep.subr.mxu0 0.0
        %1603 = vmatpush1.xpose.msra.mxu0 0.0
        %1604 = vmatprep.subr.mxu0 0.0
        %1605 = vmatpush1.xpose.msra.mxu0 0.0
        %1606 = vmatprep.subr.mxu0 0.0
        %1607 = vmatpush1.xpose.msra.mxu0 0.0
        %1608 = vmatprep.subr.mxu0 0.0
        %1609 = vmatpush1.xpose.msra.mxu0 0.0
        %1610 = vmatprep.subr.mxu0 0.0
        %1611 = vmatpush1.xpose.msra.mxu0 0.0
        %1612 = vmatprep.subr.mxu0 0.0
        %1613 = vmatpush1.xpose.msra.mxu0 0.0
        %1614 = vmatprep.mubr.f32.mxu0 0.0
        %1615 = vmatmul.mubr.f32.gmra.mrb[0].mxu0 %v1542
        %v1616 = vpop.f32.mrb[0].mxu0
        %v1617 = vadd.f32 0.0, %v1616
        %v1618 = vpop.f32.mrb[0].mxu0
        %1619 = vmatprep.mubr.f32.mxu0 0.0
        %1620 = vmatmul.mubr.f32.gmra.mrb[0].mxu0 %v1544
        %v1621 = vpop.f32.mrb[0].mxu0
        %v1622 = vadd.f32 0.0, %v1621
        %v1623 = vpop.f32.mrb[0].mxu0
        %1624 = vdwg.mxu0
        %v1625 = vsel %vm828, %v1617, -inf
        %1626 = vmax.xlane.f32.xlu0 %v1625
        %v1627 = vpop.xlane.xlu0 %1626
        %v1628 = vsel %vm828, %v1622, -inf
        %1629 = vmax.xlane.f32.xlu0 %v1628
        %v1630 = vpop.xlane.xlu0 %1629
        %v1631 = vsub.f32 %v1617, %v1627
        %v1632 = vsub.f32 %v1622, %v1630
        %v1633 = vmul.f32 %v1631, 1.442695
        %v1634 = vpow.pop %v1633
        %v1635 = vmul.f32 %v1632, 1.442695
        %v1636 = vpow.pop %v1635
        %v1637 = vsel %vm828, %v1634, 0.0
        %1638 = vadd.xlane.f32.xlu0 %v1637
        %v1639 = vpop.xlane.xlu0 %1638
        %v1640 = vsel %vm828, %v1636, 0.0
        %1641 = vadd.xlane.f32.xlu0 %v1640
        %v1642 = vpop.xlane.xlu0 %1641
        %v1643 = vrcp.pop %v1639
        %v1644 = vrcp.pop %v1642
        %v1645 = vmul.f32 %v1634, %v1643
        %v1646 = vmul.f32 %v1636, %v1644
        %1647 = vrot.lane.b32.xlu0 %v732, 112
        %v1648 = vpop.permute.xlu0 %1647
        %1649 = vrot.lane.b32.xlu0 %v737, 112
        %v1650 = vpop.permute.xlu0 %1649
        %v1654 = vsel %vm828, %v1645, 0
        %v1657 = vsel %vm828, %v1646, 0
        %1659 = vmatprep.subr.mxu0 0.0
        %1660 = vmatpush1.msra.mxu0 %v1648
        %1661 = vmatprep.subr.mxu0 0.0
        %1662 = vmatpush1.msra.mxu0 %v1650
        %1663 = vmatprep.subr.mxu0 0.0
        %1664 = vmatpush1.msra.mxu0 0.0
        %1665 = vmatprep.subr.mxu0 0.0
        %1666 = vmatpush1.msra.mxu0 0.0
        %1667 = vmatprep.subr.mxu0 0.0
        %1668 = vmatpush1.msra.mxu0 0.0
        %1669 = vmatprep.subr.mxu0 0.0
        %1670 = vmatpush1.msra.mxu0 0.0
        %1671 = vmatprep.subr.mxu0 0.0
        %1672 = vmatpush1.msra.mxu0 0.0
        %1673 = vmatprep.subr.mxu0 0.0
        %1674 = vmatpush1.msra.mxu0 0.0
        %1675 = vmatprep.subr.mxu0 0.0
        %1676 = vmatpush1.msra.mxu0 0.0
        %1677 = vmatprep.subr.mxu0 0.0
        %1678 = vmatpush1.msra.mxu0 0.0
        %1679 = vmatprep.subr.mxu0 0.0
        %1680 = vmatpush1.msra.mxu0 0.0
        %1681 = vmatprep.subr.mxu0 0.0
        %1682 = vmatpush1.msra.mxu0 0.0
        %1683 = vmatprep.subr.mxu0 0.0
        %1684 = vmatpush1.msra.mxu0 0.0
        %1685 = vmatprep.subr.mxu0 0.0
        %1686 = vmatpush1.msra.mxu0 0.0
        %1687 = vmatprep.subr.mxu0 0.0
        %1688 = vmatpush1.msra.mxu0 0.0
        %1689 = vmatprep.subr.mxu0 0.0
        %1690 = vmatpush1.msra.mxu0 0.0
        %1691 = vmatprep.subr.mxu0 0.0
        %1692 = vmatpush1.msra.mxu0 0.0
        %1693 = vmatprep.subr.mxu0 0.0
        %1694 = vmatpush1.msra.mxu0 0.0
        %1695 = vmatprep.subr.mxu0 0.0
        %1696 = vmatpush1.msra.mxu0 0.0
        %1697 = vmatprep.subr.mxu0 0.0
        %1698 = vmatpush1.msra.mxu0 0.0
        %1699 = vmatprep.subr.mxu0 0.0
        %1700 = vmatpush1.msra.mxu0 0.0
        %1701 = vmatprep.subr.mxu0 0.0
        %1702 = vmatpush1.msra.mxu0 0.0
        %1703 = vmatprep.subr.mxu0 0.0
        %1704 = vmatpush1.msra.mxu0 0.0
        %1705 = vmatprep.subr.mxu0 0.0
        %1706 = vmatpush1.msra.mxu0 0.0
        %1707 = vmatprep.subr.mxu0 0.0
        %1708 = vmatpush1.msra.mxu0 0.0
        %1709 = vmatprep.subr.mxu0 0.0
        %1710 = vmatpush1.msra.mxu0 0.0
        %1711 = vmatprep.subr.mxu0 0.0
        %1712 = vmatpush1.msra.mxu0 0.0
        %1713 = vmatprep.subr.mxu0 0.0
        %1714 = vmatpush1.msra.mxu0 0.0
        %1715 = vmatprep.subr.mxu0 0.0
        %1716 = vmatpush1.msra.mxu0 0.0
        %1717 = vmatprep.subr.mxu0 0.0
        %1718 = vmatpush1.msra.mxu0 0.0
        %1719 = vmatprep.subr.mxu0 0.0
        %1720 = vmatpush1.msra.mxu0 0.0
        %1721 = vmatprep.subr.mxu0 0.0
        %1722 = vmatpush1.msra.mxu0 0.0
        %1723 = vmatprep.mubr.f32.mxu0 0.0
        %1724 = vmatmul.mubr.f32.gmra.mrb[0].mxu0 %v1654
        %v1725 = vpop.f32.mrb[0].mxu0
        %v1726 = vadd.f32 0.0, %v1725
        %v1727 = vpop.f32.mrb[0].mxu0
        %1728 = vmatprep.mubr.f32.mxu0 0.0
        %1729 = vmatmul.mubr.f32.gmra.mrb[0].mxu0 %v1657
        %v1730 = vpop.f32.mrb[0].mxu0
        %v1731 = vadd.f32 0.0, %v1730
        %v1732 = vpop.f32.mrb[0].mxu0
        %1733 = vdwg.mxu0
        %1734 = vrot.lane.b32.xlu0 %v548, 108
        %v1735 = vpop.permute.xlu0 %1734
        %1736 = vrot.lane.b32.xlu0 %v553, 108
        %v1737 = vpop.permute.xlu0 %1736
        %1738 = vrot.lane.b32.xlu0 %v640, 108
        %v1739 = vpop.permute.xlu0 %1738
        %1740 = vrot.lane.b32.xlu0 %v645, 108
        %v1741 = vpop.permute.xlu0 %1740
        %v1742 = vsel %vm740, %v1735, 0
        %v1744 = vsel %vm740, %v1737, 0
        %v1746 = vsel %vm740, %v1739, 0
        %v1748 = vsel %vm740, %v1741, 0
        %1750 = vmatprep.subr.mxu0 0.0
        %1751 = vmatpush1.xpose.msra.mxu0 %v1746
        %1752 = vmatprep.subr.mxu0 0.0
        %1753 = vmatpush1.xpose.msra.mxu0 %v1748
        %1754 = vmatprep.subr.mxu0 0.0
        %1755 = vmatpush1.xpose.msra.mxu0 0.0
        %1756 = vmatprep.subr.mxu0 0.0
        %1757 = vmatpush1.xpose.msra.mxu0 0.0
        %1758 = vmatprep.subr.mxu0 0.0
        %1759 = vmatpush1.xpose.msra.mxu0 0.0
        %1760 = vmatprep.subr.mxu0 0.0
        %1761 = vmatpush1.xpose.msra.mxu0 0.0
        %1762 = vmatprep.subr.mxu0 0.0
        %1763 = vmatpush1.xpose.msra.mxu0 0.0
        %1764 = vmatprep.subr.mxu0 0.0
        %1765 = vmatpush1.xpose.msra.mxu0 0.0
        %1766 = vmatprep.subr.mxu0 0.0
        %1767 = vmatpush1.xpose.msra.mxu0 0.0
        %1768 = vmatprep.subr.mxu0 0.0
        %1769 = vmatpush1.xpose.msra.mxu0 0.0
        %1770 = vmatprep.subr.mxu0 0.0
        %1771 = vmatpush1.xpose.msra.mxu0 0.0
        %1772 = vmatprep.subr.mxu0 0.0
        %1773 = vmatpush1.xpose.msra.mxu0 0.0
        %1774 = vmatprep.subr.mxu0 0.0
        %1775 = vmatpush1.xpose.msra.mxu0 0.0
        %1776 = vmatprep.subr.mxu0 0.0
        %1777 = vmatpush1.xpose.msra.mxu0 0.0
        %1778 = vmatprep.subr.mxu0 0.0
        %1779 = vmatpush1.xpose.msra.mxu0 0.0
        %1780 = vmatprep.subr.mxu0 0.0
        %1781 = vmatpush1.xpose.msra.mxu0 0.0
        %1782 = vmatprep.subr.mxu0 0.0
        %1783 = vmatpush1.xpose.msra.mxu0 0.0
        %1784 = vmatprep.subr.mxu0 0.0
        %1785 = vmatpush1.xpose.msra.mxu0 0.0
        %1786 = vmatprep.subr.mxu0 0.0
        %1787 = vmatpush1.xpose.msra.mxu0 0.0
        %1788 = vmatprep.subr.mxu0 0.0
        %1789 = vmatpush1.xpose.msra.mxu0 0.0
        %1790 = vmatprep.subr.mxu0 0.0
        %1791 = vmatpush1.xpose.msra.mxu0 0.0
        %1792 = vmatprep.subr.mxu0 0.0
        %1793 = vmatpush1.xpose.msra.mxu0 0.0
        %1794 = vmatprep.subr.mxu0 0.0
        %1795 = vmatpush1.xpose.msra.mxu0 0.0
        %1796 = vmatprep.subr.mxu0 0.0
        %1797 = vmatpush1.xpose.msra.mxu0 0.0
        %1798 = vmatprep.subr.mxu0 0.0
        %1799 = vmatpush1.xpose.msra.mxu0 0.0
        %1800 = vmatprep.subr.mxu0 0.0
        %1801 = vmatpush1.xpose.msra.mxu0 0.0
        %1802 = vmatprep.subr.mxu0 0.0
        %1803 = vmatpush1.xpose.msra.mxu0 0.0
        %1804 = vmatprep.subr.mxu0 0.0
        %1805 = vmatpush1.xpose.msra.mxu0 0.0
        %1806 = vmatprep.subr.mxu0 0.0
        %1807 = vmatpush1.xpose.msra.mxu0 0.0
        %1808 = vmatprep.subr.mxu0 0.0
        %1809 = vmatpush1.xpose.msra.mxu0 0.0
        %1810 = vmatprep.subr.mxu0 0.0
        %1811 = vmatpush1.xpose.msra.mxu0 0.0
        %1812 = vmatprep.subr.mxu0 0.0
        %1813 = vmatpush1.xpose.msra.mxu0 0.0
        %1814 = vmatprep.mubr.f32.mxu0 0.0
        %1815 = vmatmul.mubr.f32.gmra.mrb[0].mxu0 %v1742
        %v1816 = vpop.f32.mrb[0].mxu0
        %v1817 = vadd.f32 0.0, %v1816
        %v1818 = vpop.f32.mrb[0].mxu0
        %1819 = vmatprep.mubr.f32.mxu0 0.0
        %1820 = vmatmul.mubr.f32.gmra.mrb[0].mxu0 %v1744
        %v1821 = vpop.f32.mrb[0].mxu0
        %v1822 = vadd.f32 0.0, %v1821
        %v1823 = vpop.f32.mrb[0].mxu0
        %1824 = vdwg.mxu0
        %v1825 = vsel %vm828, %v1817, -inf
        %1826 = vmax.xlane.f32.xlu0 %v1825
        %v1827 = vpop.xlane.xlu0 %1826
        %v1828 = vsel %vm828, %v1822, -inf
        %1829 = vmax.xlane.f32.xlu0 %v1828
        %v1830 = vpop.xlane.xlu0 %1829
        %v1831 = vsub.f32 %v1817, %v1827
        %v1832 = vsub.f32 %v1822, %v1830
        %v1833 = vmul.f32 %v1831, 1.442695
        %v1834 = vpow.pop %v1833
        %v1835 = vmul.f32 %v1832, 1.442695
        %v1836 = vpow.pop %v1835
        %v1837 = vsel %vm828, %v1834, 0.0
        %1838 = vadd.xlane.f32.xlu0 %v1837
        %v1839 = vpop.xlane.xlu0 %1838
        %v1840 = vsel %vm828, %v1836, 0.0
        %1841 = vadd.xlane.f32.xlu0 %v1840
        %v1842 = vpop.xlane.xlu0 %1841
        %v1843 = vrcp.pop %v1839
        %v1844 = vrcp.pop %v1842
        %v1845 = vmul.f32 %v1834, %v1843
        %v1846 = vmul.f32 %v1836, %v1844
        %1847 = vrot.lane.b32.xlu0 %v732, 108
        %v1848 = vpop.permute.xlu0 %1847
        %1849 = vrot.lane.b32.xlu0 %v737, 108
        %v1850 = vpop.permute.xlu0 %1849
        %v1854 = vsel %vm828, %v1845, 0
        %v1857 = vsel %vm828, %v1846, 0
        %1859 = vmatprep.subr.mxu0 0.0
        %1860 = vmatpush1.msra.mxu0 %v1848
        %1861 = vmatprep.subr.mxu0 0.0
        %1862 = vmatpush1.msra.mxu0 %v1850
        %1863 = vmatprep.subr.mxu0 0.0
        %1864 = vmatpush1.msra.mxu0 0.0
        %1865 = vmatprep.subr.mxu0 0.0
        %1866 = vmatpush1.msra.mxu0 0.0
        %1867 = vmatprep.subr.mxu0 0.0
        %1868 = vmatpush1.msra.mxu0 0.0
        %1869 = vmatprep.subr.mxu0 0.0
        %1870 = vmatpush1.msra.mxu0 0.0
        %1871 = vmatprep.subr.mxu0 0.0
        %1872 = vmatpush1.msra.mxu0 0.0
        %1873 = vmatprep.subr.mxu0 0.0
        %1874 = vmatpush1.msra.mxu0 0.0
        %1875 = vmatprep.subr.mxu0 0.0
        %1876 = vmatpush1.msra.mxu0 0.0
        %1877 = vmatprep.subr.mxu0 0.0
        %1878 = vmatpush1.msra.mxu0 0.0
        %1879 = vmatprep.subr.mxu0 0.0
        %1880 = vmatpush1.msra.mxu0 0.0
        %1881 = vmatprep.subr.mxu0 0.0
        %1882 = vmatpush1.msra.mxu0 0.0
        %1883 = vmatprep.subr.mxu0 0.0
        %1884 = vmatpush1.msra.mxu0 0.0
        %1885 = vmatprep.subr.mxu0 0.0
        %1886 = vmatpush1.msra.mxu0 0.0
        %1887 = vmatprep.subr.mxu0 0.0
        %1888 = vmatpush1.msra.mxu0 0.0
        %1889 = vmatprep.subr.mxu0 0.0
        %1890 = vmatpush1.msra.mxu0 0.0
        %1891 = vmatprep.subr.mxu0 0.0
        %1892 = vmatpush1.msra.mxu0 0.0
        %1893 = vmatprep.subr.mxu0 0.0
        %1894 = vmatpush1.msra.mxu0 0.0
        %1895 = vmatprep.subr.mxu0 0.0
        %1896 = vmatpush1.msra.mxu0 0.0
        %1897 = vmatprep.subr.mxu0 0.0
        %1898 = vmatpush1.msra.mxu0 0.0
        %1899 = vmatprep.subr.mxu0 0.0
        %1900 = vmatpush1.msra.mxu0 0.0
        %1901 = vmatprep.subr.mxu0 0.0
        %1902 = vmatpush1.msra.mxu0 0.0
        %1903 = vmatprep.subr.mxu0 0.0
        %1904 = vmatpush1.msra.mxu0 0.0
        %1905 = vmatprep.subr.mxu0 0.0
        %1906 = vmatpush1.msra.mxu0 0.0
        %1907 = vmatprep.subr.mxu0 0.0
        %1908 = vmatpush1.msra.mxu0 0.0
        %1909 = vmatprep.subr.mxu0 0.0
        %1910 = vmatpush1.msra.mxu0 0.0
        %1911 = vmatprep.subr.mxu0 0.0
        %1912 = vmatpush1.msra.mxu0 0.0
        %1913 = vmatprep.subr.mxu0 0.0
        %1914 = vmatpush1.msra.mxu0 0.0
        %1915 = vmatprep.subr.mxu0 0.0
        %1916 = vmatpush1.msra.mxu0 0.0
        %1917 = vmatprep.subr.mxu0 0.0
        %1918 = vmatpush1.msra.mxu0 0.0
        %1919 = vmatprep.subr.mxu0 0.0
        %1920 = vmatpush1.msra.mxu0 0.0
        %1921 = vmatprep.subr.mxu0 0.0
        %1922 = vmatpush1.msra.mxu0 0.0
        %1923 = vmatprep.mubr.f32.mxu0 0.0
        %1924 = vmatmul.mubr.f32.gmra.mrb[0].mxu0 %v1854
        %v1925 = vpop.f32.mrb[0].mxu0
        %v1926 = vadd.f32 0.0, %v1925
        %v1927 = vpop.f32.mrb[0].mxu0
        %1928 = vmatprep.mubr.f32.mxu0 0.0
        %1929 = vmatmul.mubr.f32.gmra.mrb[0].mxu0 %v1857
        %v1930 = vpop.f32.mrb[0].mxu0
        %v1931 = vadd.f32 0.0, %v1930
        %v1932 = vpop.f32.mrb[0].mxu0
        %1933 = vdwg.mxu0
        %1934 = vrot.lane.b32.xlu0 %v548, 104
        %v1935 = vpop.permute.xlu0 %1934
        %1936 = vrot.lane.b32.xlu0 %v553, 104
        %v1937 = vpop.permute.xlu0 %1936
        %1938 = vrot.lane.b32.xlu0 %v640, 104
        %v1939 = vpop.permute.xlu0 %1938
        %1940 = vrot.lane.b32.xlu0 %v645, 104
        %v1941 = vpop.permute.xlu0 %1940
        %v1942 = vsel %vm740, %v1935, 0
        %v1944 = vsel %vm740, %v1937, 0
        %v1946 = vsel %vm740, %v1939, 0
        %v1948 = vsel %vm740, %v1941, 0
        %1950 = vmatprep.subr.mxu0 0.0
        %1951 = vmatpush1.xpose.msra.mxu0 %v1946
        %1952 = vmatprep.subr.mxu0 0.0
        %1953 = vmatpush1.xpose.msra.mxu0 %v1948
        %1954 = vmatprep.subr.mxu0 0.0
        %1955 = vmatpush1.xpose.msra.mxu0 0.0
        %1956 = vmatprep.subr.mxu0 0.0
        %1957 = vmatpush1.xpose.msra.mxu0 0.0
        %1958 = vmatprep.subr.mxu0 0.0
        %1959 = vmatpush1.xpose.msra.mxu0 0.0
        %1960 = vmatprep.subr.mxu0 0.0
        %1961 = vmatpush1.xpose.msra.mxu0 0.0
        %1962 = vmatprep.subr.mxu0 0.0
        %1963 = vmatpush1.xpose.msra.mxu0 0.0
        %1964 = vmatprep.subr.mxu0 0.0
        %1965 = vmatpush1.xpose.msra.mxu0 0.0
        %1966 = vmatprep.subr.mxu0 0.0
        %1967 = vmatpush1.xpose.msra.mxu0 0.0
        %1968 = vmatprep.subr.mxu0 0.0
        %1969 = vmatpush1.xpose.msra.mxu0 0.0
        %1970 = vmatprep.subr.mxu0 0.0
        %1971 = vmatpush1.xpose.msra.mxu0 0.0
        %1972 = vmatprep.subr.mxu0 0.0
        %1973 = vmatpush1.xpose.msra.mxu0 0.0
        %1974 = vmatprep.subr.mxu0 0.0
        %1975 = vmatpush1.xpose.msra.mxu0 0.0
        %1976 = vmatprep.subr.mxu0 0.0
        %1977 = vmatpush1.xpose.msra.mxu0 0.0
        %1978 = vmatprep.subr.mxu0 0.0
        %1979 = vmatpush1.xpose.msra.mxu0 0.0
        %1980 = vmatprep.subr.mxu0 0.0
        %1981 = vmatpush1.xpose.msra.mxu0 0.0
        %1982 = vmatprep.subr.mxu0 0.0
        %1983 = vmatpush1.xpose.msra.mxu0 0.0
        %1984 = vmatprep.subr.mxu0 0.0
        %1985 = vmatpush1.xpose.msra.mxu0 0.0
        %1986 = vmatprep.subr.mxu0 0.0
        %1987 = vmatpush1.xpose.msra.mxu0 0.0
        %1988 = vmatprep.subr.mxu0 0.0
        %1989 = vmatpush1.xpose.msra.mxu0 0.0
        %1990 = vmatprep.subr.mxu0 0.0
        %1991 = vmatpush1.xpose.msra.mxu0 0.0
        %1992 = vmatprep.subr.mxu0 0.0
        %1993 = vmatpush1.xpose.msra.mxu0 0.0
        %1994 = vmatprep.subr.mxu0 0.0
        %1995 = vmatpush1.xpose.msra.mxu0 0.0
        %1996 = vmatprep.subr.mxu0 0.0
        %1997 = vmatpush1.xpose.msra.mxu0 0.0
        %1998 = vmatprep.subr.mxu0 0.0
        %1999 = vmatpush1.xpose.msra.mxu0 0.0
        %2000 = vmatprep.subr.mxu0 0.0
        %2001 = vmatpush1.xpose.msra.mxu0 0.0
        %2002 = vmatprep.subr.mxu0 0.0
        %2003 = vmatpush1.xpose.msra.mxu0 0.0
        %2004 = vmatprep.subr.mxu0 0.0
        %2005 = vmatpush1.xpose.msra.mxu0 0.0
        %2006 = vmatprep.subr.mxu0 0.0
        %2007 = vmatpush1.xpose.msra.mxu0 0.0
        %2008 = vmatprep.subr.mxu0 0.0
        %2009 = vmatpush1.xpose.msra.mxu0 0.0
        %2010 = vmatprep.subr.mxu0 0.0
        %2011 = vmatpush1.xpose.msra.mxu0 0.0
        %2012 = vmatprep.subr.mxu0 0.0
        %2013 = vmatpush1.xpose.msra.mxu0 0.0
        %2014 = vmatprep.mubr.f32.mxu0 0.0
        %2015 = vmatmul.mubr.f32.gmra.mrb[0].mxu0 %v1942
        %v2016 = vpop.f32.mrb[0].mxu0
        %v2017 = vadd.f32 0.0, %v2016
        %v2018 = vpop.f32.mrb[0].mxu0
        %2019 = vmatprep.mubr.f32.mxu0 0.0
        %2020 = vmatmul.mubr.f32.gmra.mrb[0].mxu0 %v1944
        %v2021 = vpop.f32.mrb[0].mxu0
        %v2022 = vadd.f32 0.0, %v2021
        %v2023 = vpop.f32.mrb[0].mxu0
        %2024 = vdwg.mxu0
        %v2025 = vsel %vm828, %v2017, -inf
        %2026 = vmax.xlane.f32.xlu0 %v2025
        %v2027 = vpop.xlane.xlu0 %2026
        %v2028 = vsel %vm828, %v2022, -inf
        %2029 = vmax.xlane.f32.xlu0 %v2028
        %v2030 = vpop.xlane.xlu0 %2029
        %v2031 = vsub.f32 %v2017, %v2027
        %v2032 = vsub.f32 %v2022, %v2030
        %v2033 = vmul.f32 %v2031, 1.442695
        %v2034 = vpow.pop %v2033
        %v2035 = vmul.f32 %v2032, 1.442695
        %v2036 = vpow.pop %v2035
        %v2037 = vsel %vm828, %v2034, 0.0
        %2038 = vadd.xlane.f32.xlu0 %v2037
        %v2039 = vpop.xlane.xlu0 %2038
        %v2040 = vsel %vm828, %v2036, 0.0
        %2041 = vadd.xlane.f32.xlu0 %v2040
        %v2042 = vpop.xlane.xlu0 %2041
        %v2043 = vrcp.pop %v2039
        %v2044 = vrcp.pop %v2042
        %v2045 = vmul.f32 %v2034, %v2043
        %v2046 = vmul.f32 %v2036, %v2044
        %2047 = vrot.lane.b32.xlu0 %v732, 104
        %v2048 = vpop.permute.xlu0 %2047
        %2049 = vrot.lane.b32.xlu0 %v737, 104
        %v2050 = vpop.permute.xlu0 %2049
        %v2054 = vsel %vm828, %v2045, 0
        %v2057 = vsel %vm828, %v2046, 0
        %2059 = vmatprep.subr.mxu0 0.0
        %2060 = vmatpush1.msra.mxu0 %v2048
        %2061 = vmatprep.subr.mxu0 0.0
        %2062 = vmatpush1.msra.mxu0 %v2050
        %2063 = vmatprep.subr.mxu0 0.0
        %2064 = vmatpush1.msra.mxu0 0.0
        %2065 = vmatprep.subr.mxu0 0.0
        %2066 = vmatpush1.msra.mxu0 0.0
        %2067 = vmatprep.subr.mxu0 0.0
        %2068 = vmatpush1.msra.mxu0 0.0
        %2069 = vmatprep.subr.mxu0 0.0
        %2070 = vmatpush1.msra.mxu0 0.0
        %2071 = vmatprep.subr.mxu0 0.0
        %2072 = vmatpush1.msra.mxu0 0.0
        %2073 = vmatprep.subr.mxu0 0.0
        %2074 = vmatpush1.msra.mxu0 0.0
        %2075 = vmatprep.subr.mxu0 0.0
        %2076 = vmatpush1.msra.mxu0 0.0
        %2077 = vmatprep.subr.mxu0 0.0
        %2078 = vmatpush1.msra.mxu0 0.0
        %2079 = vmatprep.subr.mxu0 0.0
        %2080 = vmatpush1.msra.mxu0 0.0
        %2081 = vmatprep.subr.mxu0 0.0
        %2082 = vmatpush1.msra.mxu0 0.0
        %2083 = vmatprep.subr.mxu0 0.0
        %2084 = vmatpush1.msra.mxu0 0.0
        %2085 = vmatprep.subr.mxu0 0.0
        %2086 = vmatpush1.msra.mxu0 0.0
        %2087 = vmatprep.subr.mxu0 0.0
        %2088 = vmatpush1.msra.mxu0 0.0
        %2089 = vmatprep.subr.mxu0 0.0
        %2090 = vmatpush1.msra.mxu0 0.0
        %2091 = vmatprep.subr.mxu0 0.0
        %2092 = vmatpush1.msra.mxu0 0.0
        %2093 = vmatprep.subr.mxu0 0.0
        %2094 = vmatpush1.msra.mxu0 0.0
        %2095 = vmatprep.subr.mxu0 0.0
        %2096 = vmatpush1.msra.mxu0 0.0
        %2097 = vmatprep.subr.mxu0 0.0
        %2098 = vmatpush1.msra.mxu0 0.0
        %2099 = vmatprep.subr.mxu0 0.0
        %2100 = vmatpush1.msra.mxu0 0.0
        %2101 = vmatprep.subr.mxu0 0.0
        %2102 = vmatpush1.msra.mxu0 0.0
        %2103 = vmatprep.subr.mxu0 0.0
        %2104 = vmatpush1.msra.mxu0 0.0
        %2105 = vmatprep.subr.mxu0 0.0
        %2106 = vmatpush1.msra.mxu0 0.0
        %2107 = vmatprep.subr.mxu0 0.0
        %2108 = vmatpush1.msra.mxu0 0.0
        %2109 = vmatprep.subr.mxu0 0.0
        %2110 = vmatpush1.msra.mxu0 0.0
        %2111 = vmatprep.subr.mxu0 0.0
        %2112 = vmatpush1.msra.mxu0 0.0
        %2113 = vmatprep.subr.mxu0 0.0
        %2114 = vmatpush1.msra.mxu0 0.0
        %2115 = vmatprep.subr.mxu0 0.0
        %2116 = vmatpush1.msra.mxu0 0.0
        %2117 = vmatprep.subr.mxu0 0.0
        %2118 = vmatpush1.msra.mxu0 0.0
        %2119 = vmatprep.subr.mxu0 0.0
        %2120 = vmatpush1.msra.mxu0 0.0
        %2121 = vmatprep.subr.mxu0 0.0
        %2122 = vmatpush1.msra.mxu0 0.0
        %2123 = vmatprep.mubr.f32.mxu0 0.0
        %2124 = vmatmul.mubr.f32.gmra.mrb[0].mxu0 %v2054
        %v2125 = vpop.f32.mrb[0].mxu0
        %v2126 = vadd.f32 0.0, %v2125
        %v2127 = vpop.f32.mrb[0].mxu0
        %2128 = vmatprep.mubr.f32.mxu0 0.0
        %2129 = vmatmul.mubr.f32.gmra.mrb[0].mxu0 %v2057
        %v2130 = vpop.f32.mrb[0].mxu0
        %v2131 = vadd.f32 0.0, %v2130
        %v2132 = vpop.f32.mrb[0].mxu0
        %2133 = vdwg.mxu0
        %2134 = vrot.lane.b32.xlu0 %v548, 100
        %v2135 = vpop.permute.xlu0 %2134
        %2136 = vrot.lane.b32.xlu0 %v553, 100
        %v2137 = vpop.permute.xlu0 %2136
        %2138 = vrot.lane.b32.xlu0 %v640, 100
        %v2139 = vpop.permute.xlu0 %2138
        %2140 = vrot.lane.b32.xlu0 %v645, 100
        %v2141 = vpop.permute.xlu0 %2140
        %v2142 = vsel %vm740, %v2135, 0
        %v2144 = vsel %vm740, %v2137, 0
        %v2146 = vsel %vm740, %v2139, 0
        %v2148 = vsel %vm740, %v2141, 0
        %2150 = vmatprep.subr.mxu0 0.0
        %2151 = vmatpush1.xpose.msra.mxu0 %v2146
        %2152 = vmatprep.subr.mxu0 0.0
        %2153 = vmatpush1.xpose.msra.mxu0 %v2148
        %2154 = vmatprep.subr.mxu0 0.0
        %2155 = vmatpush1.xpose.msra.mxu0 0.0
        %2156 = vmatprep.subr.mxu0 0.0
        %2157 = vmatpush1.xpose.msra.mxu0 0.0
        %2158 = vmatprep.subr.mxu0 0.0
        %2159 = vmatpush1.xpose.msra.mxu0 0.0
        %2160 = vmatprep.subr.mxu0 0.0
        %2161 = vmatpush1.xpose.msra.mxu0 0.0
        %2162 = vmatprep.subr.mxu0 0.0
        %2163 = vmatpush1.xpose.msra.mxu0 0.0
        %2164 = vmatprep.subr.mxu0 0.0
        %2165 = vmatpush1.xpose.msra.mxu0 0.0
        %2166 = vmatprep.subr.mxu0 0.0
        %2167 = vmatpush1.xpose.msra.mxu0 0.0
        %2168 = vmatprep.subr.mxu0 0.0
        %2169 = vmatpush1.xpose.msra.mxu0 0.0
        %2170 = vmatprep.subr.mxu0 0.0
        %2171 = vmatpush1.xpose.msra.mxu0 0.0
        %2172 = vmatprep.subr.mxu0 0.0
        %2173 = vmatpush1.xpose.msra.mxu0 0.0
        %2174 = vmatprep.subr.mxu0 0.0
        %2175 = vmatpush1.xpose.msra.mxu0 0.0
        %2176 = vmatprep.subr.mxu0 0.0
        %2177 = vmatpush1.xpose.msra.mxu0 0.0
        %2178 = vmatprep.subr.mxu0 0.0
        %2179 = vmatpush1.xpose.msra.mxu0 0.0
        %2180 = vmatprep.subr.mxu0 0.0
        %2181 = vmatpush1.xpose.msra.mxu0 0.0
        %2182 = vmatprep.subr.mxu0 0.0
        %2183 = vmatpush1.xpose.msra.mxu0 0.0
        %2184 = vmatprep.subr.mxu0 0.0
        %2185 = vmatpush1.xpose.msra.mxu0 0.0
        %2186 = vmatprep.subr.mxu0 0.0
        %2187 = vmatpush1.xpose.msra.mxu0 0.0
        %2188 = vmatprep.subr.mxu0 0.0
        %2189 = vmatpush1.xpose.msra.mxu0 0.0
        %2190 = vmatprep.subr.mxu0 0.0
        %2191 = vmatpush1.xpose.msra.mxu0 0.0
        %2192 = vmatprep.subr.mxu0 0.0
        %2193 = vmatpush1.xpose.msra.mxu0 0.0
        %2194 = vmatprep.subr.mxu0 0.0
        %2195 = vmatpush1.xpose.msra.mxu0 0.0
        %2196 = vmatprep.subr.mxu0 0.0
        %2197 = vmatpush1.xpose.msra.mxu0 0.0
        %2198 = vmatprep.subr.mxu0 0.0
        %2199 = vmatpush1.xpose.msra.mxu0 0.0
        %2200 = vmatprep.subr.mxu0 0.0
        %2201 = vmatpush1.xpose.msra.mxu0 0.0
        %2202 = vmatprep.subr.mxu0 0.0
        %2203 = vmatpush1.xpose.msra.mxu0 0.0
        %2204 = vmatprep.subr.mxu0 0.0
        %2205 = vmatpush1.xpose.msra.mxu0 0.0
        %2206 = vmatprep.subr.mxu0 0.0
        %2207 = vmatpush1.xpose.msra.mxu0 0.0
        %2208 = vmatprep.subr.mxu0 0.0
        %2209 = vmatpush1.xpose.msra.mxu0 0.0
        %2210 = vmatprep.subr.mxu0 0.0
        %2211 = vmatpush1.xpose.msra.mxu0 0.0
        %2212 = vmatprep.subr.mxu0 0.0
        %2213 = vmatpush1.xpose.msra.mxu0 0.0
        %2214 = vmatprep.mubr.f32.mxu0 0.0
        %2215 = vmatmul.mubr.f32.gmra.mrb[0].mxu0 %v2142
        %v2216 = vpop.f32.mrb[0].mxu0
        %v2217 = vadd.f32 0.0, %v2216
        %v2218 = vpop.f32.mrb[0].mxu0
        %2219 = vmatprep.mubr.f32.mxu0 0.0
        %2220 = vmatmul.mubr.f32.gmra.mrb[0].mxu0 %v2144
        %v2221 = vpop.f32.mrb[0].mxu0
        %v2222 = vadd.f32 0.0, %v2221
        %v2223 = vpop.f32.mrb[0].mxu0
        %2224 = vdwg.mxu0
        %v2225 = vsel %vm828, %v2217, -inf
        %2226 = vmax.xlane.f32.xlu0 %v2225
        %v2227 = vpop.xlane.xlu0 %2226
        %v2228 = vsel %vm828, %v2222, -inf
        %2229 = vmax.xlane.f32.xlu0 %v2228
        %v2230 = vpop.xlane.xlu0 %2229
        %v2231 = vsub.f32 %v2217, %v2227
        %v2232 = vsub.f32 %v2222, %v2230
        %v2233 = vmul.f32 %v2231, 1.442695
        %v2234 = vpow.pop %v2233
        %v2235 = vmul.f32 %v2232, 1.442695
        %v2236 = vpow.pop %v2235
        %v2237 = vsel %vm828, %v2234, 0.0
        %2238 = vadd.xlane.f32.xlu0 %v2237
        %v2239 = vpop.xlane.xlu0 %2238
        %v2240 = vsel %vm828, %v2236, 0.0
        %2241 = vadd.xlane.f32.xlu0 %v2240
        %v2242 = vpop.xlane.xlu0 %2241
        %v2243 = vrcp.pop %v2239
        %v2244 = vrcp.pop %v2242
        %v2245 = vmul.f32 %v2234, %v2243
        %v2246 = vmul.f32 %v2236, %v2244
        %2247 = vrot.lane.b32.xlu0 %v732, 100
        %v2248 = vpop.permute.xlu0 %2247
        %2249 = vrot.lane.b32.xlu0 %v737, 100
        %v2250 = vpop.permute.xlu0 %2249
        %v2254 = vsel %vm828, %v2245, 0
        %v2257 = vsel %vm828, %v2246, 0
        %2259 = vmatprep.subr.mxu0 0.0
        %2260 = vmatpush1.msra.mxu0 %v2248
        %2261 = vmatprep.subr.mxu0 0.0
        %2262 = vmatpush1.msra.mxu0 %v2250
        %2263 = vmatprep.subr.mxu0 0.0
        %2264 = vmatpush1.msra.mxu0 0.0
        %2265 = vmatprep.subr.mxu0 0.0
        %2266 = vmatpush1.msra.mxu0 0.0
        %2267 = vmatprep.subr.mxu0 0.0
        %2268 = vmatpush1.msra.mxu0 0.0
        %2269 = vmatprep.subr.mxu0 0.0
        %2270 = vmatpush1.msra.mxu0 0.0
        %2271 = vmatprep.subr.mxu0 0.0
        %2272 = vmatpush1.msra.mxu0 0.0
        %2273 = vmatprep.subr.mxu0 0.0
        %2274 = vmatpush1.msra.mxu0 0.0
        %2275 = vmatprep.subr.mxu0 0.0
        %2276 = vmatpush1.msra.mxu0 0.0
        %2277 = vmatprep.subr.mxu0 0.0
        %2278 = vmatpush1.msra.mxu0 0.0
        %2279 = vmatprep.subr.mxu0 0.0
        %2280 = vmatpush1.msra.mxu0 0.0
        %2281 = vmatprep.subr.mxu0 0.0
        %2282 = vmatpush1.msra.mxu0 0.0
        %2283 = vmatprep.subr.mxu0 0.0
        %2284 = vmatpush1.msra.mxu0 0.0
        %2285 = vmatprep.subr.mxu0 0.0
        %2286 = vmatpush1.msra.mxu0 0.0
        %2287 = vmatprep.subr.mxu0 0.0
        %2288 = vmatpush1.msra.mxu0 0.0
        %2289 = vmatprep.subr.mxu0 0.0
        %2290 = vmatpush1.msra.mxu0 0.0
        %2291 = vmatprep.subr.mxu0 0.0
        %2292 = vmatpush1.msra.mxu0 0.0
        %2293 = vmatprep.subr.mxu0 0.0
        %2294 = vmatpush1.msra.mxu0 0.0
        %2295 = vmatprep.subr.mxu0 0.0
        %2296 = vmatpush1.msra.mxu0 0.0
        %2297 = vmatprep.subr.mxu0 0.0
        %2298 = vmatpush1.msra.mxu0 0.0
        %2299 = vmatprep.subr.mxu0 0.0
        %2300 = vmatpush1.msra.mxu0 0.0
        %2301 = vmatprep.subr.mxu0 0.0
        %2302 = vmatpush1.msra.mxu0 0.0
        %2303 = vmatprep.subr.mxu0 0.0
        %2304 = vmatpush1.msra.mxu0 0.0
        %2305 = vmatprep.subr.mxu0 0.0
        %2306 = vmatpush1.msra.mxu0 0.0
        %2307 = vmatprep.subr.mxu0 0.0
        %2308 = vmatpush1.msra.mxu0 0.0
        %2309 = vmatprep.subr.mxu0 0.0
        %2310 = vmatpush1.msra.mxu0 0.0
        %2311 = vmatprep.subr.mxu0 0.0
        %2312 = vmatpush1.msra.mxu0 0.0
        %2313 = vmatprep.subr.mxu0 0.0
        %2314 = vmatpush1.msra.mxu0 0.0
        %2315 = vmatprep.subr.mxu0 0.0
        %2316 = vmatpush1.msra.mxu0 0.0
        %2317 = vmatprep.subr.mxu0 0.0
        %2318 = vmatpush1.msra.mxu0 0.0
        %2319 = vmatprep.subr.mxu0 0.0
        %2320 = vmatpush1.msra.mxu0 0.0
        %2321 = vmatprep.subr.mxu0 0.0
        %2322 = vmatpush1.msra.mxu0 0.0
        %2323 = vmatprep.mubr.f32.mxu0 0.0
        %2324 = vmatmul.mubr.f32.gmra.mrb[0].mxu0 %v2254
        %v2325 = vpop.f32.mrb[0].mxu0
        %v2326 = vadd.f32 0.0, %v2325
        %v2327 = vpop.f32.mrb[0].mxu0
        %2328 = vmatprep.mubr.f32.mxu0 0.0
        %2329 = vmatmul.mubr.f32.gmra.mrb[0].mxu0 %v2257
        %v2330 = vpop.f32.mrb[0].mxu0
        %v2331 = vadd.f32 0.0, %v2330
        %v2332 = vpop.f32.mrb[0].mxu0
        %2333 = vdwg.mxu0
        %2336 = vrot.lane.b32.xlu0 %v1126, 4
        %v2337 = vpop.permute.xlu0 %2336
        %2338 = vrot.lane.b32.xlu0 %v1131, 4
        %v2339 = vpop.permute.xlu0 %2338
        %2344 = vrot.lane.b32.xlu0 %v1326, 8
        %v2345 = vpop.permute.xlu0 %2344
        %2346 = vrot.lane.b32.xlu0 %v1331, 8
        %v2347 = vpop.permute.xlu0 %2346
        %2352 = vrot.lane.b32.xlu0 %v1526, 12
        %v2353 = vpop.permute.xlu0 %2352
        %2354 = vrot.lane.b32.xlu0 %v1531, 12
        %v2355 = vpop.permute.xlu0 %2354
        %2360 = vrot.lane.b32.xlu0 %v1726, 16
        %v2361 = vpop.permute.xlu0 %2360
        %2362 = vrot.lane.b32.xlu0 %v1731, 16
        %v2363 = vpop.permute.xlu0 %2362
        %2368 = vrot.lane.b32.xlu0 %v1926, 20
        %v2369 = vpop.permute.xlu0 %2368
        %2370 = vrot.lane.b32.xlu0 %v1931, 20
        %v2371 = vpop.permute.xlu0 %2370
        %2376 = vrot.lane.b32.xlu0 %v2126, 24
        %v2377 = vpop.permute.xlu0 %2376
        %2378 = vrot.lane.b32.xlu0 %v2131, 24
        %v2379 = vpop.permute.xlu0 %2378
        %2384 = vrot.lane.b32.xlu0 %v2326, 28
        %v2385 = vpop.permute.xlu0 %2384
        %2386 = vrot.lane.b32.xlu0 %v2331, 28
        %v2387 = vpop.permute.xlu0 %2386
        %v2390 = vsel %vm740, %v924, %v2337
        %v2391 = vsel %vm740, %v929, %v2339
        %vm2392 = vcmask 64512
        %v2393 = vsel %vm2392, %v2390, %v2345
        %v2394 = vsel %vm2392, %v2391, %v2347
        %vm2395 = vcmask 97280
        %v2396 = vsel %vm2395, %v2393, %v2353
        %v2397 = vsel %vm2395, %v2394, %v2355
        %v2398 = vsel %vm828, %v2396, %v2361
        %v2399 = vsel %vm828, %v2397, %v2363
        %vm2400 = vcmask 162816
        %v2401 = vsel %vm2400, %v2398, %v2369
        %v2402 = vsel %vm2400, %v2399, %v2371
        %vm2403 = vcmask 195584
        %v2404 = vsel %vm2403, %v2401, %v2377
        %v2405 = vsel %vm2403, %v2402, %v2379
        %vm2406 = vcmask 228352
        %v2407 = vsel %vm2406, %v2404, %v2385
        %v2408 = vsel %vm2406, %v2405, %v2387
        %v2409 = vld [vmem:[#allocation13] sm:$0xff]
        %v2410 = vld [vmem:[#allocation13 + $0x8] sm:$0xff]
        %v2411 = vld [vmem:[#allocation13 + $0x10] sm:$0xff]
        %v2412 = vld [vmem:[#allocation13 + $0x18] sm:$0xff]
        %v2413 = vld [vmem:[%s7 + $0x3] sm:$0x1]
        %v2414 = vlaneseq
        %v2415 = vshrl.u32 %v2414, 7
        %v2416 = vsub.s32 0, %v2415
        %v2417 = vrot.slane %v2413, %v2416
        %v2419 = vsel %vm474, %v2407, 0
        %v2422 = vsel %vm474, %v2408, 0
        %2424 = vmatprep.subr.mxu0 0.0
        %2425 = vmatpush1.msra.mxu0 %v2409
        %2426 = vmatprep.subr.mxu0 0.0
        %2427 = vmatpush1.msra.mxu0 %v2410
        %2428 = vmatprep.subr.mxu0 0.0
        %2429 = vmatpush1.msra.mxu0 %v2411
        %2430 = vmatprep.subr.mxu0 0.0
        %2431 = vmatpush1.msra.mxu0 %v2412
        %2432 = vmatprep.subr.mxu0 0.0
        %2433 = vmatpush1.msra.mxu0 0.0
        %2434 = vmatprep.subr.mxu0 0.0
        %2435 = vmatpush1.msra.mxu0 0.0
        %2436 = vmatprep.subr.mxu0 0.0
        %2437 = vmatpush1.msra.mxu0 0.0
        %2438 = vmatprep.subr.mxu0 0.0
        %2439 = vmatpush1.msra.mxu0 0.0
        %2440 = vmatprep.subr.mxu0 0.0
        %2441 = vmatpush1.msra.mxu0 0.0
        %2442 = vmatprep.subr.mxu0 0.0
        %2443 = vmatpush1.msra.mxu0 0.0
        %2444 = vmatprep.subr.mxu0 0.0
        %2445 = vmatpush1.msra.mxu0 0.0
        %2446 = vmatprep.subr.mxu0 0.0
        %2447 = vmatpush1.msra.mxu0 0.0
        %2448 = vmatprep.subr.mxu0 0.0
        %2449 = vmatpush1.msra.mxu0 0.0
        %2450 = vmatprep.subr.mxu0 0.0
        %2451 = vmatpush1.msra.mxu0 0.0
        %2452 = vmatprep.subr.mxu0 0.0
        %2453 = vmatpush1.msra.mxu0 0.0
        %2454 = vmatprep.subr.mxu0 0.0
        %2455 = vmatpush1.msra.mxu0 0.0
        %2456 = vmatprep.subr.mxu0 0.0
        %2457 = vmatpush1.msra.mxu0 0.0
        %2458 = vmatprep.subr.mxu0 0.0
        %2459 = vmatpush1.msra.mxu0 0.0
        %2460 = vmatprep.subr.mxu0 0.0
        %2461 = vmatpush1.msra.mxu0 0.0
        %2462 = vmatprep.subr.mxu0 0.0
        %2463 = vmatpush1.msra.mxu0 0.0
        %2464 = vmatprep.subr.mxu0 0.0
        %2465 = vmatpush1.msra.mxu0 0.0
        %2466 = vmatprep.subr.mxu0 0.0
        %2467 = vmatpush1.msra.mxu0 0.0
        %2468 = vmatprep.subr.mxu0 0.0
        %2469 = vmatpush1.msra.mxu0 0.0
        %2470 = vmatprep.subr.mxu0 0.0
        %2471 = vmatpush1.msra.mxu0 0.0
        %2472 = vmatprep.subr.mxu0 0.0
        %2473 = vmatpush1.msra.mxu0 0.0
        %2474 = vmatprep.subr.mxu0 0.0
        %2475 = vmatpush1.msra.mxu0 0.0
        %2476 = vmatprep.subr.mxu0 0.0
        %2477 = vmatpush1.msra.mxu0 0.0
        %2478 = vmatprep.subr.mxu0 0.0
        %2479 = vmatpush1.msra.mxu0 0.0
        %2480 = vmatprep.subr.mxu0 0.0
        %2481 = vmatpush1.msra.mxu0 0.0
        %2482 = vmatprep.subr.mxu0 0.0
        %2483 = vmatpush1.msra.mxu0 0.0
        %2484 = vmatprep.subr.mxu0 0.0
        %2485 = vmatpush1.msra.mxu0 0.0
        %2486 = vmatprep.subr.mxu0 0.0
        %2487 = vmatpush1.msra.mxu0 0.0
        %2488 = vmatprep.mubr.f32.mxu0 0.0
        %2489 = vmatmul.mubr.f32.gmra.mrb[0].mxu0 %v2419
        %v2490 = vpop.f32.mrb[0].mxu0
        %v2491 = vadd.f32 %v2417, %v2490
        %v2492 = vpop.f32.mrb[0].mxu0
        %2493 = vmatprep.mubr.f32.mxu0 0.0
        %2494 = vmatmul.mubr.f32.gmra.mrb[0].mxu0 %v2422
        %v2495 = vpop.f32.mrb[0].mxu0
        %v2496 = vadd.f32 %v2417, %v2495
        %v2497 = vpop.f32.mrb[0].mxu0
        %2498 = vdwg.mxu0
        %2499 = vst.msk [vmem:[%s458] sm:$0xff] %vm474, %v2491
        %2500 = vst.msk [vmem:[%s458 + $0x8] sm:$0xff] %vm474, %v2496
        %s2501 = sand.u32 %s221, 1
        %s2502 = scalar_lea.sflag [#allocation4], %s2501
        %s2503 = sand.u32 %s221, 1
        %s2504 = smul.addr %s2503, 16
        %s2505 = scalar_lea.vmem [#allocation14], %s2504
        // Predicated region
        $region81: #{tpu_custom_call.1} parent=51 // pred_check
          %p2506 = pneg %p231
        $region82: #{tpu_custom_call.1} parent=51 // pred_check_branch
          %2508 = sbr.rel (%p2506) target = $region84
        $region83: #{tpu_custom_call.1} parent=51 // pred_region
          %s2509 = smul.u32 2, %s30
          %s2511 = ssub.s32 256, 256
          %2512 = vsyncadd %s2502, %s2511
          %s2513 = smul.addr %s2509, 128
          %s2514 = scalar_lea.hbm %s8, %s2513
          %s2515 = sshll.u32 %s2505, 4
          %s2516 = int_to_ptr.vmem [resolvable:$true] %s2515
          %2521 = dma.vmem_to_hbm [thread:$0]  %s2516, 256, %s2514, %s2502, 128, 128, 8
        $region84: #{tpu_custom_call.1} parent=51 // pred_fallthru
          _
      $region52: #{tpu_custom_call.1} parent=5 // pred_fallthru
        _
      %p2522 = scmp.le.s32.totalorder 2, %s25
      // Predicated region
      $region85: #{tpu_custom_call.1} parent=5 // pred_check
        %p2523 = pneg %p2522
      $region86: #{tpu_custom_call.1} parent=5 // pred_check_branch
        %2525 = sbr.rel (%p2523) target = $region88
      $region87: #{tpu_custom_call.1} parent=5 // pred_region
        %s2526 = ssub.s32 %s25, 2
        // Predicated region
        $region89: #{tpu_custom_call.1} parent=87 // pred_check
          %p2527 = pneg %p237
        $region90: #{tpu_custom_call.1} parent=87 // pred_check_branch
          %2529 = sbr.rel (%p2527) target = $region92
        $region91: #{tpu_custom_call.1} parent=87 // pred_region
          %s2530 = sand.u32 %s222, 1
          %s2531 = scalar_lea.sflag [#allocation4], %s2530
          %s2532 = sand.u32 %s222, 1
          %s2533 = smul.addr %s2532, 16
          %s2534 = scalar_lea.vmem [#allocation14], %s2533
          %2535 = dma.done %s2531, 256
        $region92: #{tpu_custom_call.1} parent=87 // pred_fallthru
          _
      $region88: #{tpu_custom_call.1} parent=5 // pred_fallthru
        _
    $region6: #{tpu_custom_call.1} parent=1 // loop_footer
      %s29 = sadd.s32 1, %s25
    $region7: #{tpu_custom_call.1} parent=1 // loop_footer_branch
      %24 = sbr.rel target = $region3
    $region8: #{tpu_custom_call.1} parent=1 // loop_exit
      _
    %2536 = vsyncpa [#allocation3], 1
    %s2537 = scalar_lea.sflag [#allocation3], 1
    %2538 = vsyncpa %s2537, 1
    %2539 = vsyncpa [#allocation6], 1
    %s2540 = scalar_lea.sflag [#allocation6], 1
    %2541 = vsyncpa %s2540, 1
    %2542 = vsyncpa [#allocation9], 1
    %2543 = vsyncpa [#allocation12], 1
    %2544 = vsyncpa [#allocation4], 1
    %s2545 = scalar_lea.sflag [#allocation4], 1
    %2546 = vsyncpa %s2545, 1

// kernel: tpu_custom_call.1
$region0: #{tpu_custom_call.1}
  #allocation0 [shape = 'u32[]', space=smem, size = 0x4, offset = 0x4, fixed_abs, tag = 'smem constant byte address 0x4 - core index']
  #allocation1 [shape = 'u32[144,128]{1,0:T(1,128)}', space=vmem, size = 0x12000, scoped, tag = 'internal scratch']
  %s0 = inlined_call_operand.hbm [shape: f32[32,32], index: 0, kind: input, shape index: {}]
  %s1 = inlined_call_operand.hbm [shape: f32[32,32], index: 1, kind: input, shape index: {}]
  %s2 = inlined_call_operand.hbm [shape: f32[32,32], index: 2, kind: input, shape index: {}]
  %s3 = inlined_call_operand.hbm [shape: f32[32,32], index: 3, kind: input, shape index: {}]
  %s4 = inlined_call_operand.hbm [shape: f32[32,32], index: 4, kind: input, shape index: {}]
  %s5 = inlined_call_operand.hbm [shape: f32[32,32], index: 5, kind: input, shape index: {}]
  %s6 = inlined_call_operand.hbm [shape: f32[32,32], index: 6, kind: input, shape index: {}]
  %s7 = inlined_call_operand.vmem [shape: f32[4,32], index: 7, kind: input, shape index: {}]
  %s8 = inlined_call_operand.hbm [shape: f32[32,32], index: 8, kind: output, shape index: {}]
  %s9 = sld [smem:[#allocation0]]
  $region93: #{tpu_custom_call.1} parent=0
    _
  %s11 = ssub.s32 1, %s9
  %s12 = scalar_select 0, %s11, %s9
  $region1: #{tpu_custom_call.1} parent=0
    #allocation2 [shape = 'u8[16384]{0}', space=vmem, size = 0x4000, scoped, tag = 'input window, operand 0']
    #allocation3 [shape = 's32[2]{0}', space=sflag, size = 0x8, scoped, tag = 'scoped memory for tpu_custom_call.1']
    #allocation4 [shape = 's32[2]{0}', space=sflag, size = 0x8, scoped, tag = 'scoped memory for tpu_custom_call.1']
    #allocation5 [shape = 'u8[16384]{0}', space=vmem, size = 0x4000, scoped, tag = 'input window, operand 1']
    #allocation6 [shape = 's32[2]{0}', space=sflag, size = 0x8, scoped, tag = 'scoped memory for tpu_custom_call.1']
    #allocation7 [shape = 'u8[16384]{0}', space=vmem, size = 0x4000, scoped, tag = 'input window, operand 2']
    #allocation8 [shape = 'u8[16384]{0}', space=vmem, size = 0x4000, scoped, tag = 'input window, operand 3, single buffered']
    #allocation9 [shape = 's32[1]{0}', space=sflag, size = 0x4, scoped, tag = 'scoped memory for tpu_custom_call.1']
    #allocation10 [shape = 'u8[16384]{0}', space=vmem, size = 0x4000, scoped, tag = 'input window, operand 4, single buffered']
    #allocation11 [shape = 'u8[16384]{0}', space=vmem, size = 0x4000, scoped, tag = 'input window, operand 5, single buffered']
    #allocation12 [shape = 's32[1]{0}', space=sflag, size = 0x4, scoped, tag = 'scoped memory for tpu_custom_call.1']
    #allocation13 [shape = 'u8[16384]{0}', space=vmem, size = 0x4000, scoped, tag = 'input window, operand 6, single buffered']
    #allocation14 [shape = 'u8[16384]{0}', space=vmem, size = 0x4000, scoped, tag = 'output window, operand 0']
    %13 = vsyncpa [#allocation3], 0
    %s14 = scalar_lea.sflag [#allocation3], 1
    %15 = vsyncpa %s14, 0
    %16 = vsyncpa [#allocation6], 0
    %s17 = scalar_lea.sflag [#allocation6], 1
    %18 = vsyncpa %s17, 0
    %19 = vsyncpa [#allocation9], 0
    %20 = vsyncpa [#allocation12], 0
    %21 = vsyncpa [#allocation4], 0
    %s22 = scalar_lea.sflag [#allocation4], 1
    %23 = vsyncpa %s22, 0
    loop: start=0, step=1, limit=4
    $region2: #{tpu_custom_call.1} parent=1 // loop_pre_header
      _
    $region3: #{tpu_custom_call.1} parent=1 // loop_header
      %s25 = sphi 0, %s29
      %p26 = scmp.ge.s32.totalorder %s25, 4
      %s35 = sphi 0, %s37
      %s38 = sphi 0, %s35
      %s39 = sphi 0, %s38
      %s55 = sphi 0, %s39
      %s61 = sphi 0, %s63
      %s64 = sphi 0, %s61
      %s65 = sphi 0, %s64
      %s81 = sphi 0, %s65
      %s87 = sphi 0, %s89
      %s90 = sphi 0, %s87
      %s91 = sphi 0, %s90
      %s107 = sphi 0, %s91
      %s111 = sphi 0, %s111
      %s113 = sphi 0, %s111
      %s114 = sphi 0, %s113
      %s128 = sphi 0, %s114
      %s132 = sphi 0, %s132
      %s134 = sphi 0, %s132
      %s135 = sphi 0, %s134
      %s149 = sphi 0, %s135
      %s153 = sphi 0, %s153
      %s155 = sphi 0, %s153
      %s156 = sphi 0, %s155
      %s170 = sphi 0, %s156
      %s174 = sphi 0, %s174
      %s176 = sphi 0, %s174
      %s177 = sphi 0, %s176
      %s191 = sphi 0, %s177
      %s195 = sphi 0, %s195
      %s197 = sphi 0, %s195
      %s198 = sphi 0, %s197
      %s212 = sphi 0, %s198
      %s218 = sphi 0, %s220
      %s221 = sphi 0, %s218
      %s222 = sphi 0, %s221
      %s238 = sphi 0, %s222
    $region4: #{tpu_custom_call.1} parent=1 // loop_header_branch
      %28 = sbr.rel (%p26) target = $region8
    $region5: #{tpu_custom_call.1} parent=1 // loop_body
      %s30 = ssub.s32 %s25, 1
      %s31 = ssub.s32 %s25, 2
      %s32 = sadd.s32 %s25, 1
      %s33 = ssub.s32 %s25, %s32
      %p34 = scmp.eq.s32.totalorder %s33, 0
      %s36 = sadd.s32 %s35, 1
      %s37 = scalar_select %p34, %s35, %s36
      %p40 = pneg %p34
      %p41 = scmp.eq.s32.totalorder %s25, 1
      %p42 = por %p40, %p41
      %p43 = scmp.ne.s32.totalorder %s35, %s38
      %p44 = scmp.eq.s32.totalorder %s25, 0
      %p45 = por %p43, %p44
      %p46 = scmp.ne.s32.totalorder %s35, %s38
      %p47 = scmp.eq.s32.totalorder %s30, 1
      %p48 = por %p46, %p47
      %p49 = scmp.ne.s32.totalorder %s38, %s39
      %p50 = scmp.eq.s32.totalorder %s30, 0
      %p51 = por %p49, %p50
      %p52 = scmp.ne.s32.totalorder %s38, %s39
      %p53 = scmp.eq.s32.totalorder %s31, 1
      %p54 = por %p52, %p53
      %p56 = scmp.ne.s32.totalorder %s39, %s55
      %p57 = scmp.eq.s32.totalorder %s31, 0
      %p58 = por %p56, %p57
      %s59 = ssub.s32 %s25, %s32
      %p60 = scmp.eq.s32.totalorder %s59, 0
      %s62 = sadd.s32 %s61, 1
      %s63 = scalar_select %p60, %s61, %s62
      %p66 = pneg %p60
      %p67 = scmp.eq.s32.totalorder %s25, 1
      %p68 = por %p66, %p67
      %p69 = scmp.ne.s32.totalorder %s61, %s64
      %p70 = scmp.eq.s32.totalorder %s25, 0
      %p71 = por %p69, %p70
      %p72 = scmp.ne.s32.totalorder %s61, %s64
      %p73 = scmp.eq.s32.totalorder %s30, 1
      %p74 = por %p72, %p73
      %p75 = scmp.ne.s32.totalorder %s64, %s65
      %p76 = scmp.eq.s32.totalorder %s30, 0
      %p77 = por %p75, %p76
      %p78 = scmp.ne.s32.totalorder %s64, %s65
      %p79 = scmp.eq.s32.totalorder %s31, 1
      %p80 = por %p78, %p79
      %p82 = scmp.ne.s32.totalorder %s65, %s81
      %p83 = scmp.eq.s32.totalorder %s31, 0
      %p84 = por %p82, %p83
      %s85 = ssub.s32 %s25, %s32
      %p86 = scmp.eq.s32.totalorder %s85, 0
      %s88 = sadd.s32 %s87, 1
      %s89 = scalar_select %p86, %s87, %s88
      %p92 = pneg %p86
      %p93 = scmp.eq.s32.totalorder %s25, 1
      %p94 = por %p92, %p93
      %p95 = scmp.ne.s32.totalorder %s87, %s90
      %p96 = scmp.eq.s32.totalorder %s25, 0
      %p97 = por %p95, %p96
      %p98 = scmp.ne.s32.totalorder %s87, %s90
      %p99 = scmp.eq.s32.totalorder %s30, 1
      %p100 = por %p98, %p99
      %p101 = scmp.ne.s32.totalorder %s90, %s91
      %p102 = scmp.eq.s32.totalorder %s30, 0
      %p103 = por %p101, %p102
      %p104 = scmp.ne.s32.totalorder %s90, %s91
      %p105 = scmp.eq.s32.totalorder %s31, 1
      %p106 = por %p104, %p105
      %p108 = scmp.ne.s32.totalorder %s91, %s107
      %p109 = scmp.eq.s32.totalorder %s31, 0
      %p110 = por %p108, %p109
      %s112 = sadd.s32 %s111, 1
      %p115 = scmp.eq.s32.totalorder %s25, 1
      %p116 = scmp.ne.s32.totalorder %s111, %s113
      %p117 = scmp.eq.s32.totalorder %s25, 0
      %p118 = por %p116, %p117
      %p119 = scmp.ne.s32.totalorder %s111, %s113
      %p120 = scmp.eq.s32.totalorder %s30, 1
      %p121 = por %p119, %p120
      %p122 = scmp.ne.s32.totalorder %s113, %s114
      %p123 = scmp.eq.s32.totalorder %s30, 0
      %p124 = por %p122, %p123
      %p125 = scmp.ne.s32.totalorder %s113, %s114
      %p126 = scmp.eq.s32.totalorder %s31, 1
      %p127 = por %p125, %p126
      %p129 = scmp.ne.s32.totalorder %s114, %s128
      %p130 = scmp.eq.s32.totalorder %s31, 0
      %p131 = por %p129, %p130
      %s133 = sadd.s32 %s132, 1
      %p136 = scmp.eq.s32.totalorder %s25, 1
      %p137 = scmp.ne.s32.totalorder %s132, %s134
      %p138 = scmp.eq.s32.totalorder %s25, 0
      %p139 = por %p137, %p138
      %p140 = scmp.ne.s32.totalorder %s132, %s134
      %p141 = scmp.eq.s32.totalorder %s30, 1
      %p142 = por %p140, %p141
      %p143 = scmp.ne.s32.totalorder %s134, %s135
      %p144 = scmp.eq.s32.totalorder %s30, 0
      %p145 = por %p143, %p144
      %p146 = scmp.ne.s32.totalorder %s134, %s135
      %p147 = scmp.eq.s32.totalorder %s31, 1
      %p148 = por %p146, %p147
      %p150 = scmp.ne.s32.totalorder %s135, %s149
      %p151 = scmp.eq.s32.totalorder %s31, 0
      %p152 = por %p150, %p151
      %s154 = sadd.s32 %s153, 1
      %p157 = scmp.eq.s32.totalorder %s25, 1
      %p158 = scmp.ne.s32.totalorder %s153, %s155
      %p159 = scmp.eq.s32.totalorder %s25, 0
      %p160 = por %p158, %p159
      %p161 = scmp.ne.s32.totalorder %s153, %s155
      %p162 = scmp.eq.s32.totalorder %s30, 1
      %p163 = por %p161, %p162
      %p164 = scmp.ne.s32.totalorder %s155, %s156
      %p165 = scmp.eq.s32.totalorder %s30, 0
      %p166 = por %p164, %p165
      %p167 = scmp.ne.s32.totalorder %s155, %s156
      %p168 = scmp.eq.s32.totalorder %s31, 1
      %p169 = por %p167, %p168
      %p171 = scmp.ne.s32.totalorder %s156, %s170
      %p172 = scmp.eq.s32.totalorder %s31, 0
      %p173 = por %p171, %p172
      %s175 = sadd.s32 %s174, 1
      %p178 = scmp.eq.s32.totalorder %s25, 1
      %p179 = scmp.ne.s32.totalorder %s174, %s176
      %p180 = scmp.eq.s32.totalorder %s25, 0
      %p181 = por %p179, %p180
      %p182 = scmp.ne.s32.totalorder %s174, %s176
      %p183 = scmp.eq.s32.totalorder %s30, 1
      %p184 = por %p182, %p183
      %p185 = scmp.ne.s32.totalorder %s176, %s177
      %p186 = scmp.eq.s32.totalorder %s30, 0
      %p187 = por %p185, %p186
      %p188 = scmp.ne.s32.totalorder %s176, %s177
      %p189 = scmp.eq.s32.totalorder %s31, 1
      %p190 = por %p188, %p189
      %p192 = scmp.ne.s32.totalorder %s177, %s191
      %p193 = scmp.eq.s32.totalorder %s31, 0
      %p194 = por %p192, %p193
      %s196 = sadd.s32 %s195, 1
      %p199 = scmp.eq.s32.totalorder %s25, 1
      %p200 = scmp.ne.s32.totalorder %s195, %s197
      %p201 = scmp.eq.s32.totalorder %s25, 0
      %p202 = por %p200, %p201
      %p203 = scmp.ne.s32.totalorder %s195, %s197
      %p204 = scmp.eq.s32.totalorder %s30, 1
      %p205 = por %p203, %p204
      %p206 = scmp.ne.s32.totalorder %s197, %s198
      %p207 = scmp.eq.s32.totalorder %s30, 0
      %p208 = por %p206, %p207
      %p209 = scmp.ne.s32.totalorder %s197, %s198
      %p210 = scmp.eq.s32.totalorder %s31, 1
      %p211 = por %p209, %p210
      %p213 = scmp.ne.s32.totalorder %s198, %s212
      %p214 = scmp.eq.s32.totalorder %s31, 0
      %p215 = por %p213, %p214
      %s216 = ssub.s32 %s25, %s32
      %p217 = scmp.eq.s32.totalorder %s216, 0
      %s219 = sadd.s32 %s218, 1
      %s220 = scalar_select %p217, %s218, %s219
      %p223 = pneg %p217
      %p224 = scmp.eq.s32.totalorder %s25, 1
      %p225 = por %p223, %p224
      %p226 = scmp.ne.s32.totalorder %s218, %s221
      %p227 = scmp.eq.s32.totalorder %s25, 0
      %p228 = por %p226, %p227
      %p229 = scmp.ne.s32.totalorder %s218, %s221
      %p230 = scmp.eq.s32.totalorder %s30, 1
      %p231 = por %p229, %p230
      %p232 = scmp.ne.s32.totalorder %s221, %s222
      %p233 = scmp.eq.s32.totalorder %s30, 0
      %p234 = por %p232, %p233
      %p235 = scmp.ne.s32.totalorder %s221, %s222
      %p236 = scmp.eq.s32.totalorder %s31, 1
      %p237 = por %p235, %p236
      %p239 = scmp.ne.s32.totalorder %s222, %s238
      %p240 = scmp.eq.s32.totalorder %s31, 0
      %p241 = por %p239, %p240
      %p242 = scmp.le.s32.totalorder 1, %s25
      %p243 = scmp.lt.s32.totalorder %s25, 3
      %p244 = pnand %p242, %p243
      %p245 = pneg %p244
      // Predicated region
      $region9: #{tpu_custom_call.1} parent=5 // pred_check
        _
      $region10: #{tpu_custom_call.1} parent=5 // pred_check_branch
        %247 = sbr.rel (%p244) target = $region12
      $region11: #{tpu_custom_call.1} parent=5 // pred_region
        %s248 = ssub.s32 %s25, 1
        // Predicated region
        $region13: #{tpu_custom_call.1} parent=11 // pred_check
          %p249 = pneg %p124
        $region14: #{tpu_custom_call.1} parent=11 // pred_check_branch
          %251 = sbr.rel (%p249) target = $region16
        $region15: #{tpu_custom_call.1} parent=11 // pred_region
          %s253 = ssub.s32 512, 512
          %254 = vsyncadd [#allocation9], %s253
          %s255 = sshll.u32 [#allocation8], 4
          %s256 = int_to_ptr.vmem [resolvable:$true] %s255
          %261 = dma.hbm_to_vmem [thread:$0]  %s3, 512, %s256, [#allocation9], 128, 128, 8
        $region16: #{tpu_custom_call.1} parent=11 // pred_fallthru
          _
        // Predicated region
        $region17: #{tpu_custom_call.1} parent=11 // pred_check
          %p262 = pneg %p145
        $region18: #{tpu_custom_call.1} parent=11 // pred_check_branch
          %264 = sbr.rel (%p262) target = $region20
        $region19: #{tpu_custom_call.1} parent=11 // pred_region
          %s266 = ssub.s32 512, 512
          %267 = vsyncadd [#allocation9], %s266
          %s268 = sshll.u32 [#allocation10], 4
          %s269 = int_to_ptr.vmem [resolvable:$true] %s268
          %274 = dma.hbm_to_vmem [thread:$0]  %s4, 512, %s269, [#allocation9], 128, 128, 8
        $region20: #{tpu_custom_call.1} parent=11 // pred_fallthru
          _
        // Predicated region
        $region21: #{tpu_custom_call.1} parent=11 // pred_check
          %p275 = pneg %p166
        $region22: #{tpu_custom_call.1} parent=11 // pred_check_branch
          %277 = sbr.rel (%p275) target = $region24
        $region23: #{tpu_custom_call.1} parent=11 // pred_region
          %s279 = ssub.s32 512, 512
          %280 = vsyncadd [#allocation12], %s279
          %s281 = sshll.u32 [#allocation11], 4
          %s282 = int_to_ptr.vmem [resolvable:$true] %s281
          %287 = dma.hbm_to_vmem [thread:$0]  %s5, 512, %s282, [#allocation12], 128, 128, 8
        $region24: #{tpu_custom_call.1} parent=11 // pred_fallthru
          _
        // Predicated region
        $region25: #{tpu_custom_call.1} parent=11 // pred_check
          %p288 = pneg %p187
        $region26: #{tpu_custom_call.1} parent=11 // pred_check_branch
          %290 = sbr.rel (%p288) target = $region28
        $region27: #{tpu_custom_call.1} parent=11 // pred_region
          %s292 = ssub.s32 512, 512
          %293 = vsyncadd [#allocation12], %s292
          %s294 = sshll.u32 [#allocation13], 4
          %s295 = int_to_ptr.vmem [resolvable:$true] %s294
          %300 = dma.hbm_to_vmem [thread:$0]  %s6, 512, %s295, [#allocation12], 128, 128, 8
        $region28: #{tpu_custom_call.1} parent=11 // pred_fallthru
          _
        // Predicated region
        $region29: #{tpu_custom_call.1} parent=11 // pred_check
          %p301 = pneg %p208
        $region30: #{tpu_custom_call.1} parent=11 // pred_check_branch
          %303 = sbr.rel (%p301) target = $region32
        $region31: #{tpu_custom_call.1} parent=11 // pred_region
          _
        $region32: #{tpu_custom_call.1} parent=11 // pred_fallthru
          _
      $region12: #{tpu_custom_call.1} parent=5 // pred_fallthru
        _
      %p304 = scmp.lt.s32.totalorder %s25, 2
      // Predicated region
      $region33: #{tpu_custom_call.1} parent=5 // pred_check
        %p305 = pneg %p304
      $region34: #{tpu_custom_call.1} parent=5 // pred_check_branch
        %307 = sbr.rel (%p305) target = $region36
      $region35: #{tpu_custom_call.1} parent=5 // pred_region
        // Predicated region
        $region37: #{tpu_custom_call.1} parent=35 // pred_check
          %p308 = pneg %p45
        $region38: #{tpu_custom_call.1} parent=35 // pred_check_branch
          %310 = sbr.rel (%p308) target = $region40
        $region39: #{tpu_custom_call.1} parent=35 // pred_region
          %s311 = sand.u32 %s35, 1
          %s312 = scalar_lea.sflag [#allocation3], %s311
          %s313 = sand.u32 %s35, 1
          %s314 = smul.addr %s313, 16
          %s315 = scalar_lea.vmem [#allocation2], %s314
          %s316 = smul.u32 2, %s25
          %s318 = ssub.s32 256, 256
          %319 = vsyncadd %s312, %s318
          %s320 = smul.addr %s316, 128
          %s321 = scalar_lea.hbm %s0, %s320
          %s322 = sshll.u32 %s315, 4
          %s323 = int_to_ptr.vmem [resolvable:$true] %s322
          %328 = dma.hbm_to_vmem [thread:$0]  %s321, 256, %s323, %s312, 128, 128, 8
        $region40: #{tpu_custom_call.1} parent=35 // pred_fallthru
          _
        // Predicated region
        $region41: #{tpu_custom_call.1} parent=35 // pred_check
          %p329 = pneg %p71
        $region42: #{tpu_custom_call.1} parent=35 // pred_check_branch
          %331 = sbr.rel (%p329) target = $region44
        $region43: #{tpu_custom_call.1} parent=35 // pred_region
          %s332 = sand.u32 %s25, 1
          %s333 = scalar_lea.sflag [#allocation6], %s332
          %s334 = sand.u32 %s61, 1
          %s335 = smul.addr %s334, 16
          %s336 = scalar_lea.vmem [#allocation5], %s335
          %s337 = smul.u32 2, %s25
          %s339 = ssub.s32 256, 256
          %340 = vsyncadd %s333, %s339
          %s341 = smul.addr %s337, 128
          %s342 = scalar_lea.hbm %s1, %s341
          %s343 = sshll.u32 %s336, 4
          %s344 = int_to_ptr.vmem [resolvable:$true] %s343
          %349 = dma.hbm_to_vmem [thread:$0]  %s342, 256, %s344, %s333, 128, 128, 8
        $region44: #{tpu_custom_call.1} parent=35 // pred_fallthru
          _
        // Predicated region
        $region45: #{tpu_custom_call.1} parent=35 // pred_check
          %p350 = pneg %p97
        $region46: #{tpu_custom_call.1} parent=35 // pred_check_branch
          %352 = sbr.rel (%p350) target = $region48
        $region47: #{tpu_custom_call.1} parent=35 // pred_region
          %s353 = sand.u32 %s25, 1
          %s354 = scalar_lea.sflag [#allocation6], %s353
          %s355 = sand.u32 %s87, 1
          %s356 = smul.addr %s355, 16
          %s357 = scalar_lea.vmem [#allocation7], %s356
          %s358 = smul.u32 2, %s25
          %s360 = ssub.s32 256, 256
          %361 = vsyncadd %s354, %s360
          %s362 = smul.addr %s358, 128
          %s363 = scalar_lea.hbm %s2, %s362
          %s364 = sshll.u32 %s357, 4
          %s365 = int_to_ptr.vmem [resolvable:$true] %s364
          %370 = dma.hbm_to_vmem [thread:$0]  %s363, 256, %s365, %s354, 128, 128, 8
        $region48: #{tpu_custom_call.1} parent=35 // pred_fallthru
          _
      $region36: #{tpu_custom_call.1} parent=5 // pred_fallthru
        _
      %p371 = scmp.le.s32.totalorder 1, %s25
      %p372 = scmp.lt.s32.totalorder %s25, 3
      %p373 = pnand %p371, %p372
      %p374 = pneg %p373
      // Predicated region
      $region49: #{tpu_custom_call.1} parent=5 // pred_check
        _
      $region50: #{tpu_custom_call.1} parent=5 // pred_check_branch
        %376 = sbr.rel (%p373) target = $region52
      $region51: #{tpu_custom_call.1} parent=5 // pred_region
        %s377 = ssub.s32 %s25, 1
        %s378 = sand.u32 %s38, 1
        %s379 = scalar_lea.sflag [#allocation3], %s378
        %s380 = sand.u32 %s38, 1
        %s381 = smul.addr %s380, 16
        %s382 = scalar_lea.vmem [#allocation2], %s381
        // Predicated region
        $region53: #{tpu_custom_call.1} parent=51 // pred_check
          %p383 = pneg %p51
        $region54: #{tpu_custom_call.1} parent=51 // pred_check_branch
          %385 = sbr.rel (%p383) target = $region56
        $region55: #{tpu_custom_call.1} parent=51 // pred_region
          %386 = dma.done %s379, 256
        $region56: #{tpu_custom_call.1} parent=51 // pred_fallthru
          _
        %s387 = sand.u32 %s30, 1
        %s388 = scalar_lea.sflag [#allocation6], %s387
        %s389 = sand.u32 %s64, 1
        %s390 = smul.addr %s389, 16
        %s391 = scalar_lea.vmem [#allocation5], %s390
        // Predicated region
        $region57: #{tpu_custom_call.1} parent=51 // pred_check
          %p392 = pneg %p77
        $region58: #{tpu_custom_call.1} parent=51 // pred_check_branch
          %394 = sbr.rel (%p392) target = $region60
        $region59: #{tpu_custom_call.1} parent=51 // pred_region
          %395 = dma.done %s388, 256
        $region60: #{tpu_custom_call.1} parent=51 // pred_fallthru
          _
        %s396 = sand.u32 %s30, 1
        %s397 = scalar_lea.sflag [#allocation6], %s396
        %s398 = sand.u32 %s90, 1
        %s399 = smul.addr %s398, 16
        %s400 = scalar_lea.vmem [#allocation7], %s399
        // Predicated region
        $region61: #{tpu_custom_call.1} parent=51 // pred_check
          %p401 = pneg %p103
        $region62: #{tpu_custom_call.1} parent=51 // pred_check_branch
          %403 = sbr.rel (%p401) target = $region64
        $region63: #{tpu_custom_call.1} parent=51 // pred_region
          %404 = dma.done %s397, 256
        $region64: #{tpu_custom_call.1} parent=51 // pred_fallthru
          _
        // Predicated region
        $region65: #{tpu_custom_call.1} parent=51 // pred_check
          %p405 = pneg %p124
        $region66: #{tpu_custom_call.1} parent=51 // pred_check_branch
          %407 = sbr.rel (%p405) target = $region68
        $region67: #{tpu_custom_call.1} parent=51 // pred_region
          %408 = dma.done [#allocation9], 512
        $region68: #{tpu_custom_call.1} parent=51 // pred_fallthru
          _
        // Predicated region
        $region69: #{tpu_custom_call.1} parent=51 // pred_check
          %p409 = pneg %p145
        $region70: #{tpu_custom_call.1} parent=51 // pred_check_branch
          %411 = sbr.rel (%p409) target = $region72
        $region71: #{tpu_custom_call.1} parent=51 // pred_region
          %412 = dma.done [#allocation9], 512
        $region72: #{tpu_custom_call.1} parent=51 // pred_fallthru
          _
        // Predicated region
        $region73: #{tpu_custom_call.1} parent=51 // pred_check
          %p413 = pneg %p166
        $region74: #{tpu_custom_call.1} parent=51 // pred_check_branch
          %415 = sbr.rel (%p413) target = $region76
        $region75: #{tpu_custom_call.1} parent=51 // pred_region
          %416 = dma.done [#allocation12], 512
        $region76: #{tpu_custom_call.1} parent=51 // pred_fallthru
          _
        // Predicated region
        $region77: #{tpu_custom_call.1} parent=51 // pred_check
          %p417 = pneg %p187
        $region78: #{tpu_custom_call.1} parent=51 // pred_check_branch
          %419 = sbr.rel (%p417) target = $region80
        $region79: #{tpu_custom_call.1} parent=51 // pred_region
          %420 = dma.done [#allocation12], 512
        $region80: #{tpu_custom_call.1} parent=51 // pred_fallthru
          _
        %s421 = sand.u32 %s38, 1
        %s422 = scalar_lea.sflag [#allocation3], %s421
        %s423 = sand.u32 %s38, 1
        %s424 = smul.addr %s423, 16
        %s425 = scalar_lea.vmem [#allocation2], %s424
        %p426 = pneg %p51
        %p427 = pneg %p48
        %s428 = sand.u32 %s30, 1
        %s429 = scalar_lea.sflag [#allocation6], %s428
        %s430 = sand.u32 %s64, 1
        %s431 = smul.addr %s430, 16
        %s432 = scalar_lea.vmem [#allocation5], %s431
        %p433 = pneg %p77
        %p434 = pneg %p74
        %s435 = sand.u32 %s30, 1
        %s436 = scalar_lea.sflag [#allocation6], %s435
        %s437 = sand.u32 %s90, 1
        %s438 = smul.addr %s437, 16
        %s439 = scalar_lea.vmem [#allocation7], %s438
        %p440 = pneg %p103
        %p441 = pneg %p100
        %p442 = pneg %p124
        %p443 = pneg %p121
        %p444 = pneg %p145
        %p445 = pneg %p142
        %p446 = pneg %p166
        %p447 = pneg %p163
        %p448 = pneg %p187
        %p449 = pneg %p184
        %p450 = pneg %p208
        %p451 = pneg %p205
        %p452 = pneg %p234
        %p453 = pneg %p231
        %s454 = sand.u32 %s221, 1
        %s455 = scalar_lea.sflag [#allocation4], %s454
        %s456 = sand.u32 %s221, 1
        %s457 = smul.addr %s456, 16
        %s458 = scalar_lea.vmem [#allocation14], %s457
        %s459 = smul.u32 2, %s30
        %s460 = smul.u32 2, %s30
        %s461 = smul.u32 2, %s30
        %s462 = smul.u32 2, %s30
        %v463 = vld [vmem:[%s7] sm:$0x1]
        %v464 = vld [vmem:[%s382] sm:$0xff]
        %v465 = vld [vmem:[%s382 + $0x8] sm:$0xff]
        %v466 = vld [vmem:[#allocation8] sm:$0xff]
        %v467 = vld [vmem:[#allocation8 + $0x8] sm:$0xff]
        %v468 = vld [vmem:[#allocation8 + $0x10] sm:$0xff]
        %v469 = vld [vmem:[#allocation8 + $0x18] sm:$0xff]
        %v470 = vlaneseq
        %v471 = vshrl.u32 %v470, 7
        %v472 = vsub.s32 0, %v471
        %v473 = vrot.slane %v463, %v472
        %vm474 = vcmask 261120
        %v476 = vsel %vm474, %v464, 0
        %v479 = vsel %vm474, %v465, 0
        %481 = vmatprep.subr.mxu0 0.0
        %482 = vmatpush1.msra.mxu0 %v466
        %483 = vmatprep.subr.mxu0 0.0
        %484 = vmatpush1.msra.mxu0 %v467
        %485 = vmatprep.subr.mxu0 0.0
        %486 = vmatpush1.msra.mxu0 %v468
        %487 = vmatprep.subr.mxu0 0.0
        %488 = vmatpush1.msra.mxu0 %v469
        %489 = vmatprep.subr.mxu0 0.0
        %490 = vmatpush1.msra.mxu0 0.0
        %491 = vmatprep.subr.mxu0 0.0
        %492 = vmatpush1.msra.mxu0 0.0
        %493 = vmatprep.subr.mxu0 0.0
        %494 = vmatpush1.msra.mxu0 0.0
        %495 = vmatprep.subr.mxu0 0.0
        %496 = vmatpush1.msra.mxu0 0.0
        %497 = vmatprep.subr.mxu0 0.0
        %498 = vmatpush1.msra.mxu0 0.0
        %499 = vmatprep.subr.mxu0 0.0
        %500 = vmatpush1.msra.mxu0 0.0
        %501 = vmatprep.subr.mxu0 0.0
        %502 = vmatpush1.msra.mxu0 0.0
        %503 = vmatprep.subr.mxu0 0.0
        %504 = vmatpush1.msra.mxu0 0.0
        %505 = vmatprep.subr.mxu0 0.0
        %506 = vmatpush1.msra.mxu0 0.0
        %507 = vmatprep.subr.mxu0 0.0
        %508 = vmatpush1.msra.mxu0 0.0
        %509 = vmatprep.subr.mxu0 0.0
        %510 = vmatpush1.msra.mxu0 0.0
        %511 = vmatprep.subr.mxu0 0.0
        %512 = vmatpush1.msra.mxu0 0.0
        %513 = vmatprep.subr.mxu0 0.0
        %514 = vmatpush1.msra.mxu0 0.0
        %515 = vmatprep.subr.mxu0 0.0
        %516 = vmatpush1.msra.mxu0 0.0
        %517 = vmatprep.subr.mxu0 0.0
        %518 = vmatpush1.msra.mxu0 0.0
        %519 = vmatprep.subr.mxu0 0.0
        %520 = vmatpush1.msra.mxu0 0.0
        %521 = vmatprep.subr.mxu0 0.0
        %522 = vmatpush1.msra.mxu0 0.0
        %523 = vmatprep.subr.mxu0 0.0
        %524 = vmatpush1.msra.mxu0 0.0
        %525 = vmatprep.subr.mxu0 0.0
        %526 = vmatpush1.msra.mxu0 0.0
        %527 = vmatprep.subr.mxu0 0.0
        %528 = vmatpush1.msra.mxu0 0.0
        %529 = vmatprep.subr.mxu0 0.0
        %530 = vmatpush1.msra.mxu0 0.0
        %531 = vmatprep.subr.mxu0 0.0
        %532 = vmatpush1.msra.mxu0 0.0
        %533 = vmatprep.subr.mxu0 0.0
        %534 = vmatpush1.msra.mxu0 0.0
        %535 = vmatprep.subr.mxu0 0.0
        %536 = vmatpush1.msra.mxu0 0.0
        %537 = vmatprep.subr.mxu0 0.0
        %538 = vmatpush1.msra.mxu0 0.0
        %539 = vmatprep.subr.mxu0 0.0
        %540 = vmatpush1.msra.mxu0 0.0
        %541 = vmatprep.subr.mxu0 0.0
        %542 = vmatpush1.msra.mxu0 0.0
        %543 = vmatprep.subr.mxu0 0.0
        %544 = vmatpush1.msra.mxu0 0.0
        %545 = vmatprep.mubr.f32.mxu0 0.0
        %546 = vmatmul.mubr.f32.gmra.mrb[0].mxu0 %v476
        %v547 = vpop.f32.mrb[0].mxu0
        %v548 = vadd.f32 %v473, %v547
        %v549 = vpop.f32.mrb[0].mxu0
        %550 = vmatprep.mubr.f32.mxu0 0.0
        %551 = vmatmul.mubr.f32.gmra.mrb[0].mxu0 %v479
        %v552 = vpop.f32.mrb[0].mxu0
        %v553 = vadd.f32 %v473, %v552
        %v554 = vpop.f32.mrb[0].mxu0
        %555 = vdwg.mxu0
        %v556 = vld [vmem:[%s7 + $0x1] sm:$0x1]
        %v557 = vld [vmem:[%s391] sm:$0xff]
        %v558 = vld [vmem:[%s391 + $0x8] sm:$0xff]
        %v559 = vld [vmem:[#allocation10] sm:$0xff]
        %v560 = vld [vmem:[#allocation10 + $0x8] sm:$0xff]
        %v561 = vld [vmem:[#allocation10 + $0x10] sm:$0xff]
        %v562 = vld [vmem:[#allocation10 + $0x18] sm:$0xff]
        %v563 = vlaneseq
        %v564 = vshrl.u32 %v563, 7
        %v565 = vsub.s32 0, %v564
        %v566 = vrot.slane %v556, %v565
        %v568 = vsel %vm474, %v557, 0
        %v571 = vsel %vm474, %v558, 0
        %573 = vmatprep.subr.mxu0 0.0
        %574 = vmatpush1.msra.mxu0 %v559
        %575 = vmatprep.subr.mxu0 0.0
        %576 = vmatpush1.msra.mxu0 %v560
        %577 = vmatprep.subr.mxu0 0.0
        %578 = vmatpush1.msra.mxu0 %v561
        %579 = vmatprep.subr.mxu0 0.0
        %580 = vmatpush1.msra.mxu0 %v562
        %581 = vmatprep.subr.mxu0 0.0
        %582 = vmatpush1.msra.mxu0 0.0
        %583 = vmatprep.subr.mxu0 0.0
        %584 = vmatpush1.msra.mxu0 0.0
        %585 = vmatprep.subr.mxu0 0.0
        %586 = vmatpush1.msra.mxu0 0.0
        %587 = vmatprep.subr.mxu0 0.0
        %588 = vmatpush1.msra.mxu0 0.0
        %589 = vmatprep.subr.mxu0 0.0
        %590 = vmatpush1.msra.mxu0 0.0
        %591 = vmatprep.subr.mxu0 0.0
        %592 = vmatpush1.msra.mxu0 0.0
        %593 = vmatprep.subr.mxu0 0.0
        %594 = vmatpush1.msra.mxu0 0.0
        %595 = vmatprep.subr.mxu0 0.0
        %596 = vmatpush1.msra.mxu0 0.0
        %597 = vmatprep.subr.mxu0 0.0
        %598 = vmatpush1.msra.mxu0 0.0
        %599 = vmatprep.subr.mxu0 0.0
        %600 = vmatpush1.msra.mxu0 0.0
        %601 = vmatprep.subr.mxu0 0.0
        %602 = vmatpush1.msra.mxu0 0.0
        %603 = vmatprep.subr.mxu0 0.0
        %604 = vmatpush1.msra.mxu0 0.0
        %605 = vmatprep.subr.mxu0 0.0
        %606 = vmatpush1.msra.mxu0 0.0
        %607 = vmatprep.subr.mxu0 0.0
        %608 = vmatpush1.msra.mxu0 0.0
        %609 = vmatprep.subr.mxu0 0.0
        %610 = vmatpush1.msra.mxu0 0.0
        %611 = vmatprep.subr.mxu0 0.0
        %612 = vmatpush1.msra.mxu0 0.0
        %613 = vmatprep.subr.mxu0 0.0
        %614 = vmatpush1.msra.mxu0 0.0
        %615 = vmatprep.subr.mxu0 0.0
        %616 = vmatpush1.msra.mxu0 0.0
        %617 = vmatprep.subr.mxu0 0.0
        %618 = vmatpush1.msra.mxu0 0.0
        %619 = vmatprep.subr.mxu0 0.0
        %620 = vmatpush1.msra.mxu0 0.0
        %621 = vmatprep.subr.mxu0 0.0
        %622 = vmatpush1.msra.mxu0 0.0
        %623 = vmatprep.subr.mxu0 0.0
        %624 = vmatpush1.msra.mxu0 0.0
        %625 = vmatprep.subr.mxu0 0.0
        %626 = vmatpush1.msra.mxu0 0.0
        %627 = vmatprep.subr.mxu0 0.0
        %628 = vmatpush1.msra.mxu0 0.0
        %629 = vmatprep.subr.mxu0 0.0
        %630 = vmatpush1.msra.mxu0 0.0
        %631 = vmatprep.subr.mxu0 0.0
        %632 = vmatpush1.msra.mxu0 0.0
        %633 = vmatprep.subr.mxu0 0.0
        %634 = vmatpush1.msra.mxu0 0.0
        %635 = vmatprep.subr.mxu0 0.0
        %636 = vmatpush1.msra.mxu0 0.0
        %637 = vmatprep.mubr.f32.mxu0 0.0
        %638 = vmatmul.mubr.f32.gmra.mrb[0].mxu0 %v568
        %v639 = vpop.f32.mrb[0].mxu0
        %v640 = vadd.f32 %v566, %v639
        %v641 = vpop.f32.mrb[0].mxu0
        %642 = vmatprep.mubr.f32.mxu0 0.0
        %643 = vmatmul.mubr.f32.gmra.mrb[0].mxu0 %v571
        %v644 = vpop.f32.mrb[0].mxu0
        %v645 = vadd.f32 %v566, %v644
        %v646 = vpop.f32.mrb[0].mxu0
        %647 = vdwg.mxu0
        %v648 = vld [vmem:[%s7 + $0x2] sm:$0x1]
        %v649 = vld [vmem:[%s400] sm:$0xff]
        %v650 = vld [vmem:[%s400 + $0x8] sm:$0xff]
        %v651 = vld [vmem:[#allocation11] sm:$0xff]
        %v652 = vld [vmem:[#allocation11 + $0x8] sm:$0xff]
        %v653 = vld [vmem:[#allocation11 + $0x10] sm:$0xff]
        %v654 = vld [vmem:[#allocation11 + $0x18] sm:$0xff]
        %v655 = vlaneseq
        %v656 = vshrl.u32 %v655, 7
        %v657 = vsub.s32 0, %v656
        %v658 = vrot.slane %v648, %v657
        %v660 = vsel %vm474, %v649, 0
        %v663 = vsel %vm474, %v650, 0
        %665 = vmatprep.subr.mxu0 0.0
        %666 = vmatpush1.msra.mxu0 %v651
        %667 = vmatprep.subr.mxu0 0.0
        %668 = vmatpush1.msra.mxu0 %v652
        %669 = vmatprep.subr.mxu0 0.0
        %670 = vmatpush1.msra.mxu0 %v653
        %671 = vmatprep.subr.mxu0 0.0
        %672 = vmatpush1.msra.mxu0 %v654
        %673 = vmatprep.subr.mxu0 0.0
        %674 = vmatpush1.msra.mxu0 0.0
        %675 = vmatprep.subr.mxu0 0.0
        %676 = vmatpush1.msra.mxu0 0.0
        %677 = vmatprep.subr.mxu0 0.0
        %678 = vmatpush1.msra.mxu0 0.0
        %679 = vmatprep.subr.mxu0 0.0
        %680 = vmatpush1.msra.mxu0 0.0
        %681 = vmatprep.subr.mxu0 0.0
        %682 = vmatpush1.msra.mxu0 0.0
        %683 = vmatprep.subr.mxu0 0.0
        %684 = vmatpush1.msra.mxu0 0.0
        %685 = vmatprep.subr.mxu0 0.0
        %686 = vmatpush1.msra.mxu0 0.0
        %687 = vmatprep.subr.mxu0 0.0
        %688 = vmatpush1.msra.mxu0 0.0
        %689 = vmatprep.subr.mxu0 0.0
        %690 = vmatpush1.msra.mxu0 0.0
        %691 = vmatprep.subr.mxu0 0.0
        %692 = vmatpush1.msra.mxu0 0.0
        %693 = vmatprep.subr.mxu0 0.0
        %694 = vmatpush1.msra.mxu0 0.0
        %695 = vmatprep.subr.mxu0 0.0
        %696 = vmatpush1.msra.mxu0 0.0
        %697 = vmatprep.subr.mxu0 0.0
        %698 = vmatpush1.msra.mxu0 0.0
        %699 = vmatprep.subr.mxu0 0.0
        %700 = vmatpush1.msra.mxu0 0.0
        %701 = vmatprep.subr.mxu0 0.0
        %702 = vmatpush1.msra.mxu0 0.0
        %703 = vmatprep.subr.mxu0 0.0
        %704 = vmatpush1.msra.mxu0 0.0
        %705 = vmatprep.subr.mxu0 0.0
        %706 = vmatpush1.msra.mxu0 0.0
        %707 = vmatprep.subr.mxu0 0.0
        %708 = vmatpush1.msra.mxu0 0.0
        %709 = vmatprep.subr.mxu0 0.0
        %710 = vmatpush1.msra.mxu0 0.0
        %711 = vmatprep.subr.mxu0 0.0
        %712 = vmatpush1.msra.mxu0 0.0
        %713 = vmatprep.subr.mxu0 0.0
        %714 = vmatpush1.msra.mxu0 0.0
        %715 = vmatprep.subr.mxu0 0.0
        %716 = vmatpush1.msra.mxu0 0.0
        %717 = vmatprep.subr.mxu0 0.0
        %718 = vmatpush1.msra.mxu0 0.0
        %719 = vmatprep.subr.mxu0 0.0
        %720 = vmatpush1.msra.mxu0 0.0
        %721 = vmatprep.subr.mxu0 0.0
        %722 = vmatpush1.msra.mxu0 0.0
        %723 = vmatprep.subr.mxu0 0.0
        %724 = vmatpush1.msra.mxu0 0.0
        %725 = vmatprep.subr.mxu0 0.0
        %726 = vmatpush1.msra.mxu0 0.0
        %727 = vmatprep.subr.mxu0 0.0
        %728 = vmatpush1.msra.mxu0 0.0
        %729 = vmatprep.mubr.f32.mxu0 0.0
        %730 = vmatmul.mubr.f32.gmra.mrb[0].mxu0 %v660
        %v731 = vpop.f32.mrb[0].mxu0
        %v732 = vadd.f32 %v658, %v731
        %v733 = vpop.f32.mrb[0].mxu0
        %734 = vmatprep.mubr.f32.mxu0 0.0
        %735 = vmatmul.mubr.f32.gmra.mrb[0].mxu0 %v663
        %v736 = vpop.f32.mrb[0].mxu0
        %v737 = vadd.f32 %v658, %v736
        %v738 = vpop.f32.mrb[0].mxu0
        %739 = vdwg.mxu0
        %vm740 = vcmask 31744
        %v742 = vsel %vm740, %v548, 0
        %v745 = vsel %vm740, %v553, 0
        %v748 = vsel %vm740, %v640, 0
        %v751 = vsel %vm740, %v645, 0
        %753 = vmatprep.subr.mxu0 0.0
        %754 = vmatpush1.xpose.msra.mxu0 %v748
        %755 = vmatprep.subr.mxu0 0.0
        %756 = vmatpush1.xpose.msra.mxu0 %v751
        %757 = vmatprep.subr.mxu0 0.0
        %758 = vmatpush1.xpose.msra.mxu0 0.0
        %759 = vmatprep.subr.mxu0 0.0
        %760 = vmatpush1.xpose.msra.mxu0 0.0
        %761 = vmatprep.subr.mxu0 0.0
        %762 = vmatpush1.xpose.msra.mxu0 0.0
        %763 = vmatprep.subr.mxu0 0.0
        %764 = vmatpush1.xpose.msra.mxu0 0.0
        %765 = vmatprep.subr.mxu0 0.0
        %766 = vmatpush1.xpose.msra.mxu0 0.0
        %767 = vmatprep.subr.mxu0 0.0
        %768 = vmatpush1.xpose.msra.mxu0 0.0
        %769 = vmatprep.subr.mxu0 0.0
        %770 = vmatpush1.xpose.msra.mxu0 0.0
        %771 = vmatprep.subr.mxu0 0.0
        %772 = vmatpush1.xpose.msra.mxu0 0.0
        %773 = vmatprep.subr.mxu0 0.0
        %774 = vmatpush1.xpose.msra.mxu0 0.0
        %775 = vmatprep.subr.mxu0 0.0
        %776 = vmatpush1.xpose.msra.mxu0 0.0
        %777 = vmatprep.subr.mxu0 0.0
        %778 = vmatpush1.xpose.msra.mxu0 0.0
        %779 = vmatprep.subr.mxu0 0.0
        %780 = vmatpush1.xpose.msra.mxu0 0.0
        %781 = vmatprep.subr.mxu0 0.0
        %782 = vmatpush1.xpose.msra.mxu0 0.0
        %783 = vmatprep.subr.mxu0 0.0
        %784 = vmatpush1.xpose.msra.mxu0 0.0
        %785 = vmatprep.subr.mxu0 0.0
        %786 = vmatpush1.xpose.msra.mxu0 0.0
        %787 = vmatprep.subr.mxu0 0.0
        %788 = vmatpush1.xpose.msra.mxu0 0.0
        %789 = vmatprep.subr.mxu0 0.0
        %790 = vmatpush1.xpose.msra.mxu0 0.0
        %791 = vmatprep.subr.mxu0 0.0
        %792 = vmatpush1.xpose.msra.mxu0 0.0
        %793 = vmatprep.subr.mxu0 0.0
        %794 = vmatpush1.xpose.msra.mxu0 0.0
        %795 = vmatprep.subr.mxu0 0.0
        %796 = vmatpush1.xpose.msra.mxu0 0.0
        %797 = vmatprep.subr.mxu0 0.0
        %798 = vmatpush1.xpose.msra.mxu0 0.0
        %799 = vmatprep.subr.mxu0 0.0
        %800 = vmatpush1.xpose.msra.mxu0 0.0
        %801 = vmatprep.subr.mxu0 0.0
        %802 = vmatpush1.xpose.msra.mxu0 0.0
        %803 = vmatprep.subr.mxu0 0.0
        %804 = vmatpush1.xpose.msra.mxu0 0.0
        %805 = vmatprep.subr.mxu0 0.0
        %806 = vmatpush1.xpose.msra.mxu0 0.0
        %807 = vmatprep.subr.mxu0 0.0
        %808 = vmatpush1.xpose.msra.mxu0 0.0
        %809 = vmatprep.subr.mxu0 0.0
        %810 = vmatpush1.xpose.msra.mxu0 0.0
        %811 = vmatprep.subr.mxu0 0.0
        %812 = vmatpush1.xpose.msra.mxu0 0.0
        %813 = vmatprep.subr.mxu0 0.0
        %814 = vmatpush1.xpose.msra.mxu0 0.0
        %815 = vmatprep.subr.mxu0 0.0
        %816 = vmatpush1.xpose.msra.mxu0 0.0
        %817 = vmatprep.mubr.f32.mxu0 0.0
        %818 = vmatmul.mubr.f32.gmra.mrb[0].mxu0 %v742
        %v819 = vpop.f32.mrb[0].mxu0
        %v820 = vadd.f32 0.0, %v819
        %v821 = vpop.f32.mrb[0].mxu0
        %822 = vmatprep.mubr.f32.mxu0 0.0
        %823 = vmatmul.mubr.f32.gmra.mrb[0].mxu0 %v745
        %v824 = vpop.f32.mrb[0].mxu0
        %v825 = vadd.f32 0.0, %v824
        %v826 = vpop.f32.mrb[0].mxu0
        %827 = vdwg.mxu0
        %vm828 = vcmask 130048
        %v829 = vsel %vm828, %v820, -inf
        %830 = vmax.xlane.f32.xlu0 %v829
        %v831 = vpop.xlane.xlu0 %830
        %v832 = vsel %vm828, %v825, -inf
        %833 = vmax.xlane.f32.xlu0 %v832
        %v834 = vpop.xlane.xlu0 %833
        %v835 = vsub.f32 %v820, %v831
        %v836 = vsub.f32 %v825, %v834
        %v837 = vmul.f32 %v835, 1.442695
        %v838 = vpow.pop %v837
        %v839 = vmul.f32 %v836, 1.442695
        %v840 = vpow.pop %v839
        %v841 = vsel %vm828, %v838, 0.0
        %842 = vadd.xlane.f32.xlu0 %v841
        %v843 = vpop.xlane.xlu0 %842
        %v844 = vsel %vm828, %v840, 0.0
        %845 = vadd.xlane.f32.xlu0 %v844
        %v846 = vpop.xlane.xlu0 %845
        %v847 = vrcp.pop %v843
        %v848 = vrcp.pop %v846
        %v849 = vmul.f32 %v838, %v847
        %v850 = vmul.f32 %v840, %v848
        %v852 = vsel %vm828, %v849, 0
        %v855 = vsel %vm828, %v850, 0
        %857 = vmatprep.subr.mxu0 0.0
        %858 = vmatpush1.msra.mxu0 %v732
        %859 = vmatprep.subr.mxu0 0.0
        %860 = vmatpush1.msra.mxu0 %v737
        %861 = vmatprep.subr.mxu0 0.0
        %862 = vmatpush1.msra.mxu0 0.0
        %863 = vmatprep.subr.mxu0 0.0
        %864 = vmatpush1.msra.mxu0 0.0
        %865 = vmatprep.subr.mxu0 0.0
        %866 = vmatpush1.msra.mxu0 0.0
        %867 = vmatprep.subr.mxu0 0.0
        %868 = vmatpush1.msra.mxu0 0.0
        %869 = vmatprep.subr.mxu0 0.0
        %870 = vmatpush1.msra.mxu0 0.0
        %871 = vmatprep.subr.mxu0 0.0
        %872 = vmatpush1.msra.mxu0 0.0
        %873 = vmatprep.subr.mxu0 0.0
        %874 = vmatpush1.msra.mxu0 0.0
        %875 = vmatprep.subr.mxu0 0.0
        %876 = vmatpush1.msra.mxu0 0.0
        %877 = vmatprep.subr.mxu0 0.0
        %878 = vmatpush1.msra.mxu0 0.0
        %879 = vmatprep.subr.mxu0 0.0
        %880 = vmatpush1.msra.mxu0 0.0
        %881 = vmatprep.subr.mxu0 0.0
        %882 = vmatpush1.msra.mxu0 0.0
        %883 = vmatprep.subr.mxu0 0.0
        %884 = vmatpush1.msra.mxu0 0.0
        %885 = vmatprep.subr.mxu0 0.0
        %886 = vmatpush1.msra.mxu0 0.0
        %887 = vmatprep.subr.mxu0 0.0
        %888 = vmatpush1.msra.mxu0 0.0
        %889 = vmatprep.subr.mxu0 0.0
        %890 = vmatpush1.msra.mxu0 0.0
        %891 = vmatprep.subr.mxu0 0.0
        %892 = vmatpush1.msra.mxu0 0.0
        %893 = vmatprep.subr.mxu0 0.0
        %894 = vmatpush1.msra.mxu0 0.0
        %895 = vmatprep.subr.mxu0 0.0
        %896 = vmatpush1.msra.mxu0 0.0
        %897 = vmatprep.subr.mxu0 0.0
        %898 = vmatpush1.msra.mxu0 0.0
        %899 = vmatprep.subr.mxu0 0.0
        %900 = vmatpush1.msra.mxu0 0.0
        %901 = vmatprep.subr.mxu0 0.0
        %902 = vmatpush1.msra.mxu0 0.0
        %903 = vmatprep.subr.mxu0 0.0
        %904 = vmatpush1.msra.mxu0 0.0
        %905 = vmatprep.subr.mxu0 0.0
        %906 = vmatpush1.msra.mxu0 0.0
        %907 = vmatprep.subr.mxu0 0.0
        %908 = vmatpush1.msra.mxu0 0.0
        %909 = vmatprep.subr.mxu0 0.0
        %910 = vmatpush1.msra.mxu0 0.0
        %911 = vmatprep.subr.mxu0 0.0
        %912 = vmatpush1.msra.mxu0 0.0
        %913 = vmatprep.subr.mxu0 0.0
        %914 = vmatpush1.msra.mxu0 0.0
        %915 = vmatprep.subr.mxu0 0.0
        %916 = vmatpush1.msra.mxu0 0.0
        %917 = vmatprep.subr.mxu0 0.0
        %918 = vmatpush1.msra.mxu0 0.0
        %919 = vmatprep.subr.mxu0 0.0
        %920 = vmatpush1.msra.mxu0 0.0
        %921 = vmatprep.mubr.f32.mxu0 0.0
        %922 = vmatmul.mubr.f32.gmra.mrb[0].mxu0 %v852
        %v923 = vpop.f32.mrb[0].mxu0
        %v924 = vadd.f32 0.0, %v923
        %v925 = vpop.f32.mrb[0].mxu0
        %926 = vmatprep.mubr.f32.mxu0 0.0
        %927 = vmatmul.mubr.f32.gmra.mrb[0].mxu0 %v855
        %v928 = vpop.f32.mrb[0].mxu0
        %v929 = vadd.f32 0.0, %v928
        %v930 = vpop.f32.mrb[0].mxu0
        %931 = vdwg.mxu0
        %932 = vrot.lane.b32.xlu0 %v548, 124
        %v933 = vpop.permute.xlu0 %932
        %934 = vrot.lane.b32.xlu0 %v553, 124
        %v935 = vpop.permute.xlu0 %934
        %936 = vrot.lane.b32.xlu0 %v640, 124
        %v937 = vpop.permute.xlu0 %936
        %938 = vrot.lane.b32.xlu0 %v645, 124
        %v939 = vpop.permute.xlu0 %938
        %v940 = vsel %vm740, %v933, 0
        %v942 = vsel %vm740, %v935, 0
        %v944 = vsel %vm740, %v937, 0
        %v946 = vsel %vm740, %v939, 0
        %948 = vmatprep.subr.mxu0 0.0
        %949 = vmatpush1.xpose.msra.mxu0 %v944
        %950 = vmatprep.subr.mxu0 0.0
        %951 = vmatpush1.xpose.msra.mxu0 %v946
        %952 = vmatprep.subr.mxu0 0.0
        %953 = vmatpush1.xpose.msra.mxu0 0.0
        %954 = vmatprep.subr.mxu0 0.0
        %955 = vmatpush1.xpose.msra.mxu0 0.0
        %956 = vmatprep.subr.mxu0 0.0
        %957 = vmatpush1.xpose.msra.mxu0 0.0
        %958 = vmatprep.subr.mxu0 0.0
        %959 = vmatpush1.xpose.msra.mxu0 0.0
        %960 = vmatprep.subr.mxu0 0.0
        %961 = vmatpush1.xpose.msra.mxu0 0.0
        %962 = vmatprep.subr.mxu0 0.0
        %963 = vmatpush1.xpose.msra.mxu0 0.0
        %964 = vmatprep.subr.mxu0 0.0
        %965 = vmatpush1.xpose.msra.mxu0 0.0
        %966 = vmatprep.subr.mxu0 0.0
        %967 = vmatpush1.xpose.msra.mxu0 0.0
        %968 = vmatprep.subr.mxu0 0.0
        %969 = vmatpush1.xpose.msra.mxu0 0.0
        %970 = vmatprep.subr.mxu0 0.0
        %971 = vmatpush1.xpose.msra.mxu0 0.0
        %972 = vmatprep.subr.mxu0 0.0
        %973 = vmatpush1.xpose.msra.mxu0 0.0
        %974 = vmatprep.subr.mxu0 0.0
        %975 = vmatpush1.xpose.msra.mxu0 0.0
        %976 = vmatprep.subr.mxu0 0.0
        %977 = vmatpush1.xpose.msra.mxu0 0.0
        %978 = vmatprep.subr.mxu0 0.0
        %979 = vmatpush1.xpose.msra.mxu0 0.0
        %980 = vmatprep.subr.mxu0 0.0
        %981 = vmatpush1.xpose.msra.mxu0 0.0
        %982 = vmatprep.subr.mxu0 0.0
        %983 = vmatpush1.xpose.msra.mxu0 0.0
        %984 = vmatprep.subr.mxu0 0.0
        %985 = vmatpush1.xpose.msra.mxu0 0.0
        %986 = vmatprep.subr.mxu0 0.0
        %987 = vmatpush1.xpose.msra.mxu0 0.0
        %988 = vmatprep.subr.mxu0 0.0
        %989 = vmatpush1.xpose.msra.mxu0 0.0
        %990 = vmatprep.subr.mxu0 0.0
        %991 = vmatpush1.xpose.msra.mxu0 0.0
        %992 = vmatprep.subr.mxu0 0.0
        %993 = vmatpush1.xpose.msra.mxu0 0.0
        %994 = vmatprep.subr.mxu0 0.0
        %995 = vmatpush1.xpose.msra.mxu0 0.0
        %996 = vmatprep.subr.mxu0 0.0
        %997 = vmatpush1.xpose.msra.mxu0 0.0
        %998 = vmatprep.subr.mxu0 0.0
        %999 = vmatpush1.xpose.msra.mxu0 0.0
        %1000 = vmatprep.subr.mxu0 0.0
        %1001 = vmatpush1.xpose.msra.mxu0 0.0
        %1002 = vmatprep.subr.mxu0 0.0
        %1003 = vmatpush1.xpose.msra.mxu0 0.0
        %1004 = vmatprep.subr.mxu0 0.0
        %1005 = vmatpush1.xpose.msra.mxu0 0.0
        %1006 = vmatprep.subr.mxu0 0.0
        %1007 = vmatpush1.xpose.msra.mxu0 0.0
        %1008 = vmatprep.subr.mxu0 0.0
        %1009 = vmatpush1.xpose.msra.mxu0 0.0
        %1010 = vmatprep.subr.mxu0 0.0
        %1011 = vmatpush1.xpose.msra.mxu0 0.0
        %1012 = vmatprep.mubr.f32.mxu0 0.0
        %1013 = vmatmul.mubr.f32.gmra.mrb[0].mxu0 %v940
        %v1014 = vpop.f32.mrb[0].mxu0
        %v1015 = vadd.f32 0.0, %v1014
        %v1016 = vpop.f32.mrb[0].mxu0
        %1017 = vmatprep.mubr.f32.mxu0 0.0
        %1018 = vmatmul.mubr.f32.gmra.mrb[0].mxu0 %v942
        %v1019 = vpop.f32.mrb[0].mxu0
        %v1020 = vadd.f32 0.0, %v1019
        %v1021 = vpop.f32.mrb[0].mxu0
        %1022 = vdwg.mxu0
        %v1023 = vsel %vm828, %v1015, -inf
        %1024 = vmax.xlane.f32.xlu0 %v1023
        %v1025 = vpop.xlane.xlu0 %1024
        %v1026 = vsel %vm828, %v1020, -inf
        %1027 = vmax.xlane.f32.xlu0 %v1026
        %v1028 = vpop.xlane.xlu0 %1027
        %v1029 = vsub.f32 %v1015, %v1025
        %v1030 = vsub.f32 %v1020, %v1028
        %v1031 = vmul.f32 %v1029, 1.442695
        %v1032 = vpow.pop %v1031
        %v1033 = vmul.f32 %v1030, 1.442695
        %v1034 = vpow.pop %v1033
        %v1035 = vsel %vm828, %v1032, 0.0
        %1036 = vadd.xlane.f32.xlu0 %v1035
        %v1037 = vpop.xlane.xlu0 %1036
        %v1038 = vsel %vm828, %v1034, 0.0
        %1039 = vadd.xlane.f32.xlu0 %v1038
        %v1040 = vpop.xlane.xlu0 %1039
        %v1041 = vrcp.pop %v1037
        %v1042 = vrcp.pop %v1040
        %v1043 = vmul.f32 %v1032, %v1041
        %v1044 = vmul.f32 %v1034, %v1042
        %1047 = vrot.lane.b32.xlu0 %v732, 124
        %v1048 = vpop.permute.xlu0 %1047
        %1049 = vrot.lane.b32.xlu0 %v737, 124
        %v1050 = vpop.permute.xlu0 %1049
        %v1054 = vsel %vm828, %v1043, 0
        %v1057 = vsel %vm828, %v1044, 0
        %1059 = vmatprep.subr.mxu0 0.0
        %1060 = vmatpush1.msra.mxu0 %v1048
        %1061 = vmatprep.subr.mxu0 0.0
        %1062 = vmatpush1.msra.mxu0 %v1050
        %1063 = vmatprep.subr.mxu0 0.0
        %1064 = vmatpush1.msra.mxu0 0.0
        %1065 = vmatprep.subr.mxu0 0.0
        %1066 = vmatpush1.msra.mxu0 0.0
        %1067 = vmatprep.subr.mxu0 0.0
        %1068 = vmatpush1.msra.mxu0 0.0
        %1069 = vmatprep.subr.mxu0 0.0
        %1070 = vmatpush1.msra.mxu0 0.0
        %1071 = vmatprep.subr.mxu0 0.0
        %1072 = vmatpush1.msra.mxu0 0.0
        %1073 = vmatprep.subr.mxu0 0.0
        %1074 = vmatpush1.msra.mxu0 0.0
        %1075 = vmatprep.subr.mxu0 0.0
        %1076 = vmatpush1.msra.mxu0 0.0
        %1077 = vmatprep.subr.mxu0 0.0
        %1078 = vmatpush1.msra.mxu0 0.0
        %1079 = vmatprep.subr.mxu0 0.0
        %1080 = vmatpush1.msra.mxu0 0.0
        %1081 = vmatprep.subr.mxu0 0.0
        %1082 = vmatpush1.msra.mxu0 0.0
        %1083 = vmatprep.subr.mxu0 0.0
        %1084 = vmatpush1.msra.mxu0 0.0
        %1085 = vmatprep.subr.mxu0 0.0
        %1086 = vmatpush1.msra.mxu0 0.0
        %1087 = vmatprep.subr.mxu0 0.0
        %1088 = vmatpush1.msra.mxu0 0.0
        %1089 = vmatprep.subr.mxu0 0.0
        %1090 = vmatpush1.msra.mxu0 0.0
        %1091 = vmatprep.subr.mxu0 0.0
        %1092 = vmatpush1.msra.mxu0 0.0
        %1093 = vmatprep.subr.mxu0 0.0
        %1094 = vmatpush1.msra.mxu0 0.0
        %1095 = vmatprep.subr.mxu0 0.0
        %1096 = vmatpush1.msra.mxu0 0.0
        %1097 = vmatprep.subr.mxu0 0.0
        %1098 = vmatpush1.msra.mxu0 0.0
        %1099 = vmatprep.subr.mxu0 0.0
        %1100 = vmatpush1.msra.mxu0 0.0
        %1101 = vmatprep.subr.mxu0 0.0
        %1102 = vmatpush1.msra.mxu0 0.0
        %1103 = vmatprep.subr.mxu0 0.0
        %1104 = vmatpush1.msra.mxu0 0.0
        %1105 = vmatprep.subr.mxu0 0.0
        %1106 = vmatpush1.msra.mxu0 0.0
        %1107 = vmatprep.subr.mxu0 0.0
        %1108 = vmatpush1.msra.mxu0 0.0
        %1109 = vmatprep.subr.mxu0 0.0
        %1110 = vmatpush1.msra.mxu0 0.0
        %1111 = vmatprep.subr.mxu0 0.0
        %1112 = vmatpush1.msra.mxu0 0.0
        %1113 = vmatprep.subr.mxu0 0.0
        %1114 = vmatpush1.msra.mxu0 0.0
        %1115 = vmatprep.subr.mxu0 0.0
        %1116 = vmatpush1.msra.mxu0 0.0
        %1117 = vmatprep.subr.mxu0 0.0
        %1118 = vmatpush1.msra.mxu0 0.0
        %1119 = vmatprep.subr.mxu0 0.0
        %1120 = vmatpush1.msra.mxu0 0.0
        %1121 = vmatprep.subr.mxu0 0.0
        %1122 = vmatpush1.msra.mxu0 0.0
        %1123 = vmatprep.mubr.f32.mxu0 0.0
        %1124 = vmatmul.mubr.f32.gmra.mrb[0].mxu0 %v1054
        %v1125 = vpop.f32.mrb[0].mxu0
        %v1126 = vadd.f32 0.0, %v1125
        %v1127 = vpop.f32.mrb[0].mxu0
        %1128 = vmatprep.mubr.f32.mxu0 0.0
        %1129 = vmatmul.mubr.f32.gmra.mrb[0].mxu0 %v1057
        %v1130 = vpop.f32.mrb[0].mxu0
        %v1131 = vadd.f32 0.0, %v1130
        %v1132 = vpop.f32.mrb[0].mxu0
        %1133 = vdwg.mxu0
        %1134 = vrot.lane.b32.xlu0 %v548, 120
        %v1135 = vpop.permute.xlu0 %1134
        %1136 = vrot.lane.b32.xlu0 %v553, 120
        %v1137 = vpop.permute.xlu0 %1136
        %1138 = vrot.lane.b32.xlu0 %v640, 120
        %v1139 = vpop.permute.xlu0 %1138
        %1140 = vrot.lane.b32.xlu0 %v645, 120
        %v1141 = vpop.permute.xlu0 %1140
        %v1142 = vsel %vm740, %v1135, 0
        %v1144 = vsel %vm740, %v1137, 0
        %v1146 = vsel %vm740, %v1139, 0
        %v1148 = vsel %vm740, %v1141, 0
        %1150 = vmatprep.subr.mxu0 0.0
        %1151 = vmatpush1.xpose.msra.mxu0 %v1146
        %1152 = vmatprep.subr.mxu0 0.0
        %1153 = vmatpush1.xpose.msra.mxu0 %v1148
        %1154 = vmatprep.subr.mxu0 0.0
        %1155 = vmatpush1.xpose.msra.mxu0 0.0
        %1156 = vmatprep.subr.mxu0 0.0
        %1157 = vmatpush1.xpose.msra.mxu0 0.0
        %1158 = vmatprep.subr.mxu0 0.0
        %1159 = vmatpush1.xpose.msra.mxu0 0.0
        %1160 = vmatprep.subr.mxu0 0.0
        %1161 = vmatpush1.xpose.msra.mxu0 0.0
        %1162 = vmatprep.subr.mxu0 0.0
        %1163 = vmatpush1.xpose.msra.mxu0 0.0
        %1164 = vmatprep.subr.mxu0 0.0
        %1165 = vmatpush1.xpose.msra.mxu0 0.0
        %1166 = vmatprep.subr.mxu0 0.0
        %1167 = vmatpush1.xpose.msra.mxu0 0.0
        %1168 = vmatprep.subr.mxu0 0.0
        %1169 = vmatpush1.xpose.msra.mxu0 0.0
        %1170 = vmatprep.subr.mxu0 0.0
        %1171 = vmatpush1.xpose.msra.mxu0 0.0
        %1172 = vmatprep.subr.mxu0 0.0
        %1173 = vmatpush1.xpose.msra.mxu0 0.0
        %1174 = vmatprep.subr.mxu0 0.0
        %1175 = vmatpush1.xpose.msra.mxu0 0.0
        %1176 = vmatprep.subr.mxu0 0.0
        %1177 = vmatpush1.xpose.msra.mxu0 0.0
        %1178 = vmatprep.subr.mxu0 0.0
        %1179 = vmatpush1.xpose.msra.mxu0 0.0
        %1180 = vmatprep.subr.mxu0 0.0
        %1181 = vmatpush1.xpose.msra.mxu0 0.0
        %1182 = vmatprep.subr.mxu0 0.0
        %1183 = vmatpush1.xpose.msra.mxu0 0.0
        %1184 = vmatprep.subr.mxu0 0.0
        %1185 = vmatpush1.xpose.msra.mxu0 0.0
        %1186 = vmatprep.subr.mxu0 0.0
        %1187 = vmatpush1.xpose.msra.mxu0 0.0
        %1188 = vmatprep.subr.mxu0 0.0
        %1189 = vmatpush1.xpose.msra.mxu0 0.0
        %1190 = vmatprep.subr.mxu0 0.0
        %1191 = vmatpush1.xpose.msra.mxu0 0.0
        %1192 = vmatprep.subr.mxu0 0.0
        %1193 = vmatpush1.xpose.msra.mxu0 0.0
        %1194 = vmatprep.subr.mxu0 0.0
        %1195 = vmatpush1.xpose.msra.mxu0 0.0
        %1196 = vmatprep.subr.mxu0 0.0
        %1197 = vmatpush1.xpose.msra.mxu0 0.0
        %1198 = vmatprep.subr.mxu0 0.0
        %1199 = vmatpush1.xpose.msra.mxu0 0.0
        %1200 = vmatprep.subr.mxu0 0.0
        %1201 = vmatpush1.xpose.msra.mxu0 0.0
        %1202 = vmatprep.subr.mxu0 0.0
        %1203 = vmatpush1.xpose.msra.mxu0 0.0
        %1204 = vmatprep.subr.mxu0 0.0
        %1205 = vmatpush1.xpose.msra.mxu0 0.0
        %1206 = vmatprep.subr.mxu0 0.0
        %1207 = vmatpush1.xpose.msra.mxu0 0.0
        %1208 = vmatprep.subr.mxu0 0.0
        %1209 = vmatpush1.xpose.msra.mxu0 0.0
        %1210 = vmatprep.subr.mxu0 0.0
        %1211 = vmatpush1.xpose.msra.mxu0 0.0
        %1212 = vmatprep.subr.mxu0 0.0
        %1213 = vmatpush1.xpose.msra.mxu0 0.0
        %1214 = vmatprep.mubr.f32.mxu0 0.0
        %1215 = vmatmul.mubr.f32.gmra.mrb[0].mxu0 %v1142
        %v1216 = vpop.f32.mrb[0].mxu0
        %v1217 = vadd.f32 0.0, %v1216
        %v1218 = vpop.f32.mrb[0].mxu0
        %1219 = vmatprep.mubr.f32.mxu0 0.0
        %1220 = vmatmul.mubr.f32.gmra.mrb[0].mxu0 %v1144
        %v1221 = vpop.f32.mrb[0].mxu0
        %v1222 = vadd.f32 0.0, %v1221
        %v1223 = vpop.f32.mrb[0].mxu0
        %1224 = vdwg.mxu0
        %v1225 = vsel %vm828, %v1217, -inf
        %1226 = vmax.xlane.f32.xlu0 %v1225
        %v1227 = vpop.xlane.xlu0 %1226
        %v1228 = vsel %vm828, %v1222, -inf
        %1229 = vmax.xlane.f32.xlu0 %v1228
        %v1230 = vpop.xlane.xlu0 %1229
        %v1231 = vsub.f32 %v1217, %v1227
        %v1232 = vsub.f32 %v1222, %v1230
        %v1233 = vmul.f32 %v1231, 1.442695
        %v1234 = vpow.pop %v1233
        %v1235 = vmul.f32 %v1232, 1.442695
        %v1236 = vpow.pop %v1235
        %v1237 = vsel %vm828, %v1234, 0.0
        %1238 = vadd.xlane.f32.xlu0 %v1237
        %v1239 = vpop.xlane.xlu0 %1238
        %v1240 = vsel %vm828, %v1236, 0.0
        %1241 = vadd.xlane.f32.xlu0 %v1240
        %v1242 = vpop.xlane.xlu0 %1241
        %v1243 = vrcp.pop %v1239
        %v1244 = vrcp.pop %v1242
        %v1245 = vmul.f32 %v1234, %v1243
        %v1246 = vmul.f32 %v1236, %v1244
        %1247 = vrot.lane.b32.xlu0 %v732, 120
        %v1248 = vpop.permute.xlu0 %1247
        %1249 = vrot.lane.b32.xlu0 %v737, 120
        %v1250 = vpop.permute.xlu0 %1249
        %v1254 = vsel %vm828, %v1245, 0
        %v1257 = vsel %vm828, %v1246, 0
        %1259 = vmatprep.subr.mxu0 0.0
        %1260 = vmatpush1.msra.mxu0 %v1248
        %1261 = vmatprep.subr.mxu0 0.0
        %1262 = vmatpush1.msra.mxu0 %v1250
        %1263 = vmatprep.subr.mxu0 0.0
        %1264 = vmatpush1.msra.mxu0 0.0
        %1265 = vmatprep.subr.mxu0 0.0
        %1266 = vmatpush1.msra.mxu0 0.0
        %1267 = vmatprep.subr.mxu0 0.0
        %1268 = vmatpush1.msra.mxu0 0.0
        %1269 = vmatprep.subr.mxu0 0.0
        %1270 = vmatpush1.msra.mxu0 0.0
        %1271 = vmatprep.subr.mxu0 0.0
        %1272 = vmatpush1.msra.mxu0 0.0
        %1273 = vmatprep.subr.mxu0 0.0
        %1274 = vmatpush1.msra.mxu0 0.0
        %1275 = vmatprep.subr.mxu0 0.0
        %1276 = vmatpush1.msra.mxu0 0.0
        %1277 = vmatprep.subr.mxu0 0.0
        %1278 = vmatpush1.msra.mxu0 0.0
        %1279 = vmatprep.subr.mxu0 0.0
        %1280 = vmatpush1.msra.mxu0 0.0
        %1281 = vmatprep.subr.mxu0 0.0
        %1282 = vmatpush1.msra.mxu0 0.0
        %1283 = vmatprep.subr.mxu0 0.0
        %1284 = vmatpush1.msra.mxu0 0.0
        %1285 = vmatprep.subr.mxu0 0.0
        %1286 = vmatpush1.msra.mxu0 0.0
        %1287 = vmatprep.subr.mxu0 0.0
        %1288 = vmatpush1.msra.mxu0 0.0
        %1289 = vmatprep.subr.mxu0 0.0
        %1290 = vmatpush1.msra.mxu0 0.0
        %1291 = vmatprep.subr.mxu0 0.0
        %1292 = vmatpush1.msra.mxu0 0.0
        %1293 = vmatprep.subr.mxu0 0.0
        %1294 = vmatpush1.msra.mxu0 0.0
        %1295 = vmatprep.subr.mxu0 0.0
        %1296 = vmatpush1.msra.mxu0 0.0
        %1297 = vmatprep.subr.mxu0 0.0
        %1298 = vmatpush1.msra.mxu0 0.0
        %1299 = vmatprep.subr.mxu0 0.0
        %1300 = vmatpush1.msra.mxu0 0.0
        %1301 = vmatprep.subr.mxu0 0.0
        %1302 = vmatpush1.msra.mxu0 0.0
        %1303 = vmatprep.subr.mxu0 0.0
        %1304 = vmatpush1.msra.mxu0 0.0
        %1305 = vmatprep.subr.mxu0 0.0
        %1306 = vmatpush1.msra.mxu0 0.0
        %1307 = vmatprep.subr.mxu0 0.0
        %1308 = vmatpush1.msra.mxu0 0.0
        %1309 = vmatprep.subr.mxu0 0.0
        %1310 = vmatpush1.msra.mxu0 0.0
        %1311 = vmatprep.subr.mxu0 0.0
        %1312 = vmatpush1.msra.mxu0 0.0
        %1313 = vmatprep.subr.mxu0 0.0
        %1314 = vmatpush1.msra.mxu0 0.0
        %1315 = vmatprep.subr.mxu0 0.0
        %1316 = vmatpush1.msra.mxu0 0.0
        %1317 = vmatprep.subr.mxu0 0.0
        %1318 = vmatpush1.msra.mxu0 0.0
        %1319 = vmatprep.subr.mxu0 0.0
        %1320 = vmatpush1.msra.mxu0 0.0
        %1321 = vmatprep.subr.mxu0 0.0
        %1322 = vmatpush1.msra.mxu0 0.0
        %1323 = vmatprep.mubr.f32.mxu0 0.0
        %1324 = vmatmul.mubr.f32.gmra.mrb[0].mxu0 %v1254
        %v1325 = vpop.f32.mrb[0].mxu0
        %v1326 = vadd.f32 0.0, %v1325
        %v1327 = vpop.f32.mrb[0].mxu0
        %1328 = vmatprep.mubr.f32.mxu0 0.0
        %1329 = vmatmul.mubr.f32.gmra.mrb[0].mxu0 %v1257
        %v1330 = vpop.f32.mrb[0].mxu0
        %v1331 = vadd.f32 0.0, %v1330
        %v1332 = vpop.f32.mrb[0].mxu0
        %1333 = vdwg.mxu0
        %1334 = vrot.lane.b32.xlu0 %v548, 116
        %v1335 = vpop.permute.xlu0 %1334
        %1336 = vrot.lane.b32.xlu0 %v553, 116
        %v1337 = vpop.permute.xlu0 %1336
        %1338 = vrot.lane.b32.xlu0 %v640, 116
        %v1339 = vpop.permute.xlu0 %1338
        %1340 = vrot.lane.b32.xlu0 %v645, 116
        %v1341 = vpop.permute.xlu0 %1340
        %v1342 = vsel %vm740, %v1335, 0
        %v1344 = vsel %vm740, %v1337, 0
        %v1346 = vsel %vm740, %v1339, 0
        %v1348 = vsel %vm740, %v1341, 0
        %1350 = vmatprep.subr.mxu0 0.0
        %1351 = vmatpush1.xpose.msra.mxu0 %v1346
        %1352 = vmatprep.subr.mxu0 0.0
        %1353 = vmatpush1.xpose.msra.mxu0 %v1348
        %1354 = vmatprep.subr.mxu0 0.0
        %1355 = vmatpush1.xpose.msra.mxu0 0.0
        %1356 = vmatprep.subr.mxu0 0.0
        %1357 = vmatpush1.xpose.msra.mxu0 0.0
        %1358 = vmatprep.subr.mxu0 0.0
        %1359 = vmatpush1.xpose.msra.mxu0 0.0
        %1360 = vmatprep.subr.mxu0 0.0
        %1361 = vmatpush1.xpose.msra.mxu0 0.0
        %1362 = vmatprep.subr.mxu0 0.0
        %1363 = vmatpush1.xpose.msra.mxu0 0.0
        %1364 = vmatprep.subr.mxu0 0.0
        %1365 = vmatpush1.xpose.msra.mxu0 0.0
        %1366 = vmatprep.subr.mxu0 0.0
        %1367 = vmatpush1.xpose.msra.mxu0 0.0
        %1368 = vmatprep.subr.mxu0 0.0
        %1369 = vmatpush1.xpose.msra.mxu0 0.0
        %1370 = vmatprep.subr.mxu0 0.0
        %1371 = vmatpush1.xpose.msra.mxu0 0.0
        %1372 = vmatprep.subr.mxu0 0.0
        %1373 = vmatpush1.xpose.msra.mxu0 0.0
        %1374 = vmatprep.subr.mxu0 0.0
        %1375 = vmatpush1.xpose.msra.mxu0 0.0
        %1376 = vmatprep.subr.mxu0 0.0
        %1377 = vmatpush1.xpose.msra.mxu0 0.0
        %1378 = vmatprep.subr.mxu0 0.0
        %1379 = vmatpush1.xpose.msra.mxu0 0.0
        %1380 = vmatprep.subr.mxu0 0.0
        %1381 = vmatpush1.xpose.msra.mxu0 0.0
        %1382 = vmatprep.subr.mxu0 0.0
        %1383 = vmatpush1.xpose.msra.mxu0 0.0
        %1384 = vmatprep.subr.mxu0 0.0
        %1385 = vmatpush1.xpose.msra.mxu0 0.0
        %1386 = vmatprep.subr.mxu0 0.0
        %1387 = vmatpush1.xpose.msra.mxu0 0.0
        %1388 = vmatprep.subr.mxu0 0.0
        %1389 = vmatpush1.xpose.msra.mxu0 0.0
        %1390 = vmatprep.subr.mxu0 0.0
        %1391 = vmatpush1.xpose.msra.mxu0 0.0
        %1392 = vmatprep.subr.mxu0 0.0
        %1393 = vmatpush1.xpose.msra.mxu0 0.0
        %1394 = vmatprep.subr.mxu0 0.0
        %1395 = vmatpush1.xpose.msra.mxu0 0.0
        %1396 = vmatprep.subr.mxu0 0.0
        %1397 = vmatpush1.xpose.msra.mxu0 0.0
        %1398 = vmatprep.subr.mxu0 0.0
        %1399 = vmatpush1.xpose.msra.mxu0 0.0
        %1400 = vmatprep.subr.mxu0 0.0
        %1401 = vmatpush1.xpose.msra.mxu0 0.0
        %1402 = vmatprep.subr.mxu0 0.0
        %1403 = vmatpush1.xpose.msra.mxu0 0.0
        %1404 = vmatprep.subr.mxu0 0.0
        %1405 = vmatpush1.xpose.msra.mxu0 0.0
        %1406 = vmatprep.subr.mxu0 0.0
        %1407 = vmatpush1.xpose.msra.mxu0 0.0
        %1408 = vmatprep.subr.mxu0 0.0
        %1409 = vmatpush1.xpose.msra.mxu0 0.0
        %1410 = vmatprep.subr.mxu0 0.0
        %1411 = vmatpush1.xpose.msra.mxu0 0.0
        %1412 = vmatprep.subr.mxu0 0.0
        %1413 = vmatpush1.xpose.msra.mxu0 0.0
        %1414 = vmatprep.mubr.f32.mxu0 0.0
        %1415 = vmatmul.mubr.f32.gmra.mrb[0].mxu0 %v1342
        %v1416 = vpop.f32.mrb[0].mxu0
        %v1417 = vadd.f32 0.0, %v1416
        %v1418 = vpop.f32.mrb[0].mxu0
        %1419 = vmatprep.mubr.f32.mxu0 0.0
        %1420 = vmatmul.mubr.f32.gmra.mrb[0].mxu0 %v1344
        %v1421 = vpop.f32.mrb[0].mxu0
        %v1422 = vadd.f32 0.0, %v1421
        %v1423 = vpop.f32.mrb[0].mxu0
        %1424 = vdwg.mxu0
        %v1425 = vsel %vm828, %v1417, -inf
        %1426 = vmax.xlane.f32.xlu0 %v1425
        %v1427 = vpop.xlane.xlu0 %1426
        %v1428 = vsel %vm828, %v1422, -inf
        %1429 = vmax.xlane.f32.xlu0 %v1428
        %v1430 = vpop.xlane.xlu0 %1429
        %v1431 = vsub.f32 %v1417, %v1427
        %v1432 = vsub.f32 %v1422, %v1430
        %v1433 = vmul.f32 %v1431, 1.442695
        %v1434 = vpow.pop %v1433
        %v1435 = vmul.f32 %v1432, 1.442695
        %v1436 = vpow.pop %v1435
        %v1437 = vsel %vm828, %v1434, 0.0
        %1438 = vadd.xlane.f32.xlu0 %v1437
        %v1439 = vpop.xlane.xlu0 %1438
        %v1440 = vsel %vm828, %v1436, 0.0
        %1441 = vadd.xlane.f32.xlu0 %v1440
        %v1442 = vpop.xlane.xlu0 %1441
        %v1443 = vrcp.pop %v1439
        %v1444 = vrcp.pop %v1442
        %v1445 = vmul.f32 %v1434, %v1443
        %v1446 = vmul.f32 %v1436, %v1444
        %1447 = vrot.lane.b32.xlu0 %v732, 116
        %v1448 = vpop.permute.xlu0 %1447
        %1449 = vrot.lane.b32.xlu0 %v737, 116
        %v1450 = vpop.permute.xlu0 %1449
        %v1454 = vsel %vm828, %v1445, 0
        %v1457 = vsel %vm828, %v1446, 0
        %1459 = vmatprep.subr.mxu0 0.0
        %1460 = vmatpush1.msra.mxu0 %v1448
        %1461 = vmatprep.subr.mxu0 0.0
        %1462 = vmatpush1.msra.mxu0 %v1450
        %1463 = vmatprep.subr.mxu0 0.0
        %1464 = vmatpush1.msra.mxu0 0.0
        %1465 = vmatprep.subr.mxu0 0.0
        %1466 = vmatpush1.msra.mxu0 0.0
        %1467 = vmatprep.subr.mxu0 0.0
        %1468 = vmatpush1.msra.mxu0 0.0
        %1469 = vmatprep.subr.mxu0 0.0
        %1470 = vmatpush1.msra.mxu0 0.0
        %1471 = vmatprep.subr.mxu0 0.0
        %1472 = vmatpush1.msra.mxu0 0.0
        %1473 = vmatprep.subr.mxu0 0.0
        %1474 = vmatpush1.msra.mxu0 0.0
        %1475 = vmatprep.subr.mxu0 0.0
        %1476 = vmatpush1.msra.mxu0 0.0
        %1477 = vmatprep.subr.mxu0 0.0
        %1478 = vmatpush1.msra.mxu0 0.0
        %1479 = vmatprep.subr.mxu0 0.0
        %1480 = vmatpush1.msra.mxu0 0.0
        %1481 = vmatprep.subr.mxu0 0.0
        %1482 = vmatpush1.msra.mxu0 0.0
        %1483 = vmatprep.subr.mxu0 0.0
        %1484 = vmatpush1.msra.mxu0 0.0
        %1485 = vmatprep.subr.mxu0 0.0
        %1486 = vmatpush1.msra.mxu0 0.0
        %1487 = vmatprep.subr.mxu0 0.0
        %1488 = vmatpush1.msra.mxu0 0.0
        %1489 = vmatprep.subr.mxu0 0.0
        %1490 = vmatpush1.msra.mxu0 0.0
        %1491 = vmatprep.subr.mxu0 0.0
        %1492 = vmatpush1.msra.mxu0 0.0
        %1493 = vmatprep.subr.mxu0 0.0
        %1494 = vmatpush1.msra.mxu0 0.0
        %1495 = vmatprep.subr.mxu0 0.0
        %1496 = vmatpush1.msra.mxu0 0.0
        %1497 = vmatprep.subr.mxu0 0.0
        %1498 = vmatpush1.msra.mxu0 0.0
        %1499 = vmatprep.subr.mxu0 0.0
        %1500 = vmatpush1.msra.mxu0 0.0
        %1501 = vmatprep.subr.mxu0 0.0
        %1502 = vmatpush1.msra.mxu0 0.0
        %1503 = vmatprep.subr.mxu0 0.0
        %1504 = vmatpush1.msra.mxu0 0.0
        %1505 = vmatprep.subr.mxu0 0.0
        %1506 = vmatpush1.msra.mxu0 0.0
        %1507 = vmatprep.subr.mxu0 0.0
        %1508 = vmatpush1.msra.mxu0 0.0
        %1509 = vmatprep.subr.mxu0 0.0
        %1510 = vmatpush1.msra.mxu0 0.0
        %1511 = vmatprep.subr.mxu0 0.0
        %1512 = vmatpush1.msra.mxu0 0.0
        %1513 = vmatprep.subr.mxu0 0.0
        %1514 = vmatpush1.msra.mxu0 0.0
        %1515 = vmatprep.subr.mxu0 0.0
        %1516 = vmatpush1.msra.mxu0 0.0
        %1517 = vmatprep.subr.mxu0 0.0
        %1518 = vmatpush1.msra.mxu0 0.0
        %1519 = vmatprep.subr.mxu0 0.0
        %1520 = vmatpush1.msra.mxu0 0.0
        %1521 = vmatprep.subr.mxu0 0.0
        %1522 = vmatpush1.msra.mxu0 0.0
        %1523 = vmatprep.mubr.f32.mxu0 0.0
        %1524 = vmatmul.mubr.f32.gmra.mrb[0].mxu0 %v1454
        %v1525 = vpop.f32.mrb[0].mxu0
        %v1526 = vadd.f32 0.0, %v1525
        %v1527 = vpop.f32.mrb[0].mxu0
        %1528 = vmatprep.mubr.f32.mxu0 0.0
        %1529 = vmatmul.mubr.f32.gmra.mrb[0].mxu0 %v1457
        %v1530 = vpop.f32.mrb[0].mxu0
        %v1531 = vadd.f32 0.0, %v1530
        %v1532 = vpop.f32.mrb[0].mxu0
        %1533 = vdwg.mxu0
        %1534 = vrot.lane.b32.xlu0 %v548, 112
        %v1535 = vpop.permute.xlu0 %1534
        %1536 = vrot.lane.b32.xlu0 %v553, 112
        %v1537 = vpop.permute.xlu0 %1536
        %1538 = vrot.lane.b32.xlu0 %v640, 112
        %v1539 = vpop.permute.xlu0 %1538
        %1540 = vrot.lane.b32.xlu0 %v645, 112
        %v1541 = vpop.permute.xlu0 %1540
        %v1542 = vsel %vm740, %v1535, 0
        %v1544 = vsel %vm740, %v1537, 0
        %v1546 = vsel %vm740, %v1539, 0
        %v1548 = vsel %vm740, %v1541, 0
        %1550 = vmatprep.subr.mxu0 0.0
        %1551 = vmatpush1.xpose.msra.mxu0 %v1546
        %1552 = vmatprep.subr.mxu0 0.0
        %1553 = vmatpush1.xpose.msra.mxu0 %v1548
        %1554 = vmatprep.subr.mxu0 0.0
        %1555 = vmatpush1.xpose.msra.mxu0 0.0
        %1556 = vmatprep.subr.mxu0 0.0
        %1557 = vmatpush1.xpose.msra.mxu0 0.0
        %1558 = vmatprep.subr.mxu0 0.0
        %1559 = vmatpush1.xpose.msra.mxu0 0.0
        %1560 = vmatprep.subr.mxu0 0.0
        %1561 = vmatpush1.xpose.msra.mxu0 0.0
        %1562 = vmatprep.subr.mxu0 0.0
        %1563 = vmatpush1.xpose.msra.mxu0 0.0
        %1564 = vmatprep.subr.mxu0 0.0
        %1565 = vmatpush1.xpose.msra.mxu0 0.0
        %1566 = vmatprep.subr.mxu0 0.0
        %1567 = vmatpush1.xpose.msra.mxu0 0.0
        %1568 = vmatprep.subr.mxu0 0.0
        %1569 = vmatpush1.xpose.msra.mxu0 0.0
        %1570 = vmatprep.subr.mxu0 0.0
        %1571 = vmatpush1.xpose.msra.mxu0 0.0
        %1572 = vmatprep.subr.mxu0 0.0
        %1573 = vmatpush1.xpose.msra.mxu0 0.0
        %1574 = vmatprep.subr.mxu0 0.0
        %1575 = vmatpush1.xpose.msra.mxu0 0.0
        %1576 = vmatprep.subr.mxu0 0.0
        %1577 = vmatpush1.xpose.msra.mxu0 0.0
        %1578 = vmatprep.subr.mxu0 0.0
        %1579 = vmatpush1.xpose.msra.mxu0 0.0
        %1580 = vmatprep.subr.mxu0 0.0
        %1581 = vmatpush1.xpose.msra.mxu0 0.0
        %1582 = vmatprep.subr.mxu0 0.0
        %1583 = vmatpush1.xpose.msra.mxu0 0.0
        %1584 = vmatprep.subr.mxu0 0.0
        %1585 = vmatpush1.xpose.msra.mxu0 0.0
        %1586 = vmatprep.subr.mxu0 0.0
        %1587 = vmatpush1.xpose.msra.mxu0 0.0
        %1588 = vmatprep.subr.mxu0 0.0
        %1589 = vmatpush1.xpose.msra.mxu0 0.0
        %1590 = vmatprep.subr.mxu0 0.0
        %1591 = vmatpush1.xpose.msra.mxu0 0.0
        %1592 = vmatprep.subr.mxu0 0.0
        %1593 = vmatpush1.xpose.msra.mxu0 0.0
        %1594 = vmatprep.subr.mxu0 0.0
        %1595 = vmatpush1.xpose.msra.mxu0 0.0
        %1596 = vmatprep.subr.mxu0 0.0
        %1597 = vmatpush1.xpose.msra.mxu0 0.0
        %1598 = vmatprep.subr.mxu0 0.0
        %1599 = vmatpush1.xpose.msra.mxu0 0.0
        %1600 = vmatprep.subr.mxu0 0.0
        %1601 = vmatpush1.xpose.msra.mxu0 0.0
        %1602 = vmatprep.subr.mxu0 0.0
        %1603 = vmatpush1.xpose.msra.mxu0 0.0
        %1604 = vmatprep.subr.mxu0 0.0
        %1605 = vmatpush1.xpose.msra.mxu0 0.0
        %1606 = vmatprep.subr.mxu0 0.0
        %1607 = vmatpush1.xpose.msra.mxu0 0.0
        %1608 = vmatprep.subr.mxu0 0.0
        %1609 = vmatpush1.xpose.msra.mxu0 0.0
        %1610 = vmatprep.subr.mxu0 0.0
        %1611 = vmatpush1.xpose.msra.mxu0 0.0
        %1612 = vmatprep.subr.mxu0 0.0
        %1613 = vmatpush1.xpose.msra.mxu0 0.0
        %1614 = vmatprep.mubr.f32.mxu0 0.0
        %1615 = vmatmul.mubr.f32.gmra.mrb[0].mxu0 %v1542
        %v1616 = vpop.f32.mrb[0].mxu0
        %v1617 = vadd.f32 0.0, %v1616
        %v1618 = vpop.f32.mrb[0].mxu0
        %1619 = vmatprep.mubr.f32.mxu0 0.0
        %1620 = vmatmul.mubr.f32.gmra.mrb[0].mxu0 %v1544
        %v1621 = vpop.f32.mrb[0].mxu0
        %v1622 = vadd.f32 0.0, %v1621
        %v1623 = vpop.f32.mrb[0].mxu0
        %1624 = vdwg.mxu0
        %v1625 = vsel %vm828, %v1617, -inf
        %1626 = vmax.xlane.f32.xlu0 %v1625
        %v1627 = vpop.xlane.xlu0 %1626
        %v1628 = vsel %vm828, %v1622, -inf
        %1629 = vmax.xlane.f32.xlu0 %v1628
        %v1630 = vpop.xlane.xlu0 %1629
        %v1631 = vsub.f32 %v1617, %v1627
        %v1632 = vsub.f32 %v1622, %v1630
        %v1633 = vmul.f32 %v1631, 1.442695
        %v1634 = vpow.pop %v1633
        %v1635 = vmul.f32 %v1632, 1.442695
        %v1636 = vpow.pop %v1635
        %v1637 = vsel %vm828, %v1634, 0.0
        %1638 = vadd.xlane.f32.xlu0 %v1637
        %v1639 = vpop.xlane.xlu0 %1638
        %v1640 = vsel %vm828, %v1636, 0.0
        %1641 = vadd.xlane.f32.xlu0 %v1640
        %v1642 = vpop.xlane.xlu0 %1641
        %v1643 = vrcp.pop %v1639
        %v1644 = vrcp.pop %v1642
        %v1645 = vmul.f32 %v1634, %v1643
        %v1646 = vmul.f32 %v1636, %v1644
        %1647 = vrot.lane.b32.xlu0 %v732, 112
        %v1648 = vpop.permute.xlu0 %1647
        %1649 = vrot.lane.b32.xlu0 %v737, 112
        %v1650 = vpop.permute.xlu0 %1649
        %v1654 = vsel %vm828, %v1645, 0
        %v1657 = vsel %vm828, %v1646, 0
        %1659 = vmatprep.subr.mxu0 0.0
        %1660 = vmatpush1.msra.mxu0 %v1648
        %1661 = vmatprep.subr.mxu0 0.0
        %1662 = vmatpush1.msra.mxu0 %v1650
        %1663 = vmatprep.subr.mxu0 0.0
        %1664 = vmatpush1.msra.mxu0 0.0
        %1665 = vmatprep.subr.mxu0 0.0
        %1666 = vmatpush1.msra.mxu0 0.0
        %1667 = vmatprep.subr.mxu0 0.0
        %1668 = vmatpush1.msra.mxu0 0.0
        %1669 = vmatprep.subr.mxu0 0.0
        %1670 = vmatpush1.msra.mxu0 0.0
        %1671 = vmatprep.subr.mxu0 0.0
        %1672 = vmatpush1.msra.mxu0 0.0
        %1673 = vmatprep.subr.mxu0 0.0
        %1674 = vmatpush1.msra.mxu0 0.0
        %1675 = vmatprep.subr.mxu0 0.0
        %1676 = vmatpush1.msra.mxu0 0.0
        %1677 = vmatprep.subr.mxu0 0.0
        %1678 = vmatpush1.msra.mxu0 0.0
        %1679 = vmatprep.subr.mxu0 0.0
        %1680 = vmatpush1.msra.mxu0 0.0
        %1681 = vmatprep.subr.mxu0 0.0
        %1682 = vmatpush1.msra.mxu0 0.0
        %1683 = vmatprep.subr.mxu0 0.0
        %1684 = vmatpush1.msra.mxu0 0.0
        %1685 = vmatprep.subr.mxu0 0.0
        %1686 = vmatpush1.msra.mxu0 0.0
        %1687 = vmatprep.subr.mxu0 0.0
        %1688 = vmatpush1.msra.mxu0 0.0
        %1689 = vmatprep.subr.mxu0 0.0
        %1690 = vmatpush1.msra.mxu0 0.0
        %1691 = vmatprep.subr.mxu0 0.0
        %1692 = vmatpush1.msra.mxu0 0.0
        %1693 = vmatprep.subr.mxu0 0.0
        %1694 = vmatpush1.msra.mxu0 0.0
        %1695 = vmatprep.subr.mxu0 0.0
        %1696 = vmatpush1.msra.mxu0 0.0
        %1697 = vmatprep.subr.mxu0 0.0
        %1698 = vmatpush1.msra.mxu0 0.0
        %1699 = vmatprep.subr.mxu0 0.0
        %1700 = vmatpush1.msra.mxu0 0.0
        %1701 = vmatprep.subr.mxu0 0.0
        %1702 = vmatpush1.msra.mxu0 0.0
        %1703 = vmatprep.subr.mxu0 0.0
        %1704 = vmatpush1.msra.mxu0 0.0
        %1705 = vmatprep.subr.mxu0 0.0
        %1706 = vmatpush1.msra.mxu0 0.0
        %1707 = vmatprep.subr.mxu0 0.0
        %1708 = vmatpush1.msra.mxu0 0.0
        %1709 = vmatprep.subr.mxu0 0.0
        %1710 = vmatpush1.msra.mxu0 0.0
        %1711 = vmatprep.subr.mxu0 0.0
        %1712 = vmatpush1.msra.mxu0 0.0
        %1713 = vmatprep.subr.mxu0 0.0
        %1714 = vmatpush1.msra.mxu0 0.0
        %1715 = vmatprep.subr.mxu0 0.0
        %1716 = vmatpush1.msra.mxu0 0.0
        %1717 = vmatprep.subr.mxu0 0.0
        %1718 = vmatpush1.msra.mxu0 0.0
        %1719 = vmatprep.subr.mxu0 0.0
        %1720 = vmatpush1.msra.mxu0 0.0
        %1721 = vmatprep.subr.mxu0 0.0
        %1722 = vmatpush1.msra.mxu0 0.0
        %1723 = vmatprep.mubr.f32.mxu0 0.0
        %1724 = vmatmul.mubr.f32.gmra.mrb[0].mxu0 %v1654
        %v1725 = vpop.f32.mrb[0].mxu0
        %v1726 = vadd.f32 0.0, %v1725
        %v1727 = vpop.f32.mrb[0].mxu0
        %1728 = vmatprep.mubr.f32.mxu0 0.0
        %1729 = vmatmul.mubr.f32.gmra.mrb[0].mxu0 %v1657
        %v1730 = vpop.f32.mrb[0].mxu0
        %v1731 = vadd.f32 0.0, %v1730
        %v1732 = vpop.f32.mrb[0].mxu0
        %1733 = vdwg.mxu0
        %1734 = vrot.lane.b32.xlu0 %v548, 108
        %v1735 = vpop.permute.xlu0 %1734
        %1736 = vrot.lane.b32.xlu0 %v553, 108
        %v1737 = vpop.permute.xlu0 %1736
        %1738 = vrot.lane.b32.xlu0 %v640, 108
        %v1739 = vpop.permute.xlu0 %1738
        %1740 = vrot.lane.b32.xlu0 %v645, 108
        %v1741 = vpop.permute.xlu0 %1740
        %v1742 = vsel %vm740, %v1735, 0
        %v1744 = vsel %vm740, %v1737, 0
        %v1746 = vsel %vm740, %v1739, 0
        %v1748 = vsel %vm740, %v1741, 0
        %1750 = vmatprep.subr.mxu0 0.0
        %1751 = vmatpush1.xpose.msra.mxu0 %v1746
        %1752 = vmatprep.subr.mxu0 0.0
        %1753 = vmatpush1.xpose.msra.mxu0 %v1748
        %1754 = vmatprep.subr.mxu0 0.0
        %1755 = vmatpush1.xpose.msra.mxu0 0.0
        %1756 = vmatprep.subr.mxu0 0.0
        %1757 = vmatpush1.xpose.msra.mxu0 0.0
        %1758 = vmatprep.subr.mxu0 0.0
        %1759 = vmatpush1.xpose.msra.mxu0 0.0
        %1760 = vmatprep.subr.mxu0 0.0
        %1761 = vmatpush1.xpose.msra.mxu0 0.0
        %1762 = vmatprep.subr.mxu0 0.0
        %1763 = vmatpush1.xpose.msra.mxu0 0.0
        %1764 = vmatprep.subr.mxu0 0.0
        %1765 = vmatpush1.xpose.msra.mxu0 0.0
        %1766 = vmatprep.subr.mxu0 0.0
        %1767 = vmatpush1.xpose.msra.mxu0 0.0
        %1768 = vmatprep.subr.mxu0 0.0
        %1769 = vmatpush1.xpose.msra.mxu0 0.0
        %1770 = vmatprep.subr.mxu0 0.0
        %1771 = vmatpush1.xpose.msra.mxu0 0.0
        %1772 = vmatprep.subr.mxu0 0.0
        %1773 = vmatpush1.xpose.msra.mxu0 0.0
        %1774 = vmatprep.subr.mxu0 0.0
        %1775 = vmatpush1.xpose.msra.mxu0 0.0
        %1776 = vmatprep.subr.mxu0 0.0
        %1777 = vmatpush1.xpose.msra.mxu0 0.0
        %1778 = vmatprep.subr.mxu0 0.0
        %1779 = vmatpush1.xpose.msra.mxu0 0.0
        %1780 = vmatprep.subr.mxu0 0.0
        %1781 = vmatpush1.xpose.msra.mxu0 0.0
        %1782 = vmatprep.subr.mxu0 0.0
        %1783 = vmatpush1.xpose.msra.mxu0 0.0
        %1784 = vmatprep.subr.mxu0 0.0
        %1785 = vmatpush1.xpose.msra.mxu0 0.0
        %1786 = vmatprep.subr.mxu0 0.0
        %1787 = vmatpush1.xpose.msra.mxu0 0.0
        %1788 = vmatprep.subr.mxu0 0.0
        %1789 = vmatpush1.xpose.msra.mxu0 0.0
        %1790 = vmatprep.subr.mxu0 0.0
        %1791 = vmatpush1.xpose.msra.mxu0 0.0
        %1792 = vmatprep.subr.mxu0 0.0
        %1793 = vmatpush1.xpose.msra.mxu0 0.0
        %1794 = vmatprep.subr.mxu0 0.0
        %1795 = vmatpush1.xpose.msra.mxu0 0.0
        %1796 = vmatprep.subr.mxu0 0.0
        %1797 = vmatpush1.xpose.msra.mxu0 0.0
        %1798 = vmatprep.subr.mxu0 0.0
        %1799 = vmatpush1.xpose.msra.mxu0 0.0
        %1800 = vmatprep.subr.mxu0 0.0
        %1801 = vmatpush1.xpose.msra.mxu0 0.0
        %1802 = vmatprep.subr.mxu0 0.0
        %1803 = vmatpush1.xpose.msra.mxu0 0.0
        %1804 = vmatprep.subr.mxu0 0.0
        %1805 = vmatpush1.xpose.msra.mxu0 0.0
        %1806 = vmatprep.subr.mxu0 0.0
        %1807 = vmatpush1.xpose.msra.mxu0 0.0
        %1808 = vmatprep.subr.mxu0 0.0
        %1809 = vmatpush1.xpose.msra.mxu0 0.0
        %1810 = vmatprep.subr.mxu0 0.0
        %1811 = vmatpush1.xpose.msra.mxu0 0.0
        %1812 = vmatprep.subr.mxu0 0.0
        %1813 = vmatpush1.xpose.msra.mxu0 0.0
        %1814 = vmatprep.mubr.f32.mxu0 0.0
        %1815 = vmatmul.mubr.f32.gmra.mrb[0].mxu0 %v1742
        %v1816 = vpop.f32.mrb[0].mxu0
        %v1817 = vadd.f32 0.0, %v1816
        %v1818 = vpop.f32.mrb[0].mxu0
        %1819 = vmatprep.mubr.f32.mxu0 0.0
        %1820 = vmatmul.mubr.f32.gmra.mrb[0].mxu0 %v1744
        %v1821 = vpop.f32.mrb[0].mxu0
        %v1822 = vadd.f32 0.0, %v1821
        %v1823 = vpop.f32.mrb[0].mxu0
        %1824 = vdwg.mxu0
        %v1825 = vsel %vm828, %v1817, -inf
        %1826 = vmax.xlane.f32.xlu0 %v1825
        %v1827 = vpop.xlane.xlu0 %1826
        %v1828 = vsel %vm828, %v1822, -inf
        %1829 = vmax.xlane.f32.xlu0 %v1828
        %v1830 = vpop.xlane.xlu0 %1829
        %v1831 = vsub.f32 %v1817, %v1827
        %v1832 = vsub.f32 %v1822, %v1830
        %v1833 = vmul.f32 %v1831, 1.442695
        %v1834 = vpow.pop %v1833
        %v1835 = vmul.f32 %v1832, 1.442695
        %v1836 = vpow.pop %v1835
        %v1837 = vsel %vm828, %v1834, 0.0
        %1838 = vadd.xlane.f32.xlu0 %v1837
        %v1839 = vpop.xlane.xlu0 %1838
        %v1840 = vsel %vm828, %v1836, 0.0
        %1841 = vadd.xlane.f32.xlu0 %v1840
        %v1842 = vpop.xlane.xlu0 %1841
        %v1843 = vrcp.pop %v1839
        %v1844 = vrcp.pop %v1842
        %v1845 = vmul.f32 %v1834, %v1843
        %v1846 = vmul.f32 %v1836, %v1844
        %1847 = vrot.lane.b32.xlu0 %v732, 108
        %v1848 = vpop.permute.xlu0 %1847
        %1849 = vrot.lane.b32.xlu0 %v737, 108
        %v1850 = vpop.permute.xlu0 %1849
        %v1854 = vsel %vm828, %v1845, 0
        %v1857 = vsel %vm828, %v1846, 0
        %1859 = vmatprep.subr.mxu0 0.0
        %1860 = vmatpush1.msra.mxu0 %v1848
        %1861 = vmatprep.subr.mxu0 0.0
        %1862 = vmatpush1.msra.mxu0 %v1850
        %1863 = vmatprep.subr.mxu0 0.0
        %1864 = vmatpush1.msra.mxu0 0.0
        %1865 = vmatprep.subr.mxu0 0.0
        %1866 = vmatpush1.msra.mxu0 0.0
        %1867 = vmatprep.subr.mxu0 0.0
        %1868 = vmatpush1.msra.mxu0 0.0
        %1869 = vmatprep.subr.mxu0 0.0
        %1870 = vmatpush1.msra.mxu0 0.0
        %1871 = vmatprep.subr.mxu0 0.0
        %1872 = vmatpush1.msra.mxu0 0.0
        %1873 = vmatprep.subr.mxu0 0.0
        %1874 = vmatpush1.msra.mxu0 0.0
        %1875 = vmatprep.subr.mxu0 0.0
        %1876 = vmatpush1.msra.mxu0 0.0
        %1877 = vmatprep.subr.mxu0 0.0
        %1878 = vmatpush1.msra.mxu0 0.0
        %1879 = vmatprep.subr.mxu0 0.0
        %1880 = vmatpush1.msra.mxu0 0.0
        %1881 = vmatprep.subr.mxu0 0.0
        %1882 = vmatpush1.msra.mxu0 0.0
        %1883 = vmatprep.subr.mxu0 0.0
        %1884 = vmatpush1.msra.mxu0 0.0
        %1885 = vmatprep.subr.mxu0 0.0
        %1886 = vmatpush1.msra.mxu0 0.0
        %1887 = vmatprep.subr.mxu0 0.0
        %1888 = vmatpush1.msra.mxu0 0.0
        %1889 = vmatprep.subr.mxu0 0.0
        %1890 = vmatpush1.msra.mxu0 0.0
        %1891 = vmatprep.subr.mxu0 0.0
        %1892 = vmatpush1.msra.mxu0 0.0
        %1893 = vmatprep.subr.mxu0 0.0
        %1894 = vmatpush1.msra.mxu0 0.0
        %1895 = vmatprep.subr.mxu0 0.0
        %1896 = vmatpush1.msra.mxu0 0.0
        %1897 = vmatprep.subr.mxu0 0.0
        %1898 = vmatpush1.msra.mxu0 0.0
        %1899 = vmatprep.subr.mxu0 0.0
        %1900 = vmatpush1.msra.mxu0 0.0
        %1901 = vmatprep.subr.mxu0 0.0
        %1902 = vmatpush1.msra.mxu0 0.0
        %1903 = vmatprep.subr.mxu0 0.0
        %1904 = vmatpush1.msra.mxu0 0.0
        %1905 = vmatprep.subr.mxu0 0.0
        %1906 = vmatpush1.msra.mxu0 0.0
        %1907 = vmatprep.subr.mxu0 0.0
        %1908 = vmatpush1.msra.mxu0 0.0
        %1909 = vmatprep.subr.mxu0 0.0
        %1910 = vmatpush1.msra.mxu0 0.0
        %1911 = vmatprep.subr.mxu0 0.0
        %1912 = vmatpush1.msra.mxu0 0.0
        %1913 = vmatprep.subr.mxu0 0.0
        %1914 = vmatpush1.msra.mxu0 0.0
        %1915 = vmatprep.subr.mxu0 0.0
        %1916 = vmatpush1.msra.mxu0 0.0
        %1917 = vmatprep.subr.mxu0 0.0
        %1918 = vmatpush1.msra.mxu0 0.0
        %1919 = vmatprep.subr.mxu0 0.0
        %1920 = vmatpush1.msra.mxu0 0.0
        %1921 = vmatprep.subr.mxu0 0.0
        %1922 = vmatpush1.msra.mxu0 0.0
        %1923 = vmatprep.mubr.f32.mxu0 0.0
        %1924 = vmatmul.mubr.f32.gmra.mrb[0].mxu0 %v1854
        %v1925 = vpop.f32.mrb[0].mxu0
        %v1926 = vadd.f32 0.0, %v1925
        %v1927 = vpop.f32.mrb[0].mxu0
        %1928 = vmatprep.mubr.f32.mxu0 0.0
        %1929 = vmatmul.mubr.f32.gmra.mrb[0].mxu0 %v1857
        %v1930 = vpop.f32.mrb[0].mxu0
        %v1931 = vadd.f32 0.0, %v1930
        %v1932 = vpop.f32.mrb[0].mxu0
        %1933 = vdwg.mxu0
        %1934 = vrot.lane.b32.xlu0 %v548, 104
        %v1935 = vpop.permute.xlu0 %1934
        %1936 = vrot.lane.b32.xlu0 %v553, 104
        %v1937 = vpop.permute.xlu0 %1936
        %1938 = vrot.lane.b32.xlu0 %v640, 104
        %v1939 = vpop.permute.xlu0 %1938
        %1940 = vrot.lane.b32.xlu0 %v645, 104
        %v1941 = vpop.permute.xlu0 %1940
        %v1942 = vsel %vm740, %v1935, 0
        %v1944 = vsel %vm740, %v1937, 0
        %v1946 = vsel %vm740, %v1939, 0
        %v1948 = vsel %vm740, %v1941, 0
        %1950 = vmatprep.subr.mxu0 0.0
        %1951 = vmatpush1.xpose.msra.mxu0 %v1946
        %1952 = vmatprep.subr.mxu0 0.0
        %1953 = vmatpush1.xpose.msra.mxu0 %v1948
        %1954 = vmatprep.subr.mxu0 0.0
        %1955 = vmatpush1.xpose.msra.mxu0 0.0
        %1956 = vmatprep.subr.mxu0 0.0
        %1957 = vmatpush1.xpose.msra.mxu0 0.0
        %1958 = vmatprep.subr.mxu0 0.0
        %1959 = vmatpush1.xpose.msra.mxu0 0.0
        %1960 = vmatprep.subr.mxu0 0.0
        %1961 = vmatpush1.xpose.msra.mxu0 0.0
        %1962 = vmatprep.subr.mxu0 0.0
        %1963 = vmatpush1.xpose.msra.mxu0 0.0
        %1964 = vmatprep.subr.mxu0 0.0
        %1965 = vmatpush1.xpose.msra.mxu0 0.0
        %1966 = vmatprep.subr.mxu0 0.0
        %1967 = vmatpush1.xpose.msra.mxu0 0.0
        %1968 = vmatprep.subr.mxu0 0.0
        %1969 = vmatpush1.xpose.msra.mxu0 0.0
        %1970 = vmatprep.subr.mxu0 0.0
        %1971 = vmatpush1.xpose.msra.mxu0 0.0
        %1972 = vmatprep.subr.mxu0 0.0
        %1973 = vmatpush1.xpose.msra.mxu0 0.0
        %1974 = vmatprep.subr.mxu0 0.0
        %1975 = vmatpush1.xpose.msra.mxu0 0.0
        %1976 = vmatprep.subr.mxu0 0.0
        %1977 = vmatpush1.xpose.msra.mxu0 0.0
        %1978 = vmatprep.subr.mxu0 0.0
        %1979 = vmatpush1.xpose.msra.mxu0 0.0
        %1980 = vmatprep.subr.mxu0 0.0
        %1981 = vmatpush1.xpose.msra.mxu0 0.0
        %1982 = vmatprep.subr.mxu0 0.0
        %1983 = vmatpush1.xpose.msra.mxu0 0.0
        %1984 = vmatprep.subr.mxu0 0.0
        %1985 = vmatpush1.xpose.msra.mxu0 0.0
        %1986 = vmatprep.subr.mxu0 0.0
        %1987 = vmatpush1.xpose.msra.mxu0 0.0
        %1988 = vmatprep.subr.mxu0 0.0
        %1989 = vmatpush1.xpose.msra.mxu0 0.0
        %1990 = vmatprep.subr.mxu0 0.0
        %1991 = vmatpush1.xpose.msra.mxu0 0.0
        %1992 = vmatprep.subr.mxu0 0.0
        %1993 = vmatpush1.xpose.msra.mxu0 0.0
        %1994 = vmatprep.subr.mxu0 0.0
        %1995 = vmatpush1.xpose.msra.mxu0 0.0
        %1996 = vmatprep.subr.mxu0 0.0
        %1997 = vmatpush1.xpose.msra.mxu0 0.0
        %1998 = vmatprep.subr.mxu0 0.0
        %1999 = vmatpush1.xpose.msra.mxu0 0.0
        %2000 = vmatprep.subr.mxu0 0.0
        %2001 = vmatpush1.xpose.msra.mxu0 0.0
        %2002 = vmatprep.subr.mxu0 0.0
        %2003 = vmatpush1.xpose.msra.mxu0 0.0
        %2004 = vmatprep.subr.mxu0 0.0
        %2005 = vmatpush1.xpose.msra.mxu0 0.0
        %2006 = vmatprep.subr.mxu0 0.0
        %2007 = vmatpush1.xpose.msra.mxu0 0.0
        %2008 = vmatprep.subr.mxu0 0.0
        %2009 = vmatpush1.xpose.msra.mxu0 0.0
        %2010 = vmatprep.subr.mxu0 0.0
        %2011 = vmatpush1.xpose.msra.mxu0 0.0
        %2012 = vmatprep.subr.mxu0 0.0
        %2013 = vmatpush1.xpose.msra.mxu0 0.0
        %2014 = vmatprep.mubr.f32.mxu0 0.0
        %2015 = vmatmul.mubr.f32.gmra.mrb[0].mxu0 %v1942
        %v2016 = vpop.f32.mrb[0].mxu0
        %v2017 = vadd.f32 0.0, %v2016
        %v2018 = vpop.f32.mrb[0].mxu0
        %2019 = vmatprep.mubr.f32.mxu0 0.0
        %2020 = vmatmul.mubr.f32.gmra.mrb[0].mxu0 %v1944
        %v2021 = vpop.f32.mrb[0].mxu0
        %v2022 = vadd.f32 0.0, %v2021
        %v2023 = vpop.f32.mrb[0].mxu0
        %2024 = vdwg.mxu0
        %v2025 = vsel %vm828, %v2017, -inf
        %2026 = vmax.xlane.f32.xlu0 %v2025
        %v2027 = vpop.xlane.xlu0 %2026
        %v2028 = vsel %vm828, %v2022, -inf
        %2029 = vmax.xlane.f32.xlu0 %v2028
        %v2030 = vpop.xlane.xlu0 %2029
        %v2031 = vsub.f32 %v2017, %v2027
        %v2032 = vsub.f32 %v2022, %v2030
        %v2033 = vmul.f32 %v2031, 1.442695
        %v2034 = vpow.pop %v2033
        %v2035 = vmul.f32 %v2032, 1.442695
        %v2036 = vpow.pop %v2035
        %v2037 = vsel %vm828, %v2034, 0.0
        %2038 = vadd.xlane.f32.xlu0 %v2037
        %v2039 = vpop.xlane.xlu0 %2038
        %v2040 = vsel %vm828, %v2036, 0.0
        %2041 = vadd.xlane.f32.xlu0 %v2040
        %v2042 = vpop.xlane.xlu0 %2041
        %v2043 = vrcp.pop %v2039
        %v2044 = vrcp.pop %v2042
        %v2045 = vmul.f32 %v2034, %v2043
        %v2046 = vmul.f32 %v2036, %v2044
        %2047 = vrot.lane.b32.xlu0 %v732, 104
        %v2048 = vpop.permute.xlu0 %2047
        %2049 = vrot.lane.b32.xlu0 %v737, 104
        %v2050 = vpop.permute.xlu0 %2049
        %v2054 = vsel %vm828, %v2045, 0
        %v2057 = vsel %vm828, %v2046, 0
        %2059 = vmatprep.subr.mxu0 0.0
        %2060 = vmatpush1.msra.mxu0 %v2048
        %2061 = vmatprep.subr.mxu0 0.0
        %2062 = vmatpush1.msra.mxu0 %v2050
        %2063 = vmatprep.subr.mxu0 0.0
        %2064 = vmatpush1.msra.mxu0 0.0
        %2065 = vmatprep.subr.mxu0 0.0
        %2066 = vmatpush1.msra.mxu0 0.0
        %2067 = vmatprep.subr.mxu0 0.0
        %2068 = vmatpush1.msra.mxu0 0.0
        %2069 = vmatprep.subr.mxu0 0.0
        %2070 = vmatpush1.msra.mxu0 0.0
        %2071 = vmatprep.subr.mxu0 0.0
        %2072 = vmatpush1.msra.mxu0 0.0
        %2073 = vmatprep.subr.mxu0 0.0
        %2074 = vmatpush1.msra.mxu0 0.0
        %2075 = vmatprep.subr.mxu0 0.0
        %2076 = vmatpush1.msra.mxu0 0.0
        %2077 = vmatprep.subr.mxu0 0.0
        %2078 = vmatpush1.msra.mxu0 0.0
        %2079 = vmatprep.subr.mxu0 0.0
        %2080 = vmatpush1.msra.mxu0 0.0
        %2081 = vmatprep.subr.mxu0 0.0
        %2082 = vmatpush1.msra.mxu0 0.0
        %2083 = vmatprep.subr.mxu0 0.0
        %2084 = vmatpush1.msra.mxu0 0.0
        %2085 = vmatprep.subr.mxu0 0.0
        %2086 = vmatpush1.msra.mxu0 0.0
        %2087 = vmatprep.subr.mxu0 0.0
        %2088 = vmatpush1.msra.mxu0 0.0
        %2089 = vmatprep.subr.mxu0 0.0
        %2090 = vmatpush1.msra.mxu0 0.0
        %2091 = vmatprep.subr.mxu0 0.0
        %2092 = vmatpush1.msra.mxu0 0.0
        %2093 = vmatprep.subr.mxu0 0.0
        %2094 = vmatpush1.msra.mxu0 0.0
        %2095 = vmatprep.subr.mxu0 0.0
        %2096 = vmatpush1.msra.mxu0 0.0
        %2097 = vmatprep.subr.mxu0 0.0
        %2098 = vmatpush1.msra.mxu0 0.0
        %2099 = vmatprep.subr.mxu0 0.0
        %2100 = vmatpush1.msra.mxu0 0.0
        %2101 = vmatprep.subr.mxu0 0.0
        %2102 = vmatpush1.msra.mxu0 0.0
        %2103 = vmatprep.subr.mxu0 0.0
        %2104 = vmatpush1.msra.mxu0 0.0
        %2105 = vmatprep.subr.mxu0 0.0
        %2106 = vmatpush1.msra.mxu0 0.0
        %2107 = vmatprep.subr.mxu0 0.0
        %2108 = vmatpush1.msra.mxu0 0.0
        %2109 = vmatprep.subr.mxu0 0.0
        %2110 = vmatpush1.msra.mxu0 0.0
        %2111 = vmatprep.subr.mxu0 0.0
        %2112 = vmatpush1.msra.mxu0 0.0
        %2113 = vmatprep.subr.mxu0 0.0
        %2114 = vmatpush1.msra.mxu0 0.0
        %2115 = vmatprep.subr.mxu0 0.0
        %2116 = vmatpush1.msra.mxu0 0.0
        %2117 = vmatprep.subr.mxu0 0.0
        %2118 = vmatpush1.msra.mxu0 0.0
        %2119 = vmatprep.subr.mxu0 0.0
        %2120 = vmatpush1.msra.mxu0 0.0
        %2121 = vmatprep.subr.mxu0 0.0
        %2122 = vmatpush1.msra.mxu0 0.0
        %2123 = vmatprep.mubr.f32.mxu0 0.0
        %2124 = vmatmul.mubr.f32.gmra.mrb[0].mxu0 %v2054
        %v2125 = vpop.f32.mrb[0].mxu0
        %v2126 = vadd.f32 0.0, %v2125
        %v2127 = vpop.f32.mrb[0].mxu0
        %2128 = vmatprep.mubr.f32.mxu0 0.0
        %2129 = vmatmul.mubr.f32.gmra.mrb[0].mxu0 %v2057
        %v2130 = vpop.f32.mrb[0].mxu0
        %v2131 = vadd.f32 0.0, %v2130
        %v2132 = vpop.f32.mrb[0].mxu0
        %2133 = vdwg.mxu0
        %2134 = vrot.lane.b32.xlu0 %v548, 100
        %v2135 = vpop.permute.xlu0 %2134
        %2136 = vrot.lane.b32.xlu0 %v553, 100
        %v2137 = vpop.permute.xlu0 %2136
        %2138 = vrot.lane.b32.xlu0 %v640, 100
        %v2139 = vpop.permute.xlu0 %2138
        %2140 = vrot.lane.b32.xlu0 %v645, 100
        %v2141 = vpop.permute.xlu0 %2140
        %v2142 = vsel %vm740, %v2135, 0
        %v2144 = vsel %vm740, %v2137, 0
        %v2146 = vsel %vm740, %v2139, 0
        %v2148 = vsel %vm740, %v2141, 0
        %2150 = vmatprep.subr.mxu0 0.0
        %2151 = vmatpush1.xpose.msra.mxu0 %v2146
        %2152 = vmatprep.subr.mxu0 0.0
        %2153 = vmatpush1.xpose.msra.mxu0 %v2148
        %2154 = vmatprep.subr.mxu0 0.0
        %2155 = vmatpush1.xpose.msra.mxu0 0.0
        %2156 = vmatprep.subr.mxu0 0.0
        %2157 = vmatpush1.xpose.msra.mxu0 0.0
        %2158 = vmatprep.subr.mxu0 0.0
        %2159 = vmatpush1.xpose.msra.mxu0 0.0
        %2160 = vmatprep.subr.mxu0 0.0
        %2161 = vmatpush1.xpose.msra.mxu0 0.0
        %2162 = vmatprep.subr.mxu0 0.0
        %2163 = vmatpush1.xpose.msra.mxu0 0.0
        %2164 = vmatprep.subr.mxu0 0.0
        %2165 = vmatpush1.xpose.msra.mxu0 0.0
        %2166 = vmatprep.subr.mxu0 0.0
        %2167 = vmatpush1.xpose.msra.mxu0 0.0
        %2168 = vmatprep.subr.mxu0 0.0
        %2169 = vmatpush1.xpose.msra.mxu0 0.0
        %2170 = vmatprep.subr.mxu0 0.0
        %2171 = vmatpush1.xpose.msra.mxu0 0.0
        %2172 = vmatprep.subr.mxu0 0.0
        %2173 = vmatpush1.xpose.msra.mxu0 0.0
        %2174 = vmatprep.subr.mxu0 0.0
        %2175 = vmatpush1.xpose.msra.mxu0 0.0
        %2176 = vmatprep.subr.mxu0 0.0
        %2177 = vmatpush1.xpose.msra.mxu0 0.0
        %2178 = vmatprep.subr.mxu0 0.0
        %2179 = vmatpush1.xpose.msra.mxu0 0.0
        %2180 = vmatprep.subr.mxu0 0.0
        %2181 = vmatpush1.xpose.msra.mxu0 0.0
        %2182 = vmatprep.subr.mxu0 0.0
        %2183 = vmatpush1.xpose.msra.mxu0 0.0
        %2184 = vmatprep.subr.mxu0 0.0
        %2185 = vmatpush1.xpose.msra.mxu0 0.0
        %2186 = vmatprep.subr.mxu0 0.0
        %2187 = vmatpush1.xpose.msra.mxu0 0.0
        %2188 = vmatprep.subr.mxu0 0.0
        %2189 = vmatpush1.xpose.msra.mxu0 0.0
        %2190 = vmatprep.subr.mxu0 0.0
        %2191 = vmatpush1.xpose.msra.mxu0 0.0
        %2192 = vmatprep.subr.mxu0 0.0
        %2193 = vmatpush1.xpose.msra.mxu0 0.0
        %2194 = vmatprep.subr.mxu0 0.0
        %2195 = vmatpush1.xpose.msra.mxu0 0.0
        %2196 = vmatprep.subr.mxu0 0.0
        %2197 = vmatpush1.xpose.msra.mxu0 0.0
        %2198 = vmatprep.subr.mxu0 0.0
        %2199 = vmatpush1.xpose.msra.mxu0 0.0
        %2200 = vmatprep.subr.mxu0 0.0
        %2201 = vmatpush1.xpose.msra.mxu0 0.0
        %2202 = vmatprep.subr.mxu0 0.0
        %2203 = vmatpush1.xpose.msra.mxu0 0.0
        %2204 = vmatprep.subr.mxu0 0.0
        %2205 = vmatpush1.xpose.msra.mxu0 0.0
        %2206 = vmatprep.subr.mxu0 0.0
        %2207 = vmatpush1.xpose.msra.mxu0 0.0
        %2208 = vmatprep.subr.mxu0 0.0
        %2209 = vmatpush1.xpose.msra.mxu0 0.0
        %2210 = vmatprep.subr.mxu0 0.0
        %2211 = vmatpush1.xpose.msra.mxu0 0.0
        %2212 = vmatprep.subr.mxu0 0.0
        %2213 = vmatpush1.xpose.msra.mxu0 0.0
        %2214 = vmatprep.mubr.f32.mxu0 0.0
        %2215 = vmatmul.mubr.f32.gmra.mrb[0].mxu0 %v2142
        %v2216 = vpop.f32.mrb[0].mxu0
        %v2217 = vadd.f32 0.0, %v2216
        %v2218 = vpop.f32.mrb[0].mxu0
        %2219 = vmatprep.mubr.f32.mxu0 0.0
        %2220 = vmatmul.mubr.f32.gmra.mrb[0].mxu0 %v2144
        %v2221 = vpop.f32.mrb[0].mxu0
        %v2222 = vadd.f32 0.0, %v2221
        %v2223 = vpop.f32.mrb[0].mxu0
        %2224 = vdwg.mxu0
        %v2225 = vsel %vm828, %v2217, -inf
        %2226 = vmax.xlane.f32.xlu0 %v2225
        %v2227 = vpop.xlane.xlu0 %2226
        %v2228 = vsel %vm828, %v2222, -inf
        %2229 = vmax.xlane.f32.xlu0 %v2228
        %v2230 = vpop.xlane.xlu0 %2229
        %v2231 = vsub.f32 %v2217, %v2227
        %v2232 = vsub.f32 %v2222, %v2230
        %v2233 = vmul.f32 %v2231, 1.442695
        %v2234 = vpow.pop %v2233
        %v2235 = vmul.f32 %v2232, 1.442695
        %v2236 = vpow.pop %v2235
        %v2237 = vsel %vm828, %v2234, 0.0
        %2238 = vadd.xlane.f32.xlu0 %v2237
        %v2239 = vpop.xlane.xlu0 %2238
        %v2240 = vsel %vm828, %v2236, 0.0
        %2241 = vadd.xlane.f32.xlu0 %v2240
        %v2242 = vpop.xlane.xlu0 %2241
        %v2243 = vrcp.pop %v2239
        %v2244 = vrcp.pop %v2242
        %v2245 = vmul.f32 %v2234, %v2243
        %v2246 = vmul.f32 %v2236, %v2244
        %2247 = vrot.lane.b32.xlu0 %v732, 100
        %v2248 = vpop.permute.xlu0 %2247
        %2249 = vrot.lane.b32.xlu0 %v737, 100
        %v2250 = vpop.permute.xlu0 %2249
        %v2254 = vsel %vm828, %v2245, 0
        %v2257 = vsel %vm828, %v2246, 0
        %2259 = vmatprep.subr.mxu0 0.0
        %2260 = vmatpush1.msra.mxu0 %v2248
        %2261 = vmatprep.subr.mxu0 0.0
        %2262 = vmatpush1.msra.mxu0 %v2250
        %2263 = vmatprep.subr.mxu0 0.0
        %2264 = vmatpush1.msra.mxu0 0.0
        %2265 = vmatprep.subr.mxu0 0.0
        %2266 = vmatpush1.msra.mxu0 0.0
        %2267 = vmatprep.subr.mxu0 0.0
        %2268 = vmatpush1.msra.mxu0 0.0
        %2269 = vmatprep.subr.mxu0 0.0
        %2270 = vmatpush1.msra.mxu0 0.0
        %2271 = vmatprep.subr.mxu0 0.0
        %2272 = vmatpush1.msra.mxu0 0.0
        %2273 = vmatprep.subr.mxu0 0.0
        %2274 = vmatpush1.msra.mxu0 0.0
        %2275 = vmatprep.subr.mxu0 0.0
        %2276 = vmatpush1.msra.mxu0 0.0
        %2277 = vmatprep.subr.mxu0 0.0
        %2278 = vmatpush1.msra.mxu0 0.0
        %2279 = vmatprep.subr.mxu0 0.0
        %2280 = vmatpush1.msra.mxu0 0.0
        %2281 = vmatprep.subr.mxu0 0.0
        %2282 = vmatpush1.msra.mxu0 0.0
        %2283 = vmatprep.subr.mxu0 0.0
        %2284 = vmatpush1.msra.mxu0 0.0
        %2285 = vmatprep.subr.mxu0 0.0
        %2286 = vmatpush1.msra.mxu0 0.0
        %2287 = vmatprep.subr.mxu0 0.0
        %2288 = vmatpush1.msra.mxu0 0.0
        %2289 = vmatprep.subr.mxu0 0.0
        %2290 = vmatpush1.msra.mxu0 0.0
        %2291 = vmatprep.subr.mxu0 0.0
        %2292 = vmatpush1.msra.mxu0 0.0
        %2293 = vmatprep.subr.mxu0 0.0
        %2294 = vmatpush1.msra.mxu0 0.0
        %2295 = vmatprep.subr.mxu0 0.0
        %2296 = vmatpush1.msra.mxu0 0.0
        %2297 = vmatprep.subr.mxu0 0.0
        %2298 = vmatpush1.msra.mxu0 0.0
        %2299 = vmatprep.subr.mxu0 0.0
        %2300 = vmatpush1.msra.mxu0 0.0
        %2301 = vmatprep.subr.mxu0 0.0
        %2302 = vmatpush1.msra.mxu0 0.0
        %2303 = vmatprep.subr.mxu0 0.0
        %2304 = vmatpush1.msra.mxu0 0.0
        %2305 = vmatprep.subr.mxu0 0.0
        %2306 = vmatpush1.msra.mxu0 0.0
        %2307 = vmatprep.subr.mxu0 0.0
        %2308 = vmatpush1.msra.mxu0 0.0
        %2309 = vmatprep.subr.mxu0 0.0
        %2310 = vmatpush1.msra.mxu0 0.0
        %2311 = vmatprep.subr.mxu0 0.0
        %2312 = vmatpush1.msra.mxu0 0.0
        %2313 = vmatprep.subr.mxu0 0.0
        %2314 = vmatpush1.msra.mxu0 0.0
        %2315 = vmatprep.subr.mxu0 0.0
        %2316 = vmatpush1.msra.mxu0 0.0
        %2317 = vmatprep.subr.mxu0 0.0
        %2318 = vmatpush1.msra.mxu0 0.0
        %2319 = vmatprep.subr.mxu0 0.0
        %2320 = vmatpush1.msra.mxu0 0.0
        %2321 = vmatprep.subr.mxu0 0.0
        %2322 = vmatpush1.msra.mxu0 0.0
        %2323 = vmatprep.mubr.f32.mxu0 0.0
        %2324 = vmatmul.mubr.f32.gmra.mrb[0].mxu0 %v2254
        %v2325 = vpop.f32.mrb[0].mxu0
        %v2326 = vadd.f32 0.0, %v2325
        %v2327 = vpop.f32.mrb[0].mxu0
        %2328 = vmatprep.mubr.f32.mxu0 0.0
        %2329 = vmatmul.mubr.f32.gmra.mrb[0].mxu0 %v2257
        %v2330 = vpop.f32.mrb[0].mxu0
        %v2331 = vadd.f32 0.0, %v2330
        %v2332 = vpop.f32.mrb[0].mxu0
        %2333 = vdwg.mxu0
        %v2334 = vld [vmem:[#allocation13] sm:$0xf]
        %v2335 = vld [vmem:[#allocation13 + $0x4] sm:$0xf]
        %v2337 = vsel %vm740, %v1126, 0
        %v2340 = vsel %vm740, %v1131, 0
        %vm2342 = vcmask 1043456
        %v2344 = vsel %vm2342, %v2335, 0
        %2346 = vmatprep.subr.mxu0 0.0
        %2347 = vmatpush1.msra.mxu0 %v2344
        %2348 = vmatprep.subr.mxu0 0.0
        %2349 = vmatpush1.msra.mxu0 0.0
        %2350 = vmatprep.subr.mxu0 0.0
        %2351 = vmatpush1.msra.mxu0 0.0
        %2352 = vmatprep.subr.mxu0 0.0
        %2353 = vmatpush1.msra.mxu0 0.0
        %2354 = vmatprep.subr.mxu0 0.0
        %2355 = vmatpush1.msra.mxu0 0.0
        %2356 = vmatprep.subr.mxu0 0.0
        %2357 = vmatpush1.msra.mxu0 0.0
        %2358 = vmatprep.subr.mxu0 0.0
        %2359 = vmatpush1.msra.mxu0 0.0
        %2360 = vmatprep.subr.mxu0 0.0
        %2361 = vmatpush1.msra.mxu0 0.0
        %2362 = vmatprep.subr.mxu0 0.0
        %2363 = vmatpush1.msra.mxu0 0.0
        %2364 = vmatprep.subr.mxu0 0.0
        %2365 = vmatpush1.msra.mxu0 0.0
        %2366 = vmatprep.subr.mxu0 0.0
        %2367 = vmatpush1.msra.mxu0 0.0
        %2368 = vmatprep.subr.mxu0 0.0
        %2369 = vmatpush1.msra.mxu0 0.0
        %2370 = vmatprep.subr.mxu0 0.0
        %2371 = vmatpush1.msra.mxu0 0.0
        %2372 = vmatprep.subr.mxu0 0.0
        %2373 = vmatpush1.msra.mxu0 0.0
        %2374 = vmatprep.subr.mxu0 0.0
        %2375 = vmatpush1.msra.mxu0 0.0
        %2376 = vmatprep.subr.mxu0 0.0
        %2377 = vmatpush1.msra.mxu0 0.0
        %2378 = vmatprep.subr.mxu0 0.0
        %2379 = vmatpush1.msra.mxu0 0.0
        %2380 = vmatprep.subr.mxu0 0.0
        %2381 = vmatpush1.msra.mxu0 0.0
        %2382 = vmatprep.subr.mxu0 0.0
        %2383 = vmatpush1.msra.mxu0 0.0
        %2384 = vmatprep.subr.mxu0 0.0
        %2385 = vmatpush1.msra.mxu0 0.0
        %2386 = vmatprep.subr.mxu0 0.0
        %2387 = vmatpush1.msra.mxu0 0.0
        %2388 = vmatprep.subr.mxu0 0.0
        %2389 = vmatpush1.msra.mxu0 0.0
        %2390 = vmatprep.subr.mxu0 0.0
        %2391 = vmatpush1.msra.mxu0 0.0
        %2392 = vmatprep.subr.mxu0 0.0
        %2393 = vmatpush1.msra.mxu0 0.0
        %2394 = vmatprep.subr.mxu0 0.0
        %2395 = vmatpush1.msra.mxu0 0.0
        %2396 = vmatprep.subr.mxu0 0.0
        %2397 = vmatpush1.msra.mxu0 0.0
        %2398 = vmatprep.subr.mxu0 0.0
        %2399 = vmatpush1.msra.mxu0 0.0
        %2400 = vmatprep.subr.mxu0 0.0
        %2401 = vmatpush1.msra.mxu0 0.0
        %2402 = vmatprep.subr.mxu0 0.0
        %2403 = vmatpush1.msra.mxu0 0.0
        %2404 = vmatprep.subr.mxu0 0.0
        %2405 = vmatpush1.msra.mxu0 0.0
        %2406 = vmatprep.subr.mxu0 0.0
        %2407 = vmatpush1.msra.mxu0 0.0
        %2408 = vmatprep.subr.mxu0 0.0
        %2409 = vmatpush1.msra.mxu0 0.0
        %2410 = vmatprep.mubr.f32.mxu0 0.0
        %2411 = vmatmul.mubr.f32.gmra.mrb[0].mxu0 %v2337
        %v2412 = vpop.f32.mrb[0].mxu0
        %v2413 = vadd.f32 0.0, %v2412
        %v2414 = vpop.f32.mrb[0].mxu0
        %2415 = vmatprep.mubr.f32.mxu0 0.0
        %2416 = vmatmul.mubr.f32.gmra.mrb[0].mxu0 %v2340
        %v2417 = vpop.f32.mrb[0].mxu0
        %v2418 = vadd.f32 0.0, %v2417
        %v2419 = vpop.f32.mrb[0].mxu0
        %2420 = vdwg.mxu0
        %v2422 = vsel %vm740, %v924, 0
        %v2425 = vsel %vm740, %v929, 0
        %v2428 = vsel %vm2342, %v2334, 0
        %2430 = vmatprep.subr.mxu0 0.0
        %2431 = vmatpush1.msra.mxu0 %v2428
        %2432 = vmatprep.subr.mxu0 0.0
        %2433 = vmatpush1.msra.mxu0 0.0
        %2434 = vmatprep.subr.mxu0 0.0
        %2435 = vmatpush1.msra.mxu0 0.0
        %2436 = vmatprep.subr.mxu0 0.0
        %2437 = vmatpush1.msra.mxu0 0.0
        %2438 = vmatprep.subr.mxu0 0.0
        %2439 = vmatpush1.msra.mxu0 0.0
        %2440 = vmatprep.subr.mxu0 0.0
        %2441 = vmatpush1.msra.mxu0 0.0
        %2442 = vmatprep.subr.mxu0 0.0
        %2443 = vmatpush1.msra.mxu0 0.0
        %2444 = vmatprep.subr.mxu0 0.0
        %2445 = vmatpush1.msra.mxu0 0.0
        %2446 = vmatprep.subr.mxu0 0.0
        %2447 = vmatpush1.msra.mxu0 0.0
        %2448 = vmatprep.subr.mxu0 0.0
        %2449 = vmatpush1.msra.mxu0 0.0
        %2450 = vmatprep.subr.mxu0 0.0
        %2451 = vmatpush1.msra.mxu0 0.0
        %2452 = vmatprep.subr.mxu0 0.0
        %2453 = vmatpush1.msra.mxu0 0.0
        %2454 = vmatprep.subr.mxu0 0.0
        %2455 = vmatpush1.msra.mxu0 0.0
        %2456 = vmatprep.subr.mxu0 0.0
        %2457 = vmatpush1.msra.mxu0 0.0
        %2458 = vmatprep.subr.mxu0 0.0
        %2459 = vmatpush1.msra.mxu0 0.0
        %2460 = vmatprep.subr.mxu0 0.0
        %2461 = vmatpush1.msra.mxu0 0.0
        %2462 = vmatprep.subr.mxu0 0.0
        %2463 = vmatpush1.msra.mxu0 0.0
        %2464 = vmatprep.subr.mxu0 0.0
        %2465 = vmatpush1.msra.mxu0 0.0
        %2466 = vmatprep.subr.mxu0 0.0
        %2467 = vmatpush1.msra.mxu0 0.0
        %2468 = vmatprep.subr.mxu0 0.0
        %2469 = vmatpush1.msra.mxu0 0.0
        %2470 = vmatprep.subr.mxu0 0.0
        %2471 = vmatpush1.msra.mxu0 0.0
        %2472 = vmatprep.subr.mxu0 0.0
        %2473 = vmatpush1.msra.mxu0 0.0
        %2474 = vmatprep.subr.mxu0 0.0
        %2475 = vmatpush1.msra.mxu0 0.0
        %2476 = vmatprep.subr.mxu0 0.0
        %2477 = vmatpush1.msra.mxu0 0.0
        %2478 = vmatprep.subr.mxu0 0.0
        %2479 = vmatpush1.msra.mxu0 0.0
        %2480 = vmatprep.subr.mxu0 0.0
        %2481 = vmatpush1.msra.mxu0 0.0
        %2482 = vmatprep.subr.mxu0 0.0
        %2483 = vmatpush1.msra.mxu0 0.0
        %2484 = vmatprep.subr.mxu0 0.0
        %2485 = vmatpush1.msra.mxu0 0.0
        %2486 = vmatprep.subr.mxu0 0.0
        %2487 = vmatpush1.msra.mxu0 0.0
        %2488 = vmatprep.subr.mxu0 0.0
        %2489 = vmatpush1.msra.mxu0 0.0
        %2490 = vmatprep.subr.mxu0 0.0
        %2491 = vmatpush1.msra.mxu0 0.0
        %2492 = vmatprep.subr.mxu0 0.0
        %2493 = vmatpush1.msra.mxu0 0.0
        %2494 = vmatprep.mubr.f32.mxu0 0.0
        %2495 = vmatmul.mubr.f32.gmra.mrb[0].mxu0 %v2422
        %v2496 = vpop.f32.mrb[0].mxu0
        %v2497 = vadd.f32 %v2413, %v2496
        %v2498 = vpop.f32.mrb[0].mxu0
        %2499 = vmatprep.mubr.f32.mxu0 0.0
        %2500 = vmatmul.mubr.f32.gmra.mrb[0].mxu0 %v2425
        %v2501 = vpop.f32.mrb[0].mxu0
        %v2502 = vadd.f32 %v2418, %v2501
        %v2503 = vpop.f32.mrb[0].mxu0
        %2504 = vdwg.mxu0
        %v2505 = vld [vmem:[#allocation13 + $0x8] sm:$0xf]
        %v2507 = vsel %vm740, %v1326, 0
        %v2510 = vsel %vm740, %v1331, 0
        %v2513 = vsel %vm2342, %v2505, 0
        %2515 = vmatprep.subr.mxu0 0.0
        %2516 = vmatpush1.msra.mxu0 %v2513
        %2517 = vmatprep.subr.mxu0 0.0
        %2518 = vmatpush1.msra.mxu0 0.0
        %2519 = vmatprep.subr.mxu0 0.0
        %2520 = vmatpush1.msra.mxu0 0.0
        %2521 = vmatprep.subr.mxu0 0.0
        %2522 = vmatpush1.msra.mxu0 0.0
        %2523 = vmatprep.subr.mxu0 0.0
        %2524 = vmatpush1.msra.mxu0 0.0
        %2525 = vmatprep.subr.mxu0 0.0
        %2526 = vmatpush1.msra.mxu0 0.0
        %2527 = vmatprep.subr.mxu0 0.0
        %2528 = vmatpush1.msra.mxu0 0.0
        %2529 = vmatprep.subr.mxu0 0.0
        %2530 = vmatpush1.msra.mxu0 0.0
        %2531 = vmatprep.subr.mxu0 0.0
        %2532 = vmatpush1.msra.mxu0 0.0
        %2533 = vmatprep.subr.mxu0 0.0
        %2534 = vmatpush1.msra.mxu0 0.0
        %2535 = vmatprep.subr.mxu0 0.0
        %2536 = vmatpush1.msra.mxu0 0.0
        %2537 = vmatprep.subr.mxu0 0.0
        %2538 = vmatpush1.msra.mxu0 0.0
        %2539 = vmatprep.subr.mxu0 0.0
        %2540 = vmatpush1.msra.mxu0 0.0
        %2541 = vmatprep.subr.mxu0 0.0
        %2542 = vmatpush1.msra.mxu0 0.0
        %2543 = vmatprep.subr.mxu0 0.0
        %2544 = vmatpush1.msra.mxu0 0.0
        %2545 = vmatprep.subr.mxu0 0.0
        %2546 = vmatpush1.msra.mxu0 0.0
        %2547 = vmatprep.subr.mxu0 0.0
        %2548 = vmatpush1.msra.mxu0 0.0
        %2549 = vmatprep.subr.mxu0 0.0
        %2550 = vmatpush1.msra.mxu0 0.0
        %2551 = vmatprep.subr.mxu0 0.0
        %2552 = vmatpush1.msra.mxu0 0.0
        %2553 = vmatprep.subr.mxu0 0.0
        %2554 = vmatpush1.msra.mxu0 0.0
        %2555 = vmatprep.subr.mxu0 0.0
        %2556 = vmatpush1.msra.mxu0 0.0
        %2557 = vmatprep.subr.mxu0 0.0
        %2558 = vmatpush1.msra.mxu0 0.0
        %2559 = vmatprep.subr.mxu0 0.0
        %2560 = vmatpush1.msra.mxu0 0.0
        %2561 = vmatprep.subr.mxu0 0.0
        %2562 = vmatpush1.msra.mxu0 0.0
        %2563 = vmatprep.subr.mxu0 0.0
        %2564 = vmatpush1.msra.mxu0 0.0
        %2565 = vmatprep.subr.mxu0 0.0
        %2566 = vmatpush1.msra.mxu0 0.0
        %2567 = vmatprep.subr.mxu0 0.0
        %2568 = vmatpush1.msra.mxu0 0.0
        %2569 = vmatprep.subr.mxu0 0.0
        %2570 = vmatpush1.msra.mxu0 0.0
        %2571 = vmatprep.subr.mxu0 0.0
        %2572 = vmatpush1.msra.mxu0 0.0
        %2573 = vmatprep.subr.mxu0 0.0
        %2574 = vmatpush1.msra.mxu0 0.0
        %2575 = vmatprep.subr.mxu0 0.0
        %2576 = vmatpush1.msra.mxu0 0.0
        %2577 = vmatprep.subr.mxu0 0.0
        %2578 = vmatpush1.msra.mxu0 0.0
        %2579 = vmatprep.mubr.f32.mxu0 0.0
        %2580 = vmatmul.mubr.f32.gmra.mrb[0].mxu0 %v2507
        %v2581 = vpop.f32.mrb[0].mxu0
        %v2582 = vadd.f32 0.0, %v2581
        %v2583 = vpop.f32.mrb[0].mxu0
        %2584 = vmatprep.mubr.f32.mxu0 0.0
        %2585 = vmatmul.mubr.f32.gmra.mrb[0].mxu0 %v2510
        %v2586 = vpop.f32.mrb[0].mxu0
        %v2587 = vadd.f32 0.0, %v2586
        %v2588 = vpop.f32.mrb[0].mxu0
        %2589 = vdwg.mxu0
        %v2590 = vadd.f32 %v2497, %v2582
        %v2591 = vadd.f32 %v2502, %v2587
        %v2592 = vld [vmem:[#allocation13 + $0xc] sm:$0xf]
        %v2594 = vsel %vm740, %v1526, 0
        %v2597 = vsel %vm740, %v1531, 0
        %v2600 = vsel %vm2342, %v2592, 0
        %2602 = vmatprep.subr.mxu0 0.0
        %2603 = vmatpush1.msra.mxu0 %v2600
        %2604 = vmatprep.subr.mxu0 0.0
        %2605 = vmatpush1.msra.mxu0 0.0
        %2606 = vmatprep.subr.mxu0 0.0
        %2607 = vmatpush1.msra.mxu0 0.0
        %2608 = vmatprep.subr.mxu0 0.0
        %2609 = vmatpush1.msra.mxu0 0.0
        %2610 = vmatprep.subr.mxu0 0.0
        %2611 = vmatpush1.msra.mxu0 0.0
        %2612 = vmatprep.subr.mxu0 0.0
        %2613 = vmatpush1.msra.mxu0 0.0
        %2614 = vmatprep.subr.mxu0 0.0
        %2615 = vmatpush1.msra.mxu0 0.0
        %2616 = vmatprep.subr.mxu0 0.0
        %2617 = vmatpush1.msra.mxu0 0.0
        %2618 = vmatprep.subr.mxu0 0.0
        %2619 = vmatpush1.msra.mxu0 0.0
        %2620 = vmatprep.subr.mxu0 0.0
        %2621 = vmatpush1.msra.mxu0 0.0
        %2622 = vmatprep.subr.mxu0 0.0
        %2623 = vmatpush1.msra.mxu0 0.0
        %2624 = vmatprep.subr.mxu0 0.0
        %2625 = vmatpush1.msra.mxu0 0.0
        %2626 = vmatprep.subr.mxu0 0.0
        %2627 = vmatpush1.msra.mxu0 0.0
        %2628 = vmatprep.subr.mxu0 0.0
        %2629 = vmatpush1.msra.mxu0 0.0
        %2630 = vmatprep.subr.mxu0 0.0
        %2631 = vmatpush1.msra.mxu0 0.0
        %2632 = vmatprep.subr.mxu0 0.0
        %2633 = vmatpush1.msra.mxu0 0.0
        %2634 = vmatprep.subr.mxu0 0.0
        %2635 = vmatpush1.msra.mxu0 0.0
        %2636 = vmatprep.subr.mxu0 0.0
        %2637 = vmatpush1.msra.mxu0 0.0
        %2638 = vmatprep.subr.mxu0 0.0
        %2639 = vmatpush1.msra.mxu0 0.0
        %2640 = vmatprep.subr.mxu0 0.0
        %2641 = vmatpush1.msra.mxu0 0.0
        %2642 = vmatprep.subr.mxu0 0.0
        %2643 = vmatpush1.msra.mxu0 0.0
        %2644 = vmatprep.subr.mxu0 0.0
        %2645 = vmatpush1.msra.mxu0 0.0
        %2646 = vmatprep.subr.mxu0 0.0
        %2647 = vmatpush1.msra.mxu0 0.0
        %2648 = vmatprep.subr.mxu0 0.0
        %2649 = vmatpush1.msra.mxu0 0.0
        %2650 = vmatprep.subr.mxu0 0.0
        %2651 = vmatpush1.msra.mxu0 0.0
        %2652 = vmatprep.subr.mxu0 0.0
        %2653 = vmatpush1.msra.mxu0 0.0
        %2654 = vmatprep.subr.mxu0 0.0
        %2655 = vmatpush1.msra.mxu0 0.0
        %2656 = vmatprep.subr.mxu0 0.0
        %2657 = vmatpush1.msra.mxu0 0.0
        %2658 = vmatprep.subr.mxu0 0.0
        %2659 = vmatpush1.msra.mxu0 0.0
        %2660 = vmatprep.subr.mxu0 0.0
        %2661 = vmatpush1.msra.mxu0 0.0
        %2662 = vmatprep.subr.mxu0 0.0
        %2663 = vmatpush1.msra.mxu0 0.0
        %2664 = vmatprep.subr.mxu0 0.0
        %2665 = vmatpush1.msra.mxu0 0.0
        %2666 = vmatprep.mubr.f32.mxu0 0.0
        %2667 = vmatmul.mubr.f32.gmra.mrb[0].mxu0 %v2594
        %v2668 = vpop.f32.mrb[0].mxu0
        %v2669 = vadd.f32 0.0, %v2668
        %v2670 = vpop.f32.mrb[0].mxu0
        %2671 = vmatprep.mubr.f32.mxu0 0.0
        %2672 = vmatmul.mubr.f32.gmra.mrb[0].mxu0 %v2597
        %v2673 = vpop.f32.mrb[0].mxu0
        %v2674 = vadd.f32 0.0, %v2673
        %v2675 = vpop.f32.mrb[0].mxu0
        %2676 = vdwg.mxu0
        %v2677 = vadd.f32 %v2590, %v2669
        %v2678 = vadd.f32 %v2591, %v2674
        %v2679 = vld [vmem:[#allocation13 + $0x10] sm:$0xf]
        %v2681 = vsel %vm740, %v1726, 0
        %v2684 = vsel %vm740, %v1731, 0
        %v2687 = vsel %vm2342, %v2679, 0
        %2689 = vmatprep.subr.mxu0 0.0
        %2690 = vmatpush1.msra.mxu0 %v2687
        %2691 = vmatprep.subr.mxu0 0.0
        %2692 = vmatpush1.msra.mxu0 0.0
        %2693 = vmatprep.subr.mxu0 0.0
        %2694 = vmatpush1.msra.mxu0 0.0
        %2695 = vmatprep.subr.mxu0 0.0
        %2696 = vmatpush1.msra.mxu0 0.0
        %2697 = vmatprep.subr.mxu0 0.0
        %2698 = vmatpush1.msra.mxu0 0.0
        %2699 = vmatprep.subr.mxu0 0.0
        %2700 = vmatpush1.msra.mxu0 0.0
        %2701 = vmatprep.subr.mxu0 0.0
        %2702 = vmatpush1.msra.mxu0 0.0
        %2703 = vmatprep.subr.mxu0 0.0
        %2704 = vmatpush1.msra.mxu0 0.0
        %2705 = vmatprep.subr.mxu0 0.0
        %2706 = vmatpush1.msra.mxu0 0.0
        %2707 = vmatprep.subr.mxu0 0.0
        %2708 = vmatpush1.msra.mxu0 0.0
        %2709 = vmatprep.subr.mxu0 0.0
        %2710 = vmatpush1.msra.mxu0 0.0
        %2711 = vmatprep.subr.mxu0 0.0
        %2712 = vmatpush1.msra.mxu0 0.0
        %2713 = vmatprep.subr.mxu0 0.0
        %2714 = vmatpush1.msra.mxu0 0.0
        %2715 = vmatprep.subr.mxu0 0.0
        %2716 = vmatpush1.msra.mxu0 0.0
        %2717 = vmatprep.subr.mxu0 0.0
        %2718 = vmatpush1.msra.mxu0 0.0
        %2719 = vmatprep.subr.mxu0 0.0
        %2720 = vmatpush1.msra.mxu0 0.0
        %2721 = vmatprep.subr.mxu0 0.0
        %2722 = vmatpush1.msra.mxu0 0.0
        %2723 = vmatprep.subr.mxu0 0.0
        %2724 = vmatpush1.msra.mxu0 0.0
        %2725 = vmatprep.subr.mxu0 0.0
        %2726 = vmatpush1.msra.mxu0 0.0
        %2727 = vmatprep.subr.mxu0 0.0
        %2728 = vmatpush1.msra.mxu0 0.0
        %2729 = vmatprep.subr.mxu0 0.0
        %2730 = vmatpush1.msra.mxu0 0.0
        %2731 = vmatprep.subr.mxu0 0.0
        %2732 = vmatpush1.msra.mxu0 0.0
        %2733 = vmatprep.subr.mxu0 0.0
        %2734 = vmatpush1.msra.mxu0 0.0
        %2735 = vmatprep.subr.mxu0 0.0
        %2736 = vmatpush1.msra.mxu0 0.0
        %2737 = vmatprep.subr.mxu0 0.0
        %2738 = vmatpush1.msra.mxu0 0.0
        %2739 = vmatprep.subr.mxu0 0.0
        %2740 = vmatpush1.msra.mxu0 0.0
        %2741 = vmatprep.subr.mxu0 0.0
        %2742 = vmatpush1.msra.mxu0 0.0
        %2743 = vmatprep.subr.mxu0 0.0
        %2744 = vmatpush1.msra.mxu0 0.0
        %2745 = vmatprep.subr.mxu0 0.0
        %2746 = vmatpush1.msra.mxu0 0.0
        %2747 = vmatprep.subr.mxu0 0.0
        %2748 = vmatpush1.msra.mxu0 0.0
        %2749 = vmatprep.subr.mxu0 0.0
        %2750 = vmatpush1.msra.mxu0 0.0
        %2751 = vmatprep.subr.mxu0 0.0
        %2752 = vmatpush1.msra.mxu0 0.0
        %2753 = vmatprep.mubr.f32.mxu0 0.0
        %2754 = vmatmul.mubr.f32.gmra.mrb[0].mxu0 %v2681
        %v2755 = vpop.f32.mrb[0].mxu0
        %v2756 = vadd.f32 0.0, %v2755
        %v2757 = vpop.f32.mrb[0].mxu0
        %2758 = vmatprep.mubr.f32.mxu0 0.0
        %2759 = vmatmul.mubr.f32.gmra.mrb[0].mxu0 %v2684
        %v2760 = vpop.f32.mrb[0].mxu0
        %v2761 = vadd.f32 0.0, %v2760
        %v2762 = vpop.f32.mrb[0].mxu0
        %2763 = vdwg.mxu0
        %v2764 = vadd.f32 %v2677, %v2756
        %v2765 = vadd.f32 %v2678, %v2761
        %v2766 = vld [vmem:[#allocation13 + $0x14] sm:$0xf]
        %v2768 = vsel %vm740, %v1926, 0
        %v2771 = vsel %vm740, %v1931, 0
        %v2774 = vsel %vm2342, %v2766, 0
        %2776 = vmatprep.subr.mxu0 0.0
        %2777 = vmatpush1.msra.mxu0 %v2774
        %2778 = vmatprep.subr.mxu0 0.0
        %2779 = vmatpush1.msra.mxu0 0.0
        %2780 = vmatprep.subr.mxu0 0.0
        %2781 = vmatpush1.msra.mxu0 0.0
        %2782 = vmatprep.subr.mxu0 0.0
        %2783 = vmatpush1.msra.mxu0 0.0
        %2784 = vmatprep.subr.mxu0 0.0
        %2785 = vmatpush1.msra.mxu0 0.0
        %2786 = vmatprep.subr.mxu0 0.0
        %2787 = vmatpush1.msra.mxu0 0.0
        %2788 = vmatprep.subr.mxu0 0.0
        %2789 = vmatpush1.msra.mxu0 0.0
        %2790 = vmatprep.subr.mxu0 0.0
        %2791 = vmatpush1.msra.mxu0 0.0
        %2792 = vmatprep.subr.mxu0 0.0
        %2793 = vmatpush1.msra.mxu0 0.0
        %2794 = vmatprep.subr.mxu0 0.0
        %2795 = vmatpush1.msra.mxu0 0.0
        %2796 = vmatprep.subr.mxu0 0.0
        %2797 = vmatpush1.msra.mxu0 0.0
        %2798 = vmatprep.subr.mxu0 0.0
        %2799 = vmatpush1.msra.mxu0 0.0
        %2800 = vmatprep.subr.mxu0 0.0
        %2801 = vmatpush1.msra.mxu0 0.0
        %2802 = vmatprep.subr.mxu0 0.0
        %2803 = vmatpush1.msra.mxu0 0.0
        %2804 = vmatprep.subr.mxu0 0.0
        %2805 = vmatpush1.msra.mxu0 0.0
        %2806 = vmatprep.subr.mxu0 0.0
        %2807 = vmatpush1.msra.mxu0 0.0
        %2808 = vmatprep.subr.mxu0 0.0
        %2809 = vmatpush1.msra.mxu0 0.0
        %2810 = vmatprep.subr.mxu0 0.0
        %2811 = vmatpush1.msra.mxu0 0.0
        %2812 = vmatprep.subr.mxu0 0.0
        %2813 = vmatpush1.msra.mxu0 0.0
        %2814 = vmatprep.subr.mxu0 0.0
        %2815 = vmatpush1.msra.mxu0 0.0
        %2816 = vmatprep.subr.mxu0 0.0
        %2817 = vmatpush1.msra.mxu0 0.0
        %2818 = vmatprep.subr.mxu0 0.0
        %2819 = vmatpush1.msra.mxu0 0.0
        %2820 = vmatprep.subr.mxu0 0.0
        %2821 = vmatpush1.msra.mxu0 0.0
        %2822 = vmatprep.subr.mxu0 0.0
        %2823 = vmatpush1.msra.mxu0 0.0
        %2824 = vmatprep.subr.mxu0 0.0
        %2825 = vmatpush1.msra.mxu0 0.0
        %2826 = vmatprep.subr.mxu0 0.0
        %2827 = vmatpush1.msra.mxu0 0.0
        %2828 = vmatprep.subr.mxu0 0.0
        %2829 = vmatpush1.msra.mxu0 0.0
        %2830 = vmatprep.subr.mxu0 0.0
        %2831 = vmatpush1.msra.mxu0 0.0
        %2832 = vmatprep.subr.mxu0 0.0
        %2833 = vmatpush1.msra.mxu0 0.0
        %2834 = vmatprep.subr.mxu0 0.0
        %2835 = vmatpush1.msra.mxu0 0.0
        %2836 = vmatprep.subr.mxu0 0.0
        %2837 = vmatpush1.msra.mxu0 0.0
        %2838 = vmatprep.subr.mxu0 0.0
        %2839 = vmatpush1.msra.mxu0 0.0
        %2840 = vmatprep.mubr.f32.mxu0 0.0
        %2841 = vmatmul.mubr.f32.gmra.mrb[0].mxu0 %v2768
        %v2842 = vpop.f32.mrb[0].mxu0
        %v2843 = vadd.f32 0.0, %v2842
        %v2844 = vpop.f32.mrb[0].mxu0
        %2845 = vmatprep.mubr.f32.mxu0 0.0
        %2846 = vmatmul.mubr.f32.gmra.mrb[0].mxu0 %v2771
        %v2847 = vpop.f32.mrb[0].mxu0
        %v2848 = vadd.f32 0.0, %v2847
        %v2849 = vpop.f32.mrb[0].mxu0
        %2850 = vdwg.mxu0
        %v2851 = vadd.f32 %v2764, %v2843
        %v2852 = vadd.f32 %v2765, %v2848
        %v2853 = vld [vmem:[#allocation13 + $0x18] sm:$0xf]
        %v2855 = vsel %vm740, %v2126, 0
        %v2858 = vsel %vm740, %v2131, 0
        %v2861 = vsel %vm2342, %v2853, 0
        %2863 = vmatprep.subr.mxu0 0.0
        %2864 = vmatpush1.msra.mxu0 %v2861
        %2865 = vmatprep.subr.mxu0 0.0
        %2866 = vmatpush1.msra.mxu0 0.0
        %2867 = vmatprep.subr.mxu0 0.0
        %2868 = vmatpush1.msra.mxu0 0.0
        %2869 = vmatprep.subr.mxu0 0.0
        %2870 = vmatpush1.msra.mxu0 0.0
        %2871 = vmatprep.subr.mxu0 0.0
        %2872 = vmatpush1.msra.mxu0 0.0
        %2873 = vmatprep.subr.mxu0 0.0
        %2874 = vmatpush1.msra.mxu0 0.0
        %2875 = vmatprep.subr.mxu0 0.0
        %2876 = vmatpush1.msra.mxu0 0.0
        %2877 = vmatprep.subr.mxu0 0.0
        %2878 = vmatpush1.msra.mxu0 0.0
        %2879 = vmatprep.subr.mxu0 0.0
        %2880 = vmatpush1.msra.mxu0 0.0
        %2881 = vmatprep.subr.mxu0 0.0
        %2882 = vmatpush1.msra.mxu0 0.0
        %2883 = vmatprep.subr.mxu0 0.0
        %2884 = vmatpush1.msra.mxu0 0.0
        %2885 = vmatprep.subr.mxu0 0.0
        %2886 = vmatpush1.msra.mxu0 0.0
        %2887 = vmatprep.subr.mxu0 0.0
        %2888 = vmatpush1.msra.mxu0 0.0
        %2889 = vmatprep.subr.mxu0 0.0
        %2890 = vmatpush1.msra.mxu0 0.0
        %2891 = vmatprep.subr.mxu0 0.0
        %2892 = vmatpush1.msra.mxu0 0.0
        %2893 = vmatprep.subr.mxu0 0.0
        %2894 = vmatpush1.msra.mxu0 0.0
        %2895 = vmatprep.subr.mxu0 0.0
        %2896 = vmatpush1.msra.mxu0 0.0
        %2897 = vmatprep.subr.mxu0 0.0
        %2898 = vmatpush1.msra.mxu0 0.0
        %2899 = vmatprep.subr.mxu0 0.0
        %2900 = vmatpush1.msra.mxu0 0.0
        %2901 = vmatprep.subr.mxu0 0.0
        %2902 = vmatpush1.msra.mxu0 0.0
        %2903 = vmatprep.subr.mxu0 0.0
        %2904 = vmatpush1.msra.mxu0 0.0
        %2905 = vmatprep.subr.mxu0 0.0
        %2906 = vmatpush1.msra.mxu0 0.0
        %2907 = vmatprep.subr.mxu0 0.0
        %2908 = vmatpush1.msra.mxu0 0.0
        %2909 = vmatprep.subr.mxu0 0.0
        %2910 = vmatpush1.msra.mxu0 0.0
        %2911 = vmatprep.subr.mxu0 0.0
        %2912 = vmatpush1.msra.mxu0 0.0
        %2913 = vmatprep.subr.mxu0 0.0
        %2914 = vmatpush1.msra.mxu0 0.0
        %2915 = vmatprep.subr.mxu0 0.0
        %2916 = vmatpush1.msra.mxu0 0.0
        %2917 = vmatprep.subr.mxu0 0.0
        %2918 = vmatpush1.msra.mxu0 0.0
        %2919 = vmatprep.subr.mxu0 0.0
        %2920 = vmatpush1.msra.mxu0 0.0
        %2921 = vmatprep.subr.mxu0 0.0
        %2922 = vmatpush1.msra.mxu0 0.0
        %2923 = vmatprep.subr.mxu0 0.0
        %2924 = vmatpush1.msra.mxu0 0.0
        %2925 = vmatprep.subr.mxu0 0.0
        %2926 = vmatpush1.msra.mxu0 0.0
        %2927 = vmatprep.mubr.f32.mxu0 0.0
        %2928 = vmatmul.mubr.f32.gmra.mrb[0].mxu0 %v2855
        %v2929 = vpop.f32.mrb[0].mxu0
        %v2930 = vadd.f32 0.0, %v2929
        %v2931 = vpop.f32.mrb[0].mxu0
        %2932 = vmatprep.mubr.f32.mxu0 0.0
        %2933 = vmatmul.mubr.f32.gmra.mrb[0].mxu0 %v2858
        %v2934 = vpop.f32.mrb[0].mxu0
        %v2935 = vadd.f32 0.0, %v2934
        %v2936 = vpop.f32.mrb[0].mxu0
        %2937 = vdwg.mxu0
        %v2938 = vadd.f32 %v2851, %v2930
        %v2939 = vadd.f32 %v2852, %v2935
        %v2940 = vld [vmem:[#allocation13 + $0x1c] sm:$0xf]
        %v2942 = vsel %vm740, %v2326, 0
        %v2945 = vsel %vm740, %v2331, 0
        %v2948 = vsel %vm2342, %v2940, 0
        %2950 = vmatprep.subr.mxu0 0.0
        %2951 = vmatpush1.msra.mxu0 %v2948
        %2952 = vmatprep.subr.mxu0 0.0
        %2953 = vmatpush1.msra.mxu0 0.0
        %2954 = vmatprep.subr.mxu0 0.0
        %2955 = vmatpush1.msra.mxu0 0.0
        %2956 = vmatprep.subr.mxu0 0.0
        %2957 = vmatpush1.msra.mxu0 0.0
        %2958 = vmatprep.subr.mxu0 0.0
        %2959 = vmatpush1.msra.mxu0 0.0
        %2960 = vmatprep.subr.mxu0 0.0
        %2961 = vmatpush1.msra.mxu0 0.0
        %2962 = vmatprep.subr.mxu0 0.0
        %2963 = vmatpush1.msra.mxu0 0.0
        %2964 = vmatprep.subr.mxu0 0.0
        %2965 = vmatpush1.msra.mxu0 0.0
        %2966 = vmatprep.subr.mxu0 0.0
        %2967 = vmatpush1.msra.mxu0 0.0
        %2968 = vmatprep.subr.mxu0 0.0
        %2969 = vmatpush1.msra.mxu0 0.0
        %2970 = vmatprep.subr.mxu0 0.0
        %2971 = vmatpush1.msra.mxu0 0.0
        %2972 = vmatprep.subr.mxu0 0.0
        %2973 = vmatpush1.msra.mxu0 0.0
        %2974 = vmatprep.subr.mxu0 0.0
        %2975 = vmatpush1.msra.mxu0 0.0
        %2976 = vmatprep.subr.mxu0 0.0
        %2977 = vmatpush1.msra.mxu0 0.0
        %2978 = vmatprep.subr.mxu0 0.0
        %2979 = vmatpush1.msra.mxu0 0.0
        %2980 = vmatprep.subr.mxu0 0.0
        %2981 = vmatpush1.msra.mxu0 0.0
        %2982 = vmatprep.subr.mxu0 0.0
        %2983 = vmatpush1.msra.mxu0 0.0
        %2984 = vmatprep.subr.mxu0 0.0
        %2985 = vmatpush1.msra.mxu0 0.0
        %2986 = vmatprep.subr.mxu0 0.0
        %2987 = vmatpush1.msra.mxu0 0.0
        %2988 = vmatprep.subr.mxu0 0.0
        %2989 = vmatpush1.msra.mxu0 0.0
        %2990 = vmatprep.subr.mxu0 0.0
        %2991 = vmatpush1.msra.mxu0 0.0
        %2992 = vmatprep.subr.mxu0 0.0
        %2993 = vmatpush1.msra.mxu0 0.0
        %2994 = vmatprep.subr.mxu0 0.0
        %2995 = vmatpush1.msra.mxu0 0.0
        %2996 = vmatprep.subr.mxu0 0.0
        %2997 = vmatpush1.msra.mxu0 0.0
        %2998 = vmatprep.subr.mxu0 0.0
        %2999 = vmatpush1.msra.mxu0 0.0
        %3000 = vmatprep.subr.mxu0 0.0
        %3001 = vmatpush1.msra.mxu0 0.0
        %3002 = vmatprep.subr.mxu0 0.0
        %3003 = vmatpush1.msra.mxu0 0.0
        %3004 = vmatprep.subr.mxu0 0.0
        %3005 = vmatpush1.msra.mxu0 0.0
        %3006 = vmatprep.subr.mxu0 0.0
        %3007 = vmatpush1.msra.mxu0 0.0
        %3008 = vmatprep.subr.mxu0 0.0
        %3009 = vmatpush1.msra.mxu0 0.0
        %3010 = vmatprep.subr.mxu0 0.0
        %3011 = vmatpush1.msra.mxu0 0.0
        %3012 = vmatprep.subr.mxu0 0.0
        %3013 = vmatpush1.msra.mxu0 0.0
        %3014 = vmatprep.mubr.f32.mxu0 0.0
        %3015 = vmatmul.mubr.f32.gmra.mrb[0].mxu0 %v2942
        %v3016 = vpop.f32.mrb[0].mxu0
        %v3017 = vadd.f32 0.0, %v3016
        %v3018 = vpop.f32.mrb[0].mxu0
        %3019 = vmatprep.mubr.f32.mxu0 0.0
        %3020 = vmatmul.mubr.f32.gmra.mrb[0].mxu0 %v2945
        %v3021 = vpop.f32.mrb[0].mxu0
        %v3022 = vadd.f32 0.0, %v3021
        %v3023 = vpop.f32.mrb[0].mxu0
        %3024 = vdwg.mxu0
        %v3025 = vadd.f32 %v2938, %v3017
        %v3026 = vadd.f32 %v2939, %v3022
        %v3027 = vld [vmem:[%s7 + $0x3] sm:$0x1]
        %v3028 = vlaneseq
        %v3029 = vshrl.u32 %v3028, 7
        %v3030 = vsub.s32 0, %v3029
        %v3031 = vrot.slane %v3027, %v3030
        %v3032 = vadd.f32 %v3025, %v3031
        %v3033 = vadd.f32 %v3026, %v3031
        %3034 = vst.msk [vmem:[%s458] sm:$0xff] %vm474, %v3032
        %3035 = vst.msk [vmem:[%s458 + $0x8] sm:$0xff] %vm474, %v3033
        %s3036 = sand.u32 %s221, 1
        %s3037 = scalar_lea.sflag [#allocation4], %s3036
        %s3038 = sand.u32 %s221, 1
        %s3039 = smul.addr %s3038, 16
        %s3040 = scalar_lea.vmem [#allocation14], %s3039
        // Predicated region
        $region81: #{tpu_custom_call.1} parent=51 // pred_check
          %p3041 = pneg %p231
        $region82: #{tpu_custom_call.1} parent=51 // pred_check_branch
          %3043 = sbr.rel (%p3041) target = $region84
        $region83: #{tpu_custom_call.1} parent=51 // pred_region
          %s3044 = smul.u32 2, %s30
          %s3046 = ssub.s32 256, 256
          %3047 = vsyncadd %s3037, %s3046
          %s3048 = smul.addr %s3044, 128
          %s3049 = scalar_lea.hbm %s8, %s3048
          %s3050 = sshll.u32 %s3040, 4
          %s3051 = int_to_ptr.vmem [resolvable:$true] %s3050
          %3056 = dma.vmem_to_hbm [thread:$0]  %s3051, 256, %s3049, %s3037, 128, 128, 8
        $region84: #{tpu_custom_call.1} parent=51 // pred_fallthru
          _
      $region52: #{tpu_custom_call.1} parent=5 // pred_fallthru
        _
      %p3057 = scmp.le.s32.totalorder 2, %s25
      // Predicated region
      $region85: #{tpu_custom_call.1} parent=5 // pred_check
        %p3058 = pneg %p3057
      $region86: #{tpu_custom_call.1} parent=5 // pred_check_branch
        %3060 = sbr.rel (%p3058) target = $region88
      $region87: #{tpu_custom_call.1} parent=5 // pred_region
        %s3061 = ssub.s32 %s25, 2
        // Predicated region
        $region89: #{tpu_custom_call.1} parent=87 // pred_check
          %p3062 = pneg %p237
        $region90: #{tpu_custom_call.1} parent=87 // pred_check_branch
          %3064 = sbr.rel (%p3062) target = $region92
        $region91: #{tpu_custom_call.1} parent=87 // pred_region
          %s3065 = sand.u32 %s222, 1
          %s3066 = scalar_lea.sflag [#allocation4], %s3065
          %s3067 = sand.u32 %s222, 1
          %s3068 = smul.addr %s3067, 16
          %s3069 = scalar_lea.vmem [#allocation14], %s3068
          %3070 = dma.done %s3066, 256
        $region92: #{tpu_custom_call.1} parent=87 // pred_fallthru
          _
      $region88: #{tpu_custom_call.1} parent=5 // pred_fallthru
        _
    $region6: #{tpu_custom_call.1} parent=1 // loop_footer
      %s29 = sadd.s32 1, %s25
    $region7: #{tpu_custom_call.1} parent=1 // loop_footer_branch
      %24 = sbr.rel target = $region3
    $region8: #{tpu_custom_call.1} parent=1 // loop_exit
      _
    %3071 = vsyncpa [#allocation3], 1
    %s3072 = scalar_lea.sflag [#allocation3], 1
    %3073 = vsyncpa %s3072, 1
    %3074 = vsyncpa [#allocation6], 1
    %s3075 = scalar_lea.sflag [#allocation6], 1
    %3076 = vsyncpa %s3075, 1
    %3077 = vsyncpa [#allocation9], 1
    %3078 = vsyncpa [#allocation12], 1
    %3079 = vsyncpa [#allocation4], 1
    %s3080 = scalar_lea.sflag [#allocation4], 1
    %3081 = vsyncpa %s3080, 1

</llo_original>
